<compile_context>
chip_gen: v7x
topology: tpu7x:2x2x1
jax: 0.10.0
libtpu: 0.0.40
codegen_flags: <defaults>
</compile_context>

<pallas_src>
import functools

import numpy as np
import jax
import jax.numpy as jnp
from jax.experimental import pallas as pl
from jax.experimental.pallas import tpu as pltpu

LRELU_SLOPE = 0.1


def get_padding(kernel_size, dilation=1):
    return int((kernel_size * dilation - dilation) / 2)


def _ru(x, m):
    return ((x + m - 1) // m) * m


def _pick_tn(n):
    """Lane-dense N tile; keep >=2 grid blocks when N allows (megacore)."""
    if n <= 256:
        return 128
    return min(512, _ru((n + 1) // 2, 128))


# --------------------------------------------------------------------------------------
# Pallas kernel 1: single-pass GEMM (full K in one block) with fused bias, leaky_relu
# (pre on the activation block, post on the accumulator) and optional residual add.
# --------------------------------------------------------------------------------------
def _make_gemm_kernel(pre_slope, post_slope, has_res):
    def kernel(*refs):
        if has_res:
            a_ref, b_ref, r_ref, o_ref = refs
        else:
            a_ref, b_ref, o_ref = refs
            r_ref = None
        b = b_ref[...]
        if pre_slope is not None:
            b = jnp.where(b >= 0, b, pre_slope * b)
        acc = jnp.dot(a_ref[...], b, preferred_element_type=jnp.float32)
        if r_ref is not None:
            acc = acc + r_ref[...]
        if post_slope is not None:
            acc = jnp.where(acc >= 0, acc, post_slope * acc)
        o_ref[...] = acc.astype(o_ref.dtype)
    return kernel


def pallas_matmul(a, b, bias=None, residual=None, *, pre_slope=None, post_slope=None):
    """(M,K) @ (K,N) (+ bias[:,None]) (+ residual) with fused leaky_relu on input/output.

    Weights A and activations B are fed to the MXU in bf16; accumulation is f32.
    Bias is folded in via a bias column on A and a ones-row on B (leaky_relu(1)==1,
    leaky_relu(0)==0, so the pre-activation fusion stays exact).
    """
    M, K = a.shape
    K2, N = b.shape
    assert K == K2
    a = a.astype(jnp.bfloat16)
    b = b.astype(jnp.bfloat16)
    if bias is not None:
        a = jnp.concatenate([a, bias.astype(jnp.bfloat16)[:, None]], axis=1)
        b = jnp.concatenate([b, jnp.ones((1, N), jnp.bfloat16)], axis=0)
        K += 1

    Mp = _ru(M, 8)
    Kp = _ru(K, 16)                       # bf16 sublane packing
    tn = _pick_tn(N)
    Np = _ru(N, tn)
    ap = jnp.pad(a, ((0, Mp - M), (0, Kp - K)))
    bp = jnp.pad(b, ((0, Kp - K), (0, Np - N)))

    in_arrays = [ap, bp]
    in_specs = [
        pl.BlockSpec((Mp, Kp), lambda j: (0, 0)),     # weights resident across N tiles
        pl.BlockSpec((Kp, tn), lambda j: (0, j)),     # activation tile
    ]
    has_res = residual is not None
    if has_res:
        rp = jnp.pad(residual.astype(jnp.float32), ((0, Mp - M), (0, Np - N)))
        in_arrays.append(rp)
        in_specs.append(pl.BlockSpec((Mp, tn), lambda j: (0, j)))

    out = pl.pallas_call(
        _make_gemm_kernel(pre_slope, post_slope, has_res),
        out_shape=jax.ShapeDtypeStruct((Mp, Np), jnp.float32),
        grid=(Np // tn,),
        in_specs=in_specs,
        out_specs=pl.BlockSpec((Mp, tn), lambda j: (0, j)),
        compiler_params=pltpu.CompilerParams(dimension_semantics=("parallel",)),
    )(*in_arrays)
    return out[:M, :N]


# --------------------------------------------------------------------------------------
# Pallas kernel 2: fused iSTFT recombination + inverse-basis GEMM
#   frames = A_re @ (exp(xs)*cos(pi*sin(xp))) + A_im @ (exp(xs)*sin(pi*sin(xp)))
# --------------------------------------------------------------------------------------
def _istft_kernel(are_ref, aim_ref, xs_ref, xp_ref, o_ref):
    mag = jnp.exp(xs_ref[...])
    ph = jnp.pi * jnp.sin(xp_ref[...])
    re = mag * jnp.cos(ph)
    im = mag * jnp.sin(ph)
    o_ref[...] = (jnp.dot(are_ref[...], re, preferred_element_type=jnp.float32)
                  + jnp.dot(aim_ref[...], im, preferred_element_type=jnp.float32))


# --------------------------------------------------------------------------------------
# Conv1d / ConvTranspose1d on the Pallas GEMM.  Channel-first (C, B, T) activation
# layout so im2col needs no batch transpose and the GEMM output reshapes for free.
# --------------------------------------------------------------------------------------
def conv1d(x, w, b, *, stride=1, padding=0, dilation=1,
           pre_slope=None, post_slope=None, residual=None):
    # x: (Cin, B, T); w: (Cout, Cin, K); b: (Cout,); residual: (Cout, B, T_out) or None
    Cin, Bn, T = x.shape
    Cout, _, K = w.shape
    xb = x.astype(jnp.bfloat16)
    xp = jnp.pad(xb, ((0, 0), (0, 0), (padding, padding)))
    Tp = xp.shape[-1]
    T_out = (Tp - dilation * (K - 1) - 1) // stride + 1
    taps = [xp[:, :, kk * dilation: kk * dilation + (T_out - 1) * stride + 1: stride]
            for kk in range(K)]
    cols = jnp.stack(taps, axis=1)                                  # (Cin, K, B, T_out)
    bmat = cols.reshape(Cin * K, Bn * T_out)
    amat = w.reshape(Cout, Cin * K)
    rmat = None if residual is None else residual.reshape(Cout, Bn * T_out)
    out = pallas_matmul(amat, bmat, b, rmat, pre_slope=pre_slope, post_slope=post_slope)
    return out.reshape(Cout, Bn, T_out)


def conv_transpose1d(x, w, b, *, stride, padding, pre_slope=None, post_slope=None):
    # x: (Cin, B, T); w: (Cin, Cout, K)  (torch.nn.ConvTranspose1d layout)
    Cin, Bn, T = x.shape
    _, Cout, K = w.shape
    if stride > 1:
        xz = jnp.pad(x[..., None], ((0, 0), (0, 0), (0, 0), (0, stride - 1)))
        xz = xz.reshape(Cin, Bn, T * stride)[:, :, : (T - 1) * stride + 1]
    else:
        xz = x
    w2 = jnp.flip(w, axis=-1).transpose(1, 0, 2)                    # (Cout, Cin, K)
    # leaky_relu(0) == 0, so fusing the pre-activation after zero-stuffing is exact.
    return conv1d(xz, w2, b, stride=1, padding=K - 1 - padding, dilation=1,
                  pre_slope=pre_slope, post_slope=post_slope)


# --------------------------------------------------------------------------------------
# ResBlocks — pre/post leaky_relu and the residual add fused into the conv GEMMs.
# --------------------------------------------------------------------------------------
def resblock1_forward(p, x, kernel_size, dilation):
    for (w1, b1), (w2, b2), d in zip(p['convs1'], p['convs2'], dilation):
        xt = conv1d(x, w1, b1, padding=get_padding(kernel_size, d), dilation=d,
                    pre_slope=LRELU_SLOPE, post_slope=LRELU_SLOPE)
        x = conv1d(xt, w2, b2, padding=get_padding(kernel_size, 1), dilation=1,
                   residual=x)
    return x


def resblock2_forward(p, x, kernel_size, dilation):
    for (w, b), d in zip(p['convs'], dilation):
        x = conv1d(x, w, b, padding=get_padding(kernel_size, d), dilation=d,
                   pre_slope=LRELU_SLOPE, residual=x)
    return x


# --------------------------------------------------------------------------------------
# iSTFT (torch-stft style inverse, as used by MB-iSTFT-VITS) — direct basis GEMM + OLA
# --------------------------------------------------------------------------------------
def _hann_periodic(n):
    return 0.5 - 0.5 * np.cos(2.0 * np.pi * np.arange(n) / n)


def make_inverse_basis(n_fft, hop):
    scale = n_fft / float(hop)
    fourier_basis = np.fft.fft(np.eye(n_fft))
    cutoff = n_fft // 2 + 1
    fb = np.vstack([np.real(fourier_basis[:cutoff]),
                    np.imag(fourier_basis[:cutoff])])                # (n_fft+2, n_fft)
    inv = np.linalg.pinv(scale * fb).T                               # (n_fft+2, n_fft)
    inv = inv * _hann_periodic(n_fft)[None, :]
    return inv.astype(np.float32)


def _window_sumsquare(n_frames, hop, n_fft):
    n = n_fft + hop * (n_frames - 1)
    x = np.zeros(n, dtype=np.float32)
    wsq = _hann_periodic(n_fft).astype(np.float32) ** 2
    for i in range(n_frames):
        s = i * hop
        x[s:min(n, s + n_fft)] += wsq[: max(0, min(n_fft, n - s))]
    return x


def istft_pallas(xs_log, xph, inv_basis, n_fft, hop):
    # xs_log/xph: (cutoff, N, T) log-magnitude / raw-phase, channel-first.
    cutoff, Nb, T = xs_log.shape
    a_re = inv_basis[:cutoff, :].T.astype(jnp.float32)               # (n_fft, cutoff)
    a_im = inv_basis[cutoff:, :].T.astype(jnp.float32)
    xs2 = xs_log.reshape(cutoff, Nb * T).astype(jnp.float32)
    xp2 = xph.reshape(cutoff, Nb * T).astype(jnp.float32)

    M, Kc, Nn = n_fft, cutoff, Nb * T
    Mp, Kp = _ru(M, 8), _ru(Kc, 8)
    tn = _pick_tn(Nn)
    Np = _ru(Nn, tn)
    arep = jnp.pad(a_re, ((0, Mp - M), (0, Kp - Kc)))
    aimp = jnp.pad(a_im, ((0, Mp - M), (0, Kp - Kc)))
    xsp = jnp.pad(xs2, ((0, Kp - Kc), (0, Np - Nn)))
    xpp = jnp.pad(xp2, ((0, Kp - Kc), (0, Np - Nn)))

    frames_flat = pl.pallas_call(
        _istft_kernel,
        out_shape=jax.ShapeDtypeStruct((Mp, Np), jnp.float32),
        grid=(Np // tn,),
        in_specs=[pl.BlockSpec((Mp, Kp), lambda j: (0, 0)),
                  pl.BlockSpec((Mp, Kp), lambda j: (0, 0)),
                  pl.BlockSpec((Kp, tn), lambda j: (0, j)),
                  pl.BlockSpec((Kp, tn), lambda j: (0, j))],
        out_specs=pl.BlockSpec((Mp, tn), lambda j: (0, j)),
        compiler_params=pltpu.CompilerParams(dimension_semantics=("parallel",)),
    )(arep, aimp, xsp, xpp)

    frames = frames_flat[:M, :Nn].reshape(n_fft, Nb, T)              # (n_fft, N, T)

    # Overlap-add at hop spacing (hop divides n_fft in MB-iSTFT-VITS configs).
    assert n_fft % hop == 0
    nchunks = n_fft // hop
    n_slots = T + nchunks - 1
    L = n_slots * hop                                                # == (T-1)*hop + n_fft
    fr = frames.reshape(nchunks, hop, Nb, T)
    ola = jnp.zeros((Nb, n_slots, hop), jnp.float32)
    for r in range(nchunks):
        ola = ola.at[:, r:r + T, :].add(fr[r].transpose(1, 2, 0))
    y = ola.reshape(Nb, L)

    wsum = _window_sumsquare(T, hop, n_fft)
    tiny = np.finfo(np.float32).tiny
    denom = np.where(wsum > tiny, wsum, 1.0).astype(np.float32)
    y = y / jnp.asarray(denom)[None, :]
    y = y * (float(n_fft) / hop)
    y = y[:, n_fft // 2: -(n_fft // 2)]
    return y


# --------------------------------------------------------------------------------------
# Parameter init (deterministic, synthetic: normal(0, 0.01) weights, zero bias)
# --------------------------------------------------------------------------------------
def init_params(key, cfg):
    std = 0.01

    def nxt():
        nonlocal key
        key, sub = jax.random.split(key)
        return sub

    ic = cfg['initial_channel']
    uic = cfg['upsample_initial_channel']
    params = {}
    params['conv_pre'] = (std * jax.random.normal(nxt(), (uic, ic, 7), jnp.float32),
                          jnp.zeros((uic,), jnp.float32))
    ups = []
    for i, (u, k) in enumerate(zip(cfg['upsample_rates'], cfg['upsample_kernel_sizes'])):
        cin = uic // (2 ** i)
        cout = uic // (2 ** (i + 1))
        ups.append((std * jax.random.normal(nxt(), (cin, cout, k), jnp.float32),
                    jnp.zeros((cout,), jnp.float32)))
    params['ups'] = ups

    resblocks = []
    ch = uic
    for i in range(len(cfg['upsample_rates'])):
        ch = uic // (2 ** (i + 1))
        for ksz, dil in zip(cfg['resblock_kernel_sizes'], cfg['resblock_dilation_sizes']):
            if cfg['resblock'] == '1':
                rb = {
                    'convs1': [(std * jax.random.normal(nxt(), (ch, ch, ksz), jnp.float32),
                                jnp.zeros((ch,), jnp.float32)) for _ in dil],
                    'convs2': [(std * jax.random.normal(nxt(), (ch, ch, ksz), jnp.float32),
                                jnp.zeros((ch,), jnp.float32)) for _ in dil],
                }
            else:
                rb = {
                    'convs': [(std * jax.random.normal(nxt(), (ch, ch, ksz), jnp.float32),
                               jnp.zeros((ch,), jnp.float32)) for _ in dil],
                }
            resblocks.append(rb)
    params['resblocks'] = resblocks

    n_fft = cfg['gen_istft_n_fft']
    params['subband_conv_post'] = (
        std * jax.random.normal(nxt(), (cfg['subbands'] * (n_fft + 2), ch, 7), jnp.float32),
        jnp.zeros((cfg['subbands'] * (n_fft + 2),), jnp.float32))
    params['istft_inv_basis'] = jnp.asarray(
        make_inverse_basis(n_fft, cfg['gen_istft_hop_size']))
    return params


# --------------------------------------------------------------------------------------
# Forward pass (== Multiband_iSTFT_Generator.forward with g=None)
# --------------------------------------------------------------------------------------
def forward(params, x, cfg):
    nk = len(cfg['resblock_kernel_sizes'])
    x = x.transpose(1, 0, 2)                       # (B, Cin, T) -> (Cin, B, T), once
    x = conv1d(x, *params['conv_pre'], padding=3)
    for i, (u, k) in enumerate(zip(cfg['upsample_rates'], cfg['upsample_kernel_sizes'])):
        # F.leaky_relu(x, 0.1) fused as pre-activation of the upsampling transpose conv
        x = conv_transpose1d(x, *params['ups'][i], stride=u, padding=(k - u) // 2,
                             pre_slope=LRELU_SLOPE)
        xs = None
        for j in range(nk):
            rb = params['resblocks'][i * nk + j]
            ksz = cfg['resblock_kernel_sizes'][j]
            dil = cfg['resblock_dilation_sizes'][j]
            if cfg['resblock'] == '1':
                y = resblock1_forward(rb, x, ksz, dil)
            else:
                y = resblock2_forward(rb, x, ksz, dil)
            xs = y if xs is None else xs + y
        x = xs * (1.0 / nk)

    # F.leaky_relu(x) (default slope 0.01) fused as pre-activation of subband_conv_post;
    # ReflectionPad1d((1, 0)) commutes with the elementwise activation.
    x = jnp.concatenate([x[:, :, 1:2], x], axis=-1)
    x = conv1d(x, *params['subband_conv_post'], padding=3, pre_slope=0.01)

    Cc, Bn, T = x.shape
    sub = cfg['subbands']
    n_fft = cfg['gen_istft_n_fft']
    hop = cfg['gen_istft_hop_size']
    cutoff = n_fft // 2 + 1
    x4 = x.reshape(sub, Cc // sub, Bn, T)
    # -> (cutoff, B*sub, T) with N ordered (b, s), matching torch's reshape ordering
    xs_log = x4[:, :cutoff].transpose(1, 2, 0, 3).reshape(cutoff, Bn * sub, T)
    xph = x4[:, cutoff:].transpose(1, 2, 0, 3).reshape(cutoff, Bn * sub, T)

    # exp / pi*sin / cos / sin recombination is fused into the iSTFT basis GEMM kernel.
    y = istft_pallas(xs_log, xph, params['istft_inv_basis'], n_fft, hop)   # (B*sub, L)
    return y.reshape(Bn, sub, -1)


# --------------------------------------------------------------------------------------
if __name__ == "__main__":
    cfg = dict(
        initial_channel=8,
        resblock='1',
        resblock_kernel_sizes=[3, 5],
        resblock_dilation_sizes=[[1, 3, 5], [1, 3, 5]],
        upsample_rates=[4, 4],
        upsample_initial_channel=32,
        upsample_kernel_sizes=[8, 8],
        gen_istft_n_fft=16,
        gen_istft_hop_size=4,
        subbands=4,
        gin_channels=0,
    )
    key = jax.random.PRNGKey(0)
    pkey, xkey = jax.random.split(key)
    params = init_params(pkey, cfg)
    # x: (batch=2, initial_channel=8, frames=8)  -- PyTorch NCT layout
    x = jax.random.normal(xkey, (2, cfg['initial_channel'], 8), jnp.float32)

    fwd = jax.jit(functools.partial(forward, cfg=cfg))
    y = fwd(params, x)
    jax.block_until_ready(y)

    expected_len = 8 * 4 * 4 * cfg['gen_istft_hop_size']        # after window pad/trim
    assert y.shape == (2, cfg['subbands'], expected_len), y.shape
    assert bool(jnp.all(jnp.isfinite(y)))
    print("KERNEL_OK")
</pallas_src>

<mosaic_0001>
module attributes {stable_mosaic.version = 11 : i64} {
  func.func @kernel(%arg0: i32, %arg1: memref<32x64xbf16, #tpu.memory_space<vmem>>, %arg2: memref<64x128xbf16, #tpu.memory_space<vmem>>, %arg3: memref<32x128xf32, #tpu.memory_space<vmem>>) attributes {dimension_semantics = [#tpu.dimension_semantics<parallel>], iteration_bounds = array<i64: 1>, scalar_prefetch = 0 : i64, scratch_operands = 0 : i64, tpu.core_type = #tpu.core_type<tc>, window_params = [{pipeline_mode = #tpu.pipeline_mode<synchronous>, transform_indices = @transform_0, window_bounds = array<i64: 32, 64>}, {transform_indices = @transform_1, window_bounds = array<i64: 64, 128>}, {transform_indices = @transform_2, window_bounds = array<i64: 32, 128>}]} {
    %c0 = arith.constant 0 : index
    %c0_0 = arith.constant 0 : index
    %0 = vector.load %arg2[%c0, %c0_0] : memref<64x128xbf16, #tpu.memory_space<vmem>>, vector<64x128xbf16>
    %c0_1 = arith.constant 0 : index
    %c0_2 = arith.constant 0 : index
    %1 = vector.load %arg1[%c0_1, %c0_2] : memref<32x64xbf16, #tpu.memory_space<vmem>>, vector<32x64xbf16>
    %cst = arith.constant dense<0.000000e+00> : vector<32x128xf32>
    %2 = tpu.matmul %1, %0, %cst {dimension_numbers = #tpu.dot_dimension_numbers<[1], [0], [0], [1], [0, 0, 1, 1], [], []>} : vector<32x64xbf16>, vector<64x128xbf16>, vector<32x128xf32> -> vector<32x128xf32>
    %c0_3 = arith.constant 0 : index
    %c0_4 = arith.constant 0 : index
    %3 = vector.load %arg3[%c0_3, %c0_4] : memref<32x128xf32, #tpu.memory_space<vmem>>, vector<32x128xf32>
    tpu.vector_store %arg3[%c0_3, %c0_4], %2 {strides = array<i32>} : memref<32x128xf32, #tpu.memory_space<vmem>>, vector<32x128xf32>,
    return
  }
  func.func @transform_0(%arg0: i32) -> (i32, i32) {
    %c0_i32 = arith.constant 0 : i32
    %c0_i32_0 = arith.constant 0 : i32
    %c0_i32_1 = arith.constant 0 : i32
    return %c0_i32, %c0_i32_0 : i32, i32
  }
  func.func @transform_1(%arg0: i32) -> (i32, i32) {
    %c0_i32 = arith.constant 0 : i32
    %c0_i32_0 = arith.constant 0 : i32
    return %c0_i32, %arg0 : i32, i32
  }
  func.func @transform_2(%arg0: i32) -> (i32, i32) {
    %c0_i32 = arith.constant 0 : i32
    %c0_i32_0 = arith.constant 0 : i32
    return %c0_i32, %arg0 : i32, i32
  }
}

module attributes {stable_mosaic.version = 11 : i64} {
  func.func @kernel(%arg0: i32, %arg1: memref<16x272xbf16, #tpu.memory_space<vmem>>, %arg2: memref<272x128xbf16, #tpu.memory_space<vmem>>, %arg3: memref<16x128xf32, #tpu.memory_space<vmem>>) attributes {dimension_semantics = [#tpu.dimension_semantics<parallel>], iteration_bounds = array<i64: 1>, scalar_prefetch = 0 : i64, scratch_operands = 0 : i64, tpu.core_type = #tpu.core_type<tc>, window_params = [{pipeline_mode = #tpu.pipeline_mode<synchronous>, transform_indices = @transform_0, window_bounds = array<i64: 16, 272>}, {transform_indices = @transform_1, window_bounds = array<i64: 272, 128>}, {transform_indices = @transform_2, window_bounds = array<i64: 16, 128>}]} {
    %c0 = arith.constant 0 : index
    %c0_0 = arith.constant 0 : index
    %0 = vector.load %arg2[%c0, %c0_0] : memref<272x128xbf16, #tpu.memory_space<vmem>>, vector<272x128xbf16>
    %cst = arith.constant 0.000000e+00 : bf16
    %1 = vector.broadcast %cst : bf16 to vector<272x128xbf16>
    %2 = arith.cmpf oge, %0, %1 : vector<272x128xbf16>
    %cst_1 = arith.constant 1.000980e-01 : bf16
    %3 = vector.broadcast %cst_1 : bf16 to vector<272x128xbf16>
    %4 = arith.mulf %3, %0 : vector<272x128xbf16>
    %5 = arith.select %2, %0, %4 : vector<272x128xi1>, vector<272x128xbf16>
    %c0_2 = arith.constant 0 : index
    %c0_3 = arith.constant 0 : index
    %6 = vector.load %arg1[%c0_2, %c0_3] : memref<16x272xbf16, #tpu.memory_space<vmem>>, vector<16x272xbf16>
    %cst_4 = arith.constant dense<0.000000e+00> : vector<16x128xf32>
    %7 = tpu.matmul %6, %5, %cst_4 {dimension_numbers = #tpu.dot_dimension_numbers<[1], [0], [0], [1], [0, 0, 1, 1], [], []>} : vector<16x272xbf16>, vector<272x128xbf16>, vector<16x128xf32> -> vector<16x128xf32>
    %c0_5 = arith.constant 0 : index
    %c0_6 = arith.constant 0 : index
    %8 = vector.load %arg3[%c0_5, %c0_6] : memref<16x128xf32, #tpu.memory_space<vmem>>, vector<16x128xf32>
    tpu.vector_store %arg3[%c0_5, %c0_6], %7 {strides = array<i32>} : memref<16x128xf32, #tpu.memory_space<vmem>>, vector<16x128xf32>,
    return
  }
  func.func @transform_0(%arg0: i32) -> (i32, i32) {
    %c0_i32 = arith.constant 0 : i32
    %c0_i32_0 = arith.constant 0 : i32
    %c0_i32_1 = arith.constant 0 : i32
    return %c0_i32, %c0_i32_0 : i32, i32
  }
  func.func @transform_1(%arg0: i32) -> (i32, i32) {
    %c0_i32 = arith.constant 0 : i32
    %c0_i32_0 = arith.constant 0 : i32
    return %c0_i32, %arg0 : i32, i32
  }
  func.func @transform_2(%arg0: i32) -> (i32, i32) {
    %c0_i32 = arith.constant 0 : i32
    %c0_i32_0 = arith.constant 0 : i32
    return %c0_i32, %arg0 : i32, i32
  }
}

module attributes {stable_mosaic.version = 11 : i64} {
  func.func @kernel(%arg0: i32, %arg1: memref<16x64xbf16, #tpu.memory_space<vmem>>, %arg2: memref<64x128xbf16, #tpu.memory_space<vmem>>, %arg3: memref<16x128xf32, #tpu.memory_space<vmem>>) attributes {dimension_semantics = [#tpu.dimension_semantics<parallel>], iteration_bounds = array<i64: 1>, scalar_prefetch = 0 : i64, scratch_operands = 0 : i64, tpu.core_type = #tpu.core_type<tc>, window_params = [{pipeline_mode = #tpu.pipeline_mode<synchronous>, transform_indices = @transform_0, window_bounds = array<i64: 16, 64>}, {transform_indices = @transform_1, window_bounds = array<i64: 64, 128>}, {transform_indices = @transform_2, window_bounds = array<i64: 16, 128>}]} {
    %c0 = arith.constant 0 : index
    %c0_0 = arith.constant 0 : index
    %0 = vector.load %arg2[%c0, %c0_0] : memref<64x128xbf16, #tpu.memory_space<vmem>>, vector<64x128xbf16>
    %cst = arith.constant 0.000000e+00 : bf16
    %1 = vector.broadcast %cst : bf16 to vector<64x128xbf16>
    %2 = arith.cmpf oge, %0, %1 : vector<64x128xbf16>
    %cst_1 = arith.constant 1.000980e-01 : bf16
    %3 = vector.broadcast %cst_1 : bf16 to vector<64x128xbf16>
    %4 = arith.mulf %3, %0 : vector<64x128xbf16>
    %5 = arith.select %2, %0, %4 : vector<64x128xi1>, vector<64x128xbf16>
    %c0_2 = arith.constant 0 : index
    %c0_3 = arith.constant 0 : index
    %6 = vector.load %arg1[%c0_2, %c0_3] : memref<16x64xbf16, #tpu.memory_space<vmem>>, vector<16x64xbf16>
    %cst_4 = arith.constant dense<0.000000e+00> : vector<16x128xf32>
    %7 = tpu.matmul %6, %5, %cst_4 {dimension_numbers = #tpu.dot_dimension_numbers<[1], [0], [0], [1], [0, 0, 1, 1], [], []>} : vector<16x64xbf16>, vector<64x128xbf16>, vector<16x128xf32> -> vector<16x128xf32>
    %cst_5 = arith.constant 0.000000e+00 : f32
    %8 = vector.broadcast %cst_5 : f32 to vector<16x128xf32>
    %9 = arith.cmpf oge, %7, %8 : vector<16x128xf32>
    %cst_6 = arith.constant 1.000000e-01 : f32
    %10 = vector.broadcast %cst_6 : f32 to vector<16x128xf32>
    %11 = arith.mulf %10, %7 : vector<16x128xf32>
    %12 = arith.select %9, %7, %11 : vector<16x128xi1>, vector<16x128xf32>
    %c0_7 = arith.constant 0 : index
    %c0_8 = arith.constant 0 : index
    %13 = vector.load %arg3[%c0_7, %c0_8] : memref<16x128xf32, #tpu.memory_space<vmem>>, vector<16x128xf32>
    tpu.vector_store %arg3[%c0_7, %c0_8], %12 {strides = array<i32>} : memref<16x128xf32, #tpu.memory_space<vmem>>, vector<16x128xf32>,
    return
  }
  func.func @transform_0(%arg0: i32) -> (i32, i32) {
    %c0_i32 = arith.constant 0 : i32
    %c0_i32_0 = arith.constant 0 : i32
    %c0_i32_1 = arith.constant 0 : i32
    return %c0_i32, %c0_i32_0 : i32, i32
  }
  func.func @transform_1(%arg0: i32) -> (i32, i32) {
    %c0_i32 = arith.constant 0 : i32
    %c0_i32_0 = arith.constant 0 : i32
    return %c0_i32, %arg0 : i32, i32
  }
  func.func @transform_2(%arg0: i32) -> (i32, i32) {
    %c0_i32 = arith.constant 0 : i32
    %c0_i32_0 = arith.constant 0 : i32
    return %c0_i32, %arg0 : i32, i32
  }
}

module attributes {stable_mosaic.version = 11 : i64} {
  func.func @kernel(%arg0: i32, %arg1: memref<16x64xbf16, #tpu.memory_space<vmem>>, %arg2: memref<64x128xbf16, #tpu.memory_space<vmem>>, %arg3: memref<16x128xf32, #tpu.memory_space<vmem>>, %arg4: memref<16x128xf32, #tpu.memory_space<vmem>>) attributes {dimension_semantics = [#tpu.dimension_semantics<parallel>], iteration_bounds = array<i64: 1>, scalar_prefetch = 0 : i64, scratch_operands = 0 : i64, tpu.core_type = #tpu.core_type<tc>, window_params = [{pipeline_mode = #tpu.pipeline_mode<synchronous>, transform_indices = @transform_0, window_bounds = array<i64: 16, 64>}, {transform_indices = @transform_1, window_bounds = array<i64: 64, 128>}, {transform_indices = @transform_2, window_bounds = array<i64: 16, 128>}, {transform_indices = @transform_3, window_bounds = array<i64: 16, 128>}]} {
    %c0 = arith.constant 0 : index
    %c0_0 = arith.constant 0 : index
    %0 = vector.load %arg2[%c0, %c0_0] : memref<64x128xbf16, #tpu.memory_space<vmem>>, vector<64x128xbf16>
    %c0_1 = arith.constant 0 : index
    %c0_2 = arith.constant 0 : index
    %1 = vector.load %arg1[%c0_1, %c0_2] : memref<16x64xbf16, #tpu.memory_space<vmem>>, vector<16x64xbf16>
    %cst = arith.constant dense<0.000000e+00> : vector<16x128xf32>
    %2 = tpu.matmul %1, %0, %cst {dimension_numbers = #tpu.dot_dimension_numbers<[1], [0], [0], [1], [0, 0, 1, 1], [], []>} : vector<16x64xbf16>, vector<64x128xbf16>, vector<16x128xf32> -> vector<16x128xf32>
    %c0_3 = arith.constant 0 : index
    %c0_4 = arith.constant 0 : index
    %3 = vector.load %arg3[%c0_3, %c0_4] : memref<16x128xf32, #tpu.memory_space<vmem>>, vector<16x128xf32>
    %4 = arith.addf %2, %3 : vector<16x128xf32>
    %c0_5 = arith.constant 0 : index
    %c0_6 = arith.constant 0 : index
    %5 = vector.load %arg4[%c0_5, %c0_6] : memref<16x128xf32, #tpu.memory_space<vmem>>, vector<16x128xf32>
    tpu.vector_store %arg4[%c0_5, %c0_6], %4 {strides = array<i32>} : memref<16x128xf32, #tpu.memory_space<vmem>>, vector<16x128xf32>,
    return
  }
  func.func @transform_0(%arg0: i32) -> (i32, i32) {
    %c0_i32 = arith.constant 0 : i32
    %c0_i32_0 = arith.constant 0 : i32
    %c0_i32_1 = arith.constant 0 : i32
    return %c0_i32, %c0_i32_0 : i32, i32
  }
  func.func @transform_1(%arg0: i32) -> (i32, i32) {
    %c0_i32 = arith.constant 0 : i32
    %c0_i32_0 = arith.constant 0 : i32
    return %c0_i32, %arg0 : i32, i32
  }
  func.func @transform_2(%arg0: i32) -> (i32, i32) {
    %c0_i32 = arith.constant 0 : i32
    %c0_i32_0 = arith.constant 0 : i32
    return %c0_i32, %arg0 : i32, i32
  }
  func.func @transform_3(%arg0: i32) -> (i32, i32) {
    %c0_i32 = arith.constant 0 : i32
    %c0_i32_0 = arith.constant 0 : i32
    return %c0_i32, %arg0 : i32, i32
  }
}

module attributes {stable_mosaic.version = 11 : i64} {
  func.func @kernel(%arg0: i32, %arg1: memref<16x96xbf16, #tpu.memory_space<vmem>>, %arg2: memref<96x128xbf16, #tpu.memory_space<vmem>>, %arg3: memref<16x128xf32, #tpu.memory_space<vmem>>) attributes {dimension_semantics = [#tpu.dimension_semantics<parallel>], iteration_bounds = array<i64: 1>, scalar_prefetch = 0 : i64, scratch_operands = 0 : i64, tpu.core_type = #tpu.core_type<tc>, window_params = [{pipeline_mode = #tpu.pipeline_mode<synchronous>, transform_indices = @transform_0, window_bounds = array<i64: 16, 96>}, {transform_indices = @transform_1, window_bounds = array<i64: 96, 128>}, {transform_indices = @transform_2, window_bounds = array<i64: 16, 128>}]} {
    %c0 = arith.constant 0 : index
    %c0_0 = arith.constant 0 : index
    %0 = vector.load %arg2[%c0, %c0_0] : memref<96x128xbf16, #tpu.memory_space<vmem>>, vector<96x128xbf16>
    %cst = arith.constant 0.000000e+00 : bf16
    %1 = vector.broadcast %cst : bf16 to vector<96x128xbf16>
    %2 = arith.cmpf oge, %0, %1 : vector<96x128xbf16>
    %cst_1 = arith.constant 1.000980e-01 : bf16
    %3 = vector.broadcast %cst_1 : bf16 to vector<96x128xbf16>
    %4 = arith.mulf %3, %0 : vector<96x128xbf16>
    %5 = arith.select %2, %0, %4 : vector<96x128xi1>, vector<96x128xbf16>
    %c0_2 = arith.constant 0 : index
    %c0_3 = arith.constant 0 : index
    %6 = vector.load %arg1[%c0_2, %c0_3] : memref<16x96xbf16, #tpu.memory_space<vmem>>, vector<16x96xbf16>
    %cst_4 = arith.constant dense<0.000000e+00> : vector<16x128xf32>
    %7 = tpu.matmul %6, %5, %cst_4 {dimension_numbers = #tpu.dot_dimension_numbers<[1], [0], [0], [1], [0, 0, 1, 1], [], []>} : vector<16x96xbf16>, vector<96x128xbf16>, vector<16x128xf32> -> vector<16x128xf32>
    %cst_5 = arith.constant 0.000000e+00 : f32
    %8 = vector.broadcast %cst_5 : f32 to vector<16x128xf32>
    %9 = arith.cmpf oge, %7, %8 : vector<16x128xf32>
    %cst_6 = arith.constant 1.000000e-01 : f32
    %10 = vector.broadcast %cst_6 : f32 to vector<16x128xf32>
    %11 = arith.mulf %10, %7 : vector<16x128xf32>
    %12 = arith.select %9, %7, %11 : vector<16x128xi1>, vector<16x128xf32>
    %c0_7 = arith.constant 0 : index
    %c0_8 = arith.constant 0 : index
    %13 = vector.load %arg3[%c0_7, %c0_8] : memref<16x128xf32, #tpu.memory_space<vmem>>, vector<16x128xf32>
    tpu.vector_store %arg3[%c0_7, %c0_8], %12 {strides = array<i32>} : memref<16x128xf32, #tpu.memory_space<vmem>>, vector<16x128xf32>,
    return
  }
  func.func @transform_0(%arg0: i32) -> (i32, i32) {
    %c0_i32 = arith.constant 0 : i32
    %c0_i32_0 = arith.constant 0 : i32
    %c0_i32_1 = arith.constant 0 : i32
    return %c0_i32, %c0_i32_0 : i32, i32
  }
  func.func @transform_1(%arg0: i32) -> (i32, i32) {
    %c0_i32 = arith.constant 0 : i32
    %c0_i32_0 = arith.constant 0 : i32
    return %c0_i32, %arg0 : i32, i32
  }
  func.func @transform_2(%arg0: i32) -> (i32, i32) {
    %c0_i32 = arith.constant 0 : i32
    %c0_i32_0 = arith.constant 0 : i32
    return %c0_i32, %arg0 : i32, i32
  }
}

module attributes {stable_mosaic.version = 11 : i64} {
  func.func @kernel(%arg0: i32, %arg1: memref<16x96xbf16, #tpu.memory_space<vmem>>, %arg2: memref<96x128xbf16, #tpu.memory_space<vmem>>, %arg3: memref<16x128xf32, #tpu.memory_space<vmem>>, %arg4: memref<16x128xf32, #tpu.memory_space<vmem>>) attributes {dimension_semantics = [#tpu.dimension_semantics<parallel>], iteration_bounds = array<i64: 1>, scalar_prefetch = 0 : i64, scratch_operands = 0 : i64, tpu.core_type = #tpu.core_type<tc>, window_params = [{pipeline_mode = #tpu.pipeline_mode<synchronous>, transform_indices = @transform_0, window_bounds = array<i64: 16, 96>}, {transform_indices = @transform_1, window_bounds = array<i64: 96, 128>}, {transform_indices = @transform_2, window_bounds = array<i64: 16, 128>}, {transform_indices = @transform_3, window_bounds = array<i64: 16, 128>}]} {
    %c0 = arith.constant 0 : index
    %c0_0 = arith.constant 0 : index
    %0 = vector.load %arg2[%c0, %c0_0] : memref<96x128xbf16, #tpu.memory_space<vmem>>, vector<96x128xbf16>
    %c0_1 = arith.constant 0 : index
    %c0_2 = arith.constant 0 : index
    %1 = vector.load %arg1[%c0_1, %c0_2] : memref<16x96xbf16, #tpu.memory_space<vmem>>, vector<16x96xbf16>
    %cst = arith.constant dense<0.000000e+00> : vector<16x128xf32>
    %2 = tpu.matmul %1, %0, %cst {dimension_numbers = #tpu.dot_dimension_numbers<[1], [0], [0], [1], [0, 0, 1, 1], [], []>} : vector<16x96xbf16>, vector<96x128xbf16>, vector<16x128xf32> -> vector<16x128xf32>
    %c0_3 = arith.constant 0 : index
    %c0_4 = arith.constant 0 : index
    %3 = vector.load %arg3[%c0_3, %c0_4] : memref<16x128xf32, #tpu.memory_space<vmem>>, vector<16x128xf32>
    %4 = arith.addf %2, %3 : vector<16x128xf32>
    %c0_5 = arith.constant 0 : index
    %c0_6 = arith.constant 0 : index
    %5 = vector.load %arg4[%c0_5, %c0_6] : memref<16x128xf32, #tpu.memory_space<vmem>>, vector<16x128xf32>
    tpu.vector_store %arg4[%c0_5, %c0_6], %4 {strides = array<i32>} : memref<16x128xf32, #tpu.memory_space<vmem>>, vector<16x128xf32>,
    return
  }
  func.func @transform_0(%arg0: i32) -> (i32, i32) {
    %c0_i32 = arith.constant 0 : i32
    %c0_i32_0 = arith.constant 0 : i32
    %c0_i32_1 = arith.constant 0 : i32
    return %c0_i32, %c0_i32_0 : i32, i32
  }
  func.func @transform_1(%arg0: i32) -> (i32, i32) {
    %c0_i32 = arith.constant 0 : i32
    %c0_i32_0 = arith.constant 0 : i32
    return %c0_i32, %arg0 : i32, i32
  }
  func.func @transform_2(%arg0: i32) -> (i32, i32) {
    %c0_i32 = arith.constant 0 : i32
    %c0_i32_0 = arith.constant 0 : i32
    return %c0_i32, %arg0 : i32, i32
  }
  func.func @transform_3(%arg0: i32) -> (i32, i32) {
    %c0_i32 = arith.constant 0 : i32
    %c0_i32_0 = arith.constant 0 : i32
    return %c0_i32, %arg0 : i32, i32
  }
}

module attributes {stable_mosaic.version = 11 : i64} {
  func.func @kernel(%arg0: i32, %arg1: memref<8x144xbf16, #tpu.memory_space<vmem>>, %arg2: memref<144x128xbf16, #tpu.memory_space<vmem>>, %arg3: memref<8x128xf32, #tpu.memory_space<vmem>>) attributes {dimension_semantics = [#tpu.dimension_semantics<parallel>], iteration_bounds = array<i64: 2>, scalar_prefetch = 0 : i64, scratch_operands = 0 : i64, tpu.core_type = #tpu.core_type<tc>, window_params = [{pipeline_mode = #tpu.pipeline_mode<synchronous>, transform_indices = @transform_0, window_bounds = array<i64: 8, 144>}, {transform_indices = @transform_1, window_bounds = array<i64: 144, 128>}, {transform_indices = @transform_2, window_bounds = array<i64: 8, 128>}]} {
    %c0 = arith.constant 0 : index
    %c0_0 = arith.constant 0 : index
    %0 = vector.load %arg2[%c0, %c0_0] : memref<144x128xbf16, #tpu.memory_space<vmem>>, vector<144x128xbf16>
    %cst = arith.constant 0.000000e+00 : bf16
    %1 = vector.broadcast %cst : bf16 to vector<144x128xbf16>
    %2 = arith.cmpf oge, %0, %1 : vector<144x128xbf16>
    %cst_1 = arith.constant 1.000980e-01 : bf16
    %3 = vector.broadcast %cst_1 : bf16 to vector<144x128xbf16>
    %4 = arith.mulf %3, %0 : vector<144x128xbf16>
    %5 = arith.select %2, %0, %4 : vector<144x128xi1>, vector<144x128xbf16>
    %c0_2 = arith.constant 0 : index
    %c0_3 = arith.constant 0 : index
    %6 = vector.load %arg1[%c0_2, %c0_3] : memref<8x144xbf16, #tpu.memory_space<vmem>>, vector<8x144xbf16>
    %cst_4 = arith.constant dense<0.000000e+00> : vector<8x128xf32>
    %7 = tpu.matmul %6, %5, %cst_4 {dimension_numbers = #tpu.dot_dimension_numbers<[1], [0], [0], [1], [0, 0, 1, 1], [], []>} : vector<8x144xbf16>, vector<144x128xbf16>, vector<8x128xf32> -> vector<8x128xf32>
    %c0_5 = arith.constant 0 : index
    %c0_6 = arith.constant 0 : index
    %8 = vector.load %arg3[%c0_5, %c0_6] : memref<8x128xf32, #tpu.memory_space<vmem>>, vector<8x128xf32>
    tpu.vector_store %arg3[%c0_5, %c0_6], %7 {strides = array<i32>} : memref<8x128xf32, #tpu.memory_space<vmem>>, vector<8x128xf32>,
    return
  }
  func.func @transform_0(%arg0: i32) -> (i32, i32) {
    %c0_i32 = arith.constant 0 : i32
    %c0_i32_0 = arith.constant 0 : i32
    %c0_i32_1 = arith.constant 0 : i32
    return %c0_i32, %c0_i32_0 : i32, i32
  }
  func.func @transform_1(%arg0: i32) -> (i32, i32) {
    %c0_i32 = arith.constant 0 : i32
    %c0_i32_0 = arith.constant 0 : i32
    return %c0_i32, %arg0 : i32, i32
  }
  func.func @transform_2(%arg0: i32) -> (i32, i32) {
    %c0_i32 = arith.constant 0 : i32
    %c0_i32_0 = arith.constant 0 : i32
    return %c0_i32, %arg0 : i32, i32
  }
}

module attributes {stable_mosaic.version = 11 : i64} {
  func.func @kernel(%arg0: i32, %arg1: memref<8x48xbf16, #tpu.memory_space<vmem>>, %arg2: memref<48x128xbf16, #tpu.memory_space<vmem>>, %arg3: memref<8x128xf32, #tpu.memory_space<vmem>>) attributes {dimension_semantics = [#tpu.dimension_semantics<parallel>], iteration_bounds = array<i64: 2>, scalar_prefetch = 0 : i64, scratch_operands = 0 : i64, tpu.core_type = #tpu.core_type<tc>, window_params = [{pipeline_mode = #tpu.pipeline_mode<synchronous>, transform_indices = @transform_0, window_bounds = array<i64: 8, 48>}, {transform_indices = @transform_1, window_bounds = array<i64: 48, 128>}, {transform_indices = @transform_2, window_bounds = array<i64: 8, 128>}]} {
    %c0 = arith.constant 0 : index
    %c0_0 = arith.constant 0 : index
    %0 = vector.load %arg2[%c0, %c0_0] : memref<48x128xbf16, #tpu.memory_space<vmem>>, vector<48x128xbf16>
    %cst = arith.constant 0.000000e+00 : bf16
    %1 = vector.broadcast %cst : bf16 to vector<48x128xbf16>
    %2 = arith.cmpf oge, %0, %1 : vector<48x128xbf16>
    %cst_1 = arith.constant 1.000980e-01 : bf16
    %3 = vector.broadcast %cst_1 : bf16 to vector<48x128xbf16>
    %4 = arith.mulf %3, %0 : vector<48x128xbf16>
    %5 = arith.select %2, %0, %4 : vector<48x128xi1>, vector<48x128xbf16>
    %c0_2 = arith.constant 0 : index
    %c0_3 = arith.constant 0 : index
    %6 = vector.load %arg1[%c0_2, %c0_3] : memref<8x48xbf16, #tpu.memory_space<vmem>>, vector<8x48xbf16>
    %cst_4 = arith.constant dense<0.000000e+00> : vector<8x128xf32>
    %7 = tpu.matmul %6, %5, %cst_4 {dimension_numbers = #tpu.dot_dimension_numbers<[1], [0], [0], [1], [0, 0, 1, 1], [], []>} : vector<8x48xbf16>, vector<48x128xbf16>, vector<8x128xf32> -> vector<8x128xf32>
    %cst_5 = arith.constant 0.000000e+00 : f32
    %8 = vector.broadcast %cst_5 : f32 to vector<8x128xf32>
    %9 = arith.cmpf oge, %7, %8 : vector<8x128xf32>
    %cst_6 = arith.constant 1.000000e-01 : f32
    %10 = vector.broadcast %cst_6 : f32 to vector<8x128xf32>
    %11 = arith.mulf %10, %7 : vector<8x128xf32>
    %12 = arith.select %9, %7, %11 : vector<8x128xi1>, vector<8x128xf32>
    %c0_7 = arith.constant 0 : index
    %c0_8 = arith.constant 0 : index
    %13 = vector.load %arg3[%c0_7, %c0_8] : memref<8x128xf32, #tpu.memory_space<vmem>>, vector<8x128xf32>
    tpu.vector_store %arg3[%c0_7, %c0_8], %12 {strides = array<i32>} : memref<8x128xf32, #tpu.memory_space<vmem>>, vector<8x128xf32>,
    return
  }
  func.func @transform_0(%arg0: i32) -> (i32, i32) {
    %c0_i32 = arith.constant 0 : i32
    %c0_i32_0 = arith.constant 0 : i32
    %c0_i32_1 = arith.constant 0 : i32
    return %c0_i32, %c0_i32_0 : i32, i32
  }
  func.func @transform_1(%arg0: i32) -> (i32, i32) {
    %c0_i32 = arith.constant 0 : i32
    %c0_i32_0 = arith.constant 0 : i32
    return %c0_i32, %arg0 : i32, i32
  }
  func.func @transform_2(%arg0: i32) -> (i32, i32) {
    %c0_i32 = arith.constant 0 : i32
    %c0_i32_0 = arith.constant 0 : i32
    return %c0_i32, %arg0 : i32, i32
  }
}

module attributes {stable_mosaic.version = 11 : i64} {
  func.func @kernel(%arg0: i32, %arg1: memref<8x48xbf16, #tpu.memory_space<vmem>>, %arg2: memref<48x128xbf16, #tpu.memory_space<vmem>>, %arg3: memref<8x128xf32, #tpu.memory_space<vmem>>, %arg4: memref<8x128xf32, #tpu.memory_space<vmem>>) attributes {dimension_semantics = [#tpu.dimension_semantics<parallel>], iteration_bounds = array<i64: 2>, scalar_prefetch = 0 : i64, scratch_operands = 0 : i64, tpu.core_type = #tpu.core_type<tc>, window_params = [{pipeline_mode = #tpu.pipeline_mode<synchronous>, transform_indices = @transform_0, window_bounds = array<i64: 8, 48>}, {transform_indices = @transform_1, window_bounds = array<i64: 48, 128>}, {transform_indices = @transform_2, window_bounds = array<i64: 8, 128>}, {transform_indices = @transform_3, window_bounds = array<i64: 8, 128>}]} {
    %c0 = arith.constant 0 : index
    %c0_0 = arith.constant 0 : index
    %0 = vector.load %arg2[%c0, %c0_0] : memref<48x128xbf16, #tpu.memory_space<vmem>>, vector<48x128xbf16>
    %c0_1 = arith.constant 0 : index
    %c0_2 = arith.constant 0 : index
    %1 = vector.load %arg1[%c0_1, %c0_2] : memref<8x48xbf16, #tpu.memory_space<vmem>>, vector<8x48xbf16>
    %cst = arith.constant dense<0.000000e+00> : vector<8x128xf32>
    %2 = tpu.matmul %1, %0, %cst {dimension_numbers = #tpu.dot_dimension_numbers<[1], [0], [0], [1], [0, 0, 1, 1], [], []>} : vector<8x48xbf16>, vector<48x128xbf16>, vector<8x128xf32> -> vector<8x128xf32>
    %c0_3 = arith.constant 0 : index
    %c0_4 = arith.constant 0 : index
    %3 = vector.load %arg3[%c0_3, %c0_4] : memref<8x128xf32, #tpu.memory_space<vmem>>, vector<8x128xf32>
    %4 = arith.addf %2, %3 : vector<8x128xf32>
    %c0_5 = arith.constant 0 : index
    %c0_6 = arith.constant 0 : index
    %5 = vector.load %arg4[%c0_5, %c0_6] : memref<8x128xf32, #tpu.memory_space<vmem>>, vector<8x128xf32>
    tpu.vector_store %arg4[%c0_5, %c0_6], %4 {strides = array<i32>} : memref<8x128xf32, #tpu.memory_space<vmem>>, vector<8x128xf32>,
    return
  }
  func.func @transform_0(%arg0: i32) -> (i32, i32) {
    %c0_i32 = arith.constant 0 : i32
    %c0_i32_0 = arith.constant 0 : i32
    %c0_i32_1 = arith.constant 0 : i32
    return %c0_i32, %c0_i32_0 : i32, i32
  }
  func.func @transform_1(%arg0: i32) -> (i32, i32) {
    %c0_i32 = arith.constant 0 : i32
    %c0_i32_0 = arith.constant 0 : i32
    return %c0_i32, %arg0 : i32, i32
  }
  func.func @transform_2(%arg0: i32) -> (i32, i32) {
    %c0_i32 = arith.constant 0 : i32
    %c0_i32_0 = arith.constant 0 : i32
    return %c0_i32, %arg0 : i32, i32
  }
  func.func @transform_3(%arg0: i32) -> (i32, i32) {
    %c0_i32 = arith.constant 0 : i32
    %c0_i32_0 = arith.constant 0 : i32
    return %c0_i32, %arg0 : i32, i32
  }
}

module attributes {stable_mosaic.version = 11 : i64} {
  func.func @kernel(%arg0: i32, %arg1: memref<8x32xbf16, #tpu.memory_space<vmem>>, %arg2: memref<32x128xbf16, #tpu.memory_space<vmem>>, %arg3: memref<8x128xf32, #tpu.memory_space<vmem>>, %arg4: memref<8x128xf32, #tpu.memory_space<vmem>>) attributes {dimension_semantics = [#tpu.dimension_semantics<parallel>], iteration_bounds = array<i64: 2>, scalar_prefetch = 0 : i64, scratch_operands = 0 : i64, tpu.core_type = #tpu.core_type<tc>, window_params = [{pipeline_mode = #tpu.pipeline_mode<synchronous>, transform_indices = @transform_0, window_bounds = array<i64: 8, 32>}, {transform_indices = @transform_1, window_bounds = array<i64: 32, 128>}, {transform_indices = @transform_2, window_bounds = array<i64: 8, 128>}, {transform_indices = @transform_3, window_bounds = array<i64: 8, 128>}]} {
    %c0 = arith.constant 0 : index
    %c0_0 = arith.constant 0 : index
    %0 = vector.load %arg2[%c0, %c0_0] : memref<32x128xbf16, #tpu.memory_space<vmem>>, vector<32x128xbf16>
    %c0_1 = arith.constant 0 : index
    %c0_2 = arith.constant 0 : index
    %1 = vector.load %arg1[%c0_1, %c0_2] : memref<8x32xbf16, #tpu.memory_space<vmem>>, vector<8x32xbf16>
    %cst = arith.constant dense<0.000000e+00> : vector<8x128xf32>
    %2 = tpu.matmul %1, %0, %cst {dimension_numbers = #tpu.dot_dimension_numbers<[1], [0], [0], [1], [0, 0, 1, 1], [], []>} : vector<8x32xbf16>, vector<32x128xbf16>, vector<8x128xf32> -> vector<8x128xf32>
    %c0_3 = arith.constant 0 : index
    %c0_4 = arith.constant 0 : index
    %3 = vector.load %arg3[%c0_3, %c0_4] : memref<8x128xf32, #tpu.memory_space<vmem>>, vector<8x128xf32>
    %4 = arith.addf %2, %3 : vector<8x128xf32>
    %c0_5 = arith.constant 0 : index
    %c0_6 = arith.constant 0 : index
    %5 = vector.load %arg4[%c0_5, %c0_6] : memref<8x128xf32, #tpu.memory_space<vmem>>, vector<8x128xf32>
    tpu.vector_store %arg4[%c0_5, %c0_6], %4 {strides = array<i32>} : memref<8x128xf32, #tpu.memory_space<vmem>>, vector<8x128xf32>,
    return
  }
  func.func @transform_0(%arg0: i32) -> (i32, i32) {
    %c0_i32 = arith.constant 0 : i32
    %c0_i32_0 = arith.constant 0 : i32
    %c0_i32_1 = arith.constant 0 : i32
    return %c0_i32, %c0_i32_0 : i32, i32
  }
  func.func @transform_1(%arg0: i32) -> (i32, i32) {
    %c0_i32 = arith.constant 0 : i32
    %c0_i32_0 = arith.constant 0 : i32
    return %c0_i32, %arg0 : i32, i32
  }
  func.func @transform_2(%arg0: i32) -> (i32, i32) {
    %c0_i32 = arith.constant 0 : i32
    %c0_i32_0 = arith.constant 0 : i32
    return %c0_i32, %arg0 : i32, i32
  }
  func.func @transform_3(%arg0: i32) -> (i32, i32) {
    %c0_i32 = arith.constant 0 : i32
    %c0_i32_0 = arith.constant 0 : i32
    return %c0_i32, %arg0 : i32, i32
  }
}

module attributes {stable_mosaic.version = 11 : i64} {
  func.func @kernel(%arg0: i32, %arg1: memref<8x32xbf16, #tpu.memory_space<vmem>>, %arg2: memref<32x128xbf16, #tpu.memory_space<vmem>>, %arg3: memref<8x128xf32, #tpu.memory_space<vmem>>) attributes {dimension_semantics = [#tpu.dimension_semantics<parallel>], iteration_bounds = array<i64: 2>, scalar_prefetch = 0 : i64, scratch_operands = 0 : i64, tpu.core_type = #tpu.core_type<tc>, window_params = [{pipeline_mode = #tpu.pipeline_mode<synchronous>, transform_indices = @transform_0, window_bounds = array<i64: 8, 32>}, {transform_indices = @transform_1, window_bounds = array<i64: 32, 128>}, {transform_indices = @transform_2, window_bounds = array<i64: 8, 128>}]} {
    %c0 = arith.constant 0 : index
    %c0_0 = arith.constant 0 : index
    %0 = vector.load %arg2[%c0, %c0_0] : memref<32x128xbf16, #tpu.memory_space<vmem>>, vector<32x128xbf16>
    %cst = arith.constant 0.000000e+00 : bf16
    %1 = vector.broadcast %cst : bf16 to vector<32x128xbf16>
    %2 = arith.cmpf oge, %0, %1 : vector<32x128xbf16>
    %cst_1 = arith.constant 1.000980e-01 : bf16
    %3 = vector.broadcast %cst_1 : bf16 to vector<32x128xbf16>
    %4 = arith.mulf %3, %0 : vector<32x128xbf16>
    %5 = arith.select %2, %0, %4 : vector<32x128xi1>, vector<32x128xbf16>
    %c0_2 = arith.constant 0 : index
    %c0_3 = arith.constant 0 : index
    %6 = vector.load %arg1[%c0_2, %c0_3] : memref<8x32xbf16, #tpu.memory_space<vmem>>, vector<8x32xbf16>
    %cst_4 = arith.constant dense<0.000000e+00> : vector<8x128xf32>
    %7 = tpu.matmul %6, %5, %cst_4 {dimension_numbers = #tpu.dot_dimension_numbers<[1], [0], [0], [1], [0, 0, 1, 1], [], []>} : vector<8x32xbf16>, vector<32x128xbf16>, vector<8x128xf32> -> vector<8x128xf32>
    %cst_5 = arith.constant 0.000000e+00 : f32
    %8 = vector.broadcast %cst_5 : f32 to vector<8x128xf32>
    %9 = arith.cmpf oge, %7, %8 : vector<8x128xf32>
    %cst_6 = arith.constant 1.000000e-01 : f32
    %10 = vector.broadcast %cst_6 : f32 to vector<8x128xf32>
    %11 = arith.mulf %10, %7 : vector<8x128xf32>
    %12 = arith.select %9, %7, %11 : vector<8x128xi1>, vector<8x128xf32>
    %c0_7 = arith.constant 0 : index
    %c0_8 = arith.constant 0 : index
    %13 = vector.load %arg3[%c0_7, %c0_8] : memref<8x128xf32, #tpu.memory_space<vmem>>, vector<8x128xf32>
    tpu.vector_store %arg3[%c0_7, %c0_8], %12 {strides = array<i32>} : memref<8x128xf32, #tpu.memory_space<vmem>>, vector<8x128xf32>,
    return
  }
  func.func @transform_0(%arg0: i32) -> (i32, i32) {
    %c0_i32 = arith.constant 0 : i32
    %c0_i32_0 = arith.constant 0 : i32
    %c0_i32_1 = arith.constant 0 : i32
    return %c0_i32, %c0_i32_0 : i32, i32
  }
  func.func @transform_1(%arg0: i32) -> (i32, i32) {
    %c0_i32 = arith.constant 0 : i32
    %c0_i32_0 = arith.constant 0 : i32
    return %c0_i32, %arg0 : i32, i32
  }
  func.func @transform_2(%arg0: i32) -> (i32, i32) {
    %c0_i32 = arith.constant 0 : i32
    %c0_i32_0 = arith.constant 0 : i32
    return %c0_i32, %arg0 : i32, i32
  }
}

module attributes {stable_mosaic.version = 11 : i64} {
  func.func @kernel(%arg0: i32, %arg1: memref<72x64xbf16, #tpu.memory_space<vmem>>, %arg2: memref<64x256xbf16, #tpu.memory_space<vmem>>, %arg3: memref<72x256xf32, #tpu.memory_space<vmem>>) attributes {dimension_semantics = [#tpu.dimension_semantics<parallel>], iteration_bounds = array<i64: 2>, scalar_prefetch = 0 : i64, scratch_operands = 0 : i64, tpu.core_type = #tpu.core_type<tc>, window_params = [{pipeline_mode = #tpu.pipeline_mode<synchronous>, transform_indices = @transform_0, window_bounds = array<i64: 72, 64>}, {transform_indices = @transform_1, window_bounds = array<i64: 64, 256>}, {transform_indices = @transform_2, window_bounds = array<i64: 72, 256>}]} {
    %c0 = arith.constant 0 : index
    %c0_0 = arith.constant 0 : index
    %0 = vector.load %arg2[%c0, %c0_0] : memref<64x256xbf16, #tpu.memory_space<vmem>>, vector<64x256xbf16>
    %cst = arith.constant 0.000000e+00 : bf16
    %1 = vector.broadcast %cst : bf16 to vector<64x256xbf16>
    %2 = arith.cmpf oge, %0, %1 : vector<64x256xbf16>
    %cst_1 = arith.constant 1.000980e-02 : bf16
    %3 = vector.broadcast %cst_1 : bf16 to vector<64x256xbf16>
    %4 = arith.mulf %3, %0 : vector<64x256xbf16>
    %5 = arith.select %2, %0, %4 : vector<64x256xi1>, vector<64x256xbf16>
    %c0_2 = arith.constant 0 : index
    %c0_3 = arith.constant 0 : index
    %6 = vector.load %arg1[%c0_2, %c0_3] : memref<72x64xbf16, #tpu.memory_space<vmem>>, vector<72x64xbf16>
    %cst_4 = arith.constant dense<0.000000e+00> : vector<72x256xf32>
    %7 = tpu.matmul %6, %5, %cst_4 {dimension_numbers = #tpu.dot_dimension_numbers<[1], [0], [0], [1], [0, 0, 1, 1], [], []>} : vector<72x64xbf16>, vector<64x256xbf16>, vector<72x256xf32> -> vector<72x256xf32>
    %c0_5 = arith.constant 0 : index
    %c0_6 = arith.constant 0 : index
    %8 = vector.load %arg3[%c0_5, %c0_6] : memref<72x256xf32, #tpu.memory_space<vmem>>, vector<72x256xf32>
    tpu.vector_store %arg3[%c0_5, %c0_6], %7 {strides = array<i32>} : memref<72x256xf32, #tpu.memory_space<vmem>>, vector<72x256xf32>,
    return
  }
  func.func @transform_0(%arg0: i32) -> (i32, i32) {
    %c0_i32 = arith.constant 0 : i32
    %c0_i32_0 = arith.constant 0 : i32
    %c0_i32_1 = arith.constant 0 : i32
    return %c0_i32, %c0_i32_0 : i32, i32
  }
  func.func @transform_1(%arg0: i32) -> (i32, i32) {
    %c0_i32 = arith.constant 0 : i32
    %c0_i32_0 = arith.constant 0 : i32
    return %c0_i32, %arg0 : i32, i32
  }
  func.func @transform_2(%arg0: i32) -> (i32, i32) {
    %c0_i32 = arith.constant 0 : i32
    %c0_i32_0 = arith.constant 0 : i32
    return %c0_i32, %arg0 : i32, i32
  }
}

module attributes {stable_mosaic.version = 11 : i64} {
  func.func @_istft_kernel(%arg0: i32, %arg1: memref<16x16xf32, #tpu.memory_space<vmem>>, %arg2: memref<16x16xf32, #tpu.memory_space<vmem>>, %arg3: memref<16x512xf32, #tpu.memory_space<vmem>>, %arg4: memref<16x512xf32, #tpu.memory_space<vmem>>, %arg5: memref<16x512xf32, #tpu.memory_space<vmem>>) attributes {dimension_semantics = [#tpu.dimension_semantics<parallel>], iteration_bounds = array<i64: 3>, scalar_prefetch = 0 : i64, scratch_operands = 0 : i64, tpu.core_type = #tpu.core_type<tc>, window_params = [{pipeline_mode = #tpu.pipeline_mode<synchronous>, transform_indices = @transform_0, window_bounds = array<i64: 16, 16>}, {pipeline_mode = #tpu.pipeline_mode<synchronous>, transform_indices = @transform_1, window_bounds = array<i64: 16, 16>}, {transform_indices = @transform_2, window_bounds = array<i64: 16, 512>}, {transform_indices = @transform_3, window_bounds = array<i64: 16, 512>}, {transform_indices = @transform_4, window_bounds = array<i64: 16, 512>}]} {
    %c0 = arith.constant 0 : index
    %c0_0 = arith.constant 0 : index
    %0 = vector.load %arg3[%c0, %c0_0] : memref<16x512xf32, #tpu.memory_space<vmem>>, vector<16x512xf32>
    %1 = math.exp %0 : vector<16x512xf32>
    %c0_1 = arith.constant 0 : index
    %c0_2 = arith.constant 0 : index
    %2 = vector.load %arg4[%c0_1, %c0_2] : memref<16x512xf32, #tpu.memory_space<vmem>>, vector<16x512xf32>
    %3 = math.sin %2 : vector<16x512xf32>
    %cst = arith.constant 3.14159274 : f32
    %4 = vector.broadcast %cst : f32 to vector<16x512xf32>
    %5 = arith.mulf %4, %3 : vector<16x512xf32>
    %6 = math.cos %5 : vector<16x512xf32>
    %7 = arith.mulf %1, %6 : vector<16x512xf32>
    %8 = math.sin %5 : vector<16x512xf32>
    %9 = arith.mulf %1, %8 : vector<16x512xf32>
    %c0_3 = arith.constant 0 : index
    %c0_4 = arith.constant 0 : index
    %10 = vector.load %arg1[%c0_3, %c0_4] : memref<16x16xf32, #tpu.memory_space<vmem>>, vector<16x16xf32>
    %cst_5 = arith.constant dense<0.000000e+00> : vector<16x512xf32>
    %11 = tpu.matmul %10, %7, %cst_5 {dimension_numbers = #tpu.dot_dimension_numbers<[1], [0], [0], [1], [0, 0, 1, 1], [], []>} : vector<16x16xf32>, vector<16x512xf32>, vector<16x512xf32> -> vector<16x512xf32>
    %c0_6 = arith.constant 0 : index
    %c0_7 = arith.constant 0 : index
    %12 = vector.load %arg2[%c0_6, %c0_7] : memref<16x16xf32, #tpu.memory_space<vmem>>, vector<16x16xf32>
    %cst_8 = arith.constant dense<0.000000e+00> : vector<16x512xf32>
    %13 = tpu.matmul %12, %9, %cst_8 {dimension_numbers = #tpu.dot_dimension_numbers<[1], [0], [0], [1], [0, 0, 1, 1], [], []>} : vector<16x16xf32>, vector<16x512xf32>, vector<16x512xf32> -> vector<16x512xf32>
    %14 = arith.addf %11, %13 : vector<16x512xf32>
    %c0_9 = arith.constant 0 : index
    %c0_10 = arith.constant 0 : index
    %15 = vector.load %arg5[%c0_9, %c0_10] : memref<16x512xf32, #tpu.memory_space<vmem>>, vector<16x512xf32>
    tpu.vector_store %arg5[%c0_9, %c0_10], %14 {strides = array<i32>} : memref<16x512xf32, #tpu.memory_space<vmem>>, vector<16x512xf32>,
    return
  }
  func.func @transform_0(%arg0: i32) -> (i32, i32) {
    %c0_i32 = arith.constant 0 : i32
    %c0_i32_0 = arith.constant 0 : i32
    %c0_i32_1 = arith.constant 0 : i32
    return %c0_i32, %c0_i32_0 : i32, i32
  }
  func.func @transform_1(%arg0: i32) -> (i32, i32) {
    %c0_i32 = arith.constant 0 : i32
    %c0_i32_0 = arith.constant 0 : i32
    %c0_i32_1 = arith.constant 0 : i32
    return %c0_i32, %c0_i32_0 : i32, i32
  }
  func.func @transform_2(%arg0: i32) -> (i32, i32) {
    %c0_i32 = arith.constant 0 : i32
    %c0_i32_0 = arith.constant 0 : i32
    return %c0_i32, %arg0 : i32, i32
  }
  func.func @transform_3(%arg0: i32) -> (i32, i32) {
    %c0_i32 = arith.constant 0 : i32
    %c0_i32_0 = arith.constant 0 : i32
    return %c0_i32, %arg0 : i32, i32
  }
  func.func @transform_4(%arg0: i32) -> (i32, i32) {
    %c0_i32 = arith.constant 0 : i32
    %c0_i32_0 = arith.constant 0 : i32
    return %c0_i32, %arg0 : i32, i32
  }
}

</mosaic_0001>

<llo_original>
// kernel: forward.29
$region0: #{forward.29}
  #allocation0 [shape = 'u32[]', space=smem, size = 0x4, offset = 0x4, fixed_abs, tag = 'smem constant byte address 0x4 - core index']
  #allocation1 [shape = 'u32[144,128]{1,0:T(1,128)}', space=vmem, size = 0x12000, scoped, tag = 'internal scratch']
  %s0 = inlined_call_operand.vmem [shape: bf16[32,64], index: 0, kind: input, shape index: {}]
  %s1 = inlined_call_operand.vmem [shape: bf16[64,128], index: 1, kind: input, shape index: {}]
  %s2 = inlined_call_operand.vmem [shape: f32[32,128], index: 2, kind: output, shape index: {}]
  %s3 = sld [smem:[#allocation0]]
  $region18: #{forward.29} parent=0
    _
  %s5 = ssub.s32 1, %s3
  %s6 = scalar_select 0, %s5, %s3
  // Predicated region
  $region2: #{forward.29} parent=0 // pred_check
    _
  $region3: #{forward.29} parent=0 // pred_check_branch
    %8 = sbr.rel (0) target = $region5
  $region4: #{forward.29} parent=0 // pred_region
    _
  $region5: #{forward.29} parent=0 // pred_fallthru
    _
  // Predicated region
  $region6: #{forward.29} parent=0 // pred_check
    _
  $region7: #{forward.29} parent=0 // pred_check_branch
    %10 = sbr.rel (0) target = $region9
  $region8: #{forward.29} parent=0 // pred_region
    _
  $region9: #{forward.29} parent=0 // pred_fallthru
    _
  %v12 = vld [vmem:[%s1] sm:$0xf]
  %v13 = vld [vmem:[%s1 + $0x4] sm:$0xf]
  %v14 = vld [vmem:[%s1 + $0x8] sm:$0xf]
  %v15 = vld [vmem:[%s1 + $0xc] sm:$0xf]
  %v16 = vld [vmem:[%s1 + $0x10] sm:$0xf]
  %v17 = vld [vmem:[%s1 + $0x14] sm:$0xf]
  %v18 = vld [vmem:[%s1 + $0x18] sm:$0xf]
  %v19 = vld [vmem:[%s1 + $0x1c] sm:$0xf]
  %v20 = vld [vmem:[%s0] sm:$0xf]
  %v21 = vld [vmem:[%s0 + $0x4] sm:$0xf]
  %v22 = vld [vmem:[%s0 + $0x8] sm:$0xf]
  %v23 = vld [vmem:[%s0 + $0xc] sm:$0xf]
  %v28 = vunpack.c.l.b16 %v20
  %v29 = vunpack.c.l.b16 %v21
  %v30 = vunpack.c.l.b16 %v22
  %v31 = vunpack.c.l.b16 %v23
  %v32 = vpack.c.b16 %v29, %v28
  %v33 = vpack.c.b16 %v31, %v30
  %v42 = vunpack.c.l.b16 %v12
  %v43 = vunpack.c.l.b16 %v13
  %v44 = vunpack.c.l.b16 %v14
  %v45 = vunpack.c.l.b16 %v15
  %v46 = vunpack.c.l.b16 %v16
  %v47 = vunpack.c.l.b16 %v17
  %v48 = vunpack.c.l.b16 %v18
  %v49 = vunpack.c.l.b16 %v19
  %v50 = vpack.c.b16 %v43, %v42
  %v51 = vpack.c.b16 %v45, %v44
  %v52 = vpack.c.b16 %v47, %v46
  %v53 = vpack.c.b16 %v49, %v48
  %vm58 = vcmask 523264
  %v60 = vsel %vm58, %v32, 0
  %v63 = vsel %vm58, %v33, 0
  %65 = vmatprep.subr.bf16.mxu0 0
  %66 = vmatpush1.bf16.msra.mxu0 %v50
  %67 = vmatprep.subr.bf16.mxu0 0
  %68 = vmatpush1.bf16.msra.mxu0 %v51
  %69 = vmatprep.subr.bf16.mxu0 0
  %70 = vmatpush1.bf16.msra.mxu0 %v52
  %71 = vmatprep.subr.bf16.mxu0 0
  %72 = vmatpush1.bf16.msra.mxu0 %v53
  %73 = vmatprep.subr.bf16.mxu0 0
  %74 = vmatpush1.bf16.msra.mxu0 0
  %75 = vmatprep.subr.bf16.mxu0 0
  %76 = vmatpush1.bf16.msra.mxu0 0
  %77 = vmatprep.subr.bf16.mxu0 0
  %78 = vmatpush1.bf16.msra.mxu0 0
  %79 = vmatprep.subr.bf16.mxu0 0
  %80 = vmatpush1.bf16.msra.mxu0 0
  %81 = vmatprep.subr.bf16.mxu0 0
  %82 = vmatpush1.bf16.msra.mxu0 0
  %83 = vmatprep.subr.bf16.mxu0 0
  %84 = vmatpush1.bf16.msra.mxu0 0
  %85 = vmatprep.subr.bf16.mxu0 0
  %86 = vmatpush1.bf16.msra.mxu0 0
  %87 = vmatprep.subr.bf16.mxu0 0
  %88 = vmatpush1.bf16.msra.mxu0 0
  %89 = vmatprep.subr.bf16.mxu0 0
  %90 = vmatpush1.bf16.msra.mxu0 0
  %91 = vmatprep.subr.bf16.mxu0 0
  %92 = vmatpush1.bf16.msra.mxu0 0
  %93 = vmatprep.subr.bf16.mxu0 0
  %94 = vmatpush1.bf16.msra.mxu0 0
  %95 = vmatprep.subr.bf16.mxu0 0
  %96 = vmatpush1.bf16.msra.mxu0 0
  %97 = vmatprep.mubr.bf16.mxu0 0
  %98 = vmatmul.mubr.bf16.gmra.mrb[0].mxu0 %v60
  %v99 = vpop.f32.mrb[0].mxu0
  %v100 = vadd.f32 0.0, %v99
  %v101 = vpop.f32.mrb[0].mxu0
  %v102 = vpop.f32.mrb[0].mxu0
  %v103 = vadd.f32 0.0, %v102
  %v104 = vpop.f32.mrb[0].mxu0
  %105 = vmatprep.mubr.bf16.mxu0 0
  %106 = vmatmul.mubr.bf16.gmra.mrb[0].mxu0 %v63
  %v107 = vpop.f32.mrb[0].mxu0
  %v108 = vadd.f32 0.0, %v107
  %v109 = vpop.f32.mrb[0].mxu0
  %v110 = vpop.f32.mrb[0].mxu0
  %v111 = vadd.f32 0.0, %v110
  %v112 = vpop.f32.mrb[0].mxu0
  %113 = vdwg.mxu0
  %114 = vst [vmem:[%s2] sm:$0xff] %v100
  %115 = vst [vmem:[%s2 + $0x8] sm:$0xff] %v103
  %116 = vst [vmem:[%s2 + $0x10] sm:$0xff] %v108
  %117 = vst [vmem:[%s2 + $0x18] sm:$0xff] %v111
  // Predicated region
  $region10: #{forward.29} parent=0 // pred_check
    _
  $region11: #{forward.29} parent=0 // pred_check_branch
    %119 = sbr.rel (0) target = $region13
  $region12: #{forward.29} parent=0 // pred_region
    _
  $region13: #{forward.29} parent=0 // pred_fallthru
    _
  // Predicated region
  $region14: #{forward.29} parent=0 // pred_check
    _
  $region15: #{forward.29} parent=0 // pred_check_branch
    %121 = sbr.rel (0) target = $region17
  $region16: #{forward.29} parent=0 // pred_region
    _
  $region17: #{forward.29} parent=0 // pred_fallthru
    _

// kernel: forward.30
$region0: #{forward.30}
  #allocation0 [shape = 'u32[]', space=smem, size = 0x4, offset = 0x4, fixed_abs, tag = 'smem constant byte address 0x4 - core index']
  #allocation1 [shape = 'u32[144,128]{1,0:T(1,128)}', space=vmem, size = 0x12000, scoped, tag = 'internal scratch']
  %s0 = inlined_call_operand.vmem [shape: bf16[16,272], index: 0, kind: input, shape index: {}]
  %s1 = inlined_call_operand.vmem [shape: bf16[272,128], index: 1, kind: input, shape index: {}]
  %s2 = inlined_call_operand.vmem [shape: f32[16,128], index: 2, kind: output, shape index: {}]
  %s3 = sld [smem:[#allocation0]]
  $region18: #{forward.30} parent=0
    _
  %s5 = ssub.s32 1, %s3
  %s6 = scalar_select 0, %s5, %s3
  // Predicated region
  $region2: #{forward.30} parent=0 // pred_check
    _
  $region3: #{forward.30} parent=0 // pred_check_branch
    %8 = sbr.rel (0) target = $region5
  $region4: #{forward.30} parent=0 // pred_region
    _
  $region5: #{forward.30} parent=0 // pred_fallthru
    _
  // Predicated region
  $region6: #{forward.30} parent=0 // pred_check
    _
  $region7: #{forward.30} parent=0 // pred_check_branch
    %10 = sbr.rel (0) target = $region9
  $region8: #{forward.30} parent=0 // pred_region
    _
  $region9: #{forward.30} parent=0 // pred_fallthru
    _
  %v13 = vld [vmem:[%s1] sm:$0xf]
  %v14 = vld [vmem:[%s1 + $0x4] sm:$0xf]
  %v15 = vld [vmem:[%s1 + $0x8] sm:$0xf]
  %v16 = vld [vmem:[%s1 + $0xc] sm:$0xf]
  %v17 = vld [vmem:[%s1 + $0x10] sm:$0xf]
  %v18 = vld [vmem:[%s1 + $0x14] sm:$0xf]
  %v19 = vld [vmem:[%s1 + $0x18] sm:$0xf]
  %v20 = vld [vmem:[%s1 + $0x1c] sm:$0xf]
  %v21 = vld [vmem:[%s1 + $0x20] sm:$0xf]
  %v22 = vld [vmem:[%s1 + $0x24] sm:$0xf]
  %v23 = vld [vmem:[%s1 + $0x28] sm:$0xf]
  %v24 = vld [vmem:[%s1 + $0x2c] sm:$0xf]
  %v25 = vld [vmem:[%s1 + $0x30] sm:$0xf]
  %v26 = vld [vmem:[%s1 + $0x34] sm:$0xf]
  %v27 = vld [vmem:[%s1 + $0x38] sm:$0xf]
  %v28 = vld [vmem:[%s1 + $0x3c] sm:$0xf]
  %v29 = vld [vmem:[%s1 + $0x40] sm:$0xf]
  %v30 = vld [vmem:[%s1 + $0x44] sm:$0xf]
  %v31 = vld [vmem:[%s1 + $0x48] sm:$0xf]
  %v32 = vld [vmem:[%s1 + $0x4c] sm:$0xf]
  %v33 = vld [vmem:[%s1 + $0x50] sm:$0xf]
  %v34 = vld [vmem:[%s1 + $0x54] sm:$0xf]
  %v35 = vld [vmem:[%s1 + $0x58] sm:$0xf]
  %v36 = vld [vmem:[%s1 + $0x5c] sm:$0xf]
  %v37 = vld [vmem:[%s1 + $0x60] sm:$0xf]
  %v38 = vld [vmem:[%s1 + $0x64] sm:$0xf]
  %v39 = vld [vmem:[%s1 + $0x68] sm:$0xf]
  %v40 = vld [vmem:[%s1 + $0x6c] sm:$0xf]
  %v41 = vld [vmem:[%s1 + $0x70] sm:$0xf]
  %v42 = vld [vmem:[%s1 + $0x74] sm:$0xf]
  %v43 = vld [vmem:[%s1 + $0x78] sm:$0xf]
  %v44 = vld [vmem:[%s1 + $0x7c] sm:$0xf]
  %v45 = vld [vmem:[%s1 + $0x80] sm:$0xf]
  %v46 = vld [vmem:[%s1 + $0x84] sm:$0xf]
  %vm47 = vcmp.ge.bf16.partialorder %v13, 0
  %vm48 = vcmp.ge.bf16.partialorder %v14, 0
  %vm49 = vcmp.ge.bf16.partialorder %v15, 0
  %vm50 = vcmp.ge.bf16.partialorder %v16, 0
  %vm51 = vcmp.ge.bf16.partialorder %v17, 0
  %vm52 = vcmp.ge.bf16.partialorder %v18, 0
  %vm53 = vcmp.ge.bf16.partialorder %v19, 0
  %vm54 = vcmp.ge.bf16.partialorder %v20, 0
  %vm55 = vcmp.ge.bf16.partialorder %v21, 0
  %vm56 = vcmp.ge.bf16.partialorder %v22, 0
  %vm57 = vcmp.ge.bf16.partialorder %v23, 0
  %vm58 = vcmp.ge.bf16.partialorder %v24, 0
  %vm59 = vcmp.ge.bf16.partialorder %v25, 0
  %vm60 = vcmp.ge.bf16.partialorder %v26, 0
  %vm61 = vcmp.ge.bf16.partialorder %v27, 0
  %vm62 = vcmp.ge.bf16.partialorder %v28, 0
  %vm63 = vcmp.ge.bf16.partialorder %v29, 0
  %vm64 = vcmp.ge.bf16.partialorder %v30, 0
  %vm65 = vcmp.ge.bf16.partialorder %v31, 0
  %vm66 = vcmp.ge.bf16.partialorder %v32, 0
  %vm67 = vcmp.ge.bf16.partialorder %v33, 0
  %vm68 = vcmp.ge.bf16.partialorder %v34, 0
  %vm69 = vcmp.ge.bf16.partialorder %v35, 0
  %vm70 = vcmp.ge.bf16.partialorder %v36, 0
  %vm71 = vcmp.ge.bf16.partialorder %v37, 0
  %vm72 = vcmp.ge.bf16.partialorder %v38, 0
  %vm73 = vcmp.ge.bf16.partialorder %v39, 0
  %vm74 = vcmp.ge.bf16.partialorder %v40, 0
  %vm75 = vcmp.ge.bf16.partialorder %v41, 0
  %vm76 = vcmp.ge.bf16.partialorder %v42, 0
  %vm77 = vcmp.ge.bf16.partialorder %v43, 0
  %vm78 = vcmp.ge.bf16.partialorder %v44, 0
  %vm79 = vcmp.ge.bf16.partialorder %v45, 0
  %vm80 = vcmp.ge.bf16.partialorder %v46, 0
  %v81 = vmul.bf16 %v13, 1036860877
  %v82 = vmul.bf16 %v14, 1036860877
  %v83 = vmul.bf16 %v15, 1036860877
  %v84 = vmul.bf16 %v16, 1036860877
  %v85 = vmul.bf16 %v17, 1036860877
  %v86 = vmul.bf16 %v18, 1036860877
  %v87 = vmul.bf16 %v19, 1036860877
  %v88 = vmul.bf16 %v20, 1036860877
  %v89 = vmul.bf16 %v21, 1036860877
  %v90 = vmul.bf16 %v22, 1036860877
  %v91 = vmul.bf16 %v23, 1036860877
  %v92 = vmul.bf16 %v24, 1036860877
  %v93 = vmul.bf16 %v25, 1036860877
  %v94 = vmul.bf16 %v26, 1036860877
  %v95 = vmul.bf16 %v27, 1036860877
  %v96 = vmul.bf16 %v28, 1036860877
  %v97 = vmul.bf16 %v29, 1036860877
  %v98 = vmul.bf16 %v30, 1036860877
  %v99 = vmul.bf16 %v31, 1036860877
  %v100 = vmul.bf16 %v32, 1036860877
  %v101 = vmul.bf16 %v33, 1036860877
  %v102 = vmul.bf16 %v34, 1036860877
  %v103 = vmul.bf16 %v35, 1036860877
  %v104 = vmul.bf16 %v36, 1036860877
  %v105 = vmul.bf16 %v37, 1036860877
  %v106 = vmul.bf16 %v38, 1036860877
  %v107 = vmul.bf16 %v39, 1036860877
  %v108 = vmul.bf16 %v40, 1036860877
  %v109 = vmul.bf16 %v41, 1036860877
  %v110 = vmul.bf16 %v42, 1036860877
  %v111 = vmul.bf16 %v43, 1036860877
  %v112 = vmul.bf16 %v44, 1036860877
  %v113 = vmul.bf16 %v45, 1036860877
  %v114 = vmul.bf16 %v46, 1036860877
  %v115 = vsel %vm47, %v13, %v81
  %v116 = vsel %vm48, %v14, %v82
  %v117 = vsel %vm49, %v15, %v83
  %v118 = vsel %vm50, %v16, %v84
  %v119 = vsel %vm51, %v17, %v85
  %v120 = vsel %vm52, %v18, %v86
  %v121 = vsel %vm53, %v19, %v87
  %v122 = vsel %vm54, %v20, %v88
  %v123 = vsel %vm55, %v21, %v89
  %v124 = vsel %vm56, %v22, %v90
  %v125 = vsel %vm57, %v23, %v91
  %v126 = vsel %vm58, %v24, %v92
  %v127 = vsel %vm59, %v25, %v93
  %v128 = vsel %vm60, %v26, %v94
  %v129 = vsel %vm61, %v27, %v95
  %v130 = vsel %vm62, %v28, %v96
  %v131 = vsel %vm63, %v29, %v97
  %v132 = vsel %vm64, %v30, %v98
  %v133 = vsel %vm65, %v31, %v99
  %v134 = vsel %vm66, %v32, %v100
  %v135 = vsel %vm67, %v33, %v101
  %v136 = vsel %vm68, %v34, %v102
  %v137 = vsel %vm69, %v35, %v103
  %v138 = vsel %vm70, %v36, %v104
  %v139 = vsel %vm71, %v37, %v105
  %v140 = vsel %vm72, %v38, %v106
  %v141 = vsel %vm73, %v39, %v107
  %v142 = vsel %vm74, %v40, %v108
  %v143 = vsel %vm75, %v41, %v109
  %v144 = vsel %vm76, %v42, %v110
  %v145 = vsel %vm77, %v43, %v111
  %v146 = vsel %vm78, %v44, %v112
  %v147 = vsel %vm79, %v45, %v113
  %v148 = vsel %vm80, %v46, %v114
  %v149 = vld [vmem:[%s0] sm:$0xff]
  %v150 = vld [vmem:[%s0 + $0x8] sm:$0xf]
  %v151 = vld [vmem:[%s0 + $0xc] sm:$0xff]
  %v152 = vld [vmem:[%s0 + $0x14] sm:$0xf]
  %v157 = vunpack.c.l.b16 %v149
  %v158 = vunpack.c.h.b16 %v149
  %v159 = vunpack.c.l.b16 %v150
  %v160 = vunpack.c.l.b16 %v151
  %v161 = vunpack.c.h.b16 %v151
  %v162 = vunpack.c.l.b16 %v152
  %v163 = vpack.c.b16 %v160, %v157
  %v164 = vpack.c.b16 %v161, %v158
  %v165 = vpack.c.b16 %v162, %v159
  %v202 = vunpack.c.l.b16 %v115
  %v203 = vunpack.c.l.b16 %v116
  %v204 = vunpack.c.l.b16 %v117
  %v205 = vunpack.c.l.b16 %v118
  %v206 = vunpack.c.l.b16 %v119
  %v207 = vunpack.c.l.b16 %v120
  %v208 = vunpack.c.l.b16 %v121
  %v209 = vunpack.c.l.b16 %v122
  %v210 = vunpack.c.l.b16 %v123
  %v211 = vunpack.c.l.b16 %v124
  %v212 = vunpack.c.l.b16 %v125
  %v213 = vunpack.c.l.b16 %v126
  %v214 = vunpack.c.l.b16 %v127
  %v215 = vunpack.c.l.b16 %v128
  %v216 = vunpack.c.l.b16 %v129
  %v217 = vunpack.c.l.b16 %v130
  %v218 = vunpack.c.l.b16 %v131
  %v219 = vunpack.c.l.b16 %v132
  %v220 = vunpack.c.l.b16 %v133
  %v221 = vunpack.c.l.b16 %v134
  %v222 = vunpack.c.l.b16 %v135
  %v223 = vunpack.c.l.b16 %v136
  %v224 = vunpack.c.l.b16 %v137
  %v225 = vunpack.c.l.b16 %v138
  %v226 = vunpack.c.l.b16 %v139
  %v227 = vunpack.c.l.b16 %v140
  %v228 = vunpack.c.l.b16 %v141
  %v229 = vunpack.c.l.b16 %v142
  %v230 = vunpack.c.l.b16 %v143
  %v231 = vunpack.c.l.b16 %v144
  %v232 = vunpack.c.l.b16 %v145
  %v233 = vunpack.c.l.b16 %v146
  %v234 = vunpack.c.l.b16 %v147
  %v235 = vunpack.c.l.b16 %v148
  %v236 = vpack.c.b16 %v203, %v202
  %v237 = vpack.c.b16 %v205, %v204
  %v238 = vpack.c.b16 %v207, %v206
  %v239 = vpack.c.b16 %v209, %v208
  %v240 = vpack.c.b16 %v211, %v210
  %v241 = vpack.c.b16 %v213, %v212
  %v242 = vpack.c.b16 %v215, %v214
  %v243 = vpack.c.b16 %v217, %v216
  %v244 = vpack.c.b16 %v219, %v218
  %v245 = vpack.c.b16 %v221, %v220
  %v246 = vpack.c.b16 %v223, %v222
  %v247 = vpack.c.b16 %v225, %v224
  %v248 = vpack.c.b16 %v227, %v226
  %v249 = vpack.c.b16 %v229, %v228
  %v250 = vpack.c.b16 %v231, %v230
  %v251 = vpack.c.b16 %v233, %v232
  %v252 = vpack.c.b16 %v235, %v234
  %vm270 = vcmask 130048
  %v272 = vsel %vm270, %v165, 0
  %274 = vmatprep.subr.bf16.mxu0 0
  %275 = vmatpush1.bf16.msra.mxu0 %v236
  %276 = vmatprep.subr.bf16.mxu0 0
  %277 = vmatpush1.bf16.msra.mxu0 %v237
  %278 = vmatprep.subr.bf16.mxu0 0
  %279 = vmatpush1.bf16.msra.mxu0 %v238
  %280 = vmatprep.subr.bf16.mxu0 0
  %281 = vmatpush1.bf16.msra.mxu0 %v239
  %282 = vmatprep.subr.bf16.mxu0 0
  %283 = vmatpush1.bf16.msra.mxu0 %v240
  %284 = vmatprep.subr.bf16.mxu0 0
  %285 = vmatpush1.bf16.msra.mxu0 %v241
  %286 = vmatprep.subr.bf16.mxu0 0
  %287 = vmatpush1.bf16.msra.mxu0 %v242
  %288 = vmatprep.subr.bf16.mxu0 0
  %289 = vmatpush1.bf16.msra.mxu0 %v243
  %290 = vmatprep.subr.bf16.mxu0 0
  %291 = vmatpush1.bf16.msra.mxu0 %v244
  %292 = vmatprep.subr.bf16.mxu0 0
  %293 = vmatpush1.bf16.msra.mxu0 %v245
  %294 = vmatprep.subr.bf16.mxu0 0
  %295 = vmatpush1.bf16.msra.mxu0 %v246
  %296 = vmatprep.subr.bf16.mxu0 0
  %297 = vmatpush1.bf16.msra.mxu0 %v247
  %298 = vmatprep.subr.bf16.mxu0 0
  %299 = vmatpush1.bf16.msra.mxu0 %v248
  %300 = vmatprep.subr.bf16.mxu0 0
  %301 = vmatpush1.bf16.msra.mxu0 %v249
  %302 = vmatprep.subr.bf16.mxu0 0
  %303 = vmatpush1.bf16.msra.mxu0 %v250
  %304 = vmatprep.subr.bf16.mxu0 0
  %305 = vmatpush1.bf16.msra.mxu0 %v251
  %306 = vmatprep.mubr.bf16.mxu0 %v164
  %307 = vmatmul.mubr.bf16.gmra.mrb[0].mxu0 %v163
  %v308 = vpop.f32.mrb[0].mxu0
  %v309 = vadd.f32 0.0, %v308
  %v310 = vpop.f32.mrb[0].mxu0
  %v311 = vpop.f32.mrb[0].mxu0
  %v312 = vadd.f32 0.0, %v311
  %v313 = vpop.f32.mrb[0].mxu0
  %314 = vdwg.mxu0
  %315 = vmatprep.subr.bf16.mxu0 0
  %316 = vmatpush1.bf16.msra.mxu0 %v252
  %317 = vmatprep.subr.bf16.mxu0 0
  %318 = vmatpush1.bf16.msra.mxu0 0
  %319 = vmatprep.subr.bf16.mxu0 0
  %320 = vmatpush1.bf16.msra.mxu0 0
  %321 = vmatprep.subr.bf16.mxu0 0
  %322 = vmatpush1.bf16.msra.mxu0 0
  %323 = vmatprep.subr.bf16.mxu0 0
  %324 = vmatpush1.bf16.msra.mxu0 0
  %325 = vmatprep.subr.bf16.mxu0 0
  %326 = vmatpush1.bf16.msra.mxu0 0
  %327 = vmatprep.subr.bf16.mxu0 0
  %328 = vmatpush1.bf16.msra.mxu0 0
  %329 = vmatprep.subr.bf16.mxu0 0
  %330 = vmatpush1.bf16.msra.mxu0 0
  %331 = vmatprep.subr.bf16.mxu0 0
  %332 = vmatpush1.bf16.msra.mxu0 0
  %333 = vmatprep.subr.bf16.mxu0 0
  %334 = vmatpush1.bf16.msra.mxu0 0
  %335 = vmatprep.subr.bf16.mxu0 0
  %336 = vmatpush1.bf16.msra.mxu0 0
  %337 = vmatprep.subr.bf16.mxu0 0
  %338 = vmatpush1.bf16.msra.mxu0 0
  %339 = vmatprep.subr.bf16.mxu0 0
  %340 = vmatpush1.bf16.msra.mxu0 0
  %341 = vmatprep.subr.bf16.mxu0 0
  %342 = vmatpush1.bf16.msra.mxu0 0
  %343 = vmatprep.subr.bf16.mxu0 0
  %344 = vmatpush1.bf16.msra.mxu0 0
  %345 = vmatprep.subr.bf16.mxu0 0
  %346 = vmatpush1.bf16.msra.mxu0 0
  %347 = vmatprep.mubr.bf16.mxu0 0
  %348 = vmatmul.mubr.bf16.gmra.mrb[0].mxu0 %v272
  %v349 = vpop.f32.mrb[0].mxu0
  %v350 = vadd.f32 %v309, %v349
  %v351 = vpop.f32.mrb[0].mxu0
  %v352 = vpop.f32.mrb[0].mxu0
  %v353 = vadd.f32 %v312, %v352
  %v354 = vpop.f32.mrb[0].mxu0
  %355 = vdwg.mxu0
  %356 = vst [vmem:[%s2] sm:$0xff] %v350
  %357 = vst [vmem:[%s2 + $0x8] sm:$0xff] %v353
  // Predicated region
  $region10: #{forward.30} parent=0 // pred_check
    _
  $region11: #{forward.30} parent=0 // pred_check_branch
    %359 = sbr.rel (0) target = $region13
  $region12: #{forward.30} parent=0 // pred_region
    _
  $region13: #{forward.30} parent=0 // pred_fallthru
    _
  // Predicated region
  $region14: #{forward.30} parent=0 // pred_check
    _
  $region15: #{forward.30} parent=0 // pred_check_branch
    %361 = sbr.rel (0) target = $region17
  $region16: #{forward.30} parent=0 // pred_region
    _
  $region17: #{forward.30} parent=0 // pred_fallthru
    _

// kernel: forward.31
$region0: #{forward.31}
  #allocation0 [shape = 'u32[]', space=smem, size = 0x4, offset = 0x4, fixed_abs, tag = 'smem constant byte address 0x4 - core index']
  #allocation1 [shape = 'u32[144,128]{1,0:T(1,128)}', space=vmem, size = 0x12000, scoped, tag = 'internal scratch']
  %s0 = inlined_call_operand.vmem [shape: bf16[16,64], index: 0, kind: input, shape index: {}]
  %s1 = inlined_call_operand.vmem [shape: bf16[64,128], index: 1, kind: input, shape index: {}]
  %s2 = inlined_call_operand.vmem [shape: f32[16,128], index: 2, kind: output, shape index: {}]
  %s3 = sld [smem:[#allocation0]]
  $region18: #{forward.31} parent=0
    _
  %s5 = ssub.s32 1, %s3
  %s6 = scalar_select 0, %s5, %s3
  // Predicated region
  $region2: #{forward.31} parent=0 // pred_check
    _
  $region3: #{forward.31} parent=0 // pred_check_branch
    %8 = sbr.rel (0) target = $region5
  $region4: #{forward.31} parent=0 // pred_region
    _
  $region5: #{forward.31} parent=0 // pred_fallthru
    _
  // Predicated region
  $region6: #{forward.31} parent=0 // pred_check
    _
  $region7: #{forward.31} parent=0 // pred_check_branch
    %10 = sbr.rel (0) target = $region9
  $region8: #{forward.31} parent=0 // pred_region
    _
  $region9: #{forward.31} parent=0 // pred_fallthru
    _
  %v13 = vld [vmem:[%s1] sm:$0xf]
  %v14 = vld [vmem:[%s1 + $0x4] sm:$0xf]
  %v15 = vld [vmem:[%s1 + $0x8] sm:$0xf]
  %v16 = vld [vmem:[%s1 + $0xc] sm:$0xf]
  %v17 = vld [vmem:[%s1 + $0x10] sm:$0xf]
  %v18 = vld [vmem:[%s1 + $0x14] sm:$0xf]
  %v19 = vld [vmem:[%s1 + $0x18] sm:$0xf]
  %v20 = vld [vmem:[%s1 + $0x1c] sm:$0xf]
  %vm21 = vcmp.ge.bf16.partialorder %v13, 0
  %vm22 = vcmp.ge.bf16.partialorder %v14, 0
  %vm23 = vcmp.ge.bf16.partialorder %v15, 0
  %vm24 = vcmp.ge.bf16.partialorder %v16, 0
  %vm25 = vcmp.ge.bf16.partialorder %v17, 0
  %vm26 = vcmp.ge.bf16.partialorder %v18, 0
  %vm27 = vcmp.ge.bf16.partialorder %v19, 0
  %vm28 = vcmp.ge.bf16.partialorder %v20, 0
  %v29 = vmul.bf16 %v13, 1036860877
  %v30 = vmul.bf16 %v14, 1036860877
  %v31 = vmul.bf16 %v15, 1036860877
  %v32 = vmul.bf16 %v16, 1036860877
  %v33 = vmul.bf16 %v17, 1036860877
  %v34 = vmul.bf16 %v18, 1036860877
  %v35 = vmul.bf16 %v19, 1036860877
  %v36 = vmul.bf16 %v20, 1036860877
  %v37 = vsel %vm21, %v13, %v29
  %v38 = vsel %vm22, %v14, %v30
  %v39 = vsel %vm23, %v15, %v31
  %v40 = vsel %vm24, %v16, %v32
  %v41 = vsel %vm25, %v17, %v33
  %v42 = vsel %vm26, %v18, %v34
  %v43 = vsel %vm27, %v19, %v35
  %v44 = vsel %vm28, %v20, %v36
  %v45 = vld [vmem:[%s0] sm:$0xf]
  %v46 = vld [vmem:[%s0 + $0x4] sm:$0xf]
  %v49 = vunpack.c.l.b16 %v45
  %v50 = vunpack.c.l.b16 %v46
  %v51 = vpack.c.b16 %v50, %v49
  %v60 = vunpack.c.l.b16 %v37
  %v61 = vunpack.c.l.b16 %v38
  %v62 = vunpack.c.l.b16 %v39
  %v63 = vunpack.c.l.b16 %v40
  %v64 = vunpack.c.l.b16 %v41
  %v65 = vunpack.c.l.b16 %v42
  %v66 = vunpack.c.l.b16 %v43
  %v67 = vunpack.c.l.b16 %v44
  %v68 = vpack.c.b16 %v61, %v60
  %v69 = vpack.c.b16 %v63, %v62
  %v70 = vpack.c.b16 %v65, %v64
  %v71 = vpack.c.b16 %v67, %v66
  %vm76 = vcmask 523264
  %v78 = vsel %vm76, %v51, 0
  %80 = vmatprep.subr.bf16.mxu0 0
  %81 = vmatpush1.bf16.msra.mxu0 %v68
  %82 = vmatprep.subr.bf16.mxu0 0
  %83 = vmatpush1.bf16.msra.mxu0 %v69
  %84 = vmatprep.subr.bf16.mxu0 0
  %85 = vmatpush1.bf16.msra.mxu0 %v70
  %86 = vmatprep.subr.bf16.mxu0 0
  %87 = vmatpush1.bf16.msra.mxu0 %v71
  %88 = vmatprep.subr.bf16.mxu0 0
  %89 = vmatpush1.bf16.msra.mxu0 0
  %90 = vmatprep.subr.bf16.mxu0 0
  %91 = vmatpush1.bf16.msra.mxu0 0
  %92 = vmatprep.subr.bf16.mxu0 0
  %93 = vmatpush1.bf16.msra.mxu0 0
  %94 = vmatprep.subr.bf16.mxu0 0
  %95 = vmatpush1.bf16.msra.mxu0 0
  %96 = vmatprep.subr.bf16.mxu0 0
  %97 = vmatpush1.bf16.msra.mxu0 0
  %98 = vmatprep.subr.bf16.mxu0 0
  %99 = vmatpush1.bf16.msra.mxu0 0
  %100 = vmatprep.subr.bf16.mxu0 0
  %101 = vmatpush1.bf16.msra.mxu0 0
  %102 = vmatprep.subr.bf16.mxu0 0
  %103 = vmatpush1.bf16.msra.mxu0 0
  %104 = vmatprep.subr.bf16.mxu0 0
  %105 = vmatpush1.bf16.msra.mxu0 0
  %106 = vmatprep.subr.bf16.mxu0 0
  %107 = vmatpush1.bf16.msra.mxu0 0
  %108 = vmatprep.subr.bf16.mxu0 0
  %109 = vmatpush1.bf16.msra.mxu0 0
  %110 = vmatprep.subr.bf16.mxu0 0
  %111 = vmatpush1.bf16.msra.mxu0 0
  %112 = vmatprep.mubr.bf16.mxu0 0
  %113 = vmatmul.mubr.bf16.gmra.mrb[0].mxu0 %v78
  %v114 = vpop.f32.mrb[0].mxu0
  %v115 = vadd.f32 0.0, %v114
  %v116 = vpop.f32.mrb[0].mxu0
  %v117 = vpop.f32.mrb[0].mxu0
  %v118 = vadd.f32 0.0, %v117
  %v119 = vpop.f32.mrb[0].mxu0
  %120 = vdwg.mxu0
  %vm121 = vcmp.ge.f32.partialorder %v115, 0.0
  %vm122 = vcmp.ge.f32.partialorder %v118, 0.0
  %v123 = vmul.f32 %v115, 0.1
  %v124 = vmul.f32 %v118, 0.1
  %v125 = vsel %vm121, %v115, %v123
  %v126 = vsel %vm122, %v118, %v124
  %127 = vst [vmem:[%s2] sm:$0xff] %v125
  %128 = vst [vmem:[%s2 + $0x8] sm:$0xff] %v126
  // Predicated region
  $region10: #{forward.31} parent=0 // pred_check
    _
  $region11: #{forward.31} parent=0 // pred_check_branch
    %130 = sbr.rel (0) target = $region13
  $region12: #{forward.31} parent=0 // pred_region
    _
  $region13: #{forward.31} parent=0 // pred_fallthru
    _
  // Predicated region
  $region14: #{forward.31} parent=0 // pred_check
    _
  $region15: #{forward.31} parent=0 // pred_check_branch
    %132 = sbr.rel (0) target = $region17
  $region16: #{forward.31} parent=0 // pred_region
    _
  $region17: #{forward.31} parent=0 // pred_fallthru
    _

// kernel: forward.32
$region0: #{forward.32}
  #allocation0 [shape = 'u32[]', space=smem, size = 0x4, offset = 0x4, fixed_abs, tag = 'smem constant byte address 0x4 - core index']
  #allocation1 [shape = 'u32[144,128]{1,0:T(1,128)}', space=vmem, size = 0x12000, scoped, tag = 'internal scratch']
  %s0 = inlined_call_operand.vmem [shape: bf16[16,64], index: 0, kind: input, shape index: {}]
  %s1 = inlined_call_operand.vmem [shape: bf16[64,128], index: 1, kind: input, shape index: {}]
  %s2 = inlined_call_operand.vmem [shape: f32[16,128], index: 2, kind: input, shape index: {}]
  %s3 = inlined_call_operand.vmem [shape: f32[16,128], index: 3, kind: output, shape index: {}]
  %s4 = sld [smem:[#allocation0]]
  $region22: #{forward.32} parent=0
    _
  %s6 = ssub.s32 1, %s4
  %s7 = scalar_select 0, %s6, %s4
  // Predicated region
  $region2: #{forward.32} parent=0 // pred_check
    _
  $region3: #{forward.32} parent=0 // pred_check_branch
    %9 = sbr.rel (0) target = $region5
  $region4: #{forward.32} parent=0 // pred_region
    _
  $region5: #{forward.32} parent=0 // pred_fallthru
    _
  // Predicated region
  $region6: #{forward.32} parent=0 // pred_check
    _
  $region7: #{forward.32} parent=0 // pred_check_branch
    %11 = sbr.rel (0) target = $region9
  $region8: #{forward.32} parent=0 // pred_region
    _
  $region9: #{forward.32} parent=0 // pred_fallthru
    _
  // Predicated region
  $region10: #{forward.32} parent=0 // pred_check
    _
  $region11: #{forward.32} parent=0 // pred_check_branch
    %13 = sbr.rel (0) target = $region13
  $region12: #{forward.32} parent=0 // pred_region
    _
  $region13: #{forward.32} parent=0 // pred_fallthru
    _
  %v15 = vld [vmem:[%s1] sm:$0xf]
  %v16 = vld [vmem:[%s1 + $0x4] sm:$0xf]
  %v17 = vld [vmem:[%s1 + $0x8] sm:$0xf]
  %v18 = vld [vmem:[%s1 + $0xc] sm:$0xf]
  %v19 = vld [vmem:[%s1 + $0x10] sm:$0xf]
  %v20 = vld [vmem:[%s1 + $0x14] sm:$0xf]
  %v21 = vld [vmem:[%s1 + $0x18] sm:$0xf]
  %v22 = vld [vmem:[%s1 + $0x1c] sm:$0xf]
  %v23 = vld [vmem:[%s0] sm:$0xf]
  %v24 = vld [vmem:[%s0 + $0x4] sm:$0xf]
  %v25 = vld [vmem:[%s2] sm:$0xff]
  %v26 = vld [vmem:[%s2 + $0x8] sm:$0xff]
  %v29 = vunpack.c.l.b16 %v23
  %v30 = vunpack.c.l.b16 %v24
  %v31 = vpack.c.b16 %v30, %v29
  %v40 = vunpack.c.l.b16 %v15
  %v41 = vunpack.c.l.b16 %v16
  %v42 = vunpack.c.l.b16 %v17
  %v43 = vunpack.c.l.b16 %v18
  %v44 = vunpack.c.l.b16 %v19
  %v45 = vunpack.c.l.b16 %v20
  %v46 = vunpack.c.l.b16 %v21
  %v47 = vunpack.c.l.b16 %v22
  %v48 = vpack.c.b16 %v41, %v40
  %v49 = vpack.c.b16 %v43, %v42
  %v50 = vpack.c.b16 %v45, %v44
  %v51 = vpack.c.b16 %v47, %v46
  %vm56 = vcmask 523264
  %v58 = vsel %vm56, %v31, 0
  %60 = vmatprep.subr.bf16.mxu0 0
  %61 = vmatpush1.bf16.msra.mxu0 %v48
  %62 = vmatprep.subr.bf16.mxu0 0
  %63 = vmatpush1.bf16.msra.mxu0 %v49
  %64 = vmatprep.subr.bf16.mxu0 0
  %65 = vmatpush1.bf16.msra.mxu0 %v50
  %66 = vmatprep.subr.bf16.mxu0 0
  %67 = vmatpush1.bf16.msra.mxu0 %v51
  %68 = vmatprep.subr.bf16.mxu0 0
  %69 = vmatpush1.bf16.msra.mxu0 0
  %70 = vmatprep.subr.bf16.mxu0 0
  %71 = vmatpush1.bf16.msra.mxu0 0
  %72 = vmatprep.subr.bf16.mxu0 0
  %73 = vmatpush1.bf16.msra.mxu0 0
  %74 = vmatprep.subr.bf16.mxu0 0
  %75 = vmatpush1.bf16.msra.mxu0 0
  %76 = vmatprep.subr.bf16.mxu0 0
  %77 = vmatpush1.bf16.msra.mxu0 0
  %78 = vmatprep.subr.bf16.mxu0 0
  %79 = vmatpush1.bf16.msra.mxu0 0
  %80 = vmatprep.subr.bf16.mxu0 0
  %81 = vmatpush1.bf16.msra.mxu0 0
  %82 = vmatprep.subr.bf16.mxu0 0
  %83 = vmatpush1.bf16.msra.mxu0 0
  %84 = vmatprep.subr.bf16.mxu0 0
  %85 = vmatpush1.bf16.msra.mxu0 0
  %86 = vmatprep.subr.bf16.mxu0 0
  %87 = vmatpush1.bf16.msra.mxu0 0
  %88 = vmatprep.subr.bf16.mxu0 0
  %89 = vmatpush1.bf16.msra.mxu0 0
  %90 = vmatprep.subr.bf16.mxu0 0
  %91 = vmatpush1.bf16.msra.mxu0 0
  %92 = vmatprep.mubr.bf16.mxu0 0
  %93 = vmatmul.mubr.bf16.gmra.mrb[0].mxu0 %v58
  %v94 = vpop.f32.mrb[0].mxu0
  %v95 = vadd.f32 %v25, %v94
  %v96 = vpop.f32.mrb[0].mxu0
  %v97 = vpop.f32.mrb[0].mxu0
  %v98 = vadd.f32 %v26, %v97
  %v99 = vpop.f32.mrb[0].mxu0
  %100 = vdwg.mxu0
  %101 = vst [vmem:[%s3] sm:$0xff] %v95
  %102 = vst [vmem:[%s3 + $0x8] sm:$0xff] %v98
  // Predicated region
  $region14: #{forward.32} parent=0 // pred_check
    _
  $region15: #{forward.32} parent=0 // pred_check_branch
    %104 = sbr.rel (0) target = $region17
  $region16: #{forward.32} parent=0 // pred_region
    _
  $region17: #{forward.32} parent=0 // pred_fallthru
    _
  // Predicated region
  $region18: #{forward.32} parent=0 // pred_check
    _
  $region19: #{forward.32} parent=0 // pred_check_branch
    %106 = sbr.rel (0) target = $region21
  $region20: #{forward.32} parent=0 // pred_region
    _
  $region21: #{forward.32} parent=0 // pred_fallthru
    _

// kernel: forward.38
$region0: #{forward.38}
  #allocation0 [shape = 'u32[]', space=smem, size = 0x4, offset = 0x4, fixed_abs, tag = 'smem constant byte address 0x4 - core index']
  #allocation1 [shape = 'u32[144,128]{1,0:T(1,128)}', space=vmem, size = 0x12000, scoped, tag = 'internal scratch']
  %s0 = inlined_call_operand.vmem [shape: bf16[16,96], index: 0, kind: input, shape index: {}]
  %s1 = inlined_call_operand.vmem [shape: bf16[96,128], index: 1, kind: input, shape index: {}]
  %s2 = inlined_call_operand.vmem [shape: f32[16,128], index: 2, kind: input, shape index: {}]
  %s3 = inlined_call_operand.vmem [shape: f32[16,128], index: 3, kind: output, shape index: {}]
  %s4 = sld [smem:[#allocation0]]
  $region22: #{forward.38} parent=0
    _
  %s6 = ssub.s32 1, %s4
  %s7 = scalar_select 0, %s6, %s4
  // Predicated region
  $region2: #{forward.38} parent=0 // pred_check
    _
  $region3: #{forward.38} parent=0 // pred_check_branch
    %9 = sbr.rel (0) target = $region5
  $region4: #{forward.38} parent=0 // pred_region
    _
  $region5: #{forward.38} parent=0 // pred_fallthru
    _
  // Predicated region
  $region6: #{forward.38} parent=0 // pred_check
    _
  $region7: #{forward.38} parent=0 // pred_check_branch
    %11 = sbr.rel (0) target = $region9
  $region8: #{forward.38} parent=0 // pred_region
    _
  $region9: #{forward.38} parent=0 // pred_fallthru
    _
  // Predicated region
  $region10: #{forward.38} parent=0 // pred_check
    _
  $region11: #{forward.38} parent=0 // pred_check_branch
    %13 = sbr.rel (0) target = $region13
  $region12: #{forward.38} parent=0 // pred_region
    _
  $region13: #{forward.38} parent=0 // pred_fallthru
    _
  %v15 = vld [vmem:[%s1] sm:$0xf]
  %v16 = vld [vmem:[%s1 + $0x4] sm:$0xf]
  %v17 = vld [vmem:[%s1 + $0x8] sm:$0xf]
  %v18 = vld [vmem:[%s1 + $0xc] sm:$0xf]
  %v19 = vld [vmem:[%s1 + $0x10] sm:$0xf]
  %v20 = vld [vmem:[%s1 + $0x14] sm:$0xf]
  %v21 = vld [vmem:[%s1 + $0x18] sm:$0xf]
  %v22 = vld [vmem:[%s1 + $0x1c] sm:$0xf]
  %v23 = vld [vmem:[%s1 + $0x20] sm:$0xf]
  %v24 = vld [vmem:[%s1 + $0x24] sm:$0xf]
  %v25 = vld [vmem:[%s1 + $0x28] sm:$0xf]
  %v26 = vld [vmem:[%s1 + $0x2c] sm:$0xf]
  %v27 = vld [vmem:[%s0] sm:$0xf]
  %v28 = vld [vmem:[%s0 + $0x4] sm:$0xf]
  %v29 = vld [vmem:[%s2] sm:$0xff]
  %v30 = vld [vmem:[%s2 + $0x8] sm:$0xff]
  %v33 = vunpack.c.l.b16 %v27
  %v34 = vunpack.c.l.b16 %v28
  %v35 = vpack.c.b16 %v34, %v33
  %v48 = vunpack.c.l.b16 %v15
  %v49 = vunpack.c.l.b16 %v16
  %v50 = vunpack.c.l.b16 %v17
  %v51 = vunpack.c.l.b16 %v18
  %v52 = vunpack.c.l.b16 %v19
  %v53 = vunpack.c.l.b16 %v20
  %v54 = vunpack.c.l.b16 %v21
  %v55 = vunpack.c.l.b16 %v22
  %v56 = vunpack.c.l.b16 %v23
  %v57 = vunpack.c.l.b16 %v24
  %v58 = vunpack.c.l.b16 %v25
  %v59 = vunpack.c.l.b16 %v26
  %v60 = vpack.c.b16 %v49, %v48
  %v61 = vpack.c.b16 %v51, %v50
  %v62 = vpack.c.b16 %v53, %v52
  %v63 = vpack.c.b16 %v55, %v54
  %v64 = vpack.c.b16 %v57, %v56
  %v65 = vpack.c.b16 %v59, %v58
  %vm72 = vcmask 785408
  %v74 = vsel %vm72, %v35, 0
  %76 = vmatprep.subr.bf16.mxu0 0
  %77 = vmatpush1.bf16.msra.mxu0 %v60
  %78 = vmatprep.subr.bf16.mxu0 0
  %79 = vmatpush1.bf16.msra.mxu0 %v61
  %80 = vmatprep.subr.bf16.mxu0 0
  %81 = vmatpush1.bf16.msra.mxu0 %v62
  %82 = vmatprep.subr.bf16.mxu0 0
  %83 = vmatpush1.bf16.msra.mxu0 %v63
  %84 = vmatprep.subr.bf16.mxu0 0
  %85 = vmatpush1.bf16.msra.mxu0 %v64
  %86 = vmatprep.subr.bf16.mxu0 0
  %87 = vmatpush1.bf16.msra.mxu0 %v65
  %88 = vmatprep.subr.bf16.mxu0 0
  %89 = vmatpush1.bf16.msra.mxu0 0
  %90 = vmatprep.subr.bf16.mxu0 0
  %91 = vmatpush1.bf16.msra.mxu0 0
  %92 = vmatprep.subr.bf16.mxu0 0
  %93 = vmatpush1.bf16.msra.mxu0 0
  %94 = vmatprep.subr.bf16.mxu0 0
  %95 = vmatpush1.bf16.msra.mxu0 0
  %96 = vmatprep.subr.bf16.mxu0 0
  %97 = vmatpush1.bf16.msra.mxu0 0
  %98 = vmatprep.subr.bf16.mxu0 0
  %99 = vmatpush1.bf16.msra.mxu0 0
  %100 = vmatprep.subr.bf16.mxu0 0
  %101 = vmatpush1.bf16.msra.mxu0 0
  %102 = vmatprep.subr.bf16.mxu0 0
  %103 = vmatpush1.bf16.msra.mxu0 0
  %104 = vmatprep.subr.bf16.mxu0 0
  %105 = vmatpush1.bf16.msra.mxu0 0
  %106 = vmatprep.subr.bf16.mxu0 0
  %107 = vmatpush1.bf16.msra.mxu0 0
  %108 = vmatprep.mubr.bf16.mxu0 0
  %109 = vmatmul.mubr.bf16.gmra.mrb[0].mxu0 %v74
  %v110 = vpop.f32.mrb[0].mxu0
  %v111 = vadd.f32 %v29, %v110
  %v112 = vpop.f32.mrb[0].mxu0
  %v113 = vpop.f32.mrb[0].mxu0
  %v114 = vadd.f32 %v30, %v113
  %v115 = vpop.f32.mrb[0].mxu0
  %116 = vdwg.mxu0
  %117 = vst [vmem:[%s3] sm:$0xff] %v111
  %118 = vst [vmem:[%s3 + $0x8] sm:$0xff] %v114
  // Predicated region
  $region14: #{forward.38} parent=0 // pred_check
    _
  $region15: #{forward.38} parent=0 // pred_check_branch
    %120 = sbr.rel (0) target = $region17
  $region16: #{forward.38} parent=0 // pred_region
    _
  $region17: #{forward.38} parent=0 // pred_fallthru
    _
  // Predicated region
  $region18: #{forward.38} parent=0 // pred_check
    _
  $region19: #{forward.38} parent=0 // pred_check_branch
    %122 = sbr.rel (0) target = $region21
  $region20: #{forward.38} parent=0 // pred_region
    _
  $region21: #{forward.38} parent=0 // pred_fallthru
    _

// kernel: forward.37
$region0: #{forward.37}
  #allocation0 [shape = 'u32[]', space=smem, size = 0x4, offset = 0x4, fixed_abs, tag = 'smem constant byte address 0x4 - core index']
  #allocation1 [shape = 'u32[144,128]{1,0:T(1,128)}', space=vmem, size = 0x12000, scoped, tag = 'internal scratch']
  %s0 = inlined_call_operand.vmem [shape: bf16[16,96], index: 0, kind: input, shape index: {}]
  %s1 = inlined_call_operand.vmem [shape: bf16[96,128], index: 1, kind: input, shape index: {}]
  %s2 = inlined_call_operand.vmem [shape: f32[16,128], index: 2, kind: output, shape index: {}]
  %s3 = sld [smem:[#allocation0]]
  $region18: #{forward.37} parent=0
    _
  %s5 = ssub.s32 1, %s3
  %s6 = scalar_select 0, %s5, %s3
  // Predicated region
  $region2: #{forward.37} parent=0 // pred_check
    _
  $region3: #{forward.37} parent=0 // pred_check_branch
    %8 = sbr.rel (0) target = $region5
  $region4: #{forward.37} parent=0 // pred_region
    _
  $region5: #{forward.37} parent=0 // pred_fallthru
    _
  // Predicated region
  $region6: #{forward.37} parent=0 // pred_check
    _
  $region7: #{forward.37} parent=0 // pred_check_branch
    %10 = sbr.rel (0) target = $region9
  $region8: #{forward.37} parent=0 // pred_region
    _
  $region9: #{forward.37} parent=0 // pred_fallthru
    _
  %v13 = vld [vmem:[%s1] sm:$0xf]
  %v14 = vld [vmem:[%s1 + $0x4] sm:$0xf]
  %v15 = vld [vmem:[%s1 + $0x8] sm:$0xf]
  %v16 = vld [vmem:[%s1 + $0xc] sm:$0xf]
  %v17 = vld [vmem:[%s1 + $0x10] sm:$0xf]
  %v18 = vld [vmem:[%s1 + $0x14] sm:$0xf]
  %v19 = vld [vmem:[%s1 + $0x18] sm:$0xf]
  %v20 = vld [vmem:[%s1 + $0x1c] sm:$0xf]
  %v21 = vld [vmem:[%s1 + $0x20] sm:$0xf]
  %v22 = vld [vmem:[%s1 + $0x24] sm:$0xf]
  %v23 = vld [vmem:[%s1 + $0x28] sm:$0xf]
  %v24 = vld [vmem:[%s1 + $0x2c] sm:$0xf]
  %vm25 = vcmp.ge.bf16.partialorder %v13, 0
  %vm26 = vcmp.ge.bf16.partialorder %v14, 0
  %vm27 = vcmp.ge.bf16.partialorder %v15, 0
  %vm28 = vcmp.ge.bf16.partialorder %v16, 0
  %vm29 = vcmp.ge.bf16.partialorder %v17, 0
  %vm30 = vcmp.ge.bf16.partialorder %v18, 0
  %vm31 = vcmp.ge.bf16.partialorder %v19, 0
  %vm32 = vcmp.ge.bf16.partialorder %v20, 0
  %vm33 = vcmp.ge.bf16.partialorder %v21, 0
  %vm34 = vcmp.ge.bf16.partialorder %v22, 0
  %vm35 = vcmp.ge.bf16.partialorder %v23, 0
  %vm36 = vcmp.ge.bf16.partialorder %v24, 0
  %v37 = vmul.bf16 %v13, 1036860877
  %v38 = vmul.bf16 %v14, 1036860877
  %v39 = vmul.bf16 %v15, 1036860877
  %v40 = vmul.bf16 %v16, 1036860877
  %v41 = vmul.bf16 %v17, 1036860877
  %v42 = vmul.bf16 %v18, 1036860877
  %v43 = vmul.bf16 %v19, 1036860877
  %v44 = vmul.bf16 %v20, 1036860877
  %v45 = vmul.bf16 %v21, 1036860877
  %v46 = vmul.bf16 %v22, 1036860877
  %v47 = vmul.bf16 %v23, 1036860877
  %v48 = vmul.bf16 %v24, 1036860877
  %v49 = vsel %vm25, %v13, %v37
  %v50 = vsel %vm26, %v14, %v38
  %v51 = vsel %vm27, %v15, %v39
  %v52 = vsel %vm28, %v16, %v40
  %v53 = vsel %vm29, %v17, %v41
  %v54 = vsel %vm30, %v18, %v42
  %v55 = vsel %vm31, %v19, %v43
  %v56 = vsel %vm32, %v20, %v44
  %v57 = vsel %vm33, %v21, %v45
  %v58 = vsel %vm34, %v22, %v46
  %v59 = vsel %vm35, %v23, %v47
  %v60 = vsel %vm36, %v24, %v48
  %v61 = vld [vmem:[%s0] sm:$0xf]
  %v62 = vld [vmem:[%s0 + $0x4] sm:$0xf]
  %v65 = vunpack.c.l.b16 %v61
  %v66 = vunpack.c.l.b16 %v62
  %v67 = vpack.c.b16 %v66, %v65
  %v80 = vunpack.c.l.b16 %v49
  %v81 = vunpack.c.l.b16 %v50
  %v82 = vunpack.c.l.b16 %v51
  %v83 = vunpack.c.l.b16 %v52
  %v84 = vunpack.c.l.b16 %v53
  %v85 = vunpack.c.l.b16 %v54
  %v86 = vunpack.c.l.b16 %v55
  %v87 = vunpack.c.l.b16 %v56
  %v88 = vunpack.c.l.b16 %v57
  %v89 = vunpack.c.l.b16 %v58
  %v90 = vunpack.c.l.b16 %v59
  %v91 = vunpack.c.l.b16 %v60
  %v92 = vpack.c.b16 %v81, %v80
  %v93 = vpack.c.b16 %v83, %v82
  %v94 = vpack.c.b16 %v85, %v84
  %v95 = vpack.c.b16 %v87, %v86
  %v96 = vpack.c.b16 %v89, %v88
  %v97 = vpack.c.b16 %v91, %v90
  %vm104 = vcmask 785408
  %v106 = vsel %vm104, %v67, 0
  %108 = vmatprep.subr.bf16.mxu0 0
  %109 = vmatpush1.bf16.msra.mxu0 %v92
  %110 = vmatprep.subr.bf16.mxu0 0
  %111 = vmatpush1.bf16.msra.mxu0 %v93
  %112 = vmatprep.subr.bf16.mxu0 0
  %113 = vmatpush1.bf16.msra.mxu0 %v94
  %114 = vmatprep.subr.bf16.mxu0 0
  %115 = vmatpush1.bf16.msra.mxu0 %v95
  %116 = vmatprep.subr.bf16.mxu0 0
  %117 = vmatpush1.bf16.msra.mxu0 %v96
  %118 = vmatprep.subr.bf16.mxu0 0
  %119 = vmatpush1.bf16.msra.mxu0 %v97
  %120 = vmatprep.subr.bf16.mxu0 0
  %121 = vmatpush1.bf16.msra.mxu0 0
  %122 = vmatprep.subr.bf16.mxu0 0
  %123 = vmatpush1.bf16.msra.mxu0 0
  %124 = vmatprep.subr.bf16.mxu0 0
  %125 = vmatpush1.bf16.msra.mxu0 0
  %126 = vmatprep.subr.bf16.mxu0 0
  %127 = vmatpush1.bf16.msra.mxu0 0
  %128 = vmatprep.subr.bf16.mxu0 0
  %129 = vmatpush1.bf16.msra.mxu0 0
  %130 = vmatprep.subr.bf16.mxu0 0
  %131 = vmatpush1.bf16.msra.mxu0 0
  %132 = vmatprep.subr.bf16.mxu0 0
  %133 = vmatpush1.bf16.msra.mxu0 0
  %134 = vmatprep.subr.bf16.mxu0 0
  %135 = vmatpush1.bf16.msra.mxu0 0
  %136 = vmatprep.subr.bf16.mxu0 0
  %137 = vmatpush1.bf16.msra.mxu0 0
  %138 = vmatprep.subr.bf16.mxu0 0
  %139 = vmatpush1.bf16.msra.mxu0 0
  %140 = vmatprep.mubr.bf16.mxu0 0
  %141 = vmatmul.mubr.bf16.gmra.mrb[0].mxu0 %v106
  %v142 = vpop.f32.mrb[0].mxu0
  %v143 = vadd.f32 0.0, %v142
  %v144 = vpop.f32.mrb[0].mxu0
  %v145 = vpop.f32.mrb[0].mxu0
  %v146 = vadd.f32 0.0, %v145
  %v147 = vpop.f32.mrb[0].mxu0
  %148 = vdwg.mxu0
  %vm149 = vcmp.ge.f32.partialorder %v143, 0.0
  %vm150 = vcmp.ge.f32.partialorder %v146, 0.0
  %v151 = vmul.f32 %v143, 0.1
  %v152 = vmul.f32 %v146, 0.1
  %v153 = vsel %vm149, %v143, %v151
  %v154 = vsel %vm150, %v146, %v152
  %155 = vst [vmem:[%s2] sm:$0xff] %v153
  %156 = vst [vmem:[%s2 + $0x8] sm:$0xff] %v154
  // Predicated region
  $region10: #{forward.37} parent=0 // pred_check
    _
  $region11: #{forward.37} parent=0 // pred_check_branch
    %158 = sbr.rel (0) target = $region13
  $region12: #{forward.37} parent=0 // pred_region
    _
  $region13: #{forward.37} parent=0 // pred_fallthru
    _
  // Predicated region
  $region14: #{forward.37} parent=0 // pred_check
    _
  $region15: #{forward.37} parent=0 // pred_check_branch
    %160 = sbr.rel (0) target = $region17
  $region16: #{forward.37} parent=0 // pred_region
    _
  $region17: #{forward.37} parent=0 // pred_fallthru
    _

// kernel: forward.43
$region0: #{forward.43}
  #allocation0 [shape = 'u32[]', space=smem, size = 0x4, offset = 0x4, fixed_abs, tag = 'smem constant byte address 0x4 - core index']
  #allocation1 [shape = 'u32[144,128]{1,0:T(1,128)}', space=vmem, size = 0x12000, scoped, tag = 'internal scratch']
  %s0 = inlined_call_operand.vmem [shape: bf16[8,144], index: 0, kind: input, shape index: {}]
  %s1 = inlined_call_operand.vmem [shape: bf16[144,256], index: 1, kind: input, shape index: {}]
  %s2 = inlined_call_operand.vmem [shape: f32[8,256], index: 2, kind: output, shape index: {}]
  %s3 = sld [smem:[#allocation0]]
  $region82: #{forward.43} parent=0
    _
  %s5 = ssub.s32 1, %s3
  %s6 = scalar_select 0, %s5, %s3
  $region1: #{forward.43} parent=0
    #allocation2 [shape = 'u8[73728]{0}', space=vmem, size = 0x12000, scoped, tag = 'input window, operand 1']
    loop: start=0, step=1, limit=4
    $region2: #{forward.43} parent=1 // loop_pre_header
      _
    $region3: #{forward.43} parent=1 // loop_header
      %s8 = sphi 0, %s12
      %p9 = scmp.ge.s32.totalorder %s8, 4
      %s16 = sphi 0, %s16
      %s18 = sphi 0, %s16
      %s19 = sphi 0, %s18
      %s33 = sphi 0, %s19
      %s39 = sphi 0, %s41
      %s42 = sphi 0, %s39
      %s43 = sphi 0, %s42
      %s59 = sphi 0, %s43
      %s65 = sphi 0, %s67
      %s68 = sphi 0, %s65
      %s69 = sphi 0, %s68
      %s85 = sphi 0, %s69
    $region4: #{forward.43} parent=1 // loop_header_branch
      %11 = sbr.rel (%p9) target = $region8
    $region5: #{forward.43} parent=1 // loop_body
      %s13 = ssub.s32 %s8, 1
      %s14 = ssub.s32 %s8, 2
      %s15 = sadd.s32 %s8, 1
      %s17 = sadd.s32 %s16, 1
      %p20 = scmp.eq.s32.totalorder %s8, 1
      %p21 = scmp.ne.s32.totalorder %s16, %s18
      %p22 = scmp.eq.s32.totalorder %s8, 0
      %p23 = por %p21, %p22
      %p24 = scmp.ne.s32.totalorder %s16, %s18
      %p25 = scmp.eq.s32.totalorder %s13, 1
      %p26 = por %p24, %p25
      %p27 = scmp.ne.s32.totalorder %s18, %s19
      %p28 = scmp.eq.s32.totalorder %s13, 0
      %p29 = por %p27, %p28
      %p30 = scmp.ne.s32.totalorder %s18, %s19
      %p31 = scmp.eq.s32.totalorder %s14, 1
      %p32 = por %p30, %p31
      %p34 = scmp.ne.s32.totalorder %s19, %s33
      %p35 = scmp.eq.s32.totalorder %s14, 0
      %p36 = por %p34, %p35
      %s37 = ssub.s32 %s8, %s15
      %p38 = scmp.eq.s32.totalorder %s37, 0
      %s40 = sadd.s32 %s39, 1
      %s41 = scalar_select %p38, %s39, %s40
      %p44 = pneg %p38
      %p45 = scmp.eq.s32.totalorder %s8, 1
      %p46 = por %p44, %p45
      %p47 = scmp.ne.s32.totalorder %s39, %s42
      %p48 = scmp.eq.s32.totalorder %s8, 0
      %p49 = por %p47, %p48
      %p50 = scmp.ne.s32.totalorder %s39, %s42
      %p51 = scmp.eq.s32.totalorder %s13, 1
      %p52 = por %p50, %p51
      %p53 = scmp.ne.s32.totalorder %s42, %s43
      %p54 = scmp.eq.s32.totalorder %s13, 0
      %p55 = por %p53, %p54
      %p56 = scmp.ne.s32.totalorder %s42, %s43
      %p57 = scmp.eq.s32.totalorder %s14, 1
      %p58 = por %p56, %p57
      %p60 = scmp.ne.s32.totalorder %s43, %s59
      %p61 = scmp.eq.s32.totalorder %s14, 0
      %p62 = por %p60, %p61
      %s63 = ssub.s32 %s8, %s15
      %p64 = scmp.eq.s32.totalorder %s63, 0
      %s66 = sadd.s32 %s65, 1
      %s67 = scalar_select %p64, %s65, %s66
      %p70 = pneg %p64
      %p71 = scmp.eq.s32.totalorder %s8, 1
      %p72 = por %p70, %p71
      %p73 = scmp.ne.s32.totalorder %s65, %s68
      %p74 = scmp.eq.s32.totalorder %s8, 0
      %p75 = por %p73, %p74
      %p76 = scmp.ne.s32.totalorder %s65, %s68
      %p77 = scmp.eq.s32.totalorder %s13, 1
      %p78 = por %p76, %p77
      %p79 = scmp.ne.s32.totalorder %s68, %s69
      %p80 = scmp.eq.s32.totalorder %s13, 0
      %p81 = por %p79, %p80
      %p82 = scmp.ne.s32.totalorder %s68, %s69
      %p83 = scmp.eq.s32.totalorder %s14, 1
      %p84 = por %p82, %p83
      %p86 = scmp.ne.s32.totalorder %s69, %s85
      %p87 = scmp.eq.s32.totalorder %s14, 0
      %p88 = por %p86, %p87
      %p89 = scmp.le.s32.totalorder 1, %s8
      %p90 = scmp.lt.s32.totalorder %s8, 3
      %p91 = pnand %p89, %p90
      %p92 = pneg %p91
      // Predicated region
      $region9: #{forward.43} parent=5 // pred_check
        _
      $region10: #{forward.43} parent=5 // pred_check_branch
        %94 = sbr.rel (%p91) target = $region12
      $region11: #{forward.43} parent=5 // pred_region
        %s95 = ssub.s32 %s8, 1
        // Predicated region
        $region13: #{forward.43} parent=11 // pred_check
          %p96 = pneg %p29
        $region14: #{forward.43} parent=11 // pred_check_branch
          %98 = sbr.rel (%p96) target = $region16
        $region15: #{forward.43} parent=11 // pred_region
          _
        $region16: #{forward.43} parent=11 // pred_fallthru
          _
      $region12: #{forward.43} parent=5 // pred_fallthru
        _
      %p99 = scmp.lt.s32.totalorder %s8, 2
      // Predicated region
      $region17: #{forward.43} parent=5 // pred_check
        %p100 = pneg %p99
      $region18: #{forward.43} parent=5 // pred_check_branch
        %102 = sbr.rel (%p100) target = $region20
      $region19: #{forward.43} parent=5 // pred_region
        // Predicated region
        $region21: #{forward.43} parent=19 // pred_check
          %p103 = pneg %p49
        $region22: #{forward.43} parent=19 // pred_check_branch
          %105 = sbr.rel (%p103) target = $region24
        $region23: #{forward.43} parent=19 // pred_region
          %s106 = sand.u32 %s39, 1
          %s107 = sand.u32 %s39, 1
          %s108 = smul.addr %s107, 72
          %s109 = scalar_lea.vmem [#allocation2], %s108
          %s110 = smul.addr %s8, 4
          %s111 = scalar_lea.vmem %s1, %s110
          // Predicated region
          $region25: #{forward.43} parent=23 // pred_check
            _
          $region26: #{forward.43} parent=23 // pred_check_branch
            %113 = sbr.rel (0) target = $region28
          $region27: #{forward.43} parent=23 // pred_region
            // Predicated region
            $region29: #{forward.43} parent=27 // pred_check
              _
            $region30: #{forward.43} parent=27 // pred_check_branch
              %115 = sbr.rel target = $region32
            $region31: #{forward.43} parent=27 // pred_region
              // Predicated region
              $region44: #{forward.43} parent=31 // pred_check
                _
              $region45: #{forward.43} parent=31 // pred_check_branch
                %164 = sbr.rel (0) target = $region47
              $region46: #{forward.43} parent=31 // pred_region
                loop: start=0, step=1, limit=1
                $region48: #{forward.43} parent=46 // loop_pre_header
                  _
                $region49: #{forward.43} parent=46 // loop_header
                  %s166 = sphi 0, %s170
                  %p167 = scmp.ge.s32.totalorder %s166, 1
                  %s171 = sphi %s111, %s111
                  %s172 = sphi %s109, %s109
                $region50: #{forward.43} parent=46 // loop_header_branch
                  %169 = sbr.rel (%p167) target = $region54
                $region51: #{forward.43} parent=46 // loop_body
                  _
                $region52: #{forward.43} parent=46 // loop_footer
                  %s170 = sadd.s32 1, %s166
                $region53: #{forward.43} parent=46 // loop_footer_branch
                  %165 = sbr.rel target = $region49
                $region54: #{forward.43} parent=46 // loop_exit
                  _
                loop: start=0, step=1, limit=1
                $region55: #{forward.43} parent=46 // loop_pre_header
                  _
                $region56: #{forward.43} parent=46 // loop_header
                  %s175 = sphi 0, %s179
                  %p176 = scmp.ge.s32.totalorder %s175, 1
                  %s180 = sphi %s111, %s111
                  %s181 = sphi %s109, %s109
                $region57: #{forward.43} parent=46 // loop_header_branch
                  %178 = sbr.rel (%p176) target = $region61
                $region58: #{forward.43} parent=46 // loop_body
                  %v182 = vld [vmem:[%s180] sm:$0xf]
                  %183 = vst [vmem:[%s181] sm:$0xf] %v182
                  %v184 = vld [vmem:[%s180 + $0x8] sm:$0xf]
                  %185 = vst [vmem:[%s181 + $0x4] sm:$0xf] %v184
                  %v186 = vld [vmem:[%s180 + $0x10] sm:$0xf]
                  %187 = vst [vmem:[%s181 + $0x8] sm:$0xf] %v186
                  %v188 = vld [vmem:[%s180 + $0x18] sm:$0xf]
                  %189 = vst [vmem:[%s181 + $0xc] sm:$0xf] %v188
                  %v190 = vld [vmem:[%s180 + $0x20] sm:$0xf]
                  %191 = vst [vmem:[%s181 + $0x10] sm:$0xf] %v190
                  %v192 = vld [vmem:[%s180 + $0x28] sm:$0xf]
                  %193 = vst [vmem:[%s181 + $0x14] sm:$0xf] %v192
                  %v194 = vld [vmem:[%s180 + $0x30] sm:$0xf]
                  %195 = vst [vmem:[%s181 + $0x18] sm:$0xf] %v194
                  %v196 = vld [vmem:[%s180 + $0x38] sm:$0xf]
                  %197 = vst [vmem:[%s181 + $0x1c] sm:$0xf] %v196
                  %v198 = vld [vmem:[%s180 + $0x40] sm:$0xf]
                  %199 = vst [vmem:[%s181 + $0x20] sm:$0xf] %v198
                  %v200 = vld [vmem:[%s180 + $0x48] sm:$0xf]
                  %201 = vst [vmem:[%s181 + $0x24] sm:$0xf] %v200
                  %v202 = vld [vmem:[%s180 + $0x50] sm:$0xf]
                  %203 = vst [vmem:[%s181 + $0x28] sm:$0xf] %v202
                  %v204 = vld [vmem:[%s180 + $0x58] sm:$0xf]
                  %205 = vst [vmem:[%s181 + $0x2c] sm:$0xf] %v204
                  %v206 = vld [vmem:[%s180 + $0x60] sm:$0xf]
                  %207 = vst [vmem:[%s181 + $0x30] sm:$0xf] %v206
                  %v208 = vld [vmem:[%s180 + $0x68] sm:$0xf]
                  %209 = vst [vmem:[%s181 + $0x34] sm:$0xf] %v208
                  %v210 = vld [vmem:[%s180 + $0x70] sm:$0xf]
                  %211 = vst [vmem:[%s181 + $0x38] sm:$0xf] %v210
                  %v212 = vld [vmem:[%s180 + $0x78] sm:$0xf]
                  %213 = vst [vmem:[%s181 + $0x3c] sm:$0xf] %v212
                  %v214 = vld [vmem:[%s180 + $0x80] sm:$0xf]
                  %215 = vst [vmem:[%s181 + $0x40] sm:$0xf] %v214
                  %v216 = vld [vmem:[%s180 + $0x88] sm:$0xf]
                  %217 = vst [vmem:[%s181 + $0x44] sm:$0xf] %v216
                $region59: #{forward.43} parent=46 // loop_footer
                  %s179 = sadd.s32 1, %s175
                $region60: #{forward.43} parent=46 // loop_footer_branch
                  %174 = sbr.rel target = $region56
                $region61: #{forward.43} parent=46 // loop_exit
                  _
              $region47: #{forward.43} parent=31 // pred_fallthru
                _
            $region32: #{forward.43} parent=27 // pred_fallthru
              _
            // Predicated region
            $region33: #{forward.43} parent=27 // pred_check
              _
            $region34: #{forward.43} parent=27 // pred_check_branch
              %117 = sbr.rel (0) target = $region36
            $region35: #{forward.43} parent=27 // pred_region
              loop: start=0, step=1, limit=1
              $region37: #{forward.43} parent=35 // loop_pre_header
                _
              $region38: #{forward.43} parent=35 // loop_header
                %s120 = sphi 0, %s124
                %p121 = scmp.ge.s32.totalorder %s120, 1
                %s125 = sphi %s111, %s111
                %s126 = sphi %s109, %s109
              $region39: #{forward.43} parent=35 // loop_header_branch
                %123 = sbr.rel (%p121) target = $region43
              $region40: #{forward.43} parent=35 // loop_body
                %v127 = vld [vmem:[%s125] sm:$0xf]
                %128 = vst [vmem:[%s126] sm:$0xf] %v127
                %v129 = vld [vmem:[%s125 + $0x8] sm:$0xf]
                %130 = vst [vmem:[%s126 + $0x4] sm:$0xf] %v129
                %v131 = vld [vmem:[%s125 + $0x10] sm:$0xf]
                %132 = vst [vmem:[%s126 + $0x8] sm:$0xf] %v131
                %v133 = vld [vmem:[%s125 + $0x18] sm:$0xf]
                %134 = vst [vmem:[%s126 + $0xc] sm:$0xf] %v133
                %v135 = vld [vmem:[%s125 + $0x20] sm:$0xf]
                %136 = vst [vmem:[%s126 + $0x10] sm:$0xf] %v135
                %v137 = vld [vmem:[%s125 + $0x28] sm:$0xf]
                %138 = vst [vmem:[%s126 + $0x14] sm:$0xf] %v137
                %v139 = vld [vmem:[%s125 + $0x30] sm:$0xf]
                %140 = vst [vmem:[%s126 + $0x18] sm:$0xf] %v139
                %v141 = vld [vmem:[%s125 + $0x38] sm:$0xf]
                %142 = vst [vmem:[%s126 + $0x1c] sm:$0xf] %v141
                %v143 = vld [vmem:[%s125 + $0x40] sm:$0xf]
                %144 = vst [vmem:[%s126 + $0x20] sm:$0xf] %v143
                %v145 = vld [vmem:[%s125 + $0x48] sm:$0xf]
                %146 = vst [vmem:[%s126 + $0x24] sm:$0xf] %v145
                %v147 = vld [vmem:[%s125 + $0x50] sm:$0xf]
                %148 = vst [vmem:[%s126 + $0x28] sm:$0xf] %v147
                %v149 = vld [vmem:[%s125 + $0x58] sm:$0xf]
                %150 = vst [vmem:[%s126 + $0x2c] sm:$0xf] %v149
                %v151 = vld [vmem:[%s125 + $0x60] sm:$0xf]
                %152 = vst [vmem:[%s126 + $0x30] sm:$0xf] %v151
                %v153 = vld [vmem:[%s125 + $0x68] sm:$0xf]
                %154 = vst [vmem:[%s126 + $0x34] sm:$0xf] %v153
                %v155 = vld [vmem:[%s125 + $0x70] sm:$0xf]
                %156 = vst [vmem:[%s126 + $0x38] sm:$0xf] %v155
                %v157 = vld [vmem:[%s125 + $0x78] sm:$0xf]
                %158 = vst [vmem:[%s126 + $0x3c] sm:$0xf] %v157
                %v159 = vld [vmem:[%s125 + $0x80] sm:$0xf]
                %160 = vst [vmem:[%s126 + $0x40] sm:$0xf] %v159
                %v161 = vld [vmem:[%s125 + $0x88] sm:$0xf]
                %162 = vst [vmem:[%s126 + $0x44] sm:$0xf] %v161
              $region41: #{forward.43} parent=35 // loop_footer
                %s124 = sadd.s32 1, %s120
              $region42: #{forward.43} parent=35 // loop_footer_branch
                %119 = sbr.rel target = $region38
              $region43: #{forward.43} parent=35 // loop_exit
                _
            $region36: #{forward.43} parent=27 // pred_fallthru
              _
          $region28: #{forward.43} parent=23 // pred_fallthru
            _
          %218 = vnop
        $region24: #{forward.43} parent=19 // pred_fallthru
          _
      $region20: #{forward.43} parent=5 // pred_fallthru
        _
      %p219 = scmp.le.s32.totalorder 1, %s8
      %p220 = scmp.lt.s32.totalorder %s8, 3
      %p221 = pnand %p219, %p220
      %p222 = pneg %p221
      // Predicated region
      $region62: #{forward.43} parent=5 // pred_check
        _
      $region63: #{forward.43} parent=5 // pred_check_branch
        %224 = sbr.rel (%p221) target = $region65
      $region64: #{forward.43} parent=5 // pred_region
        %s225 = ssub.s32 %s8, 1
        %s226 = sand.u32 %s42, 1
        %s227 = sand.u32 %s42, 1
        %s228 = smul.addr %s227, 72
        %s229 = scalar_lea.vmem [#allocation2], %s228
        // Predicated region
        $region66: #{forward.43} parent=64 // pred_check
          %p230 = pneg %p55
        $region67: #{forward.43} parent=64 // pred_check_branch
          %232 = sbr.rel (%p230) target = $region69
        $region68: #{forward.43} parent=64 // pred_region
          _
        $region69: #{forward.43} parent=64 // pred_fallthru
          _
        %p233 = pneg %p29
        %p234 = pneg %p26
        %s235 = sand.u32 %s42, 1
        %s236 = sand.u32 %s42, 1
        %s237 = smul.addr %s236, 72
        %s238 = scalar_lea.vmem [#allocation2], %s237
        %p239 = pneg %p55
        %p240 = pneg %p52
        %p241 = pneg %p81
        %p242 = pneg %p78
        %p243 = scmp.lt.s32.totalorder %s13, 1
        %s244 = scalar_select %p243, %s13, 1
        %s245 = smul.addr %s244, 8
        %s246 = scalar_lea.vmem %s2, %s245
        %p247 = scmp.lt.s32.totalorder %s13, 1
        %s248 = scalar_select %p247, %s13, 1
        %s249 = smul.addr %s248, 8
        %s250 = scalar_lea.vmem %s2, %s249
        %v253 = vld [vmem:[%s229] sm:$0xf]
        %v254 = vld [vmem:[%s229 + $0x4] sm:$0xf]
        %v255 = vld [vmem:[%s229 + $0x8] sm:$0xf]
        %v256 = vld [vmem:[%s229 + $0xc] sm:$0xf]
        %v257 = vld [vmem:[%s229 + $0x10] sm:$0xf]
        %v258 = vld [vmem:[%s229 + $0x14] sm:$0xf]
        %v259 = vld [vmem:[%s229 + $0x18] sm:$0xf]
        %v260 = vld [vmem:[%s229 + $0x1c] sm:$0xf]
        %v261 = vld [vmem:[%s229 + $0x20] sm:$0xf]
        %v262 = vld [vmem:[%s229 + $0x24] sm:$0xf]
        %v263 = vld [vmem:[%s229 + $0x28] sm:$0xf]
        %v264 = vld [vmem:[%s229 + $0x2c] sm:$0xf]
        %v265 = vld [vmem:[%s229 + $0x30] sm:$0xf]
        %v266 = vld [vmem:[%s229 + $0x34] sm:$0xf]
        %v267 = vld [vmem:[%s229 + $0x38] sm:$0xf]
        %v268 = vld [vmem:[%s229 + $0x3c] sm:$0xf]
        %v269 = vld [vmem:[%s229 + $0x40] sm:$0xf]
        %v270 = vld [vmem:[%s229 + $0x44] sm:$0xf]
        %vm271 = vcmp.ge.bf16.partialorder %v253, 0
        %vm272 = vcmp.ge.bf16.partialorder %v254, 0
        %vm273 = vcmp.ge.bf16.partialorder %v255, 0
        %vm274 = vcmp.ge.bf16.partialorder %v256, 0
        %vm275 = vcmp.ge.bf16.partialorder %v257, 0
        %vm276 = vcmp.ge.bf16.partialorder %v258, 0
        %vm277 = vcmp.ge.bf16.partialorder %v259, 0
        %vm278 = vcmp.ge.bf16.partialorder %v260, 0
        %vm279 = vcmp.ge.bf16.partialorder %v261, 0
        %vm280 = vcmp.ge.bf16.partialorder %v262, 0
        %vm281 = vcmp.ge.bf16.partialorder %v263, 0
        %vm282 = vcmp.ge.bf16.partialorder %v264, 0
        %vm283 = vcmp.ge.bf16.partialorder %v265, 0
        %vm284 = vcmp.ge.bf16.partialorder %v266, 0
        %vm285 = vcmp.ge.bf16.partialorder %v267, 0
        %vm286 = vcmp.ge.bf16.partialorder %v268, 0
        %vm287 = vcmp.ge.bf16.partialorder %v269, 0
        %vm288 = vcmp.ge.bf16.partialorder %v270, 0
        %v289 = vmul.bf16 %v253, 1036860877
        %v290 = vmul.bf16 %v254, 1036860877
        %v291 = vmul.bf16 %v255, 1036860877
        %v292 = vmul.bf16 %v256, 1036860877
        %v293 = vmul.bf16 %v257, 1036860877
        %v294 = vmul.bf16 %v258, 1036860877
        %v295 = vmul.bf16 %v259, 1036860877
        %v296 = vmul.bf16 %v260, 1036860877
        %v297 = vmul.bf16 %v261, 1036860877
        %v298 = vmul.bf16 %v262, 1036860877
        %v299 = vmul.bf16 %v263, 1036860877
        %v300 = vmul.bf16 %v264, 1036860877
        %v301 = vmul.bf16 %v265, 1036860877
        %v302 = vmul.bf16 %v266, 1036860877
        %v303 = vmul.bf16 %v267, 1036860877
        %v304 = vmul.bf16 %v268, 1036860877
        %v305 = vmul.bf16 %v269, 1036860877
        %v306 = vmul.bf16 %v270, 1036860877
        %v307 = vsel %vm271, %v253, %v289
        %v308 = vsel %vm272, %v254, %v290
        %v309 = vsel %vm273, %v255, %v291
        %v310 = vsel %vm274, %v256, %v292
        %v311 = vsel %vm275, %v257, %v293
        %v312 = vsel %vm276, %v258, %v294
        %v313 = vsel %vm277, %v259, %v295
        %v314 = vsel %vm278, %v260, %v296
        %v315 = vsel %vm279, %v261, %v297
        %v316 = vsel %vm280, %v262, %v298
        %v317 = vsel %vm281, %v263, %v299
        %v318 = vsel %vm282, %v264, %v300
        %v319 = vsel %vm283, %v265, %v301
        %v320 = vsel %vm284, %v266, %v302
        %v321 = vsel %vm285, %v267, %v303
        %v322 = vsel %vm286, %v268, %v304
        %v323 = vsel %vm287, %v269, %v305
        %v324 = vsel %vm288, %v270, %v306
        %v325 = vld [vmem:[%s0] sm:$0xff]
        %v327 = vunpack.c.l.b16 %v325
        %v328 = vunpack.c.h.b16 %v325
        %v329 = vpack.c.b16 %v327, %v327
        %v330 = vpack.c.b16 %v328, %v328
        %v350 = vunpack.c.l.b16 %v307
        %v351 = vunpack.c.l.b16 %v308
        %v352 = vunpack.c.l.b16 %v309
        %v353 = vunpack.c.l.b16 %v310
        %v354 = vunpack.c.l.b16 %v311
        %v355 = vunpack.c.l.b16 %v312
        %v356 = vunpack.c.l.b16 %v313
        %v357 = vunpack.c.l.b16 %v314
        %v358 = vunpack.c.l.b16 %v315
        %v359 = vunpack.c.l.b16 %v316
        %v360 = vunpack.c.l.b16 %v317
        %v361 = vunpack.c.l.b16 %v318
        %v362 = vunpack.c.l.b16 %v319
        %v363 = vunpack.c.l.b16 %v320
        %v364 = vunpack.c.l.b16 %v321
        %v365 = vunpack.c.l.b16 %v322
        %v366 = vunpack.c.l.b16 %v323
        %v367 = vunpack.c.l.b16 %v324
        %v368 = vpack.c.b16 %v351, %v350
        %v369 = vpack.c.b16 %v353, %v352
        %v370 = vpack.c.b16 %v355, %v354
        %v371 = vpack.c.b16 %v357, %v356
        %v372 = vpack.c.b16 %v359, %v358
        %v373 = vpack.c.b16 %v361, %v360
        %v374 = vpack.c.b16 %v363, %v362
        %v375 = vpack.c.b16 %v365, %v364
        %v376 = vpack.c.b16 %v367, %v366
        %vm386 = vcmask 130048
        %v388 = vsel %vm386, %v330, 0
        %390 = vmatprep.subr.bf16.mxu0 0
        %391 = vmatpush1.bf16.msra.mxu0 %v368
        %392 = vmatprep.subr.bf16.mxu0 0
        %393 = vmatpush1.bf16.msra.mxu0 %v369
        %394 = vmatprep.subr.bf16.mxu0 0
        %395 = vmatpush1.bf16.msra.mxu0 %v370
        %396 = vmatprep.subr.bf16.mxu0 0
        %397 = vmatpush1.bf16.msra.mxu0 %v371
        %398 = vmatprep.subr.bf16.mxu0 0
        %399 = vmatpush1.bf16.msra.mxu0 %v372
        %400 = vmatprep.subr.bf16.mxu0 0
        %401 = vmatpush1.bf16.msra.mxu0 %v373
        %402 = vmatprep.subr.bf16.mxu0 0
        %403 = vmatpush1.bf16.msra.mxu0 %v374
        %404 = vmatprep.subr.bf16.mxu0 0
        %405 = vmatpush1.bf16.msra.mxu0 %v375
        %406 = vmatprep.subr.bf16.mxu0 0
        %407 = vmatpush1.bf16.msra.mxu0 %v376
        %408 = vmatprep.subr.bf16.mxu0 0
        %409 = vmatpush1.bf16.msra.mxu0 0
        %410 = vmatprep.subr.bf16.mxu0 0
        %411 = vmatpush1.bf16.msra.mxu0 0
        %412 = vmatprep.subr.bf16.mxu0 0
        %413 = vmatpush1.bf16.msra.mxu0 0
        %414 = vmatprep.subr.bf16.mxu0 0
        %415 = vmatpush1.bf16.msra.mxu0 0
        %416 = vmatprep.subr.bf16.mxu0 0
        %417 = vmatpush1.bf16.msra.mxu0 0
        %418 = vmatprep.subr.bf16.mxu0 0
        %419 = vmatpush1.bf16.msra.mxu0 0
        %420 = vmatprep.subr.bf16.mxu0 0
        %421 = vmatpush1.bf16.msra.mxu0 0
        %422 = vmatprep.mubr.bf16.mxu0 %v388
        %423 = vmatmul.mubr.bf16.gmra.mrb[0].mxu0 %v329
        %v424 = vpop.f32.mrb[0].mxu0
        %v425 = vadd.f32 0.0, %v424
        %v426 = vpop.f32.mrb[0].mxu0
        %v427 = vpop.f32.mrb[0].mxu0
        %v428 = vpop.f32.mrb[0].mxu0
        %429 = vdwg.mxu0
        %430 = vst [vmem:[%s250] sm:$0xff] %v425
        %p431 = scmp.lt.s32.totalorder %s13, 1
        %s432 = scalar_select %p431, %s13, 1
        %s433 = smul.addr %s432, 8
        %s434 = scalar_lea.vmem %s2, %s433
        // Predicated region
        $region70: #{forward.43} parent=64 // pred_check
          %p435 = pneg %p78
        $region71: #{forward.43} parent=64 // pred_check_branch
          %437 = sbr.rel (%p435) target = $region73
        $region72: #{forward.43} parent=64 // pred_region
          _
        $region73: #{forward.43} parent=64 // pred_fallthru
          _
      $region65: #{forward.43} parent=5 // pred_fallthru
        _
      %p438 = scmp.le.s32.totalorder 2, %s8
      // Predicated region
      $region74: #{forward.43} parent=5 // pred_check
        %p439 = pneg %p438
      $region75: #{forward.43} parent=5 // pred_check_branch
        %441 = sbr.rel (%p439) target = $region77
      $region76: #{forward.43} parent=5 // pred_region
        %s442 = ssub.s32 %s8, 2
        // Predicated region
        $region78: #{forward.43} parent=76 // pred_check
          %p443 = pneg %p84
        $region79: #{forward.43} parent=76 // pred_check_branch
          %445 = sbr.rel (%p443) target = $region81
        $region80: #{forward.43} parent=76 // pred_region
          %p446 = scmp.lt.s32.totalorder %s14, 1
          %s447 = scalar_select %p446, %s14, 1
          %s448 = smul.addr %s447, 8
          %s449 = scalar_lea.vmem %s2, %s448
        $region81: #{forward.43} parent=76 // pred_fallthru
          _
      $region77: #{forward.43} parent=5 // pred_fallthru
        _
    $region6: #{forward.43} parent=1 // loop_footer
      %s12 = sadd.s32 1, %s8
    $region7: #{forward.43} parent=1 // loop_footer_branch
      %7 = sbr.rel target = $region3
    $region8: #{forward.43} parent=1 // loop_exit
      _

// kernel: forward.50
$region0: #{forward.50}
  #allocation0 [shape = 'u32[]', space=smem, size = 0x4, offset = 0x4, fixed_abs, tag = 'smem constant byte address 0x4 - core index']
  #allocation1 [shape = 'u32[144,128]{1,0:T(1,128)}', space=vmem, size = 0x12000, scoped, tag = 'internal scratch']
  %s0 = inlined_call_operand.vmem [shape: bf16[8,48], index: 0, kind: input, shape index: {}]
  %s1 = inlined_call_operand.vmem [shape: bf16[48,256], index: 1, kind: input, shape index: {}]
  %s2 = inlined_call_operand.vmem [shape: f32[8,256], index: 2, kind: output, shape index: {}]
  %s3 = sld [smem:[#allocation0]]
  $region82: #{forward.50} parent=0
    _
  %s5 = ssub.s32 1, %s3
  %s6 = scalar_select 0, %s5, %s3
  $region1: #{forward.50} parent=0
    #allocation2 [shape = 'u8[24576]{0}', space=vmem, size = 0x6000, scoped, tag = 'input window, operand 1']
    loop: start=0, step=1, limit=4
    $region2: #{forward.50} parent=1 // loop_pre_header
      _
    $region3: #{forward.50} parent=1 // loop_header
      %s8 = sphi 0, %s12
      %p9 = scmp.ge.s32.totalorder %s8, 4
      %s16 = sphi 0, %s16
      %s18 = sphi 0, %s16
      %s19 = sphi 0, %s18
      %s33 = sphi 0, %s19
      %s39 = sphi 0, %s41
      %s42 = sphi 0, %s39
      %s43 = sphi 0, %s42
      %s59 = sphi 0, %s43
      %s65 = sphi 0, %s67
      %s68 = sphi 0, %s65
      %s69 = sphi 0, %s68
      %s85 = sphi 0, %s69
    $region4: #{forward.50} parent=1 // loop_header_branch
      %11 = sbr.rel (%p9) target = $region8
    $region5: #{forward.50} parent=1 // loop_body
      %s13 = ssub.s32 %s8, 1
      %s14 = ssub.s32 %s8, 2
      %s15 = sadd.s32 %s8, 1
      %s17 = sadd.s32 %s16, 1
      %p20 = scmp.eq.s32.totalorder %s8, 1
      %p21 = scmp.ne.s32.totalorder %s16, %s18
      %p22 = scmp.eq.s32.totalorder %s8, 0
      %p23 = por %p21, %p22
      %p24 = scmp.ne.s32.totalorder %s16, %s18
      %p25 = scmp.eq.s32.totalorder %s13, 1
      %p26 = por %p24, %p25
      %p27 = scmp.ne.s32.totalorder %s18, %s19
      %p28 = scmp.eq.s32.totalorder %s13, 0
      %p29 = por %p27, %p28
      %p30 = scmp.ne.s32.totalorder %s18, %s19
      %p31 = scmp.eq.s32.totalorder %s14, 1
      %p32 = por %p30, %p31
      %p34 = scmp.ne.s32.totalorder %s19, %s33
      %p35 = scmp.eq.s32.totalorder %s14, 0
      %p36 = por %p34, %p35
      %s37 = ssub.s32 %s8, %s15
      %p38 = scmp.eq.s32.totalorder %s37, 0
      %s40 = sadd.s32 %s39, 1
      %s41 = scalar_select %p38, %s39, %s40
      %p44 = pneg %p38
      %p45 = scmp.eq.s32.totalorder %s8, 1
      %p46 = por %p44, %p45
      %p47 = scmp.ne.s32.totalorder %s39, %s42
      %p48 = scmp.eq.s32.totalorder %s8, 0
      %p49 = por %p47, %p48
      %p50 = scmp.ne.s32.totalorder %s39, %s42
      %p51 = scmp.eq.s32.totalorder %s13, 1
      %p52 = por %p50, %p51
      %p53 = scmp.ne.s32.totalorder %s42, %s43
      %p54 = scmp.eq.s32.totalorder %s13, 0
      %p55 = por %p53, %p54
      %p56 = scmp.ne.s32.totalorder %s42, %s43
      %p57 = scmp.eq.s32.totalorder %s14, 1
      %p58 = por %p56, %p57
      %p60 = scmp.ne.s32.totalorder %s43, %s59
      %p61 = scmp.eq.s32.totalorder %s14, 0
      %p62 = por %p60, %p61
      %s63 = ssub.s32 %s8, %s15
      %p64 = scmp.eq.s32.totalorder %s63, 0
      %s66 = sadd.s32 %s65, 1
      %s67 = scalar_select %p64, %s65, %s66
      %p70 = pneg %p64
      %p71 = scmp.eq.s32.totalorder %s8, 1
      %p72 = por %p70, %p71
      %p73 = scmp.ne.s32.totalorder %s65, %s68
      %p74 = scmp.eq.s32.totalorder %s8, 0
      %p75 = por %p73, %p74
      %p76 = scmp.ne.s32.totalorder %s65, %s68
      %p77 = scmp.eq.s32.totalorder %s13, 1
      %p78 = por %p76, %p77
      %p79 = scmp.ne.s32.totalorder %s68, %s69
      %p80 = scmp.eq.s32.totalorder %s13, 0
      %p81 = por %p79, %p80
      %p82 = scmp.ne.s32.totalorder %s68, %s69
      %p83 = scmp.eq.s32.totalorder %s14, 1
      %p84 = por %p82, %p83
      %p86 = scmp.ne.s32.totalorder %s69, %s85
      %p87 = scmp.eq.s32.totalorder %s14, 0
      %p88 = por %p86, %p87
      %p89 = scmp.le.s32.totalorder 1, %s8
      %p90 = scmp.lt.s32.totalorder %s8, 3
      %p91 = pnand %p89, %p90
      %p92 = pneg %p91
      // Predicated region
      $region9: #{forward.50} parent=5 // pred_check
        _
      $region10: #{forward.50} parent=5 // pred_check_branch
        %94 = sbr.rel (%p91) target = $region12
      $region11: #{forward.50} parent=5 // pred_region
        %s95 = ssub.s32 %s8, 1
        // Predicated region
        $region13: #{forward.50} parent=11 // pred_check
          %p96 = pneg %p29
        $region14: #{forward.50} parent=11 // pred_check_branch
          %98 = sbr.rel (%p96) target = $region16
        $region15: #{forward.50} parent=11 // pred_region
          _
        $region16: #{forward.50} parent=11 // pred_fallthru
          _
      $region12: #{forward.50} parent=5 // pred_fallthru
        _
      %p99 = scmp.lt.s32.totalorder %s8, 2
      // Predicated region
      $region17: #{forward.50} parent=5 // pred_check
        %p100 = pneg %p99
      $region18: #{forward.50} parent=5 // pred_check_branch
        %102 = sbr.rel (%p100) target = $region20
      $region19: #{forward.50} parent=5 // pred_region
        // Predicated region
        $region21: #{forward.50} parent=19 // pred_check
          %p103 = pneg %p49
        $region22: #{forward.50} parent=19 // pred_check_branch
          %105 = sbr.rel (%p103) target = $region24
        $region23: #{forward.50} parent=19 // pred_region
          %s106 = sand.u32 %s39, 1
          %s107 = sand.u32 %s39, 1
          %s108 = smul.addr %s107, 24
          %s109 = scalar_lea.vmem [#allocation2], %s108
          %s110 = smul.addr %s8, 4
          %s111 = scalar_lea.vmem %s1, %s110
          // Predicated region
          $region25: #{forward.50} parent=23 // pred_check
            _
          $region26: #{forward.50} parent=23 // pred_check_branch
            %113 = sbr.rel (0) target = $region28
          $region27: #{forward.50} parent=23 // pred_region
            // Predicated region
            $region29: #{forward.50} parent=27 // pred_check
              _
            $region30: #{forward.50} parent=27 // pred_check_branch
              %115 = sbr.rel target = $region32
            $region31: #{forward.50} parent=27 // pred_region
              // Predicated region
              $region44: #{forward.50} parent=31 // pred_check
                _
              $region45: #{forward.50} parent=31 // pred_check_branch
                %140 = sbr.rel (0) target = $region47
              $region46: #{forward.50} parent=31 // pred_region
                loop: start=0, step=1, limit=1
                $region48: #{forward.50} parent=46 // loop_pre_header
                  _
                $region49: #{forward.50} parent=46 // loop_header
                  %s142 = sphi 0, %s146
                  %p143 = scmp.ge.s32.totalorder %s142, 1
                  %s147 = sphi %s111, %s111
                  %s148 = sphi %s109, %s109
                $region50: #{forward.50} parent=46 // loop_header_branch
                  %145 = sbr.rel (%p143) target = $region54
                $region51: #{forward.50} parent=46 // loop_body
                  _
                $region52: #{forward.50} parent=46 // loop_footer
                  %s146 = sadd.s32 1, %s142
                $region53: #{forward.50} parent=46 // loop_footer_branch
                  %141 = sbr.rel target = $region49
                $region54: #{forward.50} parent=46 // loop_exit
                  _
                loop: start=0, step=1, limit=1
                $region55: #{forward.50} parent=46 // loop_pre_header
                  _
                $region56: #{forward.50} parent=46 // loop_header
                  %s151 = sphi 0, %s155
                  %p152 = scmp.ge.s32.totalorder %s151, 1
                  %s156 = sphi %s111, %s111
                  %s157 = sphi %s109, %s109
                $region57: #{forward.50} parent=46 // loop_header_branch
                  %154 = sbr.rel (%p152) target = $region61
                $region58: #{forward.50} parent=46 // loop_body
                  %v158 = vld [vmem:[%s156] sm:$0xf]
                  %159 = vst [vmem:[%s157] sm:$0xf] %v158
                  %v160 = vld [vmem:[%s156 + $0x8] sm:$0xf]
                  %161 = vst [vmem:[%s157 + $0x4] sm:$0xf] %v160
                  %v162 = vld [vmem:[%s156 + $0x10] sm:$0xf]
                  %163 = vst [vmem:[%s157 + $0x8] sm:$0xf] %v162
                  %v164 = vld [vmem:[%s156 + $0x18] sm:$0xf]
                  %165 = vst [vmem:[%s157 + $0xc] sm:$0xf] %v164
                  %v166 = vld [vmem:[%s156 + $0x20] sm:$0xf]
                  %167 = vst [vmem:[%s157 + $0x10] sm:$0xf] %v166
                  %v168 = vld [vmem:[%s156 + $0x28] sm:$0xf]
                  %169 = vst [vmem:[%s157 + $0x14] sm:$0xf] %v168
                $region59: #{forward.50} parent=46 // loop_footer
                  %s155 = sadd.s32 1, %s151
                $region60: #{forward.50} parent=46 // loop_footer_branch
                  %150 = sbr.rel target = $region56
                $region61: #{forward.50} parent=46 // loop_exit
                  _
              $region47: #{forward.50} parent=31 // pred_fallthru
                _
            $region32: #{forward.50} parent=27 // pred_fallthru
              _
            // Predicated region
            $region33: #{forward.50} parent=27 // pred_check
              _
            $region34: #{forward.50} parent=27 // pred_check_branch
              %117 = sbr.rel (0) target = $region36
            $region35: #{forward.50} parent=27 // pred_region
              loop: start=0, step=1, limit=1
              $region37: #{forward.50} parent=35 // loop_pre_header
                _
              $region38: #{forward.50} parent=35 // loop_header
                %s120 = sphi 0, %s124
                %p121 = scmp.ge.s32.totalorder %s120, 1
                %s125 = sphi %s111, %s111
                %s126 = sphi %s109, %s109
              $region39: #{forward.50} parent=35 // loop_header_branch
                %123 = sbr.rel (%p121) target = $region43
              $region40: #{forward.50} parent=35 // loop_body
                %v127 = vld [vmem:[%s125] sm:$0xf]
                %128 = vst [vmem:[%s126] sm:$0xf] %v127
                %v129 = vld [vmem:[%s125 + $0x8] sm:$0xf]
                %130 = vst [vmem:[%s126 + $0x4] sm:$0xf] %v129
                %v131 = vld [vmem:[%s125 + $0x10] sm:$0xf]
                %132 = vst [vmem:[%s126 + $0x8] sm:$0xf] %v131
                %v133 = vld [vmem:[%s125 + $0x18] sm:$0xf]
                %134 = vst [vmem:[%s126 + $0xc] sm:$0xf] %v133
                %v135 = vld [vmem:[%s125 + $0x20] sm:$0xf]
                %136 = vst [vmem:[%s126 + $0x10] sm:$0xf] %v135
                %v137 = vld [vmem:[%s125 + $0x28] sm:$0xf]
                %138 = vst [vmem:[%s126 + $0x14] sm:$0xf] %v137
              $region41: #{forward.50} parent=35 // loop_footer
                %s124 = sadd.s32 1, %s120
              $region42: #{forward.50} parent=35 // loop_footer_branch
                %119 = sbr.rel target = $region38
              $region43: #{forward.50} parent=35 // loop_exit
                _
            $region36: #{forward.50} parent=27 // pred_fallthru
              _
          $region28: #{forward.50} parent=23 // pred_fallthru
            _
          %170 = vnop
        $region24: #{forward.50} parent=19 // pred_fallthru
          _
      $region20: #{forward.50} parent=5 // pred_fallthru
        _
      %p171 = scmp.le.s32.totalorder 1, %s8
      %p172 = scmp.lt.s32.totalorder %s8, 3
      %p173 = pnand %p171, %p172
      %p174 = pneg %p173
      // Predicated region
      $region62: #{forward.50} parent=5 // pred_check
        _
      $region63: #{forward.50} parent=5 // pred_check_branch
        %176 = sbr.rel (%p173) target = $region65
      $region64: #{forward.50} parent=5 // pred_region
        %s177 = ssub.s32 %s8, 1
        %s178 = sand.u32 %s42, 1
        %s179 = sand.u32 %s42, 1
        %s180 = smul.addr %s179, 24
        %s181 = scalar_lea.vmem [#allocation2], %s180
        // Predicated region
        $region66: #{forward.50} parent=64 // pred_check
          %p182 = pneg %p55
        $region67: #{forward.50} parent=64 // pred_check_branch
          %184 = sbr.rel (%p182) target = $region69
        $region68: #{forward.50} parent=64 // pred_region
          _
        $region69: #{forward.50} parent=64 // pred_fallthru
          _
        %p185 = pneg %p29
        %p186 = pneg %p26
        %s187 = sand.u32 %s42, 1
        %s188 = sand.u32 %s42, 1
        %s189 = smul.addr %s188, 24
        %s190 = scalar_lea.vmem [#allocation2], %s189
        %p191 = pneg %p55
        %p192 = pneg %p52
        %p193 = pneg %p81
        %p194 = pneg %p78
        %p195 = scmp.lt.s32.totalorder %s13, 1
        %s196 = scalar_select %p195, %s13, 1
        %s197 = smul.addr %s196, 8
        %s198 = scalar_lea.vmem %s2, %s197
        %p199 = scmp.lt.s32.totalorder %s13, 1
        %s200 = scalar_select %p199, %s13, 1
        %s201 = smul.addr %s200, 8
        %s202 = scalar_lea.vmem %s2, %s201
        %v205 = vld [vmem:[%s181] sm:$0xf]
        %v206 = vld [vmem:[%s181 + $0x4] sm:$0xf]
        %v207 = vld [vmem:[%s181 + $0x8] sm:$0xf]
        %v208 = vld [vmem:[%s181 + $0xc] sm:$0xf]
        %v209 = vld [vmem:[%s181 + $0x10] sm:$0xf]
        %v210 = vld [vmem:[%s181 + $0x14] sm:$0xf]
        %vm211 = vcmp.ge.bf16.partialorder %v205, 0
        %vm212 = vcmp.ge.bf16.partialorder %v206, 0
        %vm213 = vcmp.ge.bf16.partialorder %v207, 0
        %vm214 = vcmp.ge.bf16.partialorder %v208, 0
        %vm215 = vcmp.ge.bf16.partialorder %v209, 0
        %vm216 = vcmp.ge.bf16.partialorder %v210, 0
        %v217 = vmul.bf16 %v205, 1036860877
        %v218 = vmul.bf16 %v206, 1036860877
        %v219 = vmul.bf16 %v207, 1036860877
        %v220 = vmul.bf16 %v208, 1036860877
        %v221 = vmul.bf16 %v209, 1036860877
        %v222 = vmul.bf16 %v210, 1036860877
        %v223 = vsel %vm211, %v205, %v217
        %v224 = vsel %vm212, %v206, %v218
        %v225 = vsel %vm213, %v207, %v219
        %v226 = vsel %vm214, %v208, %v220
        %v227 = vsel %vm215, %v209, %v221
        %v228 = vsel %vm216, %v210, %v222
        %v229 = vld [vmem:[%s0] sm:$0xf]
        %v236 = vunpack.c.l.b16 %v223
        %v237 = vunpack.c.l.b16 %v224
        %v238 = vunpack.c.l.b16 %v225
        %v239 = vunpack.c.l.b16 %v226
        %v240 = vunpack.c.l.b16 %v227
        %v241 = vunpack.c.l.b16 %v228
        %v242 = vpack.c.b16 %v237, %v236
        %v243 = vpack.c.b16 %v239, %v238
        %v244 = vpack.c.b16 %v241, %v240
        %vm248 = vcmask 392192
        %v250 = vsel %vm248, %v229, 0
        %252 = vmatprep.subr.bf16.mxu0 0
        %253 = vmatpush1.bf16.msra.mxu0 %v242
        %254 = vmatprep.subr.bf16.mxu0 0
        %255 = vmatpush1.bf16.msra.mxu0 %v243
        %256 = vmatprep.subr.bf16.mxu0 0
        %257 = vmatpush1.bf16.msra.mxu0 %v244
        %258 = vmatprep.subr.bf16.mxu0 0
        %259 = vmatpush1.bf16.msra.mxu0 0
        %260 = vmatprep.subr.bf16.mxu0 0
        %261 = vmatpush1.bf16.msra.mxu0 0
        %262 = vmatprep.subr.bf16.mxu0 0
        %263 = vmatpush1.bf16.msra.mxu0 0
        %264 = vmatprep.subr.bf16.mxu0 0
        %265 = vmatpush1.bf16.msra.mxu0 0
        %266 = vmatprep.subr.bf16.mxu0 0
        %267 = vmatpush1.bf16.msra.mxu0 0
        %268 = vmatprep.subr.bf16.mxu0 0
        %269 = vmatpush1.bf16.msra.mxu0 0
        %270 = vmatprep.subr.bf16.mxu0 0
        %271 = vmatpush1.bf16.msra.mxu0 0
        %272 = vmatprep.subr.bf16.mxu0 0
        %273 = vmatpush1.bf16.msra.mxu0 0
        %274 = vmatprep.subr.bf16.mxu0 0
        %275 = vmatpush1.bf16.msra.mxu0 0
        %276 = vmatprep.subr.bf16.mxu0 0
        %277 = vmatpush1.bf16.msra.mxu0 0
        %278 = vmatprep.subr.bf16.mxu0 0
        %279 = vmatpush1.bf16.msra.mxu0 0
        %280 = vmatprep.subr.bf16.mxu0 0
        %281 = vmatpush1.bf16.msra.mxu0 0
        %282 = vmatprep.subr.bf16.mxu0 0
        %283 = vmatpush1.bf16.msra.mxu0 0
        %284 = vmatprep.mubr.bf16.mxu0 0
        %285 = vmatmul.mubr.bf16.gmra.mrb[0].mxu0 %v250
        %v286 = vpop.f32.mrb[0].mxu0
        %v287 = vadd.f32 0.0, %v286
        %v288 = vpop.f32.mrb[0].mxu0
        %v289 = vpop.f32.mrb[0].mxu0
        %v290 = vpop.f32.mrb[0].mxu0
        %291 = vdwg.mxu0
        %vm292 = vcmp.ge.f32.partialorder %v287, 0.0
        %v293 = vmul.f32 %v287, 0.1
        %v294 = vsel %vm292, %v287, %v293
        %295 = vst [vmem:[%s202] sm:$0xff] %v294
        %p296 = scmp.lt.s32.totalorder %s13, 1
        %s297 = scalar_select %p296, %s13, 1
        %s298 = smul.addr %s297, 8
        %s299 = scalar_lea.vmem %s2, %s298
        // Predicated region
        $region70: #{forward.50} parent=64 // pred_check
          %p300 = pneg %p78
        $region71: #{forward.50} parent=64 // pred_check_branch
          %302 = sbr.rel (%p300) target = $region73
        $region72: #{forward.50} parent=64 // pred_region
          _
        $region73: #{forward.50} parent=64 // pred_fallthru
          _
      $region65: #{forward.50} parent=5 // pred_fallthru
        _
      %p303 = scmp.le.s32.totalorder 2, %s8
      // Predicated region
      $region74: #{forward.50} parent=5 // pred_check
        %p304 = pneg %p303
      $region75: #{forward.50} parent=5 // pred_check_branch
        %306 = sbr.rel (%p304) target = $region77
      $region76: #{forward.50} parent=5 // pred_region
        %s307 = ssub.s32 %s8, 2
        // Predicated region
        $region78: #{forward.50} parent=76 // pred_check
          %p308 = pneg %p84
        $region79: #{forward.50} parent=76 // pred_check_branch
          %310 = sbr.rel (%p308) target = $region81
        $region80: #{forward.50} parent=76 // pred_region
          %p311 = scmp.lt.s32.totalorder %s14, 1
          %s312 = scalar_select %p311, %s14, 1
          %s313 = smul.addr %s312, 8
          %s314 = scalar_lea.vmem %s2, %s313
        $region81: #{forward.50} parent=76 // pred_fallthru
          _
      $region77: #{forward.50} parent=5 // pred_fallthru
        _
    $region6: #{forward.50} parent=1 // loop_footer
      %s12 = sadd.s32 1, %s8
    $region7: #{forward.50} parent=1 // loop_footer_branch
      %7 = sbr.rel target = $region3
    $region8: #{forward.50} parent=1 // loop_exit
      _

// kernel: forward.51
$region0: #{forward.51}
  #allocation0 [shape = 'u32[]', space=smem, size = 0x4, offset = 0x4, fixed_abs, tag = 'smem constant byte address 0x4 - core index']
  #allocation1 [shape = 'u32[144,128]{1,0:T(1,128)}', space=vmem, size = 0x12000, scoped, tag = 'internal scratch']
  %s0 = inlined_call_operand.vmem [shape: bf16[8,48], index: 0, kind: input, shape index: {}]
  %s1 = inlined_call_operand.vmem [shape: bf16[48,256], index: 1, kind: input, shape index: {}]
  %s2 = inlined_call_operand.vmem [shape: f32[8,256], index: 2, kind: input, shape index: {}]
  %s3 = inlined_call_operand.vmem [shape: f32[8,256], index: 3, kind: output, shape index: {}]
  %s4 = sld [smem:[#allocation0]]
  $region86: #{forward.51} parent=0
    _
  %s6 = ssub.s32 1, %s4
  %s7 = scalar_select 0, %s6, %s4
  $region1: #{forward.51} parent=0
    #allocation2 [shape = 'u8[24576]{0}', space=vmem, size = 0x6000, scoped, tag = 'input window, operand 1']
    loop: start=0, step=1, limit=4
    $region2: #{forward.51} parent=1 // loop_pre_header
      _
    $region3: #{forward.51} parent=1 // loop_header
      %s9 = sphi 0, %s13
      %p10 = scmp.ge.s32.totalorder %s9, 4
      %s17 = sphi 0, %s17
      %s19 = sphi 0, %s17
      %s20 = sphi 0, %s19
      %s34 = sphi 0, %s20
      %s40 = sphi 0, %s42
      %s43 = sphi 0, %s40
      %s44 = sphi 0, %s43
      %s60 = sphi 0, %s44
      %s66 = sphi 0, %s68
      %s69 = sphi 0, %s66
      %s70 = sphi 0, %s69
      %s86 = sphi 0, %s70
      %s92 = sphi 0, %s94
      %s95 = sphi 0, %s92
      %s96 = sphi 0, %s95
      %s112 = sphi 0, %s96
    $region4: #{forward.51} parent=1 // loop_header_branch
      %12 = sbr.rel (%p10) target = $region8
    $region5: #{forward.51} parent=1 // loop_body
      %s14 = ssub.s32 %s9, 1
      %s15 = ssub.s32 %s9, 2
      %s16 = sadd.s32 %s9, 1
      %s18 = sadd.s32 %s17, 1
      %p21 = scmp.eq.s32.totalorder %s9, 1
      %p22 = scmp.ne.s32.totalorder %s17, %s19
      %p23 = scmp.eq.s32.totalorder %s9, 0
      %p24 = por %p22, %p23
      %p25 = scmp.ne.s32.totalorder %s17, %s19
      %p26 = scmp.eq.s32.totalorder %s14, 1
      %p27 = por %p25, %p26
      %p28 = scmp.ne.s32.totalorder %s19, %s20
      %p29 = scmp.eq.s32.totalorder %s14, 0
      %p30 = por %p28, %p29
      %p31 = scmp.ne.s32.totalorder %s19, %s20
      %p32 = scmp.eq.s32.totalorder %s15, 1
      %p33 = por %p31, %p32
      %p35 = scmp.ne.s32.totalorder %s20, %s34
      %p36 = scmp.eq.s32.totalorder %s15, 0
      %p37 = por %p35, %p36
      %s38 = ssub.s32 %s9, %s16
      %p39 = scmp.eq.s32.totalorder %s38, 0
      %s41 = sadd.s32 %s40, 1
      %s42 = scalar_select %p39, %s40, %s41
      %p45 = pneg %p39
      %p46 = scmp.eq.s32.totalorder %s9, 1
      %p47 = por %p45, %p46
      %p48 = scmp.ne.s32.totalorder %s40, %s43
      %p49 = scmp.eq.s32.totalorder %s9, 0
      %p50 = por %p48, %p49
      %p51 = scmp.ne.s32.totalorder %s40, %s43
      %p52 = scmp.eq.s32.totalorder %s14, 1
      %p53 = por %p51, %p52
      %p54 = scmp.ne.s32.totalorder %s43, %s44
      %p55 = scmp.eq.s32.totalorder %s14, 0
      %p56 = por %p54, %p55
      %p57 = scmp.ne.s32.totalorder %s43, %s44
      %p58 = scmp.eq.s32.totalorder %s15, 1
      %p59 = por %p57, %p58
      %p61 = scmp.ne.s32.totalorder %s44, %s60
      %p62 = scmp.eq.s32.totalorder %s15, 0
      %p63 = por %p61, %p62
      %s64 = ssub.s32 %s9, %s16
      %p65 = scmp.eq.s32.totalorder %s64, 0
      %s67 = sadd.s32 %s66, 1
      %s68 = scalar_select %p65, %s66, %s67
      %p71 = pneg %p65
      %p72 = scmp.eq.s32.totalorder %s9, 1
      %p73 = por %p71, %p72
      %p74 = scmp.ne.s32.totalorder %s66, %s69
      %p75 = scmp.eq.s32.totalorder %s9, 0
      %p76 = por %p74, %p75
      %p77 = scmp.ne.s32.totalorder %s66, %s69
      %p78 = scmp.eq.s32.totalorder %s14, 1
      %p79 = por %p77, %p78
      %p80 = scmp.ne.s32.totalorder %s69, %s70
      %p81 = scmp.eq.s32.totalorder %s14, 0
      %p82 = por %p80, %p81
      %p83 = scmp.ne.s32.totalorder %s69, %s70
      %p84 = scmp.eq.s32.totalorder %s15, 1
      %p85 = por %p83, %p84
      %p87 = scmp.ne.s32.totalorder %s70, %s86
      %p88 = scmp.eq.s32.totalorder %s15, 0
      %p89 = por %p87, %p88
      %s90 = ssub.s32 %s9, %s16
      %p91 = scmp.eq.s32.totalorder %s90, 0
      %s93 = sadd.s32 %s92, 1
      %s94 = scalar_select %p91, %s92, %s93
      %p97 = pneg %p91
      %p98 = scmp.eq.s32.totalorder %s9, 1
      %p99 = por %p97, %p98
      %p100 = scmp.ne.s32.totalorder %s92, %s95
      %p101 = scmp.eq.s32.totalorder %s9, 0
      %p102 = por %p100, %p101
      %p103 = scmp.ne.s32.totalorder %s92, %s95
      %p104 = scmp.eq.s32.totalorder %s14, 1
      %p105 = por %p103, %p104
      %p106 = scmp.ne.s32.totalorder %s95, %s96
      %p107 = scmp.eq.s32.totalorder %s14, 0
      %p108 = por %p106, %p107
      %p109 = scmp.ne.s32.totalorder %s95, %s96
      %p110 = scmp.eq.s32.totalorder %s15, 1
      %p111 = por %p109, %p110
      %p113 = scmp.ne.s32.totalorder %s96, %s112
      %p114 = scmp.eq.s32.totalorder %s15, 0
      %p115 = por %p113, %p114
      %p116 = scmp.le.s32.totalorder 1, %s9
      %p117 = scmp.lt.s32.totalorder %s9, 3
      %p118 = pnand %p116, %p117
      %p119 = pneg %p118
      // Predicated region
      $region9: #{forward.51} parent=5 // pred_check
        _
      $region10: #{forward.51} parent=5 // pred_check_branch
        %121 = sbr.rel (%p118) target = $region12
      $region11: #{forward.51} parent=5 // pred_region
        %s122 = ssub.s32 %s9, 1
        // Predicated region
        $region13: #{forward.51} parent=11 // pred_check
          %p123 = pneg %p30
        $region14: #{forward.51} parent=11 // pred_check_branch
          %125 = sbr.rel (%p123) target = $region16
        $region15: #{forward.51} parent=11 // pred_region
          _
        $region16: #{forward.51} parent=11 // pred_fallthru
          _
      $region12: #{forward.51} parent=5 // pred_fallthru
        _
      %p126 = scmp.lt.s32.totalorder %s9, 2
      // Predicated region
      $region17: #{forward.51} parent=5 // pred_check
        %p127 = pneg %p126
      $region18: #{forward.51} parent=5 // pred_check_branch
        %129 = sbr.rel (%p127) target = $region20
      $region19: #{forward.51} parent=5 // pred_region
        // Predicated region
        $region21: #{forward.51} parent=19 // pred_check
          %p130 = pneg %p50
        $region22: #{forward.51} parent=19 // pred_check_branch
          %132 = sbr.rel (%p130) target = $region24
        $region23: #{forward.51} parent=19 // pred_region
          %s133 = sand.u32 %s40, 1
          %s134 = sand.u32 %s40, 1
          %s135 = smul.addr %s134, 24
          %s136 = scalar_lea.vmem [#allocation2], %s135
          %s137 = smul.addr %s9, 4
          %s138 = scalar_lea.vmem %s1, %s137
          // Predicated region
          $region25: #{forward.51} parent=23 // pred_check
            _
          $region26: #{forward.51} parent=23 // pred_check_branch
            %140 = sbr.rel (0) target = $region28
          $region27: #{forward.51} parent=23 // pred_region
            // Predicated region
            $region29: #{forward.51} parent=27 // pred_check
              _
            $region30: #{forward.51} parent=27 // pred_check_branch
              %142 = sbr.rel target = $region32
            $region31: #{forward.51} parent=27 // pred_region
              // Predicated region
              $region44: #{forward.51} parent=31 // pred_check
                _
              $region45: #{forward.51} parent=31 // pred_check_branch
                %167 = sbr.rel (0) target = $region47
              $region46: #{forward.51} parent=31 // pred_region
                loop: start=0, step=1, limit=1
                $region48: #{forward.51} parent=46 // loop_pre_header
                  _
                $region49: #{forward.51} parent=46 // loop_header
                  %s169 = sphi 0, %s173
                  %p170 = scmp.ge.s32.totalorder %s169, 1
                  %s174 = sphi %s138, %s138
                  %s175 = sphi %s136, %s136
                $region50: #{forward.51} parent=46 // loop_header_branch
                  %172 = sbr.rel (%p170) target = $region54
                $region51: #{forward.51} parent=46 // loop_body
                  _
                $region52: #{forward.51} parent=46 // loop_footer
                  %s173 = sadd.s32 1, %s169
                $region53: #{forward.51} parent=46 // loop_footer_branch
                  %168 = sbr.rel target = $region49
                $region54: #{forward.51} parent=46 // loop_exit
                  _
                loop: start=0, step=1, limit=1
                $region55: #{forward.51} parent=46 // loop_pre_header
                  _
                $region56: #{forward.51} parent=46 // loop_header
                  %s178 = sphi 0, %s182
                  %p179 = scmp.ge.s32.totalorder %s178, 1
                  %s183 = sphi %s138, %s138
                  %s184 = sphi %s136, %s136
                $region57: #{forward.51} parent=46 // loop_header_branch
                  %181 = sbr.rel (%p179) target = $region61
                $region58: #{forward.51} parent=46 // loop_body
                  %v185 = vld [vmem:[%s183] sm:$0xf]
                  %186 = vst [vmem:[%s184] sm:$0xf] %v185
                  %v187 = vld [vmem:[%s183 + $0x8] sm:$0xf]
                  %188 = vst [vmem:[%s184 + $0x4] sm:$0xf] %v187
                  %v189 = vld [vmem:[%s183 + $0x10] sm:$0xf]
                  %190 = vst [vmem:[%s184 + $0x8] sm:$0xf] %v189
                  %v191 = vld [vmem:[%s183 + $0x18] sm:$0xf]
                  %192 = vst [vmem:[%s184 + $0xc] sm:$0xf] %v191
                  %v193 = vld [vmem:[%s183 + $0x20] sm:$0xf]
                  %194 = vst [vmem:[%s184 + $0x10] sm:$0xf] %v193
                  %v195 = vld [vmem:[%s183 + $0x28] sm:$0xf]
                  %196 = vst [vmem:[%s184 + $0x14] sm:$0xf] %v195
                $region59: #{forward.51} parent=46 // loop_footer
                  %s182 = sadd.s32 1, %s178
                $region60: #{forward.51} parent=46 // loop_footer_branch
                  %177 = sbr.rel target = $region56
                $region61: #{forward.51} parent=46 // loop_exit
                  _
              $region47: #{forward.51} parent=31 // pred_fallthru
                _
            $region32: #{forward.51} parent=27 // pred_fallthru
              _
            // Predicated region
            $region33: #{forward.51} parent=27 // pred_check
              _
            $region34: #{forward.51} parent=27 // pred_check_branch
              %144 = sbr.rel (0) target = $region36
            $region35: #{forward.51} parent=27 // pred_region
              loop: start=0, step=1, limit=1
              $region37: #{forward.51} parent=35 // loop_pre_header
                _
              $region38: #{forward.51} parent=35 // loop_header
                %s147 = sphi 0, %s151
                %p148 = scmp.ge.s32.totalorder %s147, 1
                %s152 = sphi %s138, %s138
                %s153 = sphi %s136, %s136
              $region39: #{forward.51} parent=35 // loop_header_branch
                %150 = sbr.rel (%p148) target = $region43
              $region40: #{forward.51} parent=35 // loop_body
                %v154 = vld [vmem:[%s152] sm:$0xf]
                %155 = vst [vmem:[%s153] sm:$0xf] %v154
                %v156 = vld [vmem:[%s152 + $0x8] sm:$0xf]
                %157 = vst [vmem:[%s153 + $0x4] sm:$0xf] %v156
                %v158 = vld [vmem:[%s152 + $0x10] sm:$0xf]
                %159 = vst [vmem:[%s153 + $0x8] sm:$0xf] %v158
                %v160 = vld [vmem:[%s152 + $0x18] sm:$0xf]
                %161 = vst [vmem:[%s153 + $0xc] sm:$0xf] %v160
                %v162 = vld [vmem:[%s152 + $0x20] sm:$0xf]
                %163 = vst [vmem:[%s153 + $0x10] sm:$0xf] %v162
                %v164 = vld [vmem:[%s152 + $0x28] sm:$0xf]
                %165 = vst [vmem:[%s153 + $0x14] sm:$0xf] %v164
              $region41: #{forward.51} parent=35 // loop_footer
                %s151 = sadd.s32 1, %s147
              $region42: #{forward.51} parent=35 // loop_footer_branch
                %146 = sbr.rel target = $region38
              $region43: #{forward.51} parent=35 // loop_exit
                _
            $region36: #{forward.51} parent=27 // pred_fallthru
              _
          $region28: #{forward.51} parent=23 // pred_fallthru
            _
          %197 = vnop
        $region24: #{forward.51} parent=19 // pred_fallthru
          _
        // Predicated region
        $region62: #{forward.51} parent=19 // pred_check
          %p198 = pneg %p76
        $region63: #{forward.51} parent=19 // pred_check_branch
          %200 = sbr.rel (%p198) target = $region65
        $region64: #{forward.51} parent=19 // pred_region
          %p201 = scmp.lt.s32.totalorder %s9, 1
          %s202 = scalar_select %p201, %s9, 1
          %s203 = smul.addr %s202, 8
          %s204 = scalar_lea.vmem %s2, %s203
        $region65: #{forward.51} parent=19 // pred_fallthru
          _
      $region20: #{forward.51} parent=5 // pred_fallthru
        _
      %p205 = scmp.le.s32.totalorder 1, %s9
      %p206 = scmp.lt.s32.totalorder %s9, 3
      %p207 = pnand %p205, %p206
      %p208 = pneg %p207
      // Predicated region
      $region66: #{forward.51} parent=5 // pred_check
        _
      $region67: #{forward.51} parent=5 // pred_check_branch
        %210 = sbr.rel (%p207) target = $region69
      $region68: #{forward.51} parent=5 // pred_region
        %s211 = ssub.s32 %s9, 1
        %s212 = sand.u32 %s43, 1
        %s213 = sand.u32 %s43, 1
        %s214 = smul.addr %s213, 24
        %s215 = scalar_lea.vmem [#allocation2], %s214
        // Predicated region
        $region70: #{forward.51} parent=68 // pred_check
          %p216 = pneg %p56
        $region71: #{forward.51} parent=68 // pred_check_branch
          %218 = sbr.rel (%p216) target = $region73
        $region72: #{forward.51} parent=68 // pred_region
          _
        $region73: #{forward.51} parent=68 // pred_fallthru
          _
        %p219 = pneg %p30
        %p220 = pneg %p27
        %s221 = sand.u32 %s43, 1
        %s222 = sand.u32 %s43, 1
        %s223 = smul.addr %s222, 24
        %s224 = scalar_lea.vmem [#allocation2], %s223
        %p225 = pneg %p56
        %p226 = pneg %p53
        %p227 = scmp.lt.s32.totalorder %s14, 1
        %s228 = scalar_select %p227, %s14, 1
        %s229 = smul.addr %s228, 8
        %s230 = scalar_lea.vmem %s2, %s229
        %p231 = pneg %p82
        %p232 = pneg %p79
        %p233 = pneg %p108
        %p234 = pneg %p105
        %p235 = scmp.lt.s32.totalorder %s14, 1
        %s236 = scalar_select %p235, %s14, 1
        %s237 = smul.addr %s236, 8
        %s238 = scalar_lea.vmem %s3, %s237
        %p239 = scmp.lt.s32.totalorder %s14, 1
        %s240 = scalar_select %p239, %s14, 1
        %s241 = smul.addr %s240, 8
        %s242 = scalar_lea.vmem %s2, %s241
        %p243 = scmp.lt.s32.totalorder %s14, 1
        %s244 = scalar_select %p243, %s14, 1
        %s245 = smul.addr %s244, 8
        %s246 = scalar_lea.vmem %s3, %s245
        %v248 = vld [vmem:[%s215] sm:$0xf]
        %v249 = vld [vmem:[%s215 + $0x4] sm:$0xf]
        %v250 = vld [vmem:[%s215 + $0x8] sm:$0xf]
        %v251 = vld [vmem:[%s215 + $0xc] sm:$0xf]
        %v252 = vld [vmem:[%s215 + $0x10] sm:$0xf]
        %v253 = vld [vmem:[%s215 + $0x14] sm:$0xf]
        %v254 = vld [vmem:[%s0] sm:$0xf]
        %v255 = vld [vmem:[%s242] sm:$0xff]
        %v262 = vunpack.c.l.b16 %v248
        %v263 = vunpack.c.l.b16 %v249
        %v264 = vunpack.c.l.b16 %v250
        %v265 = vunpack.c.l.b16 %v251
        %v266 = vunpack.c.l.b16 %v252
        %v267 = vunpack.c.l.b16 %v253
        %v268 = vpack.c.b16 %v263, %v262
        %v269 = vpack.c.b16 %v265, %v264
        %v270 = vpack.c.b16 %v267, %v266
        %vm274 = vcmask 392192
        %v276 = vsel %vm274, %v254, 0
        %278 = vmatprep.subr.bf16.mxu0 0
        %279 = vmatpush1.bf16.msra.mxu0 %v268
        %280 = vmatprep.subr.bf16.mxu0 0
        %281 = vmatpush1.bf16.msra.mxu0 %v269
        %282 = vmatprep.subr.bf16.mxu0 0
        %283 = vmatpush1.bf16.msra.mxu0 %v270
        %284 = vmatprep.subr.bf16.mxu0 0
        %285 = vmatpush1.bf16.msra.mxu0 0
        %286 = vmatprep.subr.bf16.mxu0 0
        %287 = vmatpush1.bf16.msra.mxu0 0
        %288 = vmatprep.subr.bf16.mxu0 0
        %289 = vmatpush1.bf16.msra.mxu0 0
        %290 = vmatprep.subr.bf16.mxu0 0
        %291 = vmatpush1.bf16.msra.mxu0 0
        %292 = vmatprep.subr.bf16.mxu0 0
        %293 = vmatpush1.bf16.msra.mxu0 0
        %294 = vmatprep.subr.bf16.mxu0 0
        %295 = vmatpush1.bf16.msra.mxu0 0
        %296 = vmatprep.subr.bf16.mxu0 0
        %297 = vmatpush1.bf16.msra.mxu0 0
        %298 = vmatprep.subr.bf16.mxu0 0
        %299 = vmatpush1.bf16.msra.mxu0 0
        %300 = vmatprep.subr.bf16.mxu0 0
        %301 = vmatpush1.bf16.msra.mxu0 0
        %302 = vmatprep.subr.bf16.mxu0 0
        %303 = vmatpush1.bf16.msra.mxu0 0
        %304 = vmatprep.subr.bf16.mxu0 0
        %305 = vmatpush1.bf16.msra.mxu0 0
        %306 = vmatprep.subr.bf16.mxu0 0
        %307 = vmatpush1.bf16.msra.mxu0 0
        %308 = vmatprep.subr.bf16.mxu0 0
        %309 = vmatpush1.bf16.msra.mxu0 0
        %310 = vmatprep.mubr.bf16.mxu0 0
        %311 = vmatmul.mubr.bf16.gmra.mrb[0].mxu0 %v276
        %v312 = vpop.f32.mrb[0].mxu0
        %v313 = vadd.f32 %v255, %v312
        %v314 = vpop.f32.mrb[0].mxu0
        %v315 = vpop.f32.mrb[0].mxu0
        %v316 = vpop.f32.mrb[0].mxu0
        %317 = vdwg.mxu0
        %318 = vst [vmem:[%s246] sm:$0xff] %v313
        %p319 = scmp.lt.s32.totalorder %s14, 1
        %s320 = scalar_select %p319, %s14, 1
        %s321 = smul.addr %s320, 8
        %s322 = scalar_lea.vmem %s3, %s321
        // Predicated region
        $region74: #{forward.51} parent=68 // pred_check
          %p323 = pneg %p105
        $region75: #{forward.51} parent=68 // pred_check_branch
          %325 = sbr.rel (%p323) target = $region77
        $region76: #{forward.51} parent=68 // pred_region
          _
        $region77: #{forward.51} parent=68 // pred_fallthru
          _
      $region69: #{forward.51} parent=5 // pred_fallthru
        _
      %p326 = scmp.le.s32.totalorder 2, %s9
      // Predicated region
      $region78: #{forward.51} parent=5 // pred_check
        %p327 = pneg %p326
      $region79: #{forward.51} parent=5 // pred_check_branch
        %329 = sbr.rel (%p327) target = $region81
      $region80: #{forward.51} parent=5 // pred_region
        %s330 = ssub.s32 %s9, 2
        // Predicated region
        $region82: #{forward.51} parent=80 // pred_check
          %p331 = pneg %p111
        $region83: #{forward.51} parent=80 // pred_check_branch
          %333 = sbr.rel (%p331) target = $region85
        $region84: #{forward.51} parent=80 // pred_region
          %p334 = scmp.lt.s32.totalorder %s15, 1
          %s335 = scalar_select %p334, %s15, 1
          %s336 = smul.addr %s335, 8
          %s337 = scalar_lea.vmem %s3, %s336
        $region85: #{forward.51} parent=80 // pred_fallthru
          _
      $region81: #{forward.51} parent=5 // pred_fallthru
        _
    $region6: #{forward.51} parent=1 // loop_footer
      %s13 = sadd.s32 1, %s9
    $region7: #{forward.51} parent=1 // loop_footer_branch
      %8 = sbr.rel target = $region3
    $region8: #{forward.51} parent=1 // loop_exit
      _

// kernel: forward.45
$region0: #{forward.45}
  #allocation0 [shape = 'u32[]', space=smem, size = 0x4, offset = 0x4, fixed_abs, tag = 'smem constant byte address 0x4 - core index']
  #allocation1 [shape = 'u32[144,128]{1,0:T(1,128)}', space=vmem, size = 0x12000, scoped, tag = 'internal scratch']
  %s0 = inlined_call_operand.vmem [shape: bf16[8,32], index: 0, kind: input, shape index: {}]
  %s1 = inlined_call_operand.vmem [shape: bf16[32,256], index: 1, kind: input, shape index: {}]
  %s2 = inlined_call_operand.vmem [shape: f32[8,256], index: 2, kind: input, shape index: {}]
  %s3 = inlined_call_operand.vmem [shape: f32[8,256], index: 3, kind: output, shape index: {}]
  %s4 = sld [smem:[#allocation0]]
  $region86: #{forward.45} parent=0
    _
  %s6 = ssub.s32 1, %s4
  %s7 = scalar_select 0, %s6, %s4
  $region1: #{forward.45} parent=0
    #allocation2 [shape = 'u8[16384]{0}', space=vmem, size = 0x4000, scoped, tag = 'input window, operand 1']
    loop: start=0, step=1, limit=4
    $region2: #{forward.45} parent=1 // loop_pre_header
      _
    $region3: #{forward.45} parent=1 // loop_header
      %s9 = sphi 0, %s13
      %p10 = scmp.ge.s32.totalorder %s9, 4
      %s17 = sphi 0, %s17
      %s19 = sphi 0, %s17
      %s20 = sphi 0, %s19
      %s34 = sphi 0, %s20
      %s40 = sphi 0, %s42
      %s43 = sphi 0, %s40
      %s44 = sphi 0, %s43
      %s60 = sphi 0, %s44
      %s66 = sphi 0, %s68
      %s69 = sphi 0, %s66
      %s70 = sphi 0, %s69
      %s86 = sphi 0, %s70
      %s92 = sphi 0, %s94
      %s95 = sphi 0, %s92
      %s96 = sphi 0, %s95
      %s112 = sphi 0, %s96
    $region4: #{forward.45} parent=1 // loop_header_branch
      %12 = sbr.rel (%p10) target = $region8
    $region5: #{forward.45} parent=1 // loop_body
      %s14 = ssub.s32 %s9, 1
      %s15 = ssub.s32 %s9, 2
      %s16 = sadd.s32 %s9, 1
      %s18 = sadd.s32 %s17, 1
      %p21 = scmp.eq.s32.totalorder %s9, 1
      %p22 = scmp.ne.s32.totalorder %s17, %s19
      %p23 = scmp.eq.s32.totalorder %s9, 0
      %p24 = por %p22, %p23
      %p25 = scmp.ne.s32.totalorder %s17, %s19
      %p26 = scmp.eq.s32.totalorder %s14, 1
      %p27 = por %p25, %p26
      %p28 = scmp.ne.s32.totalorder %s19, %s20
      %p29 = scmp.eq.s32.totalorder %s14, 0
      %p30 = por %p28, %p29
      %p31 = scmp.ne.s32.totalorder %s19, %s20
      %p32 = scmp.eq.s32.totalorder %s15, 1
      %p33 = por %p31, %p32
      %p35 = scmp.ne.s32.totalorder %s20, %s34
      %p36 = scmp.eq.s32.totalorder %s15, 0
      %p37 = por %p35, %p36
      %s38 = ssub.s32 %s9, %s16
      %p39 = scmp.eq.s32.totalorder %s38, 0
      %s41 = sadd.s32 %s40, 1
      %s42 = scalar_select %p39, %s40, %s41
      %p45 = pneg %p39
      %p46 = scmp.eq.s32.totalorder %s9, 1
      %p47 = por %p45, %p46
      %p48 = scmp.ne.s32.totalorder %s40, %s43
      %p49 = scmp.eq.s32.totalorder %s9, 0
      %p50 = por %p48, %p49
      %p51 = scmp.ne.s32.totalorder %s40, %s43
      %p52 = scmp.eq.s32.totalorder %s14, 1
      %p53 = por %p51, %p52
      %p54 = scmp.ne.s32.totalorder %s43, %s44
      %p55 = scmp.eq.s32.totalorder %s14, 0
      %p56 = por %p54, %p55
      %p57 = scmp.ne.s32.totalorder %s43, %s44
      %p58 = scmp.eq.s32.totalorder %s15, 1
      %p59 = por %p57, %p58
      %p61 = scmp.ne.s32.totalorder %s44, %s60
      %p62 = scmp.eq.s32.totalorder %s15, 0
      %p63 = por %p61, %p62
      %s64 = ssub.s32 %s9, %s16
      %p65 = scmp.eq.s32.totalorder %s64, 0
      %s67 = sadd.s32 %s66, 1
      %s68 = scalar_select %p65, %s66, %s67
      %p71 = pneg %p65
      %p72 = scmp.eq.s32.totalorder %s9, 1
      %p73 = por %p71, %p72
      %p74 = scmp.ne.s32.totalorder %s66, %s69
      %p75 = scmp.eq.s32.totalorder %s9, 0
      %p76 = por %p74, %p75
      %p77 = scmp.ne.s32.totalorder %s66, %s69
      %p78 = scmp.eq.s32.totalorder %s14, 1
      %p79 = por %p77, %p78
      %p80 = scmp.ne.s32.totalorder %s69, %s70
      %p81 = scmp.eq.s32.totalorder %s14, 0
      %p82 = por %p80, %p81
      %p83 = scmp.ne.s32.totalorder %s69, %s70
      %p84 = scmp.eq.s32.totalorder %s15, 1
      %p85 = por %p83, %p84
      %p87 = scmp.ne.s32.totalorder %s70, %s86
      %p88 = scmp.eq.s32.totalorder %s15, 0
      %p89 = por %p87, %p88
      %s90 = ssub.s32 %s9, %s16
      %p91 = scmp.eq.s32.totalorder %s90, 0
      %s93 = sadd.s32 %s92, 1
      %s94 = scalar_select %p91, %s92, %s93
      %p97 = pneg %p91
      %p98 = scmp.eq.s32.totalorder %s9, 1
      %p99 = por %p97, %p98
      %p100 = scmp.ne.s32.totalorder %s92, %s95
      %p101 = scmp.eq.s32.totalorder %s9, 0
      %p102 = por %p100, %p101
      %p103 = scmp.ne.s32.totalorder %s92, %s95
      %p104 = scmp.eq.s32.totalorder %s14, 1
      %p105 = por %p103, %p104
      %p106 = scmp.ne.s32.totalorder %s95, %s96
      %p107 = scmp.eq.s32.totalorder %s14, 0
      %p108 = por %p106, %p107
      %p109 = scmp.ne.s32.totalorder %s95, %s96
      %p110 = scmp.eq.s32.totalorder %s15, 1
      %p111 = por %p109, %p110
      %p113 = scmp.ne.s32.totalorder %s96, %s112
      %p114 = scmp.eq.s32.totalorder %s15, 0
      %p115 = por %p113, %p114
      %p116 = scmp.le.s32.totalorder 1, %s9
      %p117 = scmp.lt.s32.totalorder %s9, 3
      %p118 = pnand %p116, %p117
      %p119 = pneg %p118
      // Predicated region
      $region9: #{forward.45} parent=5 // pred_check
        _
      $region10: #{forward.45} parent=5 // pred_check_branch
        %121 = sbr.rel (%p118) target = $region12
      $region11: #{forward.45} parent=5 // pred_region
        %s122 = ssub.s32 %s9, 1
        // Predicated region
        $region13: #{forward.45} parent=11 // pred_check
          %p123 = pneg %p30
        $region14: #{forward.45} parent=11 // pred_check_branch
          %125 = sbr.rel (%p123) target = $region16
        $region15: #{forward.45} parent=11 // pred_region
          _
        $region16: #{forward.45} parent=11 // pred_fallthru
          _
      $region12: #{forward.45} parent=5 // pred_fallthru
        _
      %p126 = scmp.lt.s32.totalorder %s9, 2
      // Predicated region
      $region17: #{forward.45} parent=5 // pred_check
        %p127 = pneg %p126
      $region18: #{forward.45} parent=5 // pred_check_branch
        %129 = sbr.rel (%p127) target = $region20
      $region19: #{forward.45} parent=5 // pred_region
        // Predicated region
        $region21: #{forward.45} parent=19 // pred_check
          %p130 = pneg %p50
        $region22: #{forward.45} parent=19 // pred_check_branch
          %132 = sbr.rel (%p130) target = $region24
        $region23: #{forward.45} parent=19 // pred_region
          %s133 = sand.u32 %s40, 1
          %s134 = sand.u32 %s40, 1
          %s135 = smul.addr %s134, 16
          %s136 = scalar_lea.vmem [#allocation2], %s135
          %s137 = smul.addr %s9, 4
          %s138 = scalar_lea.vmem %s1, %s137
          // Predicated region
          $region25: #{forward.45} parent=23 // pred_check
            _
          $region26: #{forward.45} parent=23 // pred_check_branch
            %140 = sbr.rel (0) target = $region28
          $region27: #{forward.45} parent=23 // pred_region
            // Predicated region
            $region29: #{forward.45} parent=27 // pred_check
              _
            $region30: #{forward.45} parent=27 // pred_check_branch
              %142 = sbr.rel target = $region32
            $region31: #{forward.45} parent=27 // pred_region
              // Predicated region
              $region44: #{forward.45} parent=31 // pred_check
                _
              $region45: #{forward.45} parent=31 // pred_check_branch
                %163 = sbr.rel (0) target = $region47
              $region46: #{forward.45} parent=31 // pred_region
                loop: start=0, step=1, limit=1
                $region48: #{forward.45} parent=46 // loop_pre_header
                  _
                $region49: #{forward.45} parent=46 // loop_header
                  %s165 = sphi 0, %s169
                  %p166 = scmp.ge.s32.totalorder %s165, 1
                  %s170 = sphi %s138, %s138
                  %s171 = sphi %s136, %s136
                $region50: #{forward.45} parent=46 // loop_header_branch
                  %168 = sbr.rel (%p166) target = $region54
                $region51: #{forward.45} parent=46 // loop_body
                  _
                $region52: #{forward.45} parent=46 // loop_footer
                  %s169 = sadd.s32 1, %s165
                $region53: #{forward.45} parent=46 // loop_footer_branch
                  %164 = sbr.rel target = $region49
                $region54: #{forward.45} parent=46 // loop_exit
                  _
                loop: start=0, step=1, limit=1
                $region55: #{forward.45} parent=46 // loop_pre_header
                  _
                $region56: #{forward.45} parent=46 // loop_header
                  %s174 = sphi 0, %s178
                  %p175 = scmp.ge.s32.totalorder %s174, 1
                  %s179 = sphi %s138, %s138
                  %s180 = sphi %s136, %s136
                $region57: #{forward.45} parent=46 // loop_header_branch
                  %177 = sbr.rel (%p175) target = $region61
                $region58: #{forward.45} parent=46 // loop_body
                  %v181 = vld [vmem:[%s179] sm:$0xf]
                  %182 = vst [vmem:[%s180] sm:$0xf] %v181
                  %v183 = vld [vmem:[%s179 + $0x8] sm:$0xf]
                  %184 = vst [vmem:[%s180 + $0x4] sm:$0xf] %v183
                  %v185 = vld [vmem:[%s179 + $0x10] sm:$0xf]
                  %186 = vst [vmem:[%s180 + $0x8] sm:$0xf] %v185
                  %v187 = vld [vmem:[%s179 + $0x18] sm:$0xf]
                  %188 = vst [vmem:[%s180 + $0xc] sm:$0xf] %v187
                $region59: #{forward.45} parent=46 // loop_footer
                  %s178 = sadd.s32 1, %s174
                $region60: #{forward.45} parent=46 // loop_footer_branch
                  %173 = sbr.rel target = $region56
                $region61: #{forward.45} parent=46 // loop_exit
                  _
              $region47: #{forward.45} parent=31 // pred_fallthru
                _
            $region32: #{forward.45} parent=27 // pred_fallthru
              _
            // Predicated region
            $region33: #{forward.45} parent=27 // pred_check
              _
            $region34: #{forward.45} parent=27 // pred_check_branch
              %144 = sbr.rel (0) target = $region36
            $region35: #{forward.45} parent=27 // pred_region
              loop: start=0, step=1, limit=1
              $region37: #{forward.45} parent=35 // loop_pre_header
                _
              $region38: #{forward.45} parent=35 // loop_header
                %s147 = sphi 0, %s151
                %p148 = scmp.ge.s32.totalorder %s147, 1
                %s152 = sphi %s138, %s138
                %s153 = sphi %s136, %s136
              $region39: #{forward.45} parent=35 // loop_header_branch
                %150 = sbr.rel (%p148) target = $region43
              $region40: #{forward.45} parent=35 // loop_body
                %v154 = vld [vmem:[%s152] sm:$0xf]
                %155 = vst [vmem:[%s153] sm:$0xf] %v154
                %v156 = vld [vmem:[%s152 + $0x8] sm:$0xf]
                %157 = vst [vmem:[%s153 + $0x4] sm:$0xf] %v156
                %v158 = vld [vmem:[%s152 + $0x10] sm:$0xf]
                %159 = vst [vmem:[%s153 + $0x8] sm:$0xf] %v158
                %v160 = vld [vmem:[%s152 + $0x18] sm:$0xf]
                %161 = vst [vmem:[%s153 + $0xc] sm:$0xf] %v160
              $region41: #{forward.45} parent=35 // loop_footer
                %s151 = sadd.s32 1, %s147
              $region42: #{forward.45} parent=35 // loop_footer_branch
                %146 = sbr.rel target = $region38
              $region43: #{forward.45} parent=35 // loop_exit
                _
            $region36: #{forward.45} parent=27 // pred_fallthru
              _
          $region28: #{forward.45} parent=23 // pred_fallthru
            _
          %189 = vnop
        $region24: #{forward.45} parent=19 // pred_fallthru
          _
        // Predicated region
        $region62: #{forward.45} parent=19 // pred_check
          %p190 = pneg %p76
        $region63: #{forward.45} parent=19 // pred_check_branch
          %192 = sbr.rel (%p190) target = $region65
        $region64: #{forward.45} parent=19 // pred_region
          %p193 = scmp.lt.s32.totalorder %s9, 1
          %s194 = scalar_select %p193, %s9, 1
          %s195 = smul.addr %s194, 8
          %s196 = scalar_lea.vmem %s2, %s195
        $region65: #{forward.45} parent=19 // pred_fallthru
          _
      $region20: #{forward.45} parent=5 // pred_fallthru
        _
      %p197 = scmp.le.s32.totalorder 1, %s9
      %p198 = scmp.lt.s32.totalorder %s9, 3
      %p199 = pnand %p197, %p198
      %p200 = pneg %p199
      // Predicated region
      $region66: #{forward.45} parent=5 // pred_check
        _
      $region67: #{forward.45} parent=5 // pred_check_branch
        %202 = sbr.rel (%p199) target = $region69
      $region68: #{forward.45} parent=5 // pred_region
        %s203 = ssub.s32 %s9, 1
        %s204 = sand.u32 %s43, 1
        %s205 = sand.u32 %s43, 1
        %s206 = smul.addr %s205, 16
        %s207 = scalar_lea.vmem [#allocation2], %s206
        // Predicated region
        $region70: #{forward.45} parent=68 // pred_check
          %p208 = pneg %p56
        $region71: #{forward.45} parent=68 // pred_check_branch
          %210 = sbr.rel (%p208) target = $region73
        $region72: #{forward.45} parent=68 // pred_region
          _
        $region73: #{forward.45} parent=68 // pred_fallthru
          _
        %p211 = pneg %p30
        %p212 = pneg %p27
        %s213 = sand.u32 %s43, 1
        %s214 = sand.u32 %s43, 1
        %s215 = smul.addr %s214, 16
        %s216 = scalar_lea.vmem [#allocation2], %s215
        %p217 = pneg %p56
        %p218 = pneg %p53
        %p219 = scmp.lt.s32.totalorder %s14, 1
        %s220 = scalar_select %p219, %s14, 1
        %s221 = smul.addr %s220, 8
        %s222 = scalar_lea.vmem %s2, %s221
        %p223 = pneg %p82
        %p224 = pneg %p79
        %p225 = pneg %p108
        %p226 = pneg %p105
        %p227 = scmp.lt.s32.totalorder %s14, 1
        %s228 = scalar_select %p227, %s14, 1
        %s229 = smul.addr %s228, 8
        %s230 = scalar_lea.vmem %s3, %s229
        %p231 = scmp.lt.s32.totalorder %s14, 1
        %s232 = scalar_select %p231, %s14, 1
        %s233 = smul.addr %s232, 8
        %s234 = scalar_lea.vmem %s2, %s233
        %p235 = scmp.lt.s32.totalorder %s14, 1
        %s236 = scalar_select %p235, %s14, 1
        %s237 = smul.addr %s236, 8
        %s238 = scalar_lea.vmem %s3, %s237
        %v240 = vld [vmem:[%s207] sm:$0xf]
        %v241 = vld [vmem:[%s207 + $0x4] sm:$0xf]
        %v242 = vld [vmem:[%s207 + $0x8] sm:$0xf]
        %v243 = vld [vmem:[%s207 + $0xc] sm:$0xf]
        %v244 = vld [vmem:[%s0] sm:$0xf]
        %v245 = vld [vmem:[%s234] sm:$0xff]
        %v250 = vunpack.c.l.b16 %v240
        %v251 = vunpack.c.l.b16 %v241
        %v252 = vunpack.c.l.b16 %v242
        %v253 = vunpack.c.l.b16 %v243
        %v254 = vpack.c.b16 %v251, %v250
        %v255 = vpack.c.b16 %v253, %v252
        %vm258 = vcmask 261120
        %v260 = vsel %vm258, %v244, 0
        %262 = vmatprep.subr.bf16.mxu0 0
        %263 = vmatpush1.bf16.msra.mxu0 %v254
        %264 = vmatprep.subr.bf16.mxu0 0
        %265 = vmatpush1.bf16.msra.mxu0 %v255
        %266 = vmatprep.subr.bf16.mxu0 0
        %267 = vmatpush1.bf16.msra.mxu0 0
        %268 = vmatprep.subr.bf16.mxu0 0
        %269 = vmatpush1.bf16.msra.mxu0 0
        %270 = vmatprep.subr.bf16.mxu0 0
        %271 = vmatpush1.bf16.msra.mxu0 0
        %272 = vmatprep.subr.bf16.mxu0 0
        %273 = vmatpush1.bf16.msra.mxu0 0
        %274 = vmatprep.subr.bf16.mxu0 0
        %275 = vmatpush1.bf16.msra.mxu0 0
        %276 = vmatprep.subr.bf16.mxu0 0
        %277 = vmatpush1.bf16.msra.mxu0 0
        %278 = vmatprep.subr.bf16.mxu0 0
        %279 = vmatpush1.bf16.msra.mxu0 0
        %280 = vmatprep.subr.bf16.mxu0 0
        %281 = vmatpush1.bf16.msra.mxu0 0
        %282 = vmatprep.subr.bf16.mxu0 0
        %283 = vmatpush1.bf16.msra.mxu0 0
        %284 = vmatprep.subr.bf16.mxu0 0
        %285 = vmatpush1.bf16.msra.mxu0 0
        %286 = vmatprep.subr.bf16.mxu0 0
        %287 = vmatpush1.bf16.msra.mxu0 0
        %288 = vmatprep.subr.bf16.mxu0 0
        %289 = vmatpush1.bf16.msra.mxu0 0
        %290 = vmatprep.subr.bf16.mxu0 0
        %291 = vmatpush1.bf16.msra.mxu0 0
        %292 = vmatprep.subr.bf16.mxu0 0
        %293 = vmatpush1.bf16.msra.mxu0 0
        %294 = vmatprep.mubr.bf16.mxu0 0
        %295 = vmatmul.mubr.bf16.gmra.mrb[0].mxu0 %v260
        %v296 = vpop.f32.mrb[0].mxu0
        %v297 = vadd.f32 %v245, %v296
        %v298 = vpop.f32.mrb[0].mxu0
        %v299 = vpop.f32.mrb[0].mxu0
        %v300 = vpop.f32.mrb[0].mxu0
        %301 = vdwg.mxu0
        %302 = vst [vmem:[%s238] sm:$0xff] %v297
        %p303 = scmp.lt.s32.totalorder %s14, 1
        %s304 = scalar_select %p303, %s14, 1
        %s305 = smul.addr %s304, 8
        %s306 = scalar_lea.vmem %s3, %s305
        // Predicated region
        $region74: #{forward.45} parent=68 // pred_check
          %p307 = pneg %p105
        $region75: #{forward.45} parent=68 // pred_check_branch
          %309 = sbr.rel (%p307) target = $region77
        $region76: #{forward.45} parent=68 // pred_region
          _
        $region77: #{forward.45} parent=68 // pred_fallthru
          _
      $region69: #{forward.45} parent=5 // pred_fallthru
        _
      %p310 = scmp.le.s32.totalorder 2, %s9
      // Predicated region
      $region78: #{forward.45} parent=5 // pred_check
        %p311 = pneg %p310
      $region79: #{forward.45} parent=5 // pred_check_branch
        %313 = sbr.rel (%p311) target = $region81
      $region80: #{forward.45} parent=5 // pred_region
        %s314 = ssub.s32 %s9, 2
        // Predicated region
        $region82: #{forward.45} parent=80 // pred_check
          %p315 = pneg %p111
        $region83: #{forward.45} parent=80 // pred_check_branch
          %317 = sbr.rel (%p315) target = $region85
        $region84: #{forward.45} parent=80 // pred_region
          %p318 = scmp.lt.s32.totalorder %s15, 1
          %s319 = scalar_select %p318, %s15, 1
          %s320 = smul.addr %s319, 8
          %s321 = scalar_lea.vmem %s3, %s320
        $region85: #{forward.45} parent=80 // pred_fallthru
          _
      $region81: #{forward.45} parent=5 // pred_fallthru
        _
    $region6: #{forward.45} parent=1 // loop_footer
      %s13 = sadd.s32 1, %s9
    $region7: #{forward.45} parent=1 // loop_footer_branch
      %8 = sbr.rel target = $region3
    $region8: #{forward.45} parent=1 // loop_exit
      _

// kernel: forward.44
$region0: #{forward.44}
  #allocation0 [shape = 'u32[]', space=smem, size = 0x4, offset = 0x4, fixed_abs, tag = 'smem constant byte address 0x4 - core index']
  #allocation1 [shape = 'u32[144,128]{1,0:T(1,128)}', space=vmem, size = 0x12000, scoped, tag = 'internal scratch']
  %s0 = inlined_call_operand.vmem [shape: bf16[8,32], index: 0, kind: input, shape index: {}]
  %s1 = inlined_call_operand.vmem [shape: bf16[32,256], index: 1, kind: input, shape index: {}]
  %s2 = inlined_call_operand.vmem [shape: f32[8,256], index: 2, kind: output, shape index: {}]
  %s3 = sld [smem:[#allocation0]]
  $region82: #{forward.44} parent=0
    _
  %s5 = ssub.s32 1, %s3
  %s6 = scalar_select 0, %s5, %s3
  $region1: #{forward.44} parent=0
    #allocation2 [shape = 'u8[16384]{0}', space=vmem, size = 0x4000, scoped, tag = 'input window, operand 1']
    loop: start=0, step=1, limit=4
    $region2: #{forward.44} parent=1 // loop_pre_header
      _
    $region3: #{forward.44} parent=1 // loop_header
      %s8 = sphi 0, %s12
      %p9 = scmp.ge.s32.totalorder %s8, 4
      %s16 = sphi 0, %s16
      %s18 = sphi 0, %s16
      %s19 = sphi 0, %s18
      %s33 = sphi 0, %s19
      %s39 = sphi 0, %s41
      %s42 = sphi 0, %s39
      %s43 = sphi 0, %s42
      %s59 = sphi 0, %s43
      %s65 = sphi 0, %s67
      %s68 = sphi 0, %s65
      %s69 = sphi 0, %s68
      %s85 = sphi 0, %s69
    $region4: #{forward.44} parent=1 // loop_header_branch
      %11 = sbr.rel (%p9) target = $region8
    $region5: #{forward.44} parent=1 // loop_body
      %s13 = ssub.s32 %s8, 1
      %s14 = ssub.s32 %s8, 2
      %s15 = sadd.s32 %s8, 1
      %s17 = sadd.s32 %s16, 1
      %p20 = scmp.eq.s32.totalorder %s8, 1
      %p21 = scmp.ne.s32.totalorder %s16, %s18
      %p22 = scmp.eq.s32.totalorder %s8, 0
      %p23 = por %p21, %p22
      %p24 = scmp.ne.s32.totalorder %s16, %s18
      %p25 = scmp.eq.s32.totalorder %s13, 1
      %p26 = por %p24, %p25
      %p27 = scmp.ne.s32.totalorder %s18, %s19
      %p28 = scmp.eq.s32.totalorder %s13, 0
      %p29 = por %p27, %p28
      %p30 = scmp.ne.s32.totalorder %s18, %s19
      %p31 = scmp.eq.s32.totalorder %s14, 1
      %p32 = por %p30, %p31
      %p34 = scmp.ne.s32.totalorder %s19, %s33
      %p35 = scmp.eq.s32.totalorder %s14, 0
      %p36 = por %p34, %p35
      %s37 = ssub.s32 %s8, %s15
      %p38 = scmp.eq.s32.totalorder %s37, 0
      %s40 = sadd.s32 %s39, 1
      %s41 = scalar_select %p38, %s39, %s40
      %p44 = pneg %p38
      %p45 = scmp.eq.s32.totalorder %s8, 1
      %p46 = por %p44, %p45
      %p47 = scmp.ne.s32.totalorder %s39, %s42
      %p48 = scmp.eq.s32.totalorder %s8, 0
      %p49 = por %p47, %p48
      %p50 = scmp.ne.s32.totalorder %s39, %s42
      %p51 = scmp.eq.s32.totalorder %s13, 1
      %p52 = por %p50, %p51
      %p53 = scmp.ne.s32.totalorder %s42, %s43
      %p54 = scmp.eq.s32.totalorder %s13, 0
      %p55 = por %p53, %p54
      %p56 = scmp.ne.s32.totalorder %s42, %s43
      %p57 = scmp.eq.s32.totalorder %s14, 1
      %p58 = por %p56, %p57
      %p60 = scmp.ne.s32.totalorder %s43, %s59
      %p61 = scmp.eq.s32.totalorder %s14, 0
      %p62 = por %p60, %p61
      %s63 = ssub.s32 %s8, %s15
      %p64 = scmp.eq.s32.totalorder %s63, 0
      %s66 = sadd.s32 %s65, 1
      %s67 = scalar_select %p64, %s65, %s66
      %p70 = pneg %p64
      %p71 = scmp.eq.s32.totalorder %s8, 1
      %p72 = por %p70, %p71
      %p73 = scmp.ne.s32.totalorder %s65, %s68
      %p74 = scmp.eq.s32.totalorder %s8, 0
      %p75 = por %p73, %p74
      %p76 = scmp.ne.s32.totalorder %s65, %s68
      %p77 = scmp.eq.s32.totalorder %s13, 1
      %p78 = por %p76, %p77
      %p79 = scmp.ne.s32.totalorder %s68, %s69
      %p80 = scmp.eq.s32.totalorder %s13, 0
      %p81 = por %p79, %p80
      %p82 = scmp.ne.s32.totalorder %s68, %s69
      %p83 = scmp.eq.s32.totalorder %s14, 1
      %p84 = por %p82, %p83
      %p86 = scmp.ne.s32.totalorder %s69, %s85
      %p87 = scmp.eq.s32.totalorder %s14, 0
      %p88 = por %p86, %p87
      %p89 = scmp.le.s32.totalorder 1, %s8
      %p90 = scmp.lt.s32.totalorder %s8, 3
      %p91 = pnand %p89, %p90
      %p92 = pneg %p91
      // Predicated region
      $region9: #{forward.44} parent=5 // pred_check
        _
      $region10: #{forward.44} parent=5 // pred_check_branch
        %94 = sbr.rel (%p91) target = $region12
      $region11: #{forward.44} parent=5 // pred_region
        %s95 = ssub.s32 %s8, 1
        // Predicated region
        $region13: #{forward.44} parent=11 // pred_check
          %p96 = pneg %p29
        $region14: #{forward.44} parent=11 // pred_check_branch
          %98 = sbr.rel (%p96) target = $region16
        $region15: #{forward.44} parent=11 // pred_region
          _
        $region16: #{forward.44} parent=11 // pred_fallthru
          _
      $region12: #{forward.44} parent=5 // pred_fallthru
        _
      %p99 = scmp.lt.s32.totalorder %s8, 2
      // Predicated region
      $region17: #{forward.44} parent=5 // pred_check
        %p100 = pneg %p99
      $region18: #{forward.44} parent=5 // pred_check_branch
        %102 = sbr.rel (%p100) target = $region20
      $region19: #{forward.44} parent=5 // pred_region
        // Predicated region
        $region21: #{forward.44} parent=19 // pred_check
          %p103 = pneg %p49
        $region22: #{forward.44} parent=19 // pred_check_branch
          %105 = sbr.rel (%p103) target = $region24
        $region23: #{forward.44} parent=19 // pred_region
          %s106 = sand.u32 %s39, 1
          %s107 = sand.u32 %s39, 1
          %s108 = smul.addr %s107, 16
          %s109 = scalar_lea.vmem [#allocation2], %s108
          %s110 = smul.addr %s8, 4
          %s111 = scalar_lea.vmem %s1, %s110
          // Predicated region
          $region25: #{forward.44} parent=23 // pred_check
            _
          $region26: #{forward.44} parent=23 // pred_check_branch
            %113 = sbr.rel (0) target = $region28
          $region27: #{forward.44} parent=23 // pred_region
            // Predicated region
            $region29: #{forward.44} parent=27 // pred_check
              _
            $region30: #{forward.44} parent=27 // pred_check_branch
              %115 = sbr.rel target = $region32
            $region31: #{forward.44} parent=27 // pred_region
              // Predicated region
              $region44: #{forward.44} parent=31 // pred_check
                _
              $region45: #{forward.44} parent=31 // pred_check_branch
                %136 = sbr.rel (0) target = $region47
              $region46: #{forward.44} parent=31 // pred_region
                loop: start=0, step=1, limit=1
                $region48: #{forward.44} parent=46 // loop_pre_header
                  _
                $region49: #{forward.44} parent=46 // loop_header
                  %s138 = sphi 0, %s142
                  %p139 = scmp.ge.s32.totalorder %s138, 1
                  %s143 = sphi %s111, %s111
                  %s144 = sphi %s109, %s109
                $region50: #{forward.44} parent=46 // loop_header_branch
                  %141 = sbr.rel (%p139) target = $region54
                $region51: #{forward.44} parent=46 // loop_body
                  _
                $region52: #{forward.44} parent=46 // loop_footer
                  %s142 = sadd.s32 1, %s138
                $region53: #{forward.44} parent=46 // loop_footer_branch
                  %137 = sbr.rel target = $region49
                $region54: #{forward.44} parent=46 // loop_exit
                  _
                loop: start=0, step=1, limit=1
                $region55: #{forward.44} parent=46 // loop_pre_header
                  _
                $region56: #{forward.44} parent=46 // loop_header
                  %s147 = sphi 0, %s151
                  %p148 = scmp.ge.s32.totalorder %s147, 1
                  %s152 = sphi %s111, %s111
                  %s153 = sphi %s109, %s109
                $region57: #{forward.44} parent=46 // loop_header_branch
                  %150 = sbr.rel (%p148) target = $region61
                $region58: #{forward.44} parent=46 // loop_body
                  %v154 = vld [vmem:[%s152] sm:$0xf]
                  %155 = vst [vmem:[%s153] sm:$0xf] %v154
                  %v156 = vld [vmem:[%s152 + $0x8] sm:$0xf]
                  %157 = vst [vmem:[%s153 + $0x4] sm:$0xf] %v156
                  %v158 = vld [vmem:[%s152 + $0x10] sm:$0xf]
                  %159 = vst [vmem:[%s153 + $0x8] sm:$0xf] %v158
                  %v160 = vld [vmem:[%s152 + $0x18] sm:$0xf]
                  %161 = vst [vmem:[%s153 + $0xc] sm:$0xf] %v160
                $region59: #{forward.44} parent=46 // loop_footer
                  %s151 = sadd.s32 1, %s147
                $region60: #{forward.44} parent=46 // loop_footer_branch
                  %146 = sbr.rel target = $region56
                $region61: #{forward.44} parent=46 // loop_exit
                  _
              $region47: #{forward.44} parent=31 // pred_fallthru
                _
            $region32: #{forward.44} parent=27 // pred_fallthru
              _
            // Predicated region
            $region33: #{forward.44} parent=27 // pred_check
              _
            $region34: #{forward.44} parent=27 // pred_check_branch
              %117 = sbr.rel (0) target = $region36
            $region35: #{forward.44} parent=27 // pred_region
              loop: start=0, step=1, limit=1
              $region37: #{forward.44} parent=35 // loop_pre_header
                _
              $region38: #{forward.44} parent=35 // loop_header
                %s120 = sphi 0, %s124
                %p121 = scmp.ge.s32.totalorder %s120, 1
                %s125 = sphi %s111, %s111
                %s126 = sphi %s109, %s109
              $region39: #{forward.44} parent=35 // loop_header_branch
                %123 = sbr.rel (%p121) target = $region43
              $region40: #{forward.44} parent=35 // loop_body
                %v127 = vld [vmem:[%s125] sm:$0xf]
                %128 = vst [vmem:[%s126] sm:$0xf] %v127
                %v129 = vld [vmem:[%s125 + $0x8] sm:$0xf]
                %130 = vst [vmem:[%s126 + $0x4] sm:$0xf] %v129
                %v131 = vld [vmem:[%s125 + $0x10] sm:$0xf]
                %132 = vst [vmem:[%s126 + $0x8] sm:$0xf] %v131
                %v133 = vld [vmem:[%s125 + $0x18] sm:$0xf]
                %134 = vst [vmem:[%s126 + $0xc] sm:$0xf] %v133
              $region41: #{forward.44} parent=35 // loop_footer
                %s124 = sadd.s32 1, %s120
              $region42: #{forward.44} parent=35 // loop_footer_branch
                %119 = sbr.rel target = $region38
              $region43: #{forward.44} parent=35 // loop_exit
                _
            $region36: #{forward.44} parent=27 // pred_fallthru
              _
          $region28: #{forward.44} parent=23 // pred_fallthru
            _
          %162 = vnop
        $region24: #{forward.44} parent=19 // pred_fallthru
          _
      $region20: #{forward.44} parent=5 // pred_fallthru
        _
      %p163 = scmp.le.s32.totalorder 1, %s8
      %p164 = scmp.lt.s32.totalorder %s8, 3
      %p165 = pnand %p163, %p164
      %p166 = pneg %p165
      // Predicated region
      $region62: #{forward.44} parent=5 // pred_check
        _
      $region63: #{forward.44} parent=5 // pred_check_branch
        %168 = sbr.rel (%p165) target = $region65
      $region64: #{forward.44} parent=5 // pred_region
        %s169 = ssub.s32 %s8, 1
        %s170 = sand.u32 %s42, 1
        %s171 = sand.u32 %s42, 1
        %s172 = smul.addr %s171, 16
        %s173 = scalar_lea.vmem [#allocation2], %s172
        // Predicated region
        $region66: #{forward.44} parent=64 // pred_check
          %p174 = pneg %p55
        $region67: #{forward.44} parent=64 // pred_check_branch
          %176 = sbr.rel (%p174) target = $region69
        $region68: #{forward.44} parent=64 // pred_region
          _
        $region69: #{forward.44} parent=64 // pred_fallthru
          _
        %p177 = pneg %p29
        %p178 = pneg %p26
        %s179 = sand.u32 %s42, 1
        %s180 = sand.u32 %s42, 1
        %s181 = smul.addr %s180, 16
        %s182 = scalar_lea.vmem [#allocation2], %s181
        %p183 = pneg %p55
        %p184 = pneg %p52
        %p185 = pneg %p81
        %p186 = pneg %p78
        %p187 = scmp.lt.s32.totalorder %s13, 1
        %s188 = scalar_select %p187, %s13, 1
        %s189 = smul.addr %s188, 8
        %s190 = scalar_lea.vmem %s2, %s189
        %p191 = scmp.lt.s32.totalorder %s13, 1
        %s192 = scalar_select %p191, %s13, 1
        %s193 = smul.addr %s192, 8
        %s194 = scalar_lea.vmem %s2, %s193
        %v197 = vld [vmem:[%s173] sm:$0xf]
        %v198 = vld [vmem:[%s173 + $0x4] sm:$0xf]
        %v199 = vld [vmem:[%s173 + $0x8] sm:$0xf]
        %v200 = vld [vmem:[%s173 + $0xc] sm:$0xf]
        %vm201 = vcmp.ge.bf16.partialorder %v197, 0
        %vm202 = vcmp.ge.bf16.partialorder %v198, 0
        %vm203 = vcmp.ge.bf16.partialorder %v199, 0
        %vm204 = vcmp.ge.bf16.partialorder %v200, 0
        %v205 = vmul.bf16 %v197, 1036860877
        %v206 = vmul.bf16 %v198, 1036860877
        %v207 = vmul.bf16 %v199, 1036860877
        %v208 = vmul.bf16 %v200, 1036860877
        %v209 = vsel %vm201, %v197, %v205
        %v210 = vsel %vm202, %v198, %v206
        %v211 = vsel %vm203, %v199, %v207
        %v212 = vsel %vm204, %v200, %v208
        %v213 = vld [vmem:[%s0] sm:$0xf]
        %v218 = vunpack.c.l.b16 %v209
        %v219 = vunpack.c.l.b16 %v210
        %v220 = vunpack.c.l.b16 %v211
        %v221 = vunpack.c.l.b16 %v212
        %v222 = vpack.c.b16 %v219, %v218
        %v223 = vpack.c.b16 %v221, %v220
        %vm226 = vcmask 261120
        %v228 = vsel %vm226, %v213, 0
        %230 = vmatprep.subr.bf16.mxu0 0
        %231 = vmatpush1.bf16.msra.mxu0 %v222
        %232 = vmatprep.subr.bf16.mxu0 0
        %233 = vmatpush1.bf16.msra.mxu0 %v223
        %234 = vmatprep.subr.bf16.mxu0 0
        %235 = vmatpush1.bf16.msra.mxu0 0
        %236 = vmatprep.subr.bf16.mxu0 0
        %237 = vmatpush1.bf16.msra.mxu0 0
        %238 = vmatprep.subr.bf16.mxu0 0
        %239 = vmatpush1.bf16.msra.mxu0 0
        %240 = vmatprep.subr.bf16.mxu0 0
        %241 = vmatpush1.bf16.msra.mxu0 0
        %242 = vmatprep.subr.bf16.mxu0 0
        %243 = vmatpush1.bf16.msra.mxu0 0
        %244 = vmatprep.subr.bf16.mxu0 0
        %245 = vmatpush1.bf16.msra.mxu0 0
        %246 = vmatprep.subr.bf16.mxu0 0
        %247 = vmatpush1.bf16.msra.mxu0 0
        %248 = vmatprep.subr.bf16.mxu0 0
        %249 = vmatpush1.bf16.msra.mxu0 0
        %250 = vmatprep.subr.bf16.mxu0 0
        %251 = vmatpush1.bf16.msra.mxu0 0
        %252 = vmatprep.subr.bf16.mxu0 0
        %253 = vmatpush1.bf16.msra.mxu0 0
        %254 = vmatprep.subr.bf16.mxu0 0
        %255 = vmatpush1.bf16.msra.mxu0 0
        %256 = vmatprep.subr.bf16.mxu0 0
        %257 = vmatpush1.bf16.msra.mxu0 0
        %258 = vmatprep.subr.bf16.mxu0 0
        %259 = vmatpush1.bf16.msra.mxu0 0
        %260 = vmatprep.subr.bf16.mxu0 0
        %261 = vmatpush1.bf16.msra.mxu0 0
        %262 = vmatprep.mubr.bf16.mxu0 0
        %263 = vmatmul.mubr.bf16.gmra.mrb[0].mxu0 %v228
        %v264 = vpop.f32.mrb[0].mxu0
        %v265 = vadd.f32 0.0, %v264
        %v266 = vpop.f32.mrb[0].mxu0
        %v267 = vpop.f32.mrb[0].mxu0
        %v268 = vpop.f32.mrb[0].mxu0
        %269 = vdwg.mxu0
        %vm270 = vcmp.ge.f32.partialorder %v265, 0.0
        %v271 = vmul.f32 %v265, 0.1
        %v272 = vsel %vm270, %v265, %v271
        %273 = vst [vmem:[%s194] sm:$0xff] %v272
        %p274 = scmp.lt.s32.totalorder %s13, 1
        %s275 = scalar_select %p274, %s13, 1
        %s276 = smul.addr %s275, 8
        %s277 = scalar_lea.vmem %s2, %s276
        // Predicated region
        $region70: #{forward.44} parent=64 // pred_check
          %p278 = pneg %p78
        $region71: #{forward.44} parent=64 // pred_check_branch
          %280 = sbr.rel (%p278) target = $region73
        $region72: #{forward.44} parent=64 // pred_region
          _
        $region73: #{forward.44} parent=64 // pred_fallthru
          _
      $region65: #{forward.44} parent=5 // pred_fallthru
        _
      %p281 = scmp.le.s32.totalorder 2, %s8
      // Predicated region
      $region74: #{forward.44} parent=5 // pred_check
        %p282 = pneg %p281
      $region75: #{forward.44} parent=5 // pred_check_branch
        %284 = sbr.rel (%p282) target = $region77
      $region76: #{forward.44} parent=5 // pred_region
        %s285 = ssub.s32 %s8, 2
        // Predicated region
        $region78: #{forward.44} parent=76 // pred_check
          %p286 = pneg %p84
        $region79: #{forward.44} parent=76 // pred_check_branch
          %288 = sbr.rel (%p286) target = $region81
        $region80: #{forward.44} parent=76 // pred_region
          %p289 = scmp.lt.s32.totalorder %s14, 1
          %s290 = scalar_select %p289, %s14, 1
          %s291 = smul.addr %s290, 8
          %s292 = scalar_lea.vmem %s2, %s291
        $region81: #{forward.44} parent=76 // pred_fallthru
          _
      $region77: #{forward.44} parent=5 // pred_fallthru
        _
    $region6: #{forward.44} parent=1 // loop_footer
      %s12 = sadd.s32 1, %s8
    $region7: #{forward.44} parent=1 // loop_footer_branch
      %7 = sbr.rel target = $region3
    $region8: #{forward.44} parent=1 // loop_exit
      _

// kernel: forward.56
$region0: #{forward.56}
  #allocation0 [shape = 'u32[]', space=smem, size = 0x4, offset = 0x4, fixed_abs, tag = 'smem constant byte address 0x4 - core index']
  #allocation1 [shape = 'u32[144,128]{1,0:T(1,128)}', space=vmem, size = 0x12000, scoped, tag = 'internal scratch']
  %s0 = inlined_call_operand.vmem [shape: bf16[72,64], index: 0, kind: input, shape index: {}]
  %s1 = inlined_call_operand.vmem [shape: bf16[64,512], index: 1, kind: input, shape index: {}]
  %s2 = inlined_call_operand.vmem [shape: f32[72,512], index: 2, kind: output, shape index: {}]
  %s3 = sld [smem:[#allocation0]]
  $region98: #{forward.56} parent=0
    _
  %s5 = ssub.s32 1, %s3
  %s6 = scalar_select 0, %s5, %s3
  $region1: #{forward.56} parent=0
    #allocation2 [shape = 'u8[65536]{0}', space=vmem, size = 0x10000, scoped, tag = 'input window, operand 1']
    #allocation3 [shape = 'u8[147456]{0}', space=vmem, size = 0x24000, scoped, tag = 'output window, operand 0']
    loop: start=0, step=1, limit=4
    $region2: #{forward.56} parent=1 // loop_pre_header
      _
    $region3: #{forward.56} parent=1 // loop_header
      %s8 = sphi 0, %s12
      %p9 = scmp.ge.s32.totalorder %s8, 4
      %s16 = sphi 0, %s16
      %s18 = sphi 0, %s16
      %s19 = sphi 0, %s18
      %s33 = sphi 0, %s19
      %s39 = sphi 0, %s41
      %s42 = sphi 0, %s39
      %s43 = sphi 0, %s42
      %s59 = sphi 0, %s43
      %s65 = sphi 0, %s67
      %s68 = sphi 0, %s65
      %s69 = sphi 0, %s68
      %s85 = sphi 0, %s69
    $region4: #{forward.56} parent=1 // loop_header_branch
      %11 = sbr.rel (%p9) target = $region8
    $region5: #{forward.56} parent=1 // loop_body
      %s13 = ssub.s32 %s8, 1
      %s14 = ssub.s32 %s8, 2
      %s15 = sadd.s32 %s8, 1
      %s17 = sadd.s32 %s16, 1
      %p20 = scmp.eq.s32.totalorder %s8, 1
      %p21 = scmp.ne.s32.totalorder %s16, %s18
      %p22 = scmp.eq.s32.totalorder %s8, 0
      %p23 = por %p21, %p22
      %p24 = scmp.ne.s32.totalorder %s16, %s18
      %p25 = scmp.eq.s32.totalorder %s13, 1
      %p26 = por %p24, %p25
      %p27 = scmp.ne.s32.totalorder %s18, %s19
      %p28 = scmp.eq.s32.totalorder %s13, 0
      %p29 = por %p27, %p28
      %p30 = scmp.ne.s32.totalorder %s18, %s19
      %p31 = scmp.eq.s32.totalorder %s14, 1
      %p32 = por %p30, %p31
      %p34 = scmp.ne.s32.totalorder %s19, %s33
      %p35 = scmp.eq.s32.totalorder %s14, 0
      %p36 = por %p34, %p35
      %s37 = ssub.s32 %s8, %s15
      %p38 = scmp.eq.s32.totalorder %s37, 0
      %s40 = sadd.s32 %s39, 1
      %s41 = scalar_select %p38, %s39, %s40
      %p44 = pneg %p38
      %p45 = scmp.eq.s32.totalorder %s8, 1
      %p46 = por %p44, %p45
      %p47 = scmp.ne.s32.totalorder %s39, %s42
      %p48 = scmp.eq.s32.totalorder %s8, 0
      %p49 = por %p47, %p48
      %p50 = scmp.ne.s32.totalorder %s39, %s42
      %p51 = scmp.eq.s32.totalorder %s13, 1
      %p52 = por %p50, %p51
      %p53 = scmp.ne.s32.totalorder %s42, %s43
      %p54 = scmp.eq.s32.totalorder %s13, 0
      %p55 = por %p53, %p54
      %p56 = scmp.ne.s32.totalorder %s42, %s43
      %p57 = scmp.eq.s32.totalorder %s14, 1
      %p58 = por %p56, %p57
      %p60 = scmp.ne.s32.totalorder %s43, %s59
      %p61 = scmp.eq.s32.totalorder %s14, 0
      %p62 = por %p60, %p61
      %s63 = ssub.s32 %s8, %s15
      %p64 = scmp.eq.s32.totalorder %s63, 0
      %s66 = sadd.s32 %s65, 1
      %s67 = scalar_select %p64, %s65, %s66
      %p70 = pneg %p64
      %p71 = scmp.eq.s32.totalorder %s8, 1
      %p72 = por %p70, %p71
      %p73 = scmp.ne.s32.totalorder %s65, %s68
      %p74 = scmp.eq.s32.totalorder %s8, 0
      %p75 = por %p73, %p74
      %p76 = scmp.ne.s32.totalorder %s65, %s68
      %p77 = scmp.eq.s32.totalorder %s13, 1
      %p78 = por %p76, %p77
      %p79 = scmp.ne.s32.totalorder %s68, %s69
      %p80 = scmp.eq.s32.totalorder %s13, 0
      %p81 = por %p79, %p80
      %p82 = scmp.ne.s32.totalorder %s68, %s69
      %p83 = scmp.eq.s32.totalorder %s14, 1
      %p84 = por %p82, %p83
      %p86 = scmp.ne.s32.totalorder %s69, %s85
      %p87 = scmp.eq.s32.totalorder %s14, 0
      %p88 = por %p86, %p87
      %p89 = scmp.le.s32.totalorder 1, %s8
      %p90 = scmp.lt.s32.totalorder %s8, 3
      %p91 = pnand %p89, %p90
      %p92 = pneg %p91
      // Predicated region
      $region9: #{forward.56} parent=5 // pred_check
        _
      $region10: #{forward.56} parent=5 // pred_check_branch
        %94 = sbr.rel (%p91) target = $region12
      $region11: #{forward.56} parent=5 // pred_region
        %s95 = ssub.s32 %s8, 1
        // Predicated region
        $region13: #{forward.56} parent=11 // pred_check
          %p96 = pneg %p29
        $region14: #{forward.56} parent=11 // pred_check_branch
          %98 = sbr.rel (%p96) target = $region16
        $region15: #{forward.56} parent=11 // pred_region
          _
        $region16: #{forward.56} parent=11 // pred_fallthru
          _
      $region12: #{forward.56} parent=5 // pred_fallthru
        _
      %p99 = scmp.lt.s32.totalorder %s8, 2
      // Predicated region
      $region17: #{forward.56} parent=5 // pred_check
        %p100 = pneg %p99
      $region18: #{forward.56} parent=5 // pred_check_branch
        %102 = sbr.rel (%p100) target = $region20
      $region19: #{forward.56} parent=5 // pred_region
        // Predicated region
        $region21: #{forward.56} parent=19 // pred_check
          %p103 = pneg %p49
        $region22: #{forward.56} parent=19 // pred_check_branch
          %105 = sbr.rel (%p103) target = $region24
        $region23: #{forward.56} parent=19 // pred_region
          %s106 = sand.u32 %s39, 1
          %s107 = sand.u32 %s39, 1
          %s108 = smul.addr %s107, 64
          %s109 = scalar_lea.vmem [#allocation2], %s108
          %s110 = smul.u32 2, %s8
          %s111 = smul.addr %s110, 4
          %s112 = scalar_lea.vmem %s1, %s111
          // Predicated region
          $region25: #{forward.56} parent=23 // pred_check
            _
          $region26: #{forward.56} parent=23 // pred_check_branch
            %114 = sbr.rel (0) target = $region28
          $region27: #{forward.56} parent=23 // pred_region
            // Predicated region
            $region29: #{forward.56} parent=27 // pred_check
              _
            $region30: #{forward.56} parent=27 // pred_check_branch
              %116 = sbr.rel (0) target = $region32
            $region31: #{forward.56} parent=27 // pred_region
              // Predicated region
              $region44: #{forward.56} parent=31 // pred_check
                _
              $region45: #{forward.56} parent=31 // pred_check_branch
                %145 = sbr.rel (0) target = $region47
              $region46: #{forward.56} parent=31 // pred_region
                loop: start=0, step=1, limit=1
                $region48: #{forward.56} parent=46 // loop_pre_header
                  _
                $region49: #{forward.56} parent=46 // loop_header
                  %s147 = sphi 0, %s151
                  %p148 = scmp.ge.s32.totalorder %s147, 1
                  %s152 = sphi %s112, %s112
                  %s153 = sphi %s109, %s109
                $region50: #{forward.56} parent=46 // loop_header_branch
                  %150 = sbr.rel (%p148) target = $region54
                $region51: #{forward.56} parent=46 // loop_body
                  %v154 = vld [vmem:[%s152] sm:$0xff]
                  %155 = vst [vmem:[%s153] sm:$0xff] %v154
                  %v156 = vld [vmem:[%s152 + $0x10] sm:$0xff]
                  %157 = vst [vmem:[%s153 + $0x8] sm:$0xff] %v156
                  %v158 = vld [vmem:[%s152 + $0x20] sm:$0xff]
                  %159 = vst [vmem:[%s153 + $0x10] sm:$0xff] %v158
                  %v160 = vld [vmem:[%s152 + $0x30] sm:$0xff]
                  %161 = vst [vmem:[%s153 + $0x18] sm:$0xff] %v160
                  %v162 = vld [vmem:[%s152 + $0x40] sm:$0xff]
                  %163 = vst [vmem:[%s153 + $0x20] sm:$0xff] %v162
                  %v164 = vld [vmem:[%s152 + $0x50] sm:$0xff]
                  %165 = vst [vmem:[%s153 + $0x28] sm:$0xff] %v164
                  %v166 = vld [vmem:[%s152 + $0x60] sm:$0xff]
                  %167 = vst [vmem:[%s153 + $0x30] sm:$0xff] %v166
                  %v168 = vld [vmem:[%s152 + $0x70] sm:$0xff]
                  %169 = vst [vmem:[%s153 + $0x38] sm:$0xff] %v168
                $region52: #{forward.56} parent=46 // loop_footer
                  %s151 = sadd.s32 1, %s147
                $region53: #{forward.56} parent=46 // loop_footer_branch
                  %146 = sbr.rel target = $region49
                $region54: #{forward.56} parent=46 // loop_exit
                  _
              $region47: #{forward.56} parent=31 // pred_fallthru
                _
              // Predicated region
              $region55: #{forward.56} parent=31 // pred_check
                _
              $region56: #{forward.56} parent=31 // pred_check_branch
                %171 = sbr.rel target = $region58
              $region57: #{forward.56} parent=31 // pred_region
                _
              $region58: #{forward.56} parent=31 // pred_fallthru
                _
            $region32: #{forward.56} parent=27 // pred_fallthru
              _
            // Predicated region
            $region33: #{forward.56} parent=27 // pred_check
              _
            $region34: #{forward.56} parent=27 // pred_check_branch
              %118 = sbr.rel target = $region36
            $region35: #{forward.56} parent=27 // pred_region
              loop: start=0, step=1, limit=1
              $region37: #{forward.56} parent=35 // loop_pre_header
                _
              $region38: #{forward.56} parent=35 // loop_header
                %s121 = sphi 0, %s125
                %p122 = scmp.ge.s32.totalorder %s121, 1
                %s126 = sphi %s112, %s112
                %s127 = sphi %s109, %s109
              $region39: #{forward.56} parent=35 // loop_header_branch
                %124 = sbr.rel (%p122) target = $region43
              $region40: #{forward.56} parent=35 // loop_body
                %v128 = vld [vmem:[%s126] sm:$0xff]
                %129 = vst [vmem:[%s127] sm:$0xff] %v128
                %v130 = vld [vmem:[%s126 + $0x10] sm:$0xff]
                %131 = vst [vmem:[%s127 + $0x8] sm:$0xff] %v130
                %v132 = vld [vmem:[%s126 + $0x20] sm:$0xff]
                %133 = vst [vmem:[%s127 + $0x10] sm:$0xff] %v132
                %v134 = vld [vmem:[%s126 + $0x30] sm:$0xff]
                %135 = vst [vmem:[%s127 + $0x18] sm:$0xff] %v134
                %v136 = vld [vmem:[%s126 + $0x40] sm:$0xff]
                %137 = vst [vmem:[%s127 + $0x20] sm:$0xff] %v136
                %v138 = vld [vmem:[%s126 + $0x50] sm:$0xff]
                %139 = vst [vmem:[%s127 + $0x28] sm:$0xff] %v138
                %v140 = vld [vmem:[%s126 + $0x60] sm:$0xff]
                %141 = vst [vmem:[%s127 + $0x30] sm:$0xff] %v140
                %v142 = vld [vmem:[%s126 + $0x70] sm:$0xff]
                %143 = vst [vmem:[%s127 + $0x38] sm:$0xff] %v142
              $region41: #{forward.56} parent=35 // loop_footer
                %s125 = sadd.s32 1, %s121
              $region42: #{forward.56} parent=35 // loop_footer_branch
                %120 = sbr.rel target = $region38
              $region43: #{forward.56} parent=35 // loop_exit
                _
            $region36: #{forward.56} parent=27 // pred_fallthru
              _
          $region28: #{forward.56} parent=23 // pred_fallthru
            _
          %172 = vnop
        $region24: #{forward.56} parent=19 // pred_fallthru
          _
      $region20: #{forward.56} parent=5 // pred_fallthru
        _
      %p173 = scmp.le.s32.totalorder 1, %s8
      %p174 = scmp.lt.s32.totalorder %s8, 3
      %p175 = pnand %p173, %p174
      %p176 = pneg %p175
      // Predicated region
      $region59: #{forward.56} parent=5 // pred_check
        _
      $region60: #{forward.56} parent=5 // pred_check_branch
        %178 = sbr.rel (%p175) target = $region62
      $region61: #{forward.56} parent=5 // pred_region
        %s179 = ssub.s32 %s8, 1
        %s180 = sand.u32 %s42, 1
        %s181 = sand.u32 %s42, 1
        %s182 = smul.addr %s181, 64
        %s183 = scalar_lea.vmem [#allocation2], %s182
        // Predicated region
        $region63: #{forward.56} parent=61 // pred_check
          %p184 = pneg %p55
        $region64: #{forward.56} parent=61 // pred_check_branch
          %186 = sbr.rel (%p184) target = $region66
        $region65: #{forward.56} parent=61 // pred_region
          _
        $region66: #{forward.56} parent=61 // pred_fallthru
          _
        %p187 = pneg %p29
        %p188 = pneg %p26
        %s189 = sand.u32 %s42, 1
        %s190 = sand.u32 %s42, 1
        %s191 = smul.addr %s190, 64
        %s192 = scalar_lea.vmem [#allocation2], %s191
        %p193 = pneg %p55
        %p194 = pneg %p52
        %p195 = pneg %p81
        %p196 = pneg %p78
        %s197 = sand.u32 %s68, 1
        %s198 = sand.u32 %s68, 1
        %s199 = smul.addr %s198, 144
        %s200 = scalar_lea.vmem [#allocation3], %s199
        %s201 = smul.u32 2, %s13
        %s202 = smul.u32 2, %s13
        %v205 = vld [vmem:[%s183] sm:$0xff]
        %v206 = vld [vmem:[%s183 + $0x8] sm:$0xff]
        %v207 = vld [vmem:[%s183 + $0x10] sm:$0xff]
        %v208 = vld [vmem:[%s183 + $0x18] sm:$0xff]
        %v209 = vld [vmem:[%s183 + $0x20] sm:$0xff]
        %v210 = vld [vmem:[%s183 + $0x28] sm:$0xff]
        %v211 = vld [vmem:[%s183 + $0x30] sm:$0xff]
        %v212 = vld [vmem:[%s183 + $0x38] sm:$0xff]
        %vm213 = vcmp.ge.bf16.partialorder %v205, 0
        %vm214 = vcmp.ge.bf16.partialorder %v206, 0
        %vm215 = vcmp.ge.bf16.partialorder %v207, 0
        %vm216 = vcmp.ge.bf16.partialorder %v208, 0
        %vm217 = vcmp.ge.bf16.partialorder %v209, 0
        %vm218 = vcmp.ge.bf16.partialorder %v210, 0
        %vm219 = vcmp.ge.bf16.partialorder %v211, 0
        %vm220 = vcmp.ge.bf16.partialorder %v212, 0
        %v221 = vmul.bf16 %v205, 1009007652
        %v222 = vmul.bf16 %v206, 1009007652
        %v223 = vmul.bf16 %v207, 1009007652
        %v224 = vmul.bf16 %v208, 1009007652
        %v225 = vmul.bf16 %v209, 1009007652
        %v226 = vmul.bf16 %v210, 1009007652
        %v227 = vmul.bf16 %v211, 1009007652
        %v228 = vmul.bf16 %v212, 1009007652
        %v229 = vsel %vm213, %v205, %v221
        %v230 = vsel %vm214, %v206, %v222
        %v231 = vsel %vm215, %v207, %v223
        %v232 = vsel %vm216, %v208, %v224
        %v233 = vsel %vm217, %v209, %v225
        %v234 = vsel %vm218, %v210, %v226
        %v235 = vsel %vm219, %v211, %v227
        %v236 = vsel %vm220, %v212, %v228
        %v237 = vld [vmem:[%s0] sm:$0xf]
        %v238 = vld [vmem:[%s0 + $0x4] sm:$0xf]
        %v239 = vld [vmem:[%s0 + $0x8] sm:$0xf]
        %v240 = vld [vmem:[%s0 + $0xc] sm:$0xf]
        %v241 = vld [vmem:[%s0 + $0x10] sm:$0xf]
        %v242 = vld [vmem:[%s0 + $0x14] sm:$0xf]
        %v243 = vld [vmem:[%s0 + $0x18] sm:$0xf]
        %v244 = vld [vmem:[%s0 + $0x1c] sm:$0xf]
        %v245 = vld [vmem:[%s0 + $0x20] sm:$0xf]
        %v255 = vunpack.c.l.b16 %v237
        %v256 = vunpack.c.l.b16 %v238
        %v257 = vunpack.c.l.b16 %v239
        %v258 = vunpack.c.l.b16 %v240
        %v259 = vunpack.c.l.b16 %v241
        %v260 = vunpack.c.l.b16 %v242
        %v261 = vunpack.c.l.b16 %v243
        %v262 = vunpack.c.l.b16 %v244
        %v263 = vunpack.c.l.b16 %v245
        %v264 = vpack.c.b16 %v256, %v255
        %v265 = vpack.c.b16 %v258, %v257
        %v266 = vpack.c.b16 %v260, %v259
        %v267 = vpack.c.b16 %v262, %v261
        %v268 = vpack.c.b16 %v263, %v263
        %v277 = vunpack.c.l.b16 %v229
        %v278 = vunpack.c.h.b16 %v229
        %v279 = vunpack.c.l.b16 %v230
        %v280 = vunpack.c.h.b16 %v230
        %v281 = vunpack.c.l.b16 %v231
        %v282 = vunpack.c.h.b16 %v231
        %v283 = vunpack.c.l.b16 %v232
        %v284 = vunpack.c.h.b16 %v232
        %v285 = vunpack.c.l.b16 %v233
        %v286 = vunpack.c.h.b16 %v233
        %v287 = vunpack.c.l.b16 %v234
        %v288 = vunpack.c.h.b16 %v234
        %v289 = vunpack.c.l.b16 %v235
        %v290 = vunpack.c.h.b16 %v235
        %v291 = vunpack.c.l.b16 %v236
        %v292 = vunpack.c.h.b16 %v236
        %v293 = vpack.c.b16 %v279, %v277
        %v294 = vpack.c.b16 %v280, %v278
        %v295 = vpack.c.b16 %v283, %v281
        %v296 = vpack.c.b16 %v284, %v282
        %v297 = vpack.c.b16 %v287, %v285
        %v298 = vpack.c.b16 %v288, %v286
        %v299 = vpack.c.b16 %v291, %v289
        %v300 = vpack.c.b16 %v292, %v290
        %vm309 = vcmask 523264
        %v311 = vsel %vm309, %v264, 0
        %v314 = vsel %vm309, %v265, 0
        %v317 = vsel %vm309, %v266, 0
        %v320 = vsel %vm309, %v267, 0
        %v323 = vsel %vm309, %v268, 0
        %325 = vmatprep.subr.bf16.mxu0 %v294
        %326 = vmatpush1.bf16.msra.mxu0 %v293
        %327 = vmatprep.subr.bf16.mxu0 %v296
        %328 = vmatpush1.bf16.msra.mxu0 %v295
        %329 = vmatprep.subr.bf16.mxu0 %v298
        %330 = vmatpush1.bf16.msra.mxu0 %v297
        %331 = vmatprep.subr.bf16.mxu0 %v300
        %332 = vmatpush1.bf16.msra.mxu0 %v299
        %333 = vmatprep.subr.bf16.mxu0 0
        %334 = vmatpush1.bf16.msra.mxu0 0
        %335 = vmatprep.subr.bf16.mxu0 0
        %336 = vmatpush1.bf16.msra.mxu0 0
        %337 = vmatprep.subr.bf16.mxu0 0
        %338 = vmatpush1.bf16.msra.mxu0 0
        %339 = vmatprep.subr.bf16.mxu0 0
        %340 = vmatpush1.bf16.msra.mxu0 0
        %341 = vmatprep.subr.bf16.mxu0 0
        %342 = vmatpush1.bf16.msra.mxu0 0
        %343 = vmatprep.subr.bf16.mxu0 0
        %344 = vmatpush1.bf16.msra.mxu0 0
        %345 = vmatprep.subr.bf16.mxu0 0
        %346 = vmatpush1.bf16.msra.mxu0 0
        %347 = vmatprep.subr.bf16.mxu0 0
        %348 = vmatpush1.bf16.msra.mxu0 0
        %349 = vmatprep.subr.bf16.mxu0 0
        %350 = vmatpush1.bf16.msra.mxu0 0
        %351 = vmatprep.subr.bf16.mxu0 0
        %352 = vmatpush1.bf16.msra.mxu0 0
        %353 = vmatprep.subr.bf16.mxu0 0
        %354 = vmatpush1.bf16.msra.mxu0 0
        %355 = vmatprep.subr.bf16.mxu0 0
        %356 = vmatpush1.bf16.msra.mxu0 0
        %357 = vmatprep.mubr.bf16.mxu0 0
        %358 = vmatmul.mubr.bf16.gmra.mrb[0].mxu0 %v311
        %v359 = vpop.f32.mrb[0].mxu0
        %v360 = vadd.f32 0.0, %v359
        %v361 = vpop.f32.mrb[0].mxu0
        %v362 = vadd.f32 0.0, %v361
        %v363 = vpop.f32.mrb[0].mxu0
        %v364 = vadd.f32 0.0, %v363
        %v365 = vpop.f32.mrb[0].mxu0
        %v366 = vadd.f32 0.0, %v365
        %367 = vmatprep.mubr.bf16.mxu0 0
        %368 = vmatmul.mubr.bf16.gmra.mrb[0].mxu0 %v314
        %v369 = vpop.f32.mrb[0].mxu0
        %v370 = vadd.f32 0.0, %v369
        %v371 = vpop.f32.mrb[0].mxu0
        %v372 = vadd.f32 0.0, %v371
        %v373 = vpop.f32.mrb[0].mxu0
        %v374 = vadd.f32 0.0, %v373
        %v375 = vpop.f32.mrb[0].mxu0
        %v376 = vadd.f32 0.0, %v375
        %377 = vmatprep.mubr.bf16.mxu0 0
        %378 = vmatmul.mubr.bf16.gmra.mrb[0].mxu0 %v317
        %v379 = vpop.f32.mrb[0].mxu0
        %v380 = vadd.f32 0.0, %v379
        %v381 = vpop.f32.mrb[0].mxu0
        %v382 = vadd.f32 0.0, %v381
        %v383 = vpop.f32.mrb[0].mxu0
        %v384 = vadd.f32 0.0, %v383
        %v385 = vpop.f32.mrb[0].mxu0
        %v386 = vadd.f32 0.0, %v385
        %387 = vmatprep.mubr.bf16.mxu0 0
        %388 = vmatmul.mubr.bf16.gmra.mrb[0].mxu0 %v320
        %v389 = vpop.f32.mrb[0].mxu0
        %v390 = vadd.f32 0.0, %v389
        %v391 = vpop.f32.mrb[0].mxu0
        %v392 = vadd.f32 0.0, %v391
        %v393 = vpop.f32.mrb[0].mxu0
        %v394 = vadd.f32 0.0, %v393
        %v395 = vpop.f32.mrb[0].mxu0
        %v396 = vadd.f32 0.0, %v395
        %397 = vmatprep.mubr.bf16.mxu0 0
        %398 = vmatmul.mubr.bf16.gmra.mrb[0].mxu0 %v323
        %v399 = vpop.f32.mrb[0].mxu0
        %v400 = vadd.f32 0.0, %v399
        %v401 = vpop.f32.mrb[0].mxu0
        %v402 = vadd.f32 0.0, %v401
        %v403 = vpop.f32.mrb[0].mxu0
        %v404 = vpop.f32.mrb[0].mxu0
        %405 = vdwg.mxu0
        %406 = vst [vmem:[%s200] sm:$0xff] %v360
        %407 = vst [vmem:[%s200 + $0x8] sm:$0xff] %v362
        %408 = vst [vmem:[%s200 + $0x10] sm:$0xff] %v364
        %409 = vst [vmem:[%s200 + $0x18] sm:$0xff] %v366
        %410 = vst [vmem:[%s200 + $0x20] sm:$0xff] %v370
        %411 = vst [vmem:[%s200 + $0x28] sm:$0xff] %v372
        %412 = vst [vmem:[%s200 + $0x30] sm:$0xff] %v374
        %413 = vst [vmem:[%s200 + $0x38] sm:$0xff] %v376
        %414 = vst [vmem:[%s200 + $0x40] sm:$0xff] %v380
        %415 = vst [vmem:[%s200 + $0x48] sm:$0xff] %v382
        %416 = vst [vmem:[%s200 + $0x50] sm:$0xff] %v384
        %417 = vst [vmem:[%s200 + $0x58] sm:$0xff] %v386
        %418 = vst [vmem:[%s200 + $0x60] sm:$0xff] %v390
        %419 = vst [vmem:[%s200 + $0x68] sm:$0xff] %v392
        %420 = vst [vmem:[%s200 + $0x70] sm:$0xff] %v394
        %421 = vst [vmem:[%s200 + $0x78] sm:$0xff] %v396
        %422 = vst [vmem:[%s200 + $0x80] sm:$0xff] %v400
        %423 = vst [vmem:[%s200 + $0x88] sm:$0xff] %v402
        %s424 = sand.u32 %s68, 1
        %s425 = sand.u32 %s68, 1
        %s426 = smul.addr %s425, 144
        %s427 = scalar_lea.vmem [#allocation3], %s426
        // Predicated region
        $region67: #{forward.56} parent=61 // pred_check
          %p428 = pneg %p78
        $region68: #{forward.56} parent=61 // pred_check_branch
          %430 = sbr.rel (%p428) target = $region70
        $region69: #{forward.56} parent=61 // pred_region
          %s431 = smul.u32 2, %s13
          %s432 = smul.addr %s431, 8
          %s433 = scalar_lea.vmem %s2, %s432
          // Predicated region
          $region71: #{forward.56} parent=69 // pred_check
            _
          $region72: #{forward.56} parent=69 // pred_check_branch
            %435 = sbr.rel (0) target = $region74
          $region73: #{forward.56} parent=69 // pred_region
            // Predicated region
            $region75: #{forward.56} parent=73 // pred_check
              _
            $region76: #{forward.56} parent=73 // pred_check_branch
              %437 = sbr.rel (0) target = $region78
            $region77: #{forward.56} parent=73 // pred_region
              loop: start=0, step=1, limit=1
              $region79: #{forward.56} parent=77 // loop_pre_header
                _
              $region80: #{forward.56} parent=77 // loop_header
                %s439 = sphi 0, %s443
                %p440 = scmp.ge.s32.totalorder %s439, 1
                %s444 = sphi %s427, %s427
                %s445 = sphi %s433, %s433
              $region81: #{forward.56} parent=77 // loop_header_branch
                %442 = sbr.rel (%p440) target = $region85
              $region82: #{forward.56} parent=77 // loop_body
                %v446 = vld [vmem:[%s444] sm:$0xff]
                %447 = vst [vmem:[%s445] sm:$0xff] %v446
                %v448 = vld [vmem:[%s444 + $0x8] sm:$0xff]
                %449 = vst [vmem:[%s445 + $0x8] sm:$0xff] %v448
                %v450 = vld [vmem:[%s444 + $0x10] sm:$0xff]
                %451 = vst [vmem:[%s445 + $0x20] sm:$0xff] %v450
                %v452 = vld [vmem:[%s444 + $0x18] sm:$0xff]
                %453 = vst [vmem:[%s445 + $0x28] sm:$0xff] %v452
                %v454 = vld [vmem:[%s444 + $0x20] sm:$0xff]
                %455 = vst [vmem:[%s445 + $0x40] sm:$0xff] %v454
                %v456 = vld [vmem:[%s444 + $0x28] sm:$0xff]
                %457 = vst [vmem:[%s445 + $0x48] sm:$0xff] %v456
                %v458 = vld [vmem:[%s444 + $0x30] sm:$0xff]
                %459 = vst [vmem:[%s445 + $0x60] sm:$0xff] %v458
                %v460 = vld [vmem:[%s444 + $0x38] sm:$0xff]
                %461 = vst [vmem:[%s445 + $0x68] sm:$0xff] %v460
                %v462 = vld [vmem:[%s444 + $0x40] sm:$0xff]
                %463 = vst [vmem:[%s445 + $0x80] sm:$0xff] %v462
                %v464 = vld [vmem:[%s444 + $0x48] sm:$0xff]
                %465 = vst [vmem:[%s445 + $0x88] sm:$0xff] %v464
                %v466 = vld [vmem:[%s444 + $0x50] sm:$0xff]
                %467 = vst [vmem:[%s445 + $0xa0] sm:$0xff] %v466
                %v468 = vld [vmem:[%s444 + $0x58] sm:$0xff]
                %469 = vst [vmem:[%s445 + $0xa8] sm:$0xff] %v468
                %v470 = vld [vmem:[%s444 + $0x60] sm:$0xff]
                %471 = vst [vmem:[%s445 + $0xc0] sm:$0xff] %v470
                %v472 = vld [vmem:[%s444 + $0x68] sm:$0xff]
                %473 = vst [vmem:[%s445 + $0xc8] sm:$0xff] %v472
                %v474 = vld [vmem:[%s444 + $0x70] sm:$0xff]
                %475 = vst [vmem:[%s445 + $0xe0] sm:$0xff] %v474
                %v476 = vld [vmem:[%s444 + $0x78] sm:$0xff]
                %477 = vst [vmem:[%s445 + $0xe8] sm:$0xff] %v476
                %v478 = vld [vmem:[%s444 + $0x80] sm:$0xff]
                %479 = vst [vmem:[%s445 + $0x100] sm:$0xff] %v478
                %v480 = vld [vmem:[%s444 + $0x88] sm:$0xff]
                %481 = vst [vmem:[%s445 + $0x108] sm:$0xff] %v480
              $region83: #{forward.56} parent=77 // loop_footer
                %s443 = sadd.s32 1, %s439
              $region84: #{forward.56} parent=77 // loop_footer_branch
                %438 = sbr.rel target = $region80
              $region85: #{forward.56} parent=77 // loop_exit
                _
            $region78: #{forward.56} parent=73 // pred_fallthru
              _
            // Predicated region
            $region86: #{forward.56} parent=73 // pred_check
              _
            $region87: #{forward.56} parent=73 // pred_check_branch
              %483 = sbr.rel target = $region89
            $region88: #{forward.56} parent=73 // pred_region
              _
            $region89: #{forward.56} parent=73 // pred_fallthru
              _
          $region74: #{forward.56} parent=69 // pred_fallthru
            _
          %484 = vnop
        $region70: #{forward.56} parent=61 // pred_fallthru
          _
      $region62: #{forward.56} parent=5 // pred_fallthru
        _
      %p485 = scmp.le.s32.totalorder 2, %s8
      // Predicated region
      $region90: #{forward.56} parent=5 // pred_check
        %p486 = pneg %p485
      $region91: #{forward.56} parent=5 // pred_check_branch
        %488 = sbr.rel (%p486) target = $region93
      $region92: #{forward.56} parent=5 // pred_region
        %s489 = ssub.s32 %s8, 2
        // Predicated region
        $region94: #{forward.56} parent=92 // pred_check
          %p490 = pneg %p84
        $region95: #{forward.56} parent=92 // pred_check_branch
          %492 = sbr.rel (%p490) target = $region97
        $region96: #{forward.56} parent=92 // pred_region
          %s493 = sand.u32 %s69, 1
          %s494 = sand.u32 %s69, 1
          %s495 = smul.addr %s494, 144
          %s496 = scalar_lea.vmem [#allocation3], %s495
        $region97: #{forward.56} parent=92 // pred_fallthru
          _
      $region93: #{forward.56} parent=5 // pred_fallthru
        _
    $region6: #{forward.56} parent=1 // loop_footer
      %s12 = sadd.s32 1, %s8
    $region7: #{forward.56} parent=1 // loop_footer_branch
      %7 = sbr.rel target = $region3
    $region8: #{forward.56} parent=1 // loop_exit
      _

// kernel: squeeze.4
$region0: #{squeeze.4}
  %s0 = inlined_call_operand.vmem [shape: f32[4,1032], index: 0, kind: input, shape index: {}]
  %s1 = inlined_call_operand.vmem [shape: f32[4,8,129], index: 1, kind: output, shape index: {}]
  $region1: #{squeeze.4} parent=0
    #allocation0 [shape = 'u8[36864]{0}', space=vmem, size = 0x9000, scoped, tag = 'scoped mem for input reshape']
    %s3 = sshllo.u32 0, 4
    %s4 = smul.addr 4, 8
    %s5 = scalar_lea.vmem %s0, %s4
    %v6 = vld [vmem:[%s5] sm:%s3]
    %s7 = scalar_lea.vmem [#allocation0], 64
    %8 = vst [vmem:[%s7] sm:%s3] %v6
    %s9 = smul.addr 4, 7
    %s10 = scalar_lea.vmem %s0, %s9
    %v11 = vld [vmem:[%s10] sm:%s3]
    %s12 = scalar_lea.vmem [#allocation0], 56
    %13 = vst [vmem:[%s12] sm:%s3] %v11
    %s14 = smul.addr 4, 6
    %s15 = scalar_lea.vmem %s0, %s14
    %v16 = vld [vmem:[%s15] sm:%s3]
    %s17 = scalar_lea.vmem [#allocation0], 48
    %18 = vst [vmem:[%s17] sm:%s3] %v16
    %s19 = smul.addr 4, 5
    %s20 = scalar_lea.vmem %s0, %s19
    %v21 = vld [vmem:[%s20] sm:%s3]
    %s22 = scalar_lea.vmem [#allocation0], 40
    %23 = vst [vmem:[%s22] sm:%s3] %v21
    %s24 = smul.addr 4, 4
    %s25 = scalar_lea.vmem %s0, %s24
    %v26 = vld [vmem:[%s25] sm:%s3]
    %s27 = scalar_lea.vmem [#allocation0], 32
    %28 = vst [vmem:[%s27] sm:%s3] %v26
    %s29 = smul.addr 4, 3
    %s30 = scalar_lea.vmem %s0, %s29
    %v31 = vld [vmem:[%s30] sm:%s3]
    %s32 = scalar_lea.vmem [#allocation0], 24
    %33 = vst [vmem:[%s32] sm:%s3] %v31
    %s34 = smul.addr 4, 2
    %s35 = scalar_lea.vmem %s0, %s34
    %v36 = vld [vmem:[%s35] sm:%s3]
    %s37 = scalar_lea.vmem [#allocation0], 16
    %38 = vst [vmem:[%s37] sm:%s3] %v36
    %s39 = scalar_lea.vmem %s0, 4
    %v40 = vld [vmem:[%s39] sm:%s3]
    %s41 = scalar_lea.vmem [#allocation0], 8
    %42 = vst [vmem:[%s41] sm:%s3] %v40
    %v43 = vld [vmem:[%s0] sm:%s3]
    %44 = vst [vmem:[#allocation0] sm:%s3] %v43
    %s45 = scalar_lea.vmem [#allocation0], 8
    %v46 = vld [vmem:[%s45] sm:$0xf]
    %vm47 = vcmask 7168
    %s48 = scalar_lea.vmem %s1, 8
    %49 = vst.msk [vmem:[%s48] ss:$16 sm:$0x3] %vm47, %v46
    %s50 = scalar_lea.vmem %s1, 8
    %51 = vst.msk [vmem:[%s50] ss:$16 sm:$0xc] %vm47, %v46
    %v52 = vld [vmem:[#allocation0] sm:$0xf]
    %53 = vst [vmem:[%s1] ss:$16 sm:$0x3] %v52
    %54 = vst [vmem:[%s1] ss:$16 sm:$0xc] %v52
    %s55 = scalar_lea.vmem [#allocation0], 16
    %v56 = vld [vmem:[%s55] sm:$0xf]
    %s57 = scalar_lea.vmem [#allocation0], 16
    %v58 = vld [vmem:[%s57] sm:$0xf]
    %vm59 = vcmask 7168
    %v60 = vsel %vm59, %v58, %v56
    %61 = vrot.lane.b32.xlu0 %v60, 127
    %v62 = vpop.permute.xlu0 %61
    %vm63 = vcmask 7168
    %s64 = scalar_lea.vmem %s1, 9
    %65 = vst.msk [vmem:[%s64] ss:$16 sm:$0x3] %vm63, %v62
    %s66 = scalar_lea.vmem %s1, 9
    %67 = vst.msk [vmem:[%s66] ss:$16 sm:$0xc] %vm63, %v62
    %vm68 = vcmask 1048568
    %s69 = scalar_lea.vmem %s1, 1
    %70 = vst.msk [vmem:[%s69] ss:$16 sm:$0x3] %vm68, %v62
    %s71 = scalar_lea.vmem %s1, 1
    %72 = vst.msk [vmem:[%s71] ss:$16 sm:$0xc] %vm68, %v62
    %s73 = scalar_lea.vmem [#allocation0], 8
    %v74 = vld [vmem:[%s73] sm:$0xf]
    %75 = vrot.lane.b32.xlu0 %v74, 127
    %v76 = vpop.permute.xlu0 %75
    %vm77 = vcmask 1039360
    %s78 = scalar_lea.vmem %s1, 1
    %79 = vst.msk [vmem:[%s78] ss:$16 sm:$0x3] %vm77, %v76
    %s80 = scalar_lea.vmem %s1, 1
    %81 = vst.msk [vmem:[%s80] ss:$16 sm:$0xc] %vm77, %v76
    %s82 = scalar_lea.vmem [#allocation0], 24
    %v83 = vld [vmem:[%s82] sm:$0xf]
    %s84 = scalar_lea.vmem [#allocation0], 24
    %v85 = vld [vmem:[%s84] sm:$0xf]
    %vm86 = vcmask 15360
    %v87 = vsel %vm86, %v85, %v83
    %88 = vrot.lane.b32.xlu0 %v87, 126
    %v89 = vpop.permute.xlu0 %88
    %vm90 = vcmask 7168
    %s91 = scalar_lea.vmem %s1, 10
    %92 = vst.msk [vmem:[%s91] ss:$16 sm:$0x3] %vm90, %v89
    %s93 = scalar_lea.vmem %s1, 10
    %94 = vst.msk [vmem:[%s93] ss:$16 sm:$0xc] %vm90, %v89
    %vm95 = vcmask 1048560
    %s96 = scalar_lea.vmem %s1, 2
    %97 = vst.msk [vmem:[%s96] ss:$16 sm:$0x3] %vm95, %v89
    %s98 = scalar_lea.vmem %s1, 2
    %99 = vst.msk [vmem:[%s98] ss:$16 sm:$0xc] %vm95, %v89
    %s100 = scalar_lea.vmem [#allocation0], 16
    %v101 = vld [vmem:[%s100] sm:$0xf]
    %102 = vrot.lane.b32.xlu0 %v101, 126
    %v103 = vpop.permute.xlu0 %102
    %vm104 = vcmask 1031168
    %s105 = scalar_lea.vmem %s1, 2
    %106 = vst.msk [vmem:[%s105] ss:$16 sm:$0x3] %vm104, %v103
    %s107 = scalar_lea.vmem %s1, 2
    %108 = vst.msk [vmem:[%s107] ss:$16 sm:$0xc] %vm104, %v103
    %s109 = scalar_lea.vmem [#allocation0], 32
    %v110 = vld [vmem:[%s109] sm:$0xf]
    %s111 = scalar_lea.vmem [#allocation0], 32
    %v112 = vld [vmem:[%s111] sm:$0xf]
    %vm113 = vcmask 23552
    %v114 = vsel %vm113, %v112, %v110
    %115 = vrot.lane.b32.xlu0 %v114, 125
    %v116 = vpop.permute.xlu0 %115
    %vm117 = vcmask 7168
    %s118 = scalar_lea.vmem %s1, 11
    %119 = vst.msk [vmem:[%s118] ss:$16 sm:$0x3] %vm117, %v116
    %s120 = scalar_lea.vmem %s1, 11
    %121 = vst.msk [vmem:[%s120] ss:$16 sm:$0xc] %vm117, %v116
    %vm122 = vcmask 1048552
    %s123 = scalar_lea.vmem %s1, 3
    %124 = vst.msk [vmem:[%s123] ss:$16 sm:$0x3] %vm122, %v116
    %s125 = scalar_lea.vmem %s1, 3
    %126 = vst.msk [vmem:[%s125] ss:$16 sm:$0xc] %vm122, %v116
    %s127 = scalar_lea.vmem [#allocation0], 24
    %v128 = vld [vmem:[%s127] sm:$0xf]
    %129 = vrot.lane.b32.xlu0 %v128, 125
    %v130 = vpop.permute.xlu0 %129
    %vm131 = vcmask 1022976
    %s132 = scalar_lea.vmem %s1, 3
    %133 = vst.msk [vmem:[%s132] ss:$16 sm:$0x3] %vm131, %v130
    %s134 = scalar_lea.vmem %s1, 3
    %135 = vst.msk [vmem:[%s134] ss:$16 sm:$0xc] %vm131, %v130
    %s136 = scalar_lea.vmem [#allocation0], 40
    %v137 = vld [vmem:[%s136] sm:$0xf]
    %s138 = scalar_lea.vmem [#allocation0], 40
    %v139 = vld [vmem:[%s138] sm:$0xf]
    %vm140 = vcmask 31744
    %v141 = vsel %vm140, %v139, %v137
    %142 = vrot.lane.b32.xlu0 %v141, 124
    %v143 = vpop.permute.xlu0 %142
    %vm144 = vcmask 7168
    %s145 = scalar_lea.vmem %s1, 12
    %146 = vst.msk [vmem:[%s145] ss:$16 sm:$0x3] %vm144, %v143
    %s147 = scalar_lea.vmem %s1, 12
    %148 = vst.msk [vmem:[%s147] ss:$16 sm:$0xc] %vm144, %v143
    %vm149 = vcmask 1048544
    %s150 = scalar_lea.vmem %s1, 4
    %151 = vst.msk [vmem:[%s150] ss:$16 sm:$0x3] %vm149, %v143
    %s152 = scalar_lea.vmem %s1, 4
    %153 = vst.msk [vmem:[%s152] ss:$16 sm:$0xc] %vm149, %v143
    %s154 = scalar_lea.vmem [#allocation0], 32
    %v155 = vld [vmem:[%s154] sm:$0xf]
    %156 = vrot.lane.b32.xlu0 %v155, 124
    %v157 = vpop.permute.xlu0 %156
    %vm158 = vcmask 1014784
    %s159 = scalar_lea.vmem %s1, 4
    %160 = vst.msk [vmem:[%s159] ss:$16 sm:$0x3] %vm158, %v157
    %s161 = scalar_lea.vmem %s1, 4
    %162 = vst.msk [vmem:[%s161] ss:$16 sm:$0xc] %vm158, %v157
    %s163 = scalar_lea.vmem [#allocation0], 48
    %v164 = vld [vmem:[%s163] sm:$0xf]
    %s165 = scalar_lea.vmem [#allocation0], 48
    %v166 = vld [vmem:[%s165] sm:$0xf]
    %vm167 = vcmask 39936
    %v168 = vsel %vm167, %v166, %v164
    %169 = vrot.lane.b32.xlu0 %v168, 123
    %v170 = vpop.permute.xlu0 %169
    %vm171 = vcmask 7168
    %s172 = scalar_lea.vmem %s1, 13
    %173 = vst.msk [vmem:[%s172] ss:$16 sm:$0x3] %vm171, %v170
    %s174 = scalar_lea.vmem %s1, 13
    %175 = vst.msk [vmem:[%s174] ss:$16 sm:$0xc] %vm171, %v170
    %vm176 = vcmask 1048536
    %s177 = scalar_lea.vmem %s1, 5
    %178 = vst.msk [vmem:[%s177] ss:$16 sm:$0x3] %vm176, %v170
    %s179 = scalar_lea.vmem %s1, 5
    %180 = vst.msk [vmem:[%s179] ss:$16 sm:$0xc] %vm176, %v170
    %s181 = scalar_lea.vmem [#allocation0], 40
    %v182 = vld [vmem:[%s181] sm:$0xf]
    %183 = vrot.lane.b32.xlu0 %v182, 123
    %v184 = vpop.permute.xlu0 %183
    %vm185 = vcmask 1006592
    %s186 = scalar_lea.vmem %s1, 5
    %187 = vst.msk [vmem:[%s186] ss:$16 sm:$0x3] %vm185, %v184
    %s188 = scalar_lea.vmem %s1, 5
    %189 = vst.msk [vmem:[%s188] ss:$16 sm:$0xc] %vm185, %v184
    %s190 = scalar_lea.vmem [#allocation0], 56
    %v191 = vld [vmem:[%s190] sm:$0xf]
    %s192 = scalar_lea.vmem [#allocation0], 56
    %v193 = vld [vmem:[%s192] sm:$0xf]
    %vm194 = vcmask 48128
    %v195 = vsel %vm194, %v193, %v191
    %196 = vrot.lane.b32.xlu0 %v195, 122
    %v197 = vpop.permute.xlu0 %196
    %vm198 = vcmask 7168
    %s199 = scalar_lea.vmem %s1, 14
    %200 = vst.msk [vmem:[%s199] ss:$16 sm:$0x3] %vm198, %v197
    %s201 = scalar_lea.vmem %s1, 14
    %202 = vst.msk [vmem:[%s201] ss:$16 sm:$0xc] %vm198, %v197
    %vm203 = vcmask 1048528
    %s204 = scalar_lea.vmem %s1, 6
    %205 = vst.msk [vmem:[%s204] ss:$16 sm:$0x3] %vm203, %v197
    %s206 = scalar_lea.vmem %s1, 6
    %207 = vst.msk [vmem:[%s206] ss:$16 sm:$0xc] %vm203, %v197
    %s208 = scalar_lea.vmem [#allocation0], 48
    %v209 = vld [vmem:[%s208] sm:$0xf]
    %210 = vrot.lane.b32.xlu0 %v209, 122
    %v211 = vpop.permute.xlu0 %210
    %vm212 = vcmask 998400
    %s213 = scalar_lea.vmem %s1, 6
    %214 = vst.msk [vmem:[%s213] ss:$16 sm:$0x3] %vm212, %v211
    %s215 = scalar_lea.vmem %s1, 6
    %216 = vst.msk [vmem:[%s215] ss:$16 sm:$0xc] %vm212, %v211
    %s217 = scalar_lea.vmem [#allocation0], 64
    %v218 = vld [vmem:[%s217] sm:$0xf]
    %s219 = scalar_lea.vmem [#allocation0], 64
    %v220 = vld [vmem:[%s219] sm:$0xf]
    %vm221 = vcmask 56320
    %v222 = vsel %vm221, %v220, %v218
    %223 = vrot.lane.b32.xlu0 %v222, 121
    %v224 = vpop.permute.xlu0 %223
    %vm225 = vcmask 7168
    %s226 = scalar_lea.vmem %s1, 15
    %227 = vst.msk [vmem:[%s226] ss:$16 sm:$0x3] %vm225, %v224
    %s228 = scalar_lea.vmem %s1, 15
    %229 = vst.msk [vmem:[%s228] ss:$16 sm:$0xc] %vm225, %v224
    %vm230 = vcmask 1048520
    %s231 = scalar_lea.vmem %s1, 7
    %232 = vst.msk [vmem:[%s231] ss:$16 sm:$0x3] %vm230, %v224
    %s233 = scalar_lea.vmem %s1, 7
    %234 = vst.msk [vmem:[%s233] ss:$16 sm:$0xc] %vm230, %v224
    %s235 = scalar_lea.vmem [#allocation0], 56
    %v236 = vld [vmem:[%s235] sm:$0xf]
    %237 = vrot.lane.b32.xlu0 %v236, 121
    %v238 = vpop.permute.xlu0 %237
    %vm239 = vcmask 990208
    %s240 = scalar_lea.vmem %s1, 7
    %241 = vst.msk [vmem:[%s240] ss:$16 sm:$0x3] %vm239, %v238
    %s242 = scalar_lea.vmem %s1, 7
    %243 = vst.msk [vmem:[%s242] ss:$16 sm:$0xc] %vm239, %v238

// kernel: forward.57
$region0: #{forward.57}
  #allocation0 [shape = 'u32[]', space=smem, size = 0x4, offset = 0x4, fixed_abs, tag = 'smem constant byte address 0x4 - core index']
  #allocation1 [shape = 'u32[144,128]{1,0:T(1,128)}', space=vmem, size = 0x12000, scoped, tag = 'internal scratch']
  %s0 = inlined_call_operand.vmem [shape: f32[16,16], index: 0, kind: input, shape index: {}]
  %s1 = inlined_call_operand.vmem [shape: f32[16,16], index: 1, kind: input, shape index: {}]
  %s2 = inlined_call_operand.vmem [shape: f32[16,1536], index: 2, kind: input, shape index: {}]
  %s3 = inlined_call_operand.vmem [shape: f32[16,1536], index: 3, kind: input, shape index: {}]
  %s4 = inlined_call_operand.vmem [shape: f32[16,1536], index: 4, kind: output, shape index: {}]
  %s5 = sld [smem:[#allocation0]]
  $region114: #{forward.57} parent=0
    _
  %s7 = ssub.s32 1, %s5
  %s8 = scalar_select 0, %s7, %s5
  $region1: #{forward.57} parent=0
    #allocation2 [shape = 'u8[65536]{0}', space=vmem, size = 0x10000, scoped, tag = 'input window, operand 2']
    #allocation3 [shape = 'u8[65536]{0}', space=vmem, size = 0x10000, scoped, tag = 'input window, operand 3']
    #allocation4 [shape = 'u8[65536]{0}', space=vmem, size = 0x10000, scoped, tag = 'output window, operand 0']
    loop: start=0, step=1, limit=5
    $region2: #{forward.57} parent=1 // loop_pre_header
      _
    $region3: #{forward.57} parent=1 // loop_header
      %s10 = sphi 0, %s14
      %p11 = scmp.ge.s32.totalorder %s10, 5
      %s18 = sphi 0, %s18
      %s20 = sphi 0, %s18
      %s21 = sphi 0, %s20
      %s35 = sphi 0, %s21
      %s39 = sphi 0, %s39
      %s41 = sphi 0, %s39
      %s42 = sphi 0, %s41
      %s56 = sphi 0, %s42
      %s62 = sphi 0, %s64
      %s65 = sphi 0, %s62
      %s66 = sphi 0, %s65
      %s82 = sphi 0, %s66
      %s88 = sphi 0, %s90
      %s91 = sphi 0, %s88
      %s92 = sphi 0, %s91
      %s108 = sphi 0, %s92
      %s114 = sphi 0, %s116
      %s117 = sphi 0, %s114
      %s118 = sphi 0, %s117
      %s134 = sphi 0, %s118
    $region4: #{forward.57} parent=1 // loop_header_branch
      %13 = sbr.rel (%p11) target = $region8
    $region5: #{forward.57} parent=1 // loop_body
      %s15 = ssub.s32 %s10, 1
      %s16 = ssub.s32 %s10, 2
      %s17 = sadd.s32 %s10, 1
      %s19 = sadd.s32 %s18, 1
      %p22 = scmp.eq.s32.totalorder %s10, 2
      %p23 = scmp.ne.s32.totalorder %s18, %s20
      %p24 = scmp.eq.s32.totalorder %s10, 0
      %p25 = por %p23, %p24
      %p26 = scmp.ne.s32.totalorder %s18, %s20
      %p27 = scmp.eq.s32.totalorder %s15, 2
      %p28 = por %p26, %p27
      %p29 = scmp.ne.s32.totalorder %s20, %s21
      %p30 = scmp.eq.s32.totalorder %s15, 0
      %p31 = por %p29, %p30
      %p32 = scmp.ne.s32.totalorder %s20, %s21
      %p33 = scmp.eq.s32.totalorder %s16, 2
      %p34 = por %p32, %p33
      %p36 = scmp.ne.s32.totalorder %s21, %s35
      %p37 = scmp.eq.s32.totalorder %s16, 0
      %p38 = por %p36, %p37
      %s40 = sadd.s32 %s39, 1
      %p43 = scmp.eq.s32.totalorder %s10, 2
      %p44 = scmp.ne.s32.totalorder %s39, %s41
      %p45 = scmp.eq.s32.totalorder %s10, 0
      %p46 = por %p44, %p45
      %p47 = scmp.ne.s32.totalorder %s39, %s41
      %p48 = scmp.eq.s32.totalorder %s15, 2
      %p49 = por %p47, %p48
      %p50 = scmp.ne.s32.totalorder %s41, %s42
      %p51 = scmp.eq.s32.totalorder %s15, 0
      %p52 = por %p50, %p51
      %p53 = scmp.ne.s32.totalorder %s41, %s42
      %p54 = scmp.eq.s32.totalorder %s16, 2
      %p55 = por %p53, %p54
      %p57 = scmp.ne.s32.totalorder %s42, %s56
      %p58 = scmp.eq.s32.totalorder %s16, 0
      %p59 = por %p57, %p58
      %s60 = ssub.s32 %s10, %s17
      %p61 = scmp.eq.s32.totalorder %s60, 0
      %s63 = sadd.s32 %s62, 1
      %s64 = scalar_select %p61, %s62, %s63
      %p67 = pneg %p61
      %p68 = scmp.eq.s32.totalorder %s10, 2
      %p69 = por %p67, %p68
      %p70 = scmp.ne.s32.totalorder %s62, %s65
      %p71 = scmp.eq.s32.totalorder %s10, 0
      %p72 = por %p70, %p71
      %p73 = scmp.ne.s32.totalorder %s62, %s65
      %p74 = scmp.eq.s32.totalorder %s15, 2
      %p75 = por %p73, %p74
      %p76 = scmp.ne.s32.totalorder %s65, %s66
      %p77 = scmp.eq.s32.totalorder %s15, 0
      %p78 = por %p76, %p77
      %p79 = scmp.ne.s32.totalorder %s65, %s66
      %p80 = scmp.eq.s32.totalorder %s16, 2
      %p81 = por %p79, %p80
      %p83 = scmp.ne.s32.totalorder %s66, %s82
      %p84 = scmp.eq.s32.totalorder %s16, 0
      %p85 = por %p83, %p84
      %s86 = ssub.s32 %s10, %s17
      %p87 = scmp.eq.s32.totalorder %s86, 0
      %s89 = sadd.s32 %s88, 1
      %s90 = scalar_select %p87, %s88, %s89
      %p93 = pneg %p87
      %p94 = scmp.eq.s32.totalorder %s10, 2
      %p95 = por %p93, %p94
      %p96 = scmp.ne.s32.totalorder %s88, %s91
      %p97 = scmp.eq.s32.totalorder %s10, 0
      %p98 = por %p96, %p97
      %p99 = scmp.ne.s32.totalorder %s88, %s91
      %p100 = scmp.eq.s32.totalorder %s15, 2
      %p101 = por %p99, %p100
      %p102 = scmp.ne.s32.totalorder %s91, %s92
      %p103 = scmp.eq.s32.totalorder %s15, 0
      %p104 = por %p102, %p103
      %p105 = scmp.ne.s32.totalorder %s91, %s92
      %p106 = scmp.eq.s32.totalorder %s16, 2
      %p107 = por %p105, %p106
      %p109 = scmp.ne.s32.totalorder %s92, %s108
      %p110 = scmp.eq.s32.totalorder %s16, 0
      %p111 = por %p109, %p110
      %s112 = ssub.s32 %s10, %s17
      %p113 = scmp.eq.s32.totalorder %s112, 0
      %s115 = sadd.s32 %s114, 1
      %s116 = scalar_select %p113, %s114, %s115
      %p119 = pneg %p113
      %p120 = scmp.eq.s32.totalorder %s10, 2
      %p121 = por %p119, %p120
      %p122 = scmp.ne.s32.totalorder %s114, %s117
      %p123 = scmp.eq.s32.totalorder %s10, 0
      %p124 = por %p122, %p123
      %p125 = scmp.ne.s32.totalorder %s114, %s117
      %p126 = scmp.eq.s32.totalorder %s15, 2
      %p127 = por %p125, %p126
      %p128 = scmp.ne.s32.totalorder %s117, %s118
      %p129 = scmp.eq.s32.totalorder %s15, 0
      %p130 = por %p128, %p129
      %p131 = scmp.ne.s32.totalorder %s117, %s118
      %p132 = scmp.eq.s32.totalorder %s16, 2
      %p133 = por %p131, %p132
      %p135 = scmp.ne.s32.totalorder %s118, %s134
      %p136 = scmp.eq.s32.totalorder %s16, 0
      %p137 = por %p135, %p136
      %p138 = scmp.le.s32.totalorder 1, %s10
      %p139 = scmp.lt.s32.totalorder %s10, 4
      %p140 = pnand %p138, %p139
      %p141 = pneg %p140
      // Predicated region
      $region9: #{forward.57} parent=5 // pred_check
        _
      $region10: #{forward.57} parent=5 // pred_check_branch
        %143 = sbr.rel (%p140) target = $region12
      $region11: #{forward.57} parent=5 // pred_region
        %s144 = ssub.s32 %s10, 1
        // Predicated region
        $region13: #{forward.57} parent=11 // pred_check
          %p145 = pneg %p31
        $region14: #{forward.57} parent=11 // pred_check_branch
          %147 = sbr.rel (%p145) target = $region16
        $region15: #{forward.57} parent=11 // pred_region
          _
        $region16: #{forward.57} parent=11 // pred_fallthru
          _
        // Predicated region
        $region17: #{forward.57} parent=11 // pred_check
          %p148 = pneg %p52
        $region18: #{forward.57} parent=11 // pred_check_branch
          %150 = sbr.rel (%p148) target = $region20
        $region19: #{forward.57} parent=11 // pred_region
          _
        $region20: #{forward.57} parent=11 // pred_fallthru
          _
      $region12: #{forward.57} parent=5 // pred_fallthru
        _
      %p151 = scmp.lt.s32.totalorder %s10, 3
      // Predicated region
      $region21: #{forward.57} parent=5 // pred_check
        %p152 = pneg %p151
      $region22: #{forward.57} parent=5 // pred_check_branch
        %154 = sbr.rel (%p152) target = $region24
      $region23: #{forward.57} parent=5 // pred_region
        // Predicated region
        $region25: #{forward.57} parent=23 // pred_check
          %p155 = pneg %p72
        $region26: #{forward.57} parent=23 // pred_check_branch
          %157 = sbr.rel (%p155) target = $region28
        $region27: #{forward.57} parent=23 // pred_region
          %s158 = sand.u32 %s62, 1
          %s159 = sand.u32 %s62, 1
          %s160 = smul.addr %s159, 64
          %s161 = scalar_lea.vmem [#allocation2], %s160
          %s162 = smul.u32 4, %s10
          %s163 = smul.addr %s162, 8
          %s164 = scalar_lea.vmem %s2, %s163
          // Predicated region
          $region29: #{forward.57} parent=27 // pred_check
            _
          $region30: #{forward.57} parent=27 // pred_check_branch
            %166 = sbr.rel (0) target = $region32
          $region31: #{forward.57} parent=27 // pred_region
            // Predicated region
            $region33: #{forward.57} parent=31 // pred_check
              _
            $region34: #{forward.57} parent=31 // pred_check_branch
              %168 = sbr.rel (0) target = $region36
            $region35: #{forward.57} parent=31 // pred_region
              loop: start=0, step=1, limit=1
              $region37: #{forward.57} parent=35 // loop_pre_header
                _
              $region38: #{forward.57} parent=35 // loop_header
                %s170 = sphi 0, %s174
                %p171 = scmp.ge.s32.totalorder %s170, 1
                %s175 = sphi %s164, %s164
                %s176 = sphi %s161, %s161
              $region39: #{forward.57} parent=35 // loop_header_branch
                %173 = sbr.rel (%p171) target = $region43
              $region40: #{forward.57} parent=35 // loop_body
                %v177 = vld [vmem:[%s175] sm:$0xff]
                %178 = vst [vmem:[%s176] sm:$0xff] %v177
                %v179 = vld [vmem:[%s175 + $0x8] sm:$0xff]
                %180 = vst [vmem:[%s176 + $0x8] sm:$0xff] %v179
                %v181 = vld [vmem:[%s175 + $0x10] sm:$0xff]
                %182 = vst [vmem:[%s176 + $0x10] sm:$0xff] %v181
                %v183 = vld [vmem:[%s175 + $0x18] sm:$0xff]
                %184 = vst [vmem:[%s176 + $0x18] sm:$0xff] %v183
                %v185 = vld [vmem:[%s175 + $0x60] sm:$0xff]
                %186 = vst [vmem:[%s176 + $0x20] sm:$0xff] %v185
                %v187 = vld [vmem:[%s175 + $0x68] sm:$0xff]
                %188 = vst [vmem:[%s176 + $0x28] sm:$0xff] %v187
                %v189 = vld [vmem:[%s175 + $0x70] sm:$0xff]
                %190 = vst [vmem:[%s176 + $0x30] sm:$0xff] %v189
                %v191 = vld [vmem:[%s175 + $0x78] sm:$0xff]
                %192 = vst [vmem:[%s176 + $0x38] sm:$0xff] %v191
              $region41: #{forward.57} parent=35 // loop_footer
                %s174 = sadd.s32 1, %s170
              $region42: #{forward.57} parent=35 // loop_footer_branch
                %169 = sbr.rel target = $region38
              $region43: #{forward.57} parent=35 // loop_exit
                _
            $region36: #{forward.57} parent=31 // pred_fallthru
              _
            // Predicated region
            $region44: #{forward.57} parent=31 // pred_check
              _
            $region45: #{forward.57} parent=31 // pred_check_branch
              %194 = sbr.rel target = $region47
            $region46: #{forward.57} parent=31 // pred_region
              _
            $region47: #{forward.57} parent=31 // pred_fallthru
              _
          $region32: #{forward.57} parent=27 // pred_fallthru
            _
          %195 = vnop
        $region28: #{forward.57} parent=23 // pred_fallthru
          _
        // Predicated region
        $region48: #{forward.57} parent=23 // pred_check
          %p196 = pneg %p98
        $region49: #{forward.57} parent=23 // pred_check_branch
          %198 = sbr.rel (%p196) target = $region51
        $region50: #{forward.57} parent=23 // pred_region
          %s199 = sand.u32 %s88, 1
          %s200 = sand.u32 %s88, 1
          %s201 = smul.addr %s200, 64
          %s202 = scalar_lea.vmem [#allocation3], %s201
          %s203 = smul.u32 4, %s10
          %s204 = smul.addr %s203, 8
          %s205 = scalar_lea.vmem %s3, %s204
          // Predicated region
          $region52: #{forward.57} parent=50 // pred_check
            _
          $region53: #{forward.57} parent=50 // pred_check_branch
            %207 = sbr.rel (0) target = $region55
          $region54: #{forward.57} parent=50 // pred_region
            // Predicated region
            $region56: #{forward.57} parent=54 // pred_check
              _
            $region57: #{forward.57} parent=54 // pred_check_branch
              %209 = sbr.rel (0) target = $region59
            $region58: #{forward.57} parent=54 // pred_region
              loop: start=0, step=1, limit=1
              $region60: #{forward.57} parent=58 // loop_pre_header
                _
              $region61: #{forward.57} parent=58 // loop_header
                %s211 = sphi 0, %s215
                %p212 = scmp.ge.s32.totalorder %s211, 1
                %s216 = sphi %s205, %s205
                %s217 = sphi %s202, %s202
              $region62: #{forward.57} parent=58 // loop_header_branch
                %214 = sbr.rel (%p212) target = $region66
              $region63: #{forward.57} parent=58 // loop_body
                %v218 = vld [vmem:[%s216] sm:$0xff]
                %219 = vst [vmem:[%s217] sm:$0xff] %v218
                %v220 = vld [vmem:[%s216 + $0x8] sm:$0xff]
                %221 = vst [vmem:[%s217 + $0x8] sm:$0xff] %v220
                %v222 = vld [vmem:[%s216 + $0x10] sm:$0xff]
                %223 = vst [vmem:[%s217 + $0x10] sm:$0xff] %v222
                %v224 = vld [vmem:[%s216 + $0x18] sm:$0xff]
                %225 = vst [vmem:[%s217 + $0x18] sm:$0xff] %v224
                %v226 = vld [vmem:[%s216 + $0x60] sm:$0xff]
                %227 = vst [vmem:[%s217 + $0x20] sm:$0xff] %v226
                %v228 = vld [vmem:[%s216 + $0x68] sm:$0xff]
                %229 = vst [vmem:[%s217 + $0x28] sm:$0xff] %v228
                %v230 = vld [vmem:[%s216 + $0x70] sm:$0xff]
                %231 = vst [vmem:[%s217 + $0x30] sm:$0xff] %v230
                %v232 = vld [vmem:[%s216 + $0x78] sm:$0xff]
                %233 = vst [vmem:[%s217 + $0x38] sm:$0xff] %v232
              $region64: #{forward.57} parent=58 // loop_footer
                %s215 = sadd.s32 1, %s211
              $region65: #{forward.57} parent=58 // loop_footer_branch
                %210 = sbr.rel target = $region61
              $region66: #{forward.57} parent=58 // loop_exit
                _
            $region59: #{forward.57} parent=54 // pred_fallthru
              _
            // Predicated region
            $region67: #{forward.57} parent=54 // pred_check
              _
            $region68: #{forward.57} parent=54 // pred_check_branch
              %235 = sbr.rel target = $region70
            $region69: #{forward.57} parent=54 // pred_region
              _
            $region70: #{forward.57} parent=54 // pred_fallthru
              _
          $region55: #{forward.57} parent=50 // pred_fallthru
            _
          %236 = vnop
        $region51: #{forward.57} parent=23 // pred_fallthru
          _
      $region24: #{forward.57} parent=5 // pred_fallthru
        _
      %p237 = scmp.le.s32.totalorder 1, %s10
      %p238 = scmp.lt.s32.totalorder %s10, 4
      %p239 = pnand %p237, %p238
      %p240 = pneg %p239
      // Predicated region
      $region71: #{forward.57} parent=5 // pred_check
        _
      $region72: #{forward.57} parent=5 // pred_check_branch
        %242 = sbr.rel (%p239) target = $region74
      $region73: #{forward.57} parent=5 // pred_region
        %s243 = ssub.s32 %s10, 1
        %s244 = sand.u32 %s65, 1
        %s245 = sand.u32 %s65, 1
        %s246 = smul.addr %s245, 64
        %s247 = scalar_lea.vmem [#allocation2], %s246
        // Predicated region
        $region75: #{forward.57} parent=73 // pred_check
          %p248 = pneg %p78
        $region76: #{forward.57} parent=73 // pred_check_branch
          %250 = sbr.rel (%p248) target = $region78
        $region77: #{forward.57} parent=73 // pred_region
          _
        $region78: #{forward.57} parent=73 // pred_fallthru
          _
        %s251 = sand.u32 %s91, 1
        %s252 = sand.u32 %s91, 1
        %s253 = smul.addr %s252, 64
        %s254 = scalar_lea.vmem [#allocation3], %s253
        // Predicated region
        $region79: #{forward.57} parent=73 // pred_check
          %p255 = pneg %p104
        $region80: #{forward.57} parent=73 // pred_check_branch
          %257 = sbr.rel (%p255) target = $region82
        $region81: #{forward.57} parent=73 // pred_region
          _
        $region82: #{forward.57} parent=73 // pred_fallthru
          _
        %p258 = pneg %p31
        %p259 = pneg %p28
        %p260 = pneg %p52
        %p261 = pneg %p49
        %s262 = sand.u32 %s65, 1
        %s263 = sand.u32 %s65, 1
        %s264 = smul.addr %s263, 64
        %s265 = scalar_lea.vmem [#allocation2], %s264
        %p266 = pneg %p78
        %p267 = pneg %p75
        %s268 = sand.u32 %s91, 1
        %s269 = sand.u32 %s91, 1
        %s270 = smul.addr %s269, 64
        %s271 = scalar_lea.vmem [#allocation3], %s270
        %p272 = pneg %p104
        %p273 = pneg %p101
        %p274 = pneg %p130
        %p275 = pneg %p127
        %s276 = sand.u32 %s117, 1
        %s277 = sand.u32 %s117, 1
        %s278 = smul.addr %s277, 64
        %s279 = scalar_lea.vmem [#allocation4], %s278
        %s280 = smul.u32 4, %s15
        %s281 = smul.u32 4, %s15
        %s282 = smul.u32 4, %s15
        %v283 = vld [vmem:[%s247] sm:$0xff]
        %v284 = vld [vmem:[%s247 + $0x8] sm:$0xff]
        %v285 = vld [vmem:[%s247 + $0x10] sm:$0xff]
        %v286 = vld [vmem:[%s247 + $0x18] sm:$0xff]
        %v287 = vld [vmem:[%s247 + $0x20] sm:$0xff]
        %v288 = vld [vmem:[%s247 + $0x28] sm:$0xff]
        %v289 = vld [vmem:[%s247 + $0x30] sm:$0xff]
        %v290 = vld [vmem:[%s247 + $0x38] sm:$0xff]
        %v291 = vmul.f32 %v283, 1.442695
        %v292 = vpow.pop %v291
        %v293 = vmul.f32 %v284, 1.442695
        %v294 = vpow.pop %v293
        %v295 = vmul.f32 %v285, 1.442695
        %v296 = vpow.pop %v295
        %v297 = vmul.f32 %v286, 1.442695
        %v298 = vpow.pop %v297
        %v299 = vmul.f32 %v287, 1.442695
        %v300 = vpow.pop %v299
        %v301 = vmul.f32 %v288, 1.442695
        %v302 = vpow.pop %v301
        %v303 = vmul.f32 %v289, 1.442695
        %v304 = vpow.pop %v303
        %v305 = vmul.f32 %v290, 1.442695
        %v306 = vpow.pop %v305
        %v307 = vld [vmem:[%s254] sm:$0xff]
        %v308 = vld [vmem:[%s254 + $0x8] sm:$0xff]
        %v309 = vld [vmem:[%s254 + $0x10] sm:$0xff]
        %v310 = vld [vmem:[%s254 + $0x18] sm:$0xff]
        %v311 = vld [vmem:[%s254 + $0x20] sm:$0xff]
        %v312 = vld [vmem:[%s254 + $0x28] sm:$0xff]
        %v313 = vld [vmem:[%s254 + $0x30] sm:$0xff]
        %v314 = vld [vmem:[%s254 + $0x38] sm:$0xff]
        %v315 = vand.u32 2147483647, %v307
        %vm316 = vcmp.le.f32.partialorder %v315, 0.7853982
        %vm317 = vcmp.lt.s32.totalorder %v307, 0
        %v318 = vand.u32 %v307, 2139095040
        %v319 = vshrl.u32 %v318, 23
        %v320 = vsub.s32 %v319, 127
        %v321 = vand.u32 2147483647, %v307
        %v322 = vand.u32 %v321, 8388607
        %v323 = vor.u32 %v322, 8388608
        %v324 = vsub.s32 0, %v323
        %v325 = vadd.s32 %v320, 1
        %vm326 = vcmp.gt.s32.totalorder %v325, 0
        %v327 = vsel %vm326, %v325, 0
        %v328 = vshrl.u32 %v327, 5
        %v329 = vand.u32 %v327, 31
        %v330 = vsub.s32 32, %v329
        %v331 = vshrl.u32 683565275, %v330
        %v332 = vshll.u32 683565275, %v329
        %v333 = vshrl.u32 2475754826, %v330
        %v334 = vor.u32 %v332, %v333
        %v335 = vshll.u32 2475754826, %v329
        %v336 = vshrl.u32 2131351028, %v330
        %v337 = vor.u32 %v335, %v336
        %v338 = vshll.u32 2131351028, %v329
        %v339 = vshrl.u32 2102212464, %v330
        %v340 = vor.u32 %v338, %v339
        %v341 = vshll.u32 2102212464, %v329
        %v342 = vshrl.u32 920167782, %v330
        %v343 = vor.u32 %v341, %v342
        %v344 = vshll.u32 920167782, %v329
        %v345 = vshrl.u32 1326507024, %v330
        %v346 = vor.u32 %v344, %v345
        %vm347 = vcmp.lt.s32.totalorder %v328, 1
        %vm348 = vcmp.lt.s32.totalorder %v328, 2
        %vm349 = vcmp.lt.s32.totalorder %v328, 3
        %vm350 = vcmp.lt.s32.totalorder %v328, 4
        %v351 = vsel %vm347, %v331, %v334
        %v352 = vsel %vm350, %v340, 2102212464
        %v353 = vsel %vm349, %v337, %v352
        %v354 = vsel %vm348, %v351, %v353
        %v355 = vsel %vm347, %v334, %v337
        %v356 = vsel %vm350, %v343, 920167782
        %v357 = vsel %vm349, %v340, %v356
        %v358 = vsel %vm348, %v355, %v357
        %v359 = vsel %vm347, %v337, %v340
        %v360 = vsel %vm350, %v346, 1326507024
        %v361 = vsel %vm349, %v343, %v360
        %v362 = vsel %vm348, %v359, %v361
        %v363 = vshll.u32 %v323, 8
        %v364 = vmul.u32.u64.compose %v363, %v362
        %v365 = vextract.low.u32 %v364
        %v366 = vextract.high.u32 %v364
        %v367 = vmul.u32.u64.compose %v363, %v358
        %v368 = vextract.low.u32 %v367
        %v369 = vextract.high.u32 %v367
        %v370 = vmul.u32 %v363, %v354
        %v371 = vadd.s32 %v366, %v368
        %vm372 = vc.u32 %v366, %v368
        %v373 = vadd.s32 %v369, 1
        %v374 = vsel %vm372, %v373, %v369
        %v375 = vadd.s32 %v370, %v374
        %v376 = vadd.s32 %v375, 536870912
        %v377 = vshrl.u32 %v376, 30
        %v378 = vshll.u32 %v377, 30
        %v379 = vsub.s32 %v375, %v378
        %vm380 = vcmp.lt.s32.totalorder %v379, 0
        %v381 = vsub.s32 0, %v379
        %v382 = vsel %vm380, %v381, %v379
        %v383 = vclz %v382
        %v384 = vsub.s32 %v383, 2
        %vm385 = vcmp.gt.s32.totalorder 0, %v384
        %v386 = vsel %vm385, 0, %v384
        %v387 = vsub.s32 32, %v386
        %v388 = vshll.u32 %v379, %v386
        %v389 = vshrl.u32 %v371, %v387
        %v390 = vor.u32 %v388, %v389
        %v391 = vsub.s32 4294967266, %v386
        %v392 = vadd.s32 %v391, 127
        %v393 = vshll.u32 %v392, 23
        %v394 = vor.u32 4788187, %v393
        %v395 = vand.u32 2147483647, %v394
        %v397 = vcvt.s32.f32 %v390
        %v398 = vmul.f32 %v397, %v395
        %v399 = vxor.u32 %v398, 2147483648
        %v400 = vsel %vm317, %v399, %v398
        %v401 = vsub.s32 4, %v377
        %v402 = vsel %vm317, %v401, %v377
        %v403 = vsel %vm316, %v307, %v400
        %v404 = vsel %vm316, 0, %v402
        %v405 = vcosq.f32.pop %v403
        %v406 = vsinq.f32.pop %v403
        %vm407 = vweird.f32 %v307
        %v408 = vadd.s32 %v404, 3
        %v409 = vand.u32 %v408, 3
        %vm410 = vcmp.lt.s32.totalorder %v409, 2
        %vm411 = vcmp.eq.s32.totalorder %v409, 0
        %v412 = vxor.u32 %v406, 2147483648
        %v413 = vsel %vm411, %v405, %v412
        %vm414 = vcmp.eq.s32.totalorder %v409, 2
        %v415 = vxor.u32 %v405, 2147483648
        %v416 = vsel %vm414, %v415, %v406
        %v417 = vsel %vm410, %v413, %v416
        %v418 = vsel %vm407, nan, %v417
        %v419 = vand.u32 2147483647, %v308
        %vm420 = vcmp.le.f32.partialorder %v419, 0.7853982
        %vm421 = vcmp.lt.s32.totalorder %v308, 0
        %v422 = vand.u32 %v308, 2139095040
        %v423 = vshrl.u32 %v422, 23
        %v424 = vsub.s32 %v423, 127
        %v425 = vand.u32 2147483647, %v308
        %v426 = vand.u32 %v425, 8388607
        %v427 = vor.u32 %v426, 8388608
        %v428 = vsub.s32 0, %v427
        %v429 = vadd.s32 %v424, 1
        %vm430 = vcmp.gt.s32.totalorder %v429, 0
        %v431 = vsel %vm430, %v429, 0
        %v432 = vshrl.u32 %v431, 5
        %v433 = vand.u32 %v431, 31
        %v434 = vsub.s32 32, %v433
        %v435 = vshrl.u32 683565275, %v434
        %v436 = vshll.u32 683565275, %v433
        %v437 = vshrl.u32 2475754826, %v434
        %v438 = vor.u32 %v436, %v437
        %v439 = vshll.u32 2475754826, %v433
        %v440 = vshrl.u32 2131351028, %v434
        %v441 = vor.u32 %v439, %v440
        %v442 = vshll.u32 2131351028, %v433
        %v443 = vshrl.u32 2102212464, %v434
        %v444 = vor.u32 %v442, %v443
        %v445 = vshll.u32 2102212464, %v433
        %v446 = vshrl.u32 920167782, %v434
        %v447 = vor.u32 %v445, %v446
        %v448 = vshll.u32 920167782, %v433
        %v449 = vshrl.u32 1326507024, %v434
        %v450 = vor.u32 %v448, %v449
        %vm451 = vcmp.lt.s32.totalorder %v432, 1
        %vm452 = vcmp.lt.s32.totalorder %v432, 2
        %vm453 = vcmp.lt.s32.totalorder %v432, 3
        %vm454 = vcmp.lt.s32.totalorder %v432, 4
        %v455 = vsel %vm451, %v435, %v438
        %v456 = vsel %vm454, %v444, 2102212464
        %v457 = vsel %vm453, %v441, %v456
        %v458 = vsel %vm452, %v455, %v457
        %v459 = vsel %vm451, %v438, %v441
        %v460 = vsel %vm454, %v447, 920167782
        %v461 = vsel %vm453, %v444, %v460
        %v462 = vsel %vm452, %v459, %v461
        %v463 = vsel %vm451, %v441, %v444
        %v464 = vsel %vm454, %v450, 1326507024
        %v465 = vsel %vm453, %v447, %v464
        %v466 = vsel %vm452, %v463, %v465
        %v467 = vshll.u32 %v427, 8
        %v468 = vmul.u32.u64.compose %v467, %v466
        %v469 = vextract.low.u32 %v468
        %v470 = vextract.high.u32 %v468
        %v471 = vmul.u32.u64.compose %v467, %v462
        %v472 = vextract.low.u32 %v471
        %v473 = vextract.high.u32 %v471
        %v474 = vmul.u32 %v467, %v458
        %v475 = vadd.s32 %v470, %v472
        %vm476 = vc.u32 %v470, %v472
        %v477 = vadd.s32 %v473, 1
        %v478 = vsel %vm476, %v477, %v473
        %v479 = vadd.s32 %v474, %v478
        %v480 = vadd.s32 %v479, 536870912
        %v481 = vshrl.u32 %v480, 30
        %v482 = vshll.u32 %v481, 30
        %v483 = vsub.s32 %v479, %v482
        %vm484 = vcmp.lt.s32.totalorder %v483, 0
        %v485 = vsub.s32 0, %v483
        %v486 = vsel %vm484, %v485, %v483
        %v487 = vclz %v486
        %v488 = vsub.s32 %v487, 2
        %vm489 = vcmp.gt.s32.totalorder 0, %v488
        %v490 = vsel %vm489, 0, %v488
        %v491 = vsub.s32 32, %v490
        %v492 = vshll.u32 %v483, %v490
        %v493 = vshrl.u32 %v475, %v491
        %v494 = vor.u32 %v492, %v493
        %v495 = vsub.s32 4294967266, %v490
        %v496 = vadd.s32 %v495, 127
        %v497 = vshll.u32 %v496, 23
        %v498 = vor.u32 4788187, %v497
        %v499 = vand.u32 2147483647, %v498
        %v501 = vcvt.s32.f32 %v494
        %v502 = vmul.f32 %v501, %v499
        %v503 = vxor.u32 %v502, 2147483648
        %v504 = vsel %vm421, %v503, %v502
        %v505 = vsub.s32 4, %v481
        %v506 = vsel %vm421, %v505, %v481
        %v507 = vsel %vm420, %v308, %v504
        %v508 = vsel %vm420, 0, %v506
        %v509 = vcosq.f32.pop %v507
        %v510 = vsinq.f32.pop %v507
        %vm511 = vweird.f32 %v308
        %v512 = vadd.s32 %v508, 3
        %v513 = vand.u32 %v512, 3
        %vm514 = vcmp.lt.s32.totalorder %v513, 2
        %vm515 = vcmp.eq.s32.totalorder %v513, 0
        %v516 = vxor.u32 %v510, 2147483648
        %v517 = vsel %vm515, %v509, %v516
        %vm518 = vcmp.eq.s32.totalorder %v513, 2
        %v519 = vxor.u32 %v509, 2147483648
        %v520 = vsel %vm518, %v519, %v510
        %v521 = vsel %vm514, %v517, %v520
        %v522 = vsel %vm511, nan, %v521
        %v523 = vand.u32 2147483647, %v309
        %vm524 = vcmp.le.f32.partialorder %v523, 0.7853982
        %vm525 = vcmp.lt.s32.totalorder %v309, 0
        %v526 = vand.u32 %v309, 2139095040
        %v527 = vshrl.u32 %v526, 23
        %v528 = vsub.s32 %v527, 127
        %v529 = vand.u32 2147483647, %v309
        %v530 = vand.u32 %v529, 8388607
        %v531 = vor.u32 %v530, 8388608
        %v532 = vsub.s32 0, %v531
        %v533 = vadd.s32 %v528, 1
        %vm534 = vcmp.gt.s32.totalorder %v533, 0
        %v535 = vsel %vm534, %v533, 0
        %v536 = vshrl.u32 %v535, 5
        %v537 = vand.u32 %v535, 31
        %v538 = vsub.s32 32, %v537
        %v539 = vshrl.u32 683565275, %v538
        %v540 = vshll.u32 683565275, %v537
        %v541 = vshrl.u32 2475754826, %v538
        %v542 = vor.u32 %v540, %v541
        %v543 = vshll.u32 2475754826, %v537
        %v544 = vshrl.u32 2131351028, %v538
        %v545 = vor.u32 %v543, %v544
        %v546 = vshll.u32 2131351028, %v537
        %v547 = vshrl.u32 2102212464, %v538
        %v548 = vor.u32 %v546, %v547
        %v549 = vshll.u32 2102212464, %v537
        %v550 = vshrl.u32 920167782, %v538
        %v551 = vor.u32 %v549, %v550
        %v552 = vshll.u32 920167782, %v537
        %v553 = vshrl.u32 1326507024, %v538
        %v554 = vor.u32 %v552, %v553
        %vm555 = vcmp.lt.s32.totalorder %v536, 1
        %vm556 = vcmp.lt.s32.totalorder %v536, 2
        %vm557 = vcmp.lt.s32.totalorder %v536, 3
        %vm558 = vcmp.lt.s32.totalorder %v536, 4
        %v559 = vsel %vm555, %v539, %v542
        %v560 = vsel %vm558, %v548, 2102212464
        %v561 = vsel %vm557, %v545, %v560
        %v562 = vsel %vm556, %v559, %v561
        %v563 = vsel %vm555, %v542, %v545
        %v564 = vsel %vm558, %v551, 920167782
        %v565 = vsel %vm557, %v548, %v564
        %v566 = vsel %vm556, %v563, %v565
        %v567 = vsel %vm555, %v545, %v548
        %v568 = vsel %vm558, %v554, 1326507024
        %v569 = vsel %vm557, %v551, %v568
        %v570 = vsel %vm556, %v567, %v569
        %v571 = vshll.u32 %v531, 8
        %v572 = vmul.u32.u64.compose %v571, %v570
        %v573 = vextract.low.u32 %v572
        %v574 = vextract.high.u32 %v572
        %v575 = vmul.u32.u64.compose %v571, %v566
        %v576 = vextract.low.u32 %v575
        %v577 = vextract.high.u32 %v575
        %v578 = vmul.u32 %v571, %v562
        %v579 = vadd.s32 %v574, %v576
        %vm580 = vc.u32 %v574, %v576
        %v581 = vadd.s32 %v577, 1
        %v582 = vsel %vm580, %v581, %v577
        %v583 = vadd.s32 %v578, %v582
        %v584 = vadd.s32 %v583, 536870912
        %v585 = vshrl.u32 %v584, 30
        %v586 = vshll.u32 %v585, 30
        %v587 = vsub.s32 %v583, %v586
        %vm588 = vcmp.lt.s32.totalorder %v587, 0
        %v589 = vsub.s32 0, %v587
        %v590 = vsel %vm588, %v589, %v587
        %v591 = vclz %v590
        %v592 = vsub.s32 %v591, 2
        %vm593 = vcmp.gt.s32.totalorder 0, %v592
        %v594 = vsel %vm593, 0, %v592
        %v595 = vsub.s32 32, %v594
        %v596 = vshll.u32 %v587, %v594
        %v597 = vshrl.u32 %v579, %v595
        %v598 = vor.u32 %v596, %v597
        %v599 = vsub.s32 4294967266, %v594
        %v600 = vadd.s32 %v599, 127
        %v601 = vshll.u32 %v600, 23
        %v602 = vor.u32 4788187, %v601
        %v603 = vand.u32 2147483647, %v602
        %v605 = vcvt.s32.f32 %v598
        %v606 = vmul.f32 %v605, %v603
        %v607 = vxor.u32 %v606, 2147483648
        %v608 = vsel %vm525, %v607, %v606
        %v609 = vsub.s32 4, %v585
        %v610 = vsel %vm525, %v609, %v585
        %v611 = vsel %vm524, %v309, %v608
        %v612 = vsel %vm524, 0, %v610
        %v613 = vcosq.f32.pop %v611
        %v614 = vsinq.f32.pop %v611
        %vm615 = vweird.f32 %v309
        %v616 = vadd.s32 %v612, 3
        %v617 = vand.u32 %v616, 3
        %vm618 = vcmp.lt.s32.totalorder %v617, 2
        %vm619 = vcmp.eq.s32.totalorder %v617, 0
        %v620 = vxor.u32 %v614, 2147483648
        %v621 = vsel %vm619, %v613, %v620
        %vm622 = vcmp.eq.s32.totalorder %v617, 2
        %v623 = vxor.u32 %v613, 2147483648
        %v624 = vsel %vm622, %v623, %v614
        %v625 = vsel %vm618, %v621, %v624
        %v626 = vsel %vm615, nan, %v625
        %v627 = vand.u32 2147483647, %v310
        %vm628 = vcmp.le.f32.partialorder %v627, 0.7853982
        %vm629 = vcmp.lt.s32.totalorder %v310, 0
        %v630 = vand.u32 %v310, 2139095040
        %v631 = vshrl.u32 %v630, 23
        %v632 = vsub.s32 %v631, 127
        %v633 = vand.u32 2147483647, %v310
        %v634 = vand.u32 %v633, 8388607
        %v635 = vor.u32 %v634, 8388608
        %v636 = vsub.s32 0, %v635
        %v637 = vadd.s32 %v632, 1
        %vm638 = vcmp.gt.s32.totalorder %v637, 0
        %v639 = vsel %vm638, %v637, 0
        %v640 = vshrl.u32 %v639, 5
        %v641 = vand.u32 %v639, 31
        %v642 = vsub.s32 32, %v641
        %v643 = vshrl.u32 683565275, %v642
        %v644 = vshll.u32 683565275, %v641
        %v645 = vshrl.u32 2475754826, %v642
        %v646 = vor.u32 %v644, %v645
        %v647 = vshll.u32 2475754826, %v641
        %v648 = vshrl.u32 2131351028, %v642
        %v649 = vor.u32 %v647, %v648
        %v650 = vshll.u32 2131351028, %v641
        %v651 = vshrl.u32 2102212464, %v642
        %v652 = vor.u32 %v650, %v651
        %v653 = vshll.u32 2102212464, %v641
        %v654 = vshrl.u32 920167782, %v642
        %v655 = vor.u32 %v653, %v654
        %v656 = vshll.u32 920167782, %v641
        %v657 = vshrl.u32 1326507024, %v642
        %v658 = vor.u32 %v656, %v657
        %vm659 = vcmp.lt.s32.totalorder %v640, 1
        %vm660 = vcmp.lt.s32.totalorder %v640, 2
        %vm661 = vcmp.lt.s32.totalorder %v640, 3
        %vm662 = vcmp.lt.s32.totalorder %v640, 4
        %v663 = vsel %vm659, %v643, %v646
        %v664 = vsel %vm662, %v652, 2102212464
        %v665 = vsel %vm661, %v649, %v664
        %v666 = vsel %vm660, %v663, %v665
        %v667 = vsel %vm659, %v646, %v649
        %v668 = vsel %vm662, %v655, 920167782
        %v669 = vsel %vm661, %v652, %v668
        %v670 = vsel %vm660, %v667, %v669
        %v671 = vsel %vm659, %v649, %v652
        %v672 = vsel %vm662, %v658, 1326507024
        %v673 = vsel %vm661, %v655, %v672
        %v674 = vsel %vm660, %v671, %v673
        %v675 = vshll.u32 %v635, 8
        %v676 = vmul.u32.u64.compose %v675, %v674
        %v677 = vextract.low.u32 %v676
        %v678 = vextract.high.u32 %v676
        %v679 = vmul.u32.u64.compose %v675, %v670
        %v680 = vextract.low.u32 %v679
        %v681 = vextract.high.u32 %v679
        %v682 = vmul.u32 %v675, %v666
        %v683 = vadd.s32 %v678, %v680
        %vm684 = vc.u32 %v678, %v680
        %v685 = vadd.s32 %v681, 1
        %v686 = vsel %vm684, %v685, %v681
        %v687 = vadd.s32 %v682, %v686
        %v688 = vadd.s32 %v687, 536870912
        %v689 = vshrl.u32 %v688, 30
        %v690 = vshll.u32 %v689, 30
        %v691 = vsub.s32 %v687, %v690
        %vm692 = vcmp.lt.s32.totalorder %v691, 0
        %v693 = vsub.s32 0, %v691
        %v694 = vsel %vm692, %v693, %v691
        %v695 = vclz %v694
        %v696 = vsub.s32 %v695, 2
        %vm697 = vcmp.gt.s32.totalorder 0, %v696
        %v698 = vsel %vm697, 0, %v696
        %v699 = vsub.s32 32, %v698
        %v700 = vshll.u32 %v691, %v698
        %v701 = vshrl.u32 %v683, %v699
        %v702 = vor.u32 %v700, %v701
        %v703 = vsub.s32 4294967266, %v698
        %v704 = vadd.s32 %v703, 127
        %v705 = vshll.u32 %v704, 23
        %v706 = vor.u32 4788187, %v705
        %v707 = vand.u32 2147483647, %v706
        %v709 = vcvt.s32.f32 %v702
        %v710 = vmul.f32 %v709, %v707
        %v711 = vxor.u32 %v710, 2147483648
        %v712 = vsel %vm629, %v711, %v710
        %v713 = vsub.s32 4, %v689
        %v714 = vsel %vm629, %v713, %v689
        %v715 = vsel %vm628, %v310, %v712
        %v716 = vsel %vm628, 0, %v714
        %v717 = vcosq.f32.pop %v715
        %v718 = vsinq.f32.pop %v715
        %vm719 = vweird.f32 %v310
        %v720 = vadd.s32 %v716, 3
        %v721 = vand.u32 %v720, 3
        %vm722 = vcmp.lt.s32.totalorder %v721, 2
        %vm723 = vcmp.eq.s32.totalorder %v721, 0
        %v724 = vxor.u32 %v718, 2147483648
        %v725 = vsel %vm723, %v717, %v724
        %vm726 = vcmp.eq.s32.totalorder %v721, 2
        %v727 = vxor.u32 %v717, 2147483648
        %v728 = vsel %vm726, %v727, %v718
        %v729 = vsel %vm722, %v725, %v728
        %v730 = vsel %vm719, nan, %v729
        %v731 = vand.u32 2147483647, %v311
        %vm732 = vcmp.le.f32.partialorder %v731, 0.7853982
        %vm733 = vcmp.lt.s32.totalorder %v311, 0
        %v734 = vand.u32 %v311, 2139095040
        %v735 = vshrl.u32 %v734, 23
        %v736 = vsub.s32 %v735, 127
        %v737 = vand.u32 2147483647, %v311
        %v738 = vand.u32 %v737, 8388607
        %v739 = vor.u32 %v738, 8388608
        %v740 = vsub.s32 0, %v739
        %v741 = vadd.s32 %v736, 1
        %vm742 = vcmp.gt.s32.totalorder %v741, 0
        %v743 = vsel %vm742, %v741, 0
        %v744 = vshrl.u32 %v743, 5
        %v745 = vand.u32 %v743, 31
        %v746 = vsub.s32 32, %v745
        %v747 = vshrl.u32 683565275, %v746
        %v748 = vshll.u32 683565275, %v745
        %v749 = vshrl.u32 2475754826, %v746
        %v750 = vor.u32 %v748, %v749
        %v751 = vshll.u32 2475754826, %v745
        %v752 = vshrl.u32 2131351028, %v746
        %v753 = vor.u32 %v751, %v752
        %v754 = vshll.u32 2131351028, %v745
        %v755 = vshrl.u32 2102212464, %v746
        %v756 = vor.u32 %v754, %v755
        %v757 = vshll.u32 2102212464, %v745
        %v758 = vshrl.u32 920167782, %v746
        %v759 = vor.u32 %v757, %v758
        %v760 = vshll.u32 920167782, %v745
        %v761 = vshrl.u32 1326507024, %v746
        %v762 = vor.u32 %v760, %v761
        %vm763 = vcmp.lt.s32.totalorder %v744, 1
        %vm764 = vcmp.lt.s32.totalorder %v744, 2
        %vm765 = vcmp.lt.s32.totalorder %v744, 3
        %vm766 = vcmp.lt.s32.totalorder %v744, 4
        %v767 = vsel %vm763, %v747, %v750
        %v768 = vsel %vm766, %v756, 2102212464
        %v769 = vsel %vm765, %v753, %v768
        %v770 = vsel %vm764, %v767, %v769
        %v771 = vsel %vm763, %v750, %v753
        %v772 = vsel %vm766, %v759, 920167782
        %v773 = vsel %vm765, %v756, %v772
        %v774 = vsel %vm764, %v771, %v773
        %v775 = vsel %vm763, %v753, %v756
        %v776 = vsel %vm766, %v762, 1326507024
        %v777 = vsel %vm765, %v759, %v776
        %v778 = vsel %vm764, %v775, %v777
        %v779 = vshll.u32 %v739, 8
        %v780 = vmul.u32.u64.compose %v779, %v778
        %v781 = vextract.low.u32 %v780
        %v782 = vextract.high.u32 %v780
        %v783 = vmul.u32.u64.compose %v779, %v774
        %v784 = vextract.low.u32 %v783
        %v785 = vextract.high.u32 %v783
        %v786 = vmul.u32 %v779, %v770
        %v787 = vadd.s32 %v782, %v784
        %vm788 = vc.u32 %v782, %v784
        %v789 = vadd.s32 %v785, 1
        %v790 = vsel %vm788, %v789, %v785
        %v791 = vadd.s32 %v786, %v790
        %v792 = vadd.s32 %v791, 536870912
        %v793 = vshrl.u32 %v792, 30
        %v794 = vshll.u32 %v793, 30
        %v795 = vsub.s32 %v791, %v794
        %vm796 = vcmp.lt.s32.totalorder %v795, 0
        %v797 = vsub.s32 0, %v795
        %v798 = vsel %vm796, %v797, %v795
        %v799 = vclz %v798
        %v800 = vsub.s32 %v799, 2
        %vm801 = vcmp.gt.s32.totalorder 0, %v800
        %v802 = vsel %vm801, 0, %v800
        %v803 = vsub.s32 32, %v802
        %v804 = vshll.u32 %v795, %v802
        %v805 = vshrl.u32 %v787, %v803
        %v806 = vor.u32 %v804, %v805
        %v807 = vsub.s32 4294967266, %v802
        %v808 = vadd.s32 %v807, 127
        %v809 = vshll.u32 %v808, 23
        %v810 = vor.u32 4788187, %v809
        %v811 = vand.u32 2147483647, %v810
        %v813 = vcvt.s32.f32 %v806
        %v814 = vmul.f32 %v813, %v811
        %v815 = vxor.u32 %v814, 2147483648
        %v816 = vsel %vm733, %v815, %v814
        %v817 = vsub.s32 4, %v793
        %v818 = vsel %vm733, %v817, %v793
        %v819 = vsel %vm732, %v311, %v816
        %v820 = vsel %vm732, 0, %v818
        %v821 = vcosq.f32.pop %v819
        %v822 = vsinq.f32.pop %v819
        %vm823 = vweird.f32 %v311
        %v824 = vadd.s32 %v820, 3
        %v825 = vand.u32 %v824, 3
        %vm826 = vcmp.lt.s32.totalorder %v825, 2
        %vm827 = vcmp.eq.s32.totalorder %v825, 0
        %v828 = vxor.u32 %v822, 2147483648
        %v829 = vsel %vm827, %v821, %v828
        %vm830 = vcmp.eq.s32.totalorder %v825, 2
        %v831 = vxor.u32 %v821, 2147483648
        %v832 = vsel %vm830, %v831, %v822
        %v833 = vsel %vm826, %v829, %v832
        %v834 = vsel %vm823, nan, %v833
        %v835 = vand.u32 2147483647, %v312
        %vm836 = vcmp.le.f32.partialorder %v835, 0.7853982
        %vm837 = vcmp.lt.s32.totalorder %v312, 0
        %v838 = vand.u32 %v312, 2139095040
        %v839 = vshrl.u32 %v838, 23
        %v840 = vsub.s32 %v839, 127
        %v841 = vand.u32 2147483647, %v312
        %v842 = vand.u32 %v841, 8388607
        %v843 = vor.u32 %v842, 8388608
        %v844 = vsub.s32 0, %v843
        %v845 = vadd.s32 %v840, 1
        %vm846 = vcmp.gt.s32.totalorder %v845, 0
        %v847 = vsel %vm846, %v845, 0
        %v848 = vshrl.u32 %v847, 5
        %v849 = vand.u32 %v847, 31
        %v850 = vsub.s32 32, %v849
        %v851 = vshrl.u32 683565275, %v850
        %v852 = vshll.u32 683565275, %v849
        %v853 = vshrl.u32 2475754826, %v850
        %v854 = vor.u32 %v852, %v853
        %v855 = vshll.u32 2475754826, %v849
        %v856 = vshrl.u32 2131351028, %v850
        %v857 = vor.u32 %v855, %v856
        %v858 = vshll.u32 2131351028, %v849
        %v859 = vshrl.u32 2102212464, %v850
        %v860 = vor.u32 %v858, %v859
        %v861 = vshll.u32 2102212464, %v849
        %v862 = vshrl.u32 920167782, %v850
        %v863 = vor.u32 %v861, %v862
        %v864 = vshll.u32 920167782, %v849
        %v865 = vshrl.u32 1326507024, %v850
        %v866 = vor.u32 %v864, %v865
        %vm867 = vcmp.lt.s32.totalorder %v848, 1
        %vm868 = vcmp.lt.s32.totalorder %v848, 2
        %vm869 = vcmp.lt.s32.totalorder %v848, 3
        %vm870 = vcmp.lt.s32.totalorder %v848, 4
        %v871 = vsel %vm867, %v851, %v854
        %v872 = vsel %vm870, %v860, 2102212464
        %v873 = vsel %vm869, %v857, %v872
        %v874 = vsel %vm868, %v871, %v873
        %v875 = vsel %vm867, %v854, %v857
        %v876 = vsel %vm870, %v863, 920167782
        %v877 = vsel %vm869, %v860, %v876
        %v878 = vsel %vm868, %v875, %v877
        %v879 = vsel %vm867, %v857, %v860
        %v880 = vsel %vm870, %v866, 1326507024
        %v881 = vsel %vm869, %v863, %v880
        %v882 = vsel %vm868, %v879, %v881
        %v883 = vshll.u32 %v843, 8
        %v884 = vmul.u32.u64.compose %v883, %v882
        %v885 = vextract.low.u32 %v884
        %v886 = vextract.high.u32 %v884
        %v887 = vmul.u32.u64.compose %v883, %v878
        %v888 = vextract.low.u32 %v887
        %v889 = vextract.high.u32 %v887
        %v890 = vmul.u32 %v883, %v874
        %v891 = vadd.s32 %v886, %v888
        %vm892 = vc.u32 %v886, %v888
        %v893 = vadd.s32 %v889, 1
        %v894 = vsel %vm892, %v893, %v889
        %v895 = vadd.s32 %v890, %v894
        %v896 = vadd.s32 %v895, 536870912
        %v897 = vshrl.u32 %v896, 30
        %v898 = vshll.u32 %v897, 30
        %v899 = vsub.s32 %v895, %v898
        %vm900 = vcmp.lt.s32.totalorder %v899, 0
        %v901 = vsub.s32 0, %v899
        %v902 = vsel %vm900, %v901, %v899
        %v903 = vclz %v902
        %v904 = vsub.s32 %v903, 2
        %vm905 = vcmp.gt.s32.totalorder 0, %v904
        %v906 = vsel %vm905, 0, %v904
        %v907 = vsub.s32 32, %v906
        %v908 = vshll.u32 %v899, %v906
        %v909 = vshrl.u32 %v891, %v907
        %v910 = vor.u32 %v908, %v909
        %v911 = vsub.s32 4294967266, %v906
        %v912 = vadd.s32 %v911, 127
        %v913 = vshll.u32 %v912, 23
        %v914 = vor.u32 4788187, %v913
        %v915 = vand.u32 2147483647, %v914
        %v917 = vcvt.s32.f32 %v910
        %v918 = vmul.f32 %v917, %v915
        %v919 = vxor.u32 %v918, 2147483648
        %v920 = vsel %vm837, %v919, %v918
        %v921 = vsub.s32 4, %v897
        %v922 = vsel %vm837, %v921, %v897
        %v923 = vsel %vm836, %v312, %v920
        %v924 = vsel %vm836, 0, %v922
        %v925 = vcosq.f32.pop %v923
        %v926 = vsinq.f32.pop %v923
        %vm927 = vweird.f32 %v312
        %v928 = vadd.s32 %v924, 3
        %v929 = vand.u32 %v928, 3
        %vm930 = vcmp.lt.s32.totalorder %v929, 2
        %vm931 = vcmp.eq.s32.totalorder %v929, 0
        %v932 = vxor.u32 %v926, 2147483648
        %v933 = vsel %vm931, %v925, %v932
        %vm934 = vcmp.eq.s32.totalorder %v929, 2
        %v935 = vxor.u32 %v925, 2147483648
        %v936 = vsel %vm934, %v935, %v926
        %v937 = vsel %vm930, %v933, %v936
        %v938 = vsel %vm927, nan, %v937
        %v939 = vand.u32 2147483647, %v313
        %vm940 = vcmp.le.f32.partialorder %v939, 0.7853982
        %vm941 = vcmp.lt.s32.totalorder %v313, 0
        %v942 = vand.u32 %v313, 2139095040
        %v943 = vshrl.u32 %v942, 23
        %v944 = vsub.s32 %v943, 127
        %v945 = vand.u32 2147483647, %v313
        %v946 = vand.u32 %v945, 8388607
        %v947 = vor.u32 %v946, 8388608
        %v948 = vsub.s32 0, %v947
        %v949 = vadd.s32 %v944, 1
        %vm950 = vcmp.gt.s32.totalorder %v949, 0
        %v951 = vsel %vm950, %v949, 0
        %v952 = vshrl.u32 %v951, 5
        %v953 = vand.u32 %v951, 31
        %v954 = vsub.s32 32, %v953
        %v955 = vshrl.u32 683565275, %v954
        %v956 = vshll.u32 683565275, %v953
        %v957 = vshrl.u32 2475754826, %v954
        %v958 = vor.u32 %v956, %v957
        %v959 = vshll.u32 2475754826, %v953
        %v960 = vshrl.u32 2131351028, %v954
        %v961 = vor.u32 %v959, %v960
        %v962 = vshll.u32 2131351028, %v953
        %v963 = vshrl.u32 2102212464, %v954
        %v964 = vor.u32 %v962, %v963
        %v965 = vshll.u32 2102212464, %v953
        %v966 = vshrl.u32 920167782, %v954
        %v967 = vor.u32 %v965, %v966
        %v968 = vshll.u32 920167782, %v953
        %v969 = vshrl.u32 1326507024, %v954
        %v970 = vor.u32 %v968, %v969
        %vm971 = vcmp.lt.s32.totalorder %v952, 1
        %vm972 = vcmp.lt.s32.totalorder %v952, 2
        %vm973 = vcmp.lt.s32.totalorder %v952, 3
        %vm974 = vcmp.lt.s32.totalorder %v952, 4
        %v975 = vsel %vm971, %v955, %v958
        %v976 = vsel %vm974, %v964, 2102212464
        %v977 = vsel %vm973, %v961, %v976
        %v978 = vsel %vm972, %v975, %v977
        %v979 = vsel %vm971, %v958, %v961
        %v980 = vsel %vm974, %v967, 920167782
        %v981 = vsel %vm973, %v964, %v980
        %v982 = vsel %vm972, %v979, %v981
        %v983 = vsel %vm971, %v961, %v964
        %v984 = vsel %vm974, %v970, 1326507024
        %v985 = vsel %vm973, %v967, %v984
        %v986 = vsel %vm972, %v983, %v985
        %v987 = vshll.u32 %v947, 8
        %v988 = vmul.u32.u64.compose %v987, %v986
        %v989 = vextract.low.u32 %v988
        %v990 = vextract.high.u32 %v988
        %v991 = vmul.u32.u64.compose %v987, %v982
        %v992 = vextract.low.u32 %v991
        %v993 = vextract.high.u32 %v991
        %v994 = vmul.u32 %v987, %v978
        %v995 = vadd.s32 %v990, %v992
        %vm996 = vc.u32 %v990, %v992
        %v997 = vadd.s32 %v993, 1
        %v998 = vsel %vm996, %v997, %v993
        %v999 = vadd.s32 %v994, %v998
        %v1000 = vadd.s32 %v999, 536870912
        %v1001 = vshrl.u32 %v1000, 30
        %v1002 = vshll.u32 %v1001, 30
        %v1003 = vsub.s32 %v999, %v1002
        %vm1004 = vcmp.lt.s32.totalorder %v1003, 0
        %v1005 = vsub.s32 0, %v1003
        %v1006 = vsel %vm1004, %v1005, %v1003
        %v1007 = vclz %v1006
        %v1008 = vsub.s32 %v1007, 2
        %vm1009 = vcmp.gt.s32.totalorder 0, %v1008
        %v1010 = vsel %vm1009, 0, %v1008
        %v1011 = vsub.s32 32, %v1010
        %v1012 = vshll.u32 %v1003, %v1010
        %v1013 = vshrl.u32 %v995, %v1011
        %v1014 = vor.u32 %v1012, %v1013
        %v1015 = vsub.s32 4294967266, %v1010
        %v1016 = vadd.s32 %v1015, 127
        %v1017 = vshll.u32 %v1016, 23
        %v1018 = vor.u32 4788187, %v1017
        %v1019 = vand.u32 2147483647, %v1018
        %v1021 = vcvt.s32.f32 %v1014
        %v1022 = vmul.f32 %v1021, %v1019
        %v1023 = vxor.u32 %v1022, 2147483648
        %v1024 = vsel %vm941, %v1023, %v1022
        %v1025 = vsub.s32 4, %v1001
        %v1026 = vsel %vm941, %v1025, %v1001
        %v1027 = vsel %vm940, %v313, %v1024
        %v1028 = vsel %vm940, 0, %v1026
        %v1029 = vcosq.f32.pop %v1027
        %v1030 = vsinq.f32.pop %v1027
        %vm1031 = vweird.f32 %v313
        %v1032 = vadd.s32 %v1028, 3
        %v1033 = vand.u32 %v1032, 3
        %vm1034 = vcmp.lt.s32.totalorder %v1033, 2
        %vm1035 = vcmp.eq.s32.totalorder %v1033, 0
        %v1036 = vxor.u32 %v1030, 2147483648
        %v1037 = vsel %vm1035, %v1029, %v1036
        %vm1038 = vcmp.eq.s32.totalorder %v1033, 2
        %v1039 = vxor.u32 %v1029, 2147483648
        %v1040 = vsel %vm1038, %v1039, %v1030
        %v1041 = vsel %vm1034, %v1037, %v1040
        %v1042 = vsel %vm1031, nan, %v1041
        %v1043 = vand.u32 2147483647, %v314
        %vm1044 = vcmp.le.f32.partialorder %v1043, 0.7853982
        %vm1045 = vcmp.lt.s32.totalorder %v314, 0
        %v1046 = vand.u32 %v314, 2139095040
        %v1047 = vshrl.u32 %v1046, 23
        %v1048 = vsub.s32 %v1047, 127
        %v1049 = vand.u32 2147483647, %v314
        %v1050 = vand.u32 %v1049, 8388607
        %v1051 = vor.u32 %v1050, 8388608
        %v1052 = vsub.s32 0, %v1051
        %v1053 = vadd.s32 %v1048, 1
        %vm1054 = vcmp.gt.s32.totalorder %v1053, 0
        %v1055 = vsel %vm1054, %v1053, 0
        %v1056 = vshrl.u32 %v1055, 5
        %v1057 = vand.u32 %v1055, 31
        %v1058 = vsub.s32 32, %v1057
        %v1059 = vshrl.u32 683565275, %v1058
        %v1060 = vshll.u32 683565275, %v1057
        %v1061 = vshrl.u32 2475754826, %v1058
        %v1062 = vor.u32 %v1060, %v1061
        %v1063 = vshll.u32 2475754826, %v1057
        %v1064 = vshrl.u32 2131351028, %v1058
        %v1065 = vor.u32 %v1063, %v1064
        %v1066 = vshll.u32 2131351028, %v1057
        %v1067 = vshrl.u32 2102212464, %v1058
        %v1068 = vor.u32 %v1066, %v1067
        %v1069 = vshll.u32 2102212464, %v1057
        %v1070 = vshrl.u32 920167782, %v1058
        %v1071 = vor.u32 %v1069, %v1070
        %v1072 = vshll.u32 920167782, %v1057
        %v1073 = vshrl.u32 1326507024, %v1058
        %v1074 = vor.u32 %v1072, %v1073
        %vm1075 = vcmp.lt.s32.totalorder %v1056, 1
        %vm1076 = vcmp.lt.s32.totalorder %v1056, 2
        %vm1077 = vcmp.lt.s32.totalorder %v1056, 3
        %vm1078 = vcmp.lt.s32.totalorder %v1056, 4
        %v1079 = vsel %vm1075, %v1059, %v1062
        %v1080 = vsel %vm1078, %v1068, 2102212464
        %v1081 = vsel %vm1077, %v1065, %v1080
        %v1082 = vsel %vm1076, %v1079, %v1081
        %v1083 = vsel %vm1075, %v1062, %v1065
        %v1084 = vsel %vm1078, %v1071, 920167782
        %v1085 = vsel %vm1077, %v1068, %v1084
        %v1086 = vsel %vm1076, %v1083, %v1085
        %v1087 = vsel %vm1075, %v1065, %v1068
        %v1088 = vsel %vm1078, %v1074, 1326507024
        %v1089 = vsel %vm1077, %v1071, %v1088
        %v1090 = vsel %vm1076, %v1087, %v1089
        %v1091 = vshll.u32 %v1051, 8
        %v1092 = vmul.u32.u64.compose %v1091, %v1090
        %v1093 = vextract.low.u32 %v1092
        %v1094 = vextract.high.u32 %v1092
        %v1095 = vmul.u32.u64.compose %v1091, %v1086
        %v1096 = vextract.low.u32 %v1095
        %v1097 = vextract.high.u32 %v1095
        %v1098 = vmul.u32 %v1091, %v1082
        %v1099 = vadd.s32 %v1094, %v1096
        %vm1100 = vc.u32 %v1094, %v1096
        %v1101 = vadd.s32 %v1097, 1
        %v1102 = vsel %vm1100, %v1101, %v1097
        %v1103 = vadd.s32 %v1098, %v1102
        %v1104 = vadd.s32 %v1103, 536870912
        %v1105 = vshrl.u32 %v1104, 30
        %v1106 = vshll.u32 %v1105, 30
        %v1107 = vsub.s32 %v1103, %v1106
        %vm1108 = vcmp.lt.s32.totalorder %v1107, 0
        %v1109 = vsub.s32 0, %v1107
        %v1110 = vsel %vm1108, %v1109, %v1107
        %v1111 = vclz %v1110
        %v1112 = vsub.s32 %v1111, 2
        %vm1113 = vcmp.gt.s32.totalorder 0, %v1112
        %v1114 = vsel %vm1113, 0, %v1112
        %v1115 = vsub.s32 32, %v1114
        %v1116 = vshll.u32 %v1107, %v1114
        %v1117 = vshrl.u32 %v1099, %v1115
        %v1118 = vor.u32 %v1116, %v1117
        %v1119 = vsub.s32 4294967266, %v1114
        %v1120 = vadd.s32 %v1119, 127
        %v1121 = vshll.u32 %v1120, 23
        %v1122 = vor.u32 4788187, %v1121
        %v1123 = vand.u32 2147483647, %v1122
        %v1125 = vcvt.s32.f32 %v1118
        %v1126 = vmul.f32 %v1125, %v1123
        %v1127 = vxor.u32 %v1126, 2147483648
        %v1128 = vsel %vm1045, %v1127, %v1126
        %v1129 = vsub.s32 4, %v1105
        %v1130 = vsel %vm1045, %v1129, %v1105
        %v1131 = vsel %vm1044, %v314, %v1128
        %v1132 = vsel %vm1044, 0, %v1130
        %v1133 = vcosq.f32.pop %v1131
        %v1134 = vsinq.f32.pop %v1131
        %vm1135 = vweird.f32 %v314
        %v1136 = vadd.s32 %v1132, 3
        %v1137 = vand.u32 %v1136, 3
        %vm1138 = vcmp.lt.s32.totalorder %v1137, 2
        %vm1139 = vcmp.eq.s32.totalorder %v1137, 0
        %v1140 = vxor.u32 %v1134, 2147483648
        %v1141 = vsel %vm1139, %v1133, %v1140
        %vm1142 = vcmp.eq.s32.totalorder %v1137, 2
        %v1143 = vxor.u32 %v1133, 2147483648
        %v1144 = vsel %vm1142, %v1143, %v1134
        %v1145 = vsel %vm1138, %v1141, %v1144
        %v1146 = vsel %vm1135, nan, %v1145
        %v1147 = vmul.f32 %v418, 3.1415927
        %v1148 = vmul.f32 %v522, 3.1415927
        %v1149 = vmul.f32 %v626, 3.1415927
        %v1150 = vmul.f32 %v730, 3.1415927
        %v1151 = vmul.f32 %v834, 3.1415927
        %v1152 = vmul.f32 %v938, 3.1415927
        %v1153 = vmul.f32 %v1042, 3.1415927
        %v1154 = vmul.f32 %v1146, 3.1415927
        %v1155 = vand.u32 2147483647, %v1147
        %vm1156 = vcmp.le.f32.partialorder %v1155, 0.7853982
        %vm1157 = vcmp.lt.s32.totalorder %v1147, 0
        %v1158 = vand.u32 %v1147, 2139095040
        %v1159 = vshrl.u32 %v1158, 23
        %v1160 = vsub.s32 %v1159, 127
        %v1161 = vand.u32 2147483647, %v1147
        %v1162 = vand.u32 %v1161, 8388607
        %v1163 = vor.u32 %v1162, 8388608
        %v1164 = vsub.s32 0, %v1163
        %v1165 = vadd.s32 %v1160, 1
        %vm1166 = vcmp.gt.s32.totalorder %v1165, 0
        %v1167 = vsel %vm1166, %v1165, 0
        %v1168 = vshrl.u32 %v1167, 5
        %v1169 = vand.u32 %v1167, 31
        %v1170 = vsub.s32 32, %v1169
        %v1171 = vshrl.u32 683565275, %v1170
        %v1172 = vshll.u32 683565275, %v1169
        %v1173 = vshrl.u32 2475754826, %v1170
        %v1174 = vor.u32 %v1172, %v1173
        %v1175 = vshll.u32 2475754826, %v1169
        %v1176 = vshrl.u32 2131351028, %v1170
        %v1177 = vor.u32 %v1175, %v1176
        %v1178 = vshll.u32 2131351028, %v1169
        %v1179 = vshrl.u32 2102212464, %v1170
        %v1180 = vor.u32 %v1178, %v1179
        %v1181 = vshll.u32 2102212464, %v1169
        %v1182 = vshrl.u32 920167782, %v1170
        %v1183 = vor.u32 %v1181, %v1182
        %v1184 = vshll.u32 920167782, %v1169
        %v1185 = vshrl.u32 1326507024, %v1170
        %v1186 = vor.u32 %v1184, %v1185
        %vm1187 = vcmp.lt.s32.totalorder %v1168, 1
        %vm1188 = vcmp.lt.s32.totalorder %v1168, 2
        %vm1189 = vcmp.lt.s32.totalorder %v1168, 3
        %vm1190 = vcmp.lt.s32.totalorder %v1168, 4
        %v1191 = vsel %vm1187, %v1171, %v1174
        %v1192 = vsel %vm1190, %v1180, 2102212464
        %v1193 = vsel %vm1189, %v1177, %v1192
        %v1194 = vsel %vm1188, %v1191, %v1193
        %v1195 = vsel %vm1187, %v1174, %v1177
        %v1196 = vsel %vm1190, %v1183, 920167782
        %v1197 = vsel %vm1189, %v1180, %v1196
        %v1198 = vsel %vm1188, %v1195, %v1197
        %v1199 = vsel %vm1187, %v1177, %v1180
        %v1200 = vsel %vm1190, %v1186, 1326507024
        %v1201 = vsel %vm1189, %v1183, %v1200
        %v1202 = vsel %vm1188, %v1199, %v1201
        %v1203 = vshll.u32 %v1163, 8
        %v1204 = vmul.u32.u64.compose %v1203, %v1202
        %v1205 = vextract.low.u32 %v1204
        %v1206 = vextract.high.u32 %v1204
        %v1207 = vmul.u32.u64.compose %v1203, %v1198
        %v1208 = vextract.low.u32 %v1207
        %v1209 = vextract.high.u32 %v1207
        %v1210 = vmul.u32 %v1203, %v1194
        %v1211 = vadd.s32 %v1206, %v1208
        %vm1212 = vc.u32 %v1206, %v1208
        %v1213 = vadd.s32 %v1209, 1
        %v1214 = vsel %vm1212, %v1213, %v1209
        %v1215 = vadd.s32 %v1210, %v1214
        %v1216 = vadd.s32 %v1215, 536870912
        %v1217 = vshrl.u32 %v1216, 30
        %v1218 = vshll.u32 %v1217, 30
        %v1219 = vsub.s32 %v1215, %v1218
        %vm1220 = vcmp.lt.s32.totalorder %v1219, 0
        %v1221 = vsub.s32 0, %v1219
        %v1222 = vsel %vm1220, %v1221, %v1219
        %v1223 = vclz %v1222
        %v1224 = vsub.s32 %v1223, 2
        %vm1225 = vcmp.gt.s32.totalorder 0, %v1224
        %v1226 = vsel %vm1225, 0, %v1224
        %v1227 = vsub.s32 32, %v1226
        %v1228 = vshll.u32 %v1219, %v1226
        %v1229 = vshrl.u32 %v1211, %v1227
        %v1230 = vor.u32 %v1228, %v1229
        %v1231 = vsub.s32 4294967266, %v1226
        %v1232 = vadd.s32 %v1231, 127
        %v1233 = vshll.u32 %v1232, 23
        %v1234 = vor.u32 4788187, %v1233
        %v1235 = vand.u32 2147483647, %v1234
        %v1237 = vcvt.s32.f32 %v1230
        %v1238 = vmul.f32 %v1237, %v1235
        %v1239 = vxor.u32 %v1238, 2147483648
        %v1240 = vsel %vm1157, %v1239, %v1238
        %v1241 = vsub.s32 4, %v1217
        %v1242 = vsel %vm1157, %v1241, %v1217
        %v1243 = vsel %vm1156, %v1147, %v1240
        %v1244 = vsel %vm1156, 0, %v1242
        %v1245 = vcosq.f32.pop %v1243
        %v1246 = vsinq.f32.pop %v1243
        %vm1247 = vweird.f32 %v1147
        %v1248 = vand.u32 %v1244, 3
        %vm1249 = vcmp.lt.s32.totalorder %v1248, 2
        %vm1250 = vcmp.eq.s32.totalorder %v1248, 0
        %v1251 = vxor.u32 %v1246, 2147483648
        %v1252 = vsel %vm1250, %v1245, %v1251
        %vm1253 = vcmp.eq.s32.totalorder %v1248, 2
        %v1254 = vxor.u32 %v1245, 2147483648
        %v1255 = vsel %vm1253, %v1254, %v1246
        %v1256 = vsel %vm1249, %v1252, %v1255
        %v1257 = vsel %vm1247, nan, %v1256
        %v1258 = vand.u32 2147483647, %v1148
        %vm1259 = vcmp.le.f32.partialorder %v1258, 0.7853982
        %vm1260 = vcmp.lt.s32.totalorder %v1148, 0
        %v1261 = vand.u32 %v1148, 2139095040
        %v1262 = vshrl.u32 %v1261, 23
        %v1263 = vsub.s32 %v1262, 127
        %v1264 = vand.u32 2147483647, %v1148
        %v1265 = vand.u32 %v1264, 8388607
        %v1266 = vor.u32 %v1265, 8388608
        %v1267 = vsub.s32 0, %v1266
        %v1268 = vadd.s32 %v1263, 1
        %vm1269 = vcmp.gt.s32.totalorder %v1268, 0
        %v1270 = vsel %vm1269, %v1268, 0
        %v1271 = vshrl.u32 %v1270, 5
        %v1272 = vand.u32 %v1270, 31
        %v1273 = vsub.s32 32, %v1272
        %v1274 = vshrl.u32 683565275, %v1273
        %v1275 = vshll.u32 683565275, %v1272
        %v1276 = vshrl.u32 2475754826, %v1273
        %v1277 = vor.u32 %v1275, %v1276
        %v1278 = vshll.u32 2475754826, %v1272
        %v1279 = vshrl.u32 2131351028, %v1273
        %v1280 = vor.u32 %v1278, %v1279
        %v1281 = vshll.u32 2131351028, %v1272
        %v1282 = vshrl.u32 2102212464, %v1273
        %v1283 = vor.u32 %v1281, %v1282
        %v1284 = vshll.u32 2102212464, %v1272
        %v1285 = vshrl.u32 920167782, %v1273
        %v1286 = vor.u32 %v1284, %v1285
        %v1287 = vshll.u32 920167782, %v1272
        %v1288 = vshrl.u32 1326507024, %v1273
        %v1289 = vor.u32 %v1287, %v1288
        %vm1290 = vcmp.lt.s32.totalorder %v1271, 1
        %vm1291 = vcmp.lt.s32.totalorder %v1271, 2
        %vm1292 = vcmp.lt.s32.totalorder %v1271, 3
        %vm1293 = vcmp.lt.s32.totalorder %v1271, 4
        %v1294 = vsel %vm1290, %v1274, %v1277
        %v1295 = vsel %vm1293, %v1283, 2102212464
        %v1296 = vsel %vm1292, %v1280, %v1295
        %v1297 = vsel %vm1291, %v1294, %v1296
        %v1298 = vsel %vm1290, %v1277, %v1280
        %v1299 = vsel %vm1293, %v1286, 920167782
        %v1300 = vsel %vm1292, %v1283, %v1299
        %v1301 = vsel %vm1291, %v1298, %v1300
        %v1302 = vsel %vm1290, %v1280, %v1283
        %v1303 = vsel %vm1293, %v1289, 1326507024
        %v1304 = vsel %vm1292, %v1286, %v1303
        %v1305 = vsel %vm1291, %v1302, %v1304
        %v1306 = vshll.u32 %v1266, 8
        %v1307 = vmul.u32.u64.compose %v1306, %v1305
        %v1308 = vextract.low.u32 %v1307
        %v1309 = vextract.high.u32 %v1307
        %v1310 = vmul.u32.u64.compose %v1306, %v1301
        %v1311 = vextract.low.u32 %v1310
        %v1312 = vextract.high.u32 %v1310
        %v1313 = vmul.u32 %v1306, %v1297
        %v1314 = vadd.s32 %v1309, %v1311
        %vm1315 = vc.u32 %v1309, %v1311
        %v1316 = vadd.s32 %v1312, 1
        %v1317 = vsel %vm1315, %v1316, %v1312
        %v1318 = vadd.s32 %v1313, %v1317
        %v1319 = vadd.s32 %v1318, 536870912
        %v1320 = vshrl.u32 %v1319, 30
        %v1321 = vshll.u32 %v1320, 30
        %v1322 = vsub.s32 %v1318, %v1321
        %vm1323 = vcmp.lt.s32.totalorder %v1322, 0
        %v1324 = vsub.s32 0, %v1322
        %v1325 = vsel %vm1323, %v1324, %v1322
        %v1326 = vclz %v1325
        %v1327 = vsub.s32 %v1326, 2
        %vm1328 = vcmp.gt.s32.totalorder 0, %v1327
        %v1329 = vsel %vm1328, 0, %v1327
        %v1330 = vsub.s32 32, %v1329
        %v1331 = vshll.u32 %v1322, %v1329
        %v1332 = vshrl.u32 %v1314, %v1330
        %v1333 = vor.u32 %v1331, %v1332
        %v1334 = vsub.s32 4294967266, %v1329
        %v1335 = vadd.s32 %v1334, 127
        %v1336 = vshll.u32 %v1335, 23
        %v1337 = vor.u32 4788187, %v1336
        %v1338 = vand.u32 2147483647, %v1337
        %v1340 = vcvt.s32.f32 %v1333
        %v1341 = vmul.f32 %v1340, %v1338
        %v1342 = vxor.u32 %v1341, 2147483648
        %v1343 = vsel %vm1260, %v1342, %v1341
        %v1344 = vsub.s32 4, %v1320
        %v1345 = vsel %vm1260, %v1344, %v1320
        %v1346 = vsel %vm1259, %v1148, %v1343
        %v1347 = vsel %vm1259, 0, %v1345
        %v1348 = vcosq.f32.pop %v1346
        %v1349 = vsinq.f32.pop %v1346
        %vm1350 = vweird.f32 %v1148
        %v1351 = vand.u32 %v1347, 3
        %vm1352 = vcmp.lt.s32.totalorder %v1351, 2
        %vm1353 = vcmp.eq.s32.totalorder %v1351, 0
        %v1354 = vxor.u32 %v1349, 2147483648
        %v1355 = vsel %vm1353, %v1348, %v1354
        %vm1356 = vcmp.eq.s32.totalorder %v1351, 2
        %v1357 = vxor.u32 %v1348, 2147483648
        %v1358 = vsel %vm1356, %v1357, %v1349
        %v1359 = vsel %vm1352, %v1355, %v1358
        %v1360 = vsel %vm1350, nan, %v1359
        %v1361 = vand.u32 2147483647, %v1149
        %vm1362 = vcmp.le.f32.partialorder %v1361, 0.7853982
        %vm1363 = vcmp.lt.s32.totalorder %v1149, 0
        %v1364 = vand.u32 %v1149, 2139095040
        %v1365 = vshrl.u32 %v1364, 23
        %v1366 = vsub.s32 %v1365, 127
        %v1367 = vand.u32 2147483647, %v1149
        %v1368 = vand.u32 %v1367, 8388607
        %v1369 = vor.u32 %v1368, 8388608
        %v1370 = vsub.s32 0, %v1369
        %v1371 = vadd.s32 %v1366, 1
        %vm1372 = vcmp.gt.s32.totalorder %v1371, 0
        %v1373 = vsel %vm1372, %v1371, 0
        %v1374 = vshrl.u32 %v1373, 5
        %v1375 = vand.u32 %v1373, 31
        %v1376 = vsub.s32 32, %v1375
        %v1377 = vshrl.u32 683565275, %v1376
        %v1378 = vshll.u32 683565275, %v1375
        %v1379 = vshrl.u32 2475754826, %v1376
        %v1380 = vor.u32 %v1378, %v1379
        %v1381 = vshll.u32 2475754826, %v1375
        %v1382 = vshrl.u32 2131351028, %v1376
        %v1383 = vor.u32 %v1381, %v1382
        %v1384 = vshll.u32 2131351028, %v1375
        %v1385 = vshrl.u32 2102212464, %v1376
        %v1386 = vor.u32 %v1384, %v1385
        %v1387 = vshll.u32 2102212464, %v1375
        %v1388 = vshrl.u32 920167782, %v1376
        %v1389 = vor.u32 %v1387, %v1388
        %v1390 = vshll.u32 920167782, %v1375
        %v1391 = vshrl.u32 1326507024, %v1376
        %v1392 = vor.u32 %v1390, %v1391
        %vm1393 = vcmp.lt.s32.totalorder %v1374, 1
        %vm1394 = vcmp.lt.s32.totalorder %v1374, 2
        %vm1395 = vcmp.lt.s32.totalorder %v1374, 3
        %vm1396 = vcmp.lt.s32.totalorder %v1374, 4
        %v1397 = vsel %vm1393, %v1377, %v1380
        %v1398 = vsel %vm1396, %v1386, 2102212464
        %v1399 = vsel %vm1395, %v1383, %v1398
        %v1400 = vsel %vm1394, %v1397, %v1399
        %v1401 = vsel %vm1393, %v1380, %v1383
        %v1402 = vsel %vm1396, %v1389, 920167782
        %v1403 = vsel %vm1395, %v1386, %v1402
        %v1404 = vsel %vm1394, %v1401, %v1403
        %v1405 = vsel %vm1393, %v1383, %v1386
        %v1406 = vsel %vm1396, %v1392, 1326507024
        %v1407 = vsel %vm1395, %v1389, %v1406
        %v1408 = vsel %vm1394, %v1405, %v1407
        %v1409 = vshll.u32 %v1369, 8
        %v1410 = vmul.u32.u64.compose %v1409, %v1408
        %v1411 = vextract.low.u32 %v1410
        %v1412 = vextract.high.u32 %v1410
        %v1413 = vmul.u32.u64.compose %v1409, %v1404
        %v1414 = vextract.low.u32 %v1413
        %v1415 = vextract.high.u32 %v1413
        %v1416 = vmul.u32 %v1409, %v1400
        %v1417 = vadd.s32 %v1412, %v1414
        %vm1418 = vc.u32 %v1412, %v1414
        %v1419 = vadd.s32 %v1415, 1
        %v1420 = vsel %vm1418, %v1419, %v1415
        %v1421 = vadd.s32 %v1416, %v1420
        %v1422 = vadd.s32 %v1421, 536870912
        %v1423 = vshrl.u32 %v1422, 30
        %v1424 = vshll.u32 %v1423, 30
        %v1425 = vsub.s32 %v1421, %v1424
        %vm1426 = vcmp.lt.s32.totalorder %v1425, 0
        %v1427 = vsub.s32 0, %v1425
        %v1428 = vsel %vm1426, %v1427, %v1425
        %v1429 = vclz %v1428
        %v1430 = vsub.s32 %v1429, 2
        %vm1431 = vcmp.gt.s32.totalorder 0, %v1430
        %v1432 = vsel %vm1431, 0, %v1430
        %v1433 = vsub.s32 32, %v1432
        %v1434 = vshll.u32 %v1425, %v1432
        %v1435 = vshrl.u32 %v1417, %v1433
        %v1436 = vor.u32 %v1434, %v1435
        %v1437 = vsub.s32 4294967266, %v1432
        %v1438 = vadd.s32 %v1437, 127
        %v1439 = vshll.u32 %v1438, 23
        %v1440 = vor.u32 4788187, %v1439
        %v1441 = vand.u32 2147483647, %v1440
        %v1443 = vcvt.s32.f32 %v1436
        %v1444 = vmul.f32 %v1443, %v1441
        %v1445 = vxor.u32 %v1444, 2147483648
        %v1446 = vsel %vm1363, %v1445, %v1444
        %v1447 = vsub.s32 4, %v1423
        %v1448 = vsel %vm1363, %v1447, %v1423
        %v1449 = vsel %vm1362, %v1149, %v1446
        %v1450 = vsel %vm1362, 0, %v1448
        %v1451 = vcosq.f32.pop %v1449
        %v1452 = vsinq.f32.pop %v1449
        %vm1453 = vweird.f32 %v1149
        %v1454 = vand.u32 %v1450, 3
        %vm1455 = vcmp.lt.s32.totalorder %v1454, 2
        %vm1456 = vcmp.eq.s32.totalorder %v1454, 0
        %v1457 = vxor.u32 %v1452, 2147483648
        %v1458 = vsel %vm1456, %v1451, %v1457
        %vm1459 = vcmp.eq.s32.totalorder %v1454, 2
        %v1460 = vxor.u32 %v1451, 2147483648
        %v1461 = vsel %vm1459, %v1460, %v1452
        %v1462 = vsel %vm1455, %v1458, %v1461
        %v1463 = vsel %vm1453, nan, %v1462
        %v1464 = vand.u32 2147483647, %v1150
        %vm1465 = vcmp.le.f32.partialorder %v1464, 0.7853982
        %vm1466 = vcmp.lt.s32.totalorder %v1150, 0
        %v1467 = vand.u32 %v1150, 2139095040
        %v1468 = vshrl.u32 %v1467, 23
        %v1469 = vsub.s32 %v1468, 127
        %v1470 = vand.u32 2147483647, %v1150
        %v1471 = vand.u32 %v1470, 8388607
        %v1472 = vor.u32 %v1471, 8388608
        %v1473 = vsub.s32 0, %v1472
        %v1474 = vadd.s32 %v1469, 1
        %vm1475 = vcmp.gt.s32.totalorder %v1474, 0
        %v1476 = vsel %vm1475, %v1474, 0
        %v1477 = vshrl.u32 %v1476, 5
        %v1478 = vand.u32 %v1476, 31
        %v1479 = vsub.s32 32, %v1478
        %v1480 = vshrl.u32 683565275, %v1479
        %v1481 = vshll.u32 683565275, %v1478
        %v1482 = vshrl.u32 2475754826, %v1479
        %v1483 = vor.u32 %v1481, %v1482
        %v1484 = vshll.u32 2475754826, %v1478
        %v1485 = vshrl.u32 2131351028, %v1479
        %v1486 = vor.u32 %v1484, %v1485
        %v1487 = vshll.u32 2131351028, %v1478
        %v1488 = vshrl.u32 2102212464, %v1479
        %v1489 = vor.u32 %v1487, %v1488
        %v1490 = vshll.u32 2102212464, %v1478
        %v1491 = vshrl.u32 920167782, %v1479
        %v1492 = vor.u32 %v1490, %v1491
        %v1493 = vshll.u32 920167782, %v1478
        %v1494 = vshrl.u32 1326507024, %v1479
        %v1495 = vor.u32 %v1493, %v1494
        %vm1496 = vcmp.lt.s32.totalorder %v1477, 1
        %vm1497 = vcmp.lt.s32.totalorder %v1477, 2
        %vm1498 = vcmp.lt.s32.totalorder %v1477, 3
        %vm1499 = vcmp.lt.s32.totalorder %v1477, 4
        %v1500 = vsel %vm1496, %v1480, %v1483
        %v1501 = vsel %vm1499, %v1489, 2102212464
        %v1502 = vsel %vm1498, %v1486, %v1501
        %v1503 = vsel %vm1497, %v1500, %v1502
        %v1504 = vsel %vm1496, %v1483, %v1486
        %v1505 = vsel %vm1499, %v1492, 920167782
        %v1506 = vsel %vm1498, %v1489, %v1505
        %v1507 = vsel %vm1497, %v1504, %v1506
        %v1508 = vsel %vm1496, %v1486, %v1489
        %v1509 = vsel %vm1499, %v1495, 1326507024
        %v1510 = vsel %vm1498, %v1492, %v1509
        %v1511 = vsel %vm1497, %v1508, %v1510
        %v1512 = vshll.u32 %v1472, 8
        %v1513 = vmul.u32.u64.compose %v1512, %v1511
        %v1514 = vextract.low.u32 %v1513
        %v1515 = vextract.high.u32 %v1513
        %v1516 = vmul.u32.u64.compose %v1512, %v1507
        %v1517 = vextract.low.u32 %v1516
        %v1518 = vextract.high.u32 %v1516
        %v1519 = vmul.u32 %v1512, %v1503
        %v1520 = vadd.s32 %v1515, %v1517
        %vm1521 = vc.u32 %v1515, %v1517
        %v1522 = vadd.s32 %v1518, 1
        %v1523 = vsel %vm1521, %v1522, %v1518
        %v1524 = vadd.s32 %v1519, %v1523
        %v1525 = vadd.s32 %v1524, 536870912
        %v1526 = vshrl.u32 %v1525, 30
        %v1527 = vshll.u32 %v1526, 30
        %v1528 = vsub.s32 %v1524, %v1527
        %vm1529 = vcmp.lt.s32.totalorder %v1528, 0
        %v1530 = vsub.s32 0, %v1528
        %v1531 = vsel %vm1529, %v1530, %v1528
        %v1532 = vclz %v1531
        %v1533 = vsub.s32 %v1532, 2
        %vm1534 = vcmp.gt.s32.totalorder 0, %v1533
        %v1535 = vsel %vm1534, 0, %v1533
        %v1536 = vsub.s32 32, %v1535
        %v1537 = vshll.u32 %v1528, %v1535
        %v1538 = vshrl.u32 %v1520, %v1536
        %v1539 = vor.u32 %v1537, %v1538
        %v1540 = vsub.s32 4294967266, %v1535
        %v1541 = vadd.s32 %v1540, 127
        %v1542 = vshll.u32 %v1541, 23
        %v1543 = vor.u32 4788187, %v1542
        %v1544 = vand.u32 2147483647, %v1543
        %v1546 = vcvt.s32.f32 %v1539
        %v1547 = vmul.f32 %v1546, %v1544
        %v1548 = vxor.u32 %v1547, 2147483648
        %v1549 = vsel %vm1466, %v1548, %v1547
        %v1550 = vsub.s32 4, %v1526
        %v1551 = vsel %vm1466, %v1550, %v1526
        %v1552 = vsel %vm1465, %v1150, %v1549
        %v1553 = vsel %vm1465, 0, %v1551
        %v1554 = vcosq.f32.pop %v1552
        %v1555 = vsinq.f32.pop %v1552
        %vm1556 = vweird.f32 %v1150
        %v1557 = vand.u32 %v1553, 3
        %vm1558 = vcmp.lt.s32.totalorder %v1557, 2
        %vm1559 = vcmp.eq.s32.totalorder %v1557, 0
        %v1560 = vxor.u32 %v1555, 2147483648
        %v1561 = vsel %vm1559, %v1554, %v1560
        %vm1562 = vcmp.eq.s32.totalorder %v1557, 2
        %v1563 = vxor.u32 %v1554, 2147483648
        %v1564 = vsel %vm1562, %v1563, %v1555
        %v1565 = vsel %vm1558, %v1561, %v1564
        %v1566 = vsel %vm1556, nan, %v1565
        %v1567 = vand.u32 2147483647, %v1151
        %vm1568 = vcmp.le.f32.partialorder %v1567, 0.7853982
        %vm1569 = vcmp.lt.s32.totalorder %v1151, 0
        %v1570 = vand.u32 %v1151, 2139095040
        %v1571 = vshrl.u32 %v1570, 23
        %v1572 = vsub.s32 %v1571, 127
        %v1573 = vand.u32 2147483647, %v1151
        %v1574 = vand.u32 %v1573, 8388607
        %v1575 = vor.u32 %v1574, 8388608
        %v1576 = vsub.s32 0, %v1575
        %v1577 = vadd.s32 %v1572, 1
        %vm1578 = vcmp.gt.s32.totalorder %v1577, 0
        %v1579 = vsel %vm1578, %v1577, 0
        %v1580 = vshrl.u32 %v1579, 5
        %v1581 = vand.u32 %v1579, 31
        %v1582 = vsub.s32 32, %v1581
        %v1583 = vshrl.u32 683565275, %v1582
        %v1584 = vshll.u32 683565275, %v1581
        %v1585 = vshrl.u32 2475754826, %v1582
        %v1586 = vor.u32 %v1584, %v1585
        %v1587 = vshll.u32 2475754826, %v1581
        %v1588 = vshrl.u32 2131351028, %v1582
        %v1589 = vor.u32 %v1587, %v1588
        %v1590 = vshll.u32 2131351028, %v1581
        %v1591 = vshrl.u32 2102212464, %v1582
        %v1592 = vor.u32 %v1590, %v1591
        %v1593 = vshll.u32 2102212464, %v1581
        %v1594 = vshrl.u32 920167782, %v1582
        %v1595 = vor.u32 %v1593, %v1594
        %v1596 = vshll.u32 920167782, %v1581
        %v1597 = vshrl.u32 1326507024, %v1582
        %v1598 = vor.u32 %v1596, %v1597
        %vm1599 = vcmp.lt.s32.totalorder %v1580, 1
        %vm1600 = vcmp.lt.s32.totalorder %v1580, 2
        %vm1601 = vcmp.lt.s32.totalorder %v1580, 3
        %vm1602 = vcmp.lt.s32.totalorder %v1580, 4
        %v1603 = vsel %vm1599, %v1583, %v1586
        %v1604 = vsel %vm1602, %v1592, 2102212464
        %v1605 = vsel %vm1601, %v1589, %v1604
        %v1606 = vsel %vm1600, %v1603, %v1605
        %v1607 = vsel %vm1599, %v1586, %v1589
        %v1608 = vsel %vm1602, %v1595, 920167782
        %v1609 = vsel %vm1601, %v1592, %v1608
        %v1610 = vsel %vm1600, %v1607, %v1609
        %v1611 = vsel %vm1599, %v1589, %v1592
        %v1612 = vsel %vm1602, %v1598, 1326507024
        %v1613 = vsel %vm1601, %v1595, %v1612
        %v1614 = vsel %vm1600, %v1611, %v1613
        %v1615 = vshll.u32 %v1575, 8
        %v1616 = vmul.u32.u64.compose %v1615, %v1614
        %v1617 = vextract.low.u32 %v1616
        %v1618 = vextract.high.u32 %v1616
        %v1619 = vmul.u32.u64.compose %v1615, %v1610
        %v1620 = vextract.low.u32 %v1619
        %v1621 = vextract.high.u32 %v1619
        %v1622 = vmul.u32 %v1615, %v1606
        %v1623 = vadd.s32 %v1618, %v1620
        %vm1624 = vc.u32 %v1618, %v1620
        %v1625 = vadd.s32 %v1621, 1
        %v1626 = vsel %vm1624, %v1625, %v1621
        %v1627 = vadd.s32 %v1622, %v1626
        %v1628 = vadd.s32 %v1627, 536870912
        %v1629 = vshrl.u32 %v1628, 30
        %v1630 = vshll.u32 %v1629, 30
        %v1631 = vsub.s32 %v1627, %v1630
        %vm1632 = vcmp.lt.s32.totalorder %v1631, 0
        %v1633 = vsub.s32 0, %v1631
        %v1634 = vsel %vm1632, %v1633, %v1631
        %v1635 = vclz %v1634
        %v1636 = vsub.s32 %v1635, 2
        %vm1637 = vcmp.gt.s32.totalorder 0, %v1636
        %v1638 = vsel %vm1637, 0, %v1636
        %v1639 = vsub.s32 32, %v1638
        %v1640 = vshll.u32 %v1631, %v1638
        %v1641 = vshrl.u32 %v1623, %v1639
        %v1642 = vor.u32 %v1640, %v1641
        %v1643 = vsub.s32 4294967266, %v1638
        %v1644 = vadd.s32 %v1643, 127
        %v1645 = vshll.u32 %v1644, 23
        %v1646 = vor.u32 4788187, %v1645
        %v1647 = vand.u32 2147483647, %v1646
        %v1649 = vcvt.s32.f32 %v1642
        %v1650 = vmul.f32 %v1649, %v1647
        %v1651 = vxor.u32 %v1650, 2147483648
        %v1652 = vsel %vm1569, %v1651, %v1650
        %v1653 = vsub.s32 4, %v1629
        %v1654 = vsel %vm1569, %v1653, %v1629
        %v1655 = vsel %vm1568, %v1151, %v1652
        %v1656 = vsel %vm1568, 0, %v1654
        %v1657 = vcosq.f32.pop %v1655
        %v1658 = vsinq.f32.pop %v1655
        %vm1659 = vweird.f32 %v1151
        %v1660 = vand.u32 %v1656, 3
        %vm1661 = vcmp.lt.s32.totalorder %v1660, 2
        %vm1662 = vcmp.eq.s32.totalorder %v1660, 0
        %v1663 = vxor.u32 %v1658, 2147483648
        %v1664 = vsel %vm1662, %v1657, %v1663
        %vm1665 = vcmp.eq.s32.totalorder %v1660, 2
        %v1666 = vxor.u32 %v1657, 2147483648
        %v1667 = vsel %vm1665, %v1666, %v1658
        %v1668 = vsel %vm1661, %v1664, %v1667
        %v1669 = vsel %vm1659, nan, %v1668
        %v1670 = vand.u32 2147483647, %v1152
        %vm1671 = vcmp.le.f32.partialorder %v1670, 0.7853982
        %vm1672 = vcmp.lt.s32.totalorder %v1152, 0
        %v1673 = vand.u32 %v1152, 2139095040
        %v1674 = vshrl.u32 %v1673, 23
        %v1675 = vsub.s32 %v1674, 127
        %v1676 = vand.u32 2147483647, %v1152
        %v1677 = vand.u32 %v1676, 8388607
        %v1678 = vor.u32 %v1677, 8388608
        %v1679 = vsub.s32 0, %v1678
        %v1680 = vadd.s32 %v1675, 1
        %vm1681 = vcmp.gt.s32.totalorder %v1680, 0
        %v1682 = vsel %vm1681, %v1680, 0
        %v1683 = vshrl.u32 %v1682, 5
        %v1684 = vand.u32 %v1682, 31
        %v1685 = vsub.s32 32, %v1684
        %v1686 = vshrl.u32 683565275, %v1685
        %v1687 = vshll.u32 683565275, %v1684
        %v1688 = vshrl.u32 2475754826, %v1685
        %v1689 = vor.u32 %v1687, %v1688
        %v1690 = vshll.u32 2475754826, %v1684
        %v1691 = vshrl.u32 2131351028, %v1685
        %v1692 = vor.u32 %v1690, %v1691
        %v1693 = vshll.u32 2131351028, %v1684
        %v1694 = vshrl.u32 2102212464, %v1685
        %v1695 = vor.u32 %v1693, %v1694
        %v1696 = vshll.u32 2102212464, %v1684
        %v1697 = vshrl.u32 920167782, %v1685
        %v1698 = vor.u32 %v1696, %v1697
        %v1699 = vshll.u32 920167782, %v1684
        %v1700 = vshrl.u32 1326507024, %v1685
        %v1701 = vor.u32 %v1699, %v1700
        %vm1702 = vcmp.lt.s32.totalorder %v1683, 1
        %vm1703 = vcmp.lt.s32.totalorder %v1683, 2
        %vm1704 = vcmp.lt.s32.totalorder %v1683, 3
        %vm1705 = vcmp.lt.s32.totalorder %v1683, 4
        %v1706 = vsel %vm1702, %v1686, %v1689
        %v1707 = vsel %vm1705, %v1695, 2102212464
        %v1708 = vsel %vm1704, %v1692, %v1707
        %v1709 = vsel %vm1703, %v1706, %v1708
        %v1710 = vsel %vm1702, %v1689, %v1692
        %v1711 = vsel %vm1705, %v1698, 920167782
        %v1712 = vsel %vm1704, %v1695, %v1711
        %v1713 = vsel %vm1703, %v1710, %v1712
        %v1714 = vsel %vm1702, %v1692, %v1695
        %v1715 = vsel %vm1705, %v1701, 1326507024
        %v1716 = vsel %vm1704, %v1698, %v1715
        %v1717 = vsel %vm1703, %v1714, %v1716
        %v1718 = vshll.u32 %v1678, 8
        %v1719 = vmul.u32.u64.compose %v1718, %v1717
        %v1720 = vextract.low.u32 %v1719
        %v1721 = vextract.high.u32 %v1719
        %v1722 = vmul.u32.u64.compose %v1718, %v1713
        %v1723 = vextract.low.u32 %v1722
        %v1724 = vextract.high.u32 %v1722
        %v1725 = vmul.u32 %v1718, %v1709
        %v1726 = vadd.s32 %v1721, %v1723
        %vm1727 = vc.u32 %v1721, %v1723
        %v1728 = vadd.s32 %v1724, 1
        %v1729 = vsel %vm1727, %v1728, %v1724
        %v1730 = vadd.s32 %v1725, %v1729
        %v1731 = vadd.s32 %v1730, 536870912
        %v1732 = vshrl.u32 %v1731, 30
        %v1733 = vshll.u32 %v1732, 30
        %v1734 = vsub.s32 %v1730, %v1733
        %vm1735 = vcmp.lt.s32.totalorder %v1734, 0
        %v1736 = vsub.s32 0, %v1734
        %v1737 = vsel %vm1735, %v1736, %v1734
        %v1738 = vclz %v1737
        %v1739 = vsub.s32 %v1738, 2
        %vm1740 = vcmp.gt.s32.totalorder 0, %v1739
        %v1741 = vsel %vm1740, 0, %v1739
        %v1742 = vsub.s32 32, %v1741
        %v1743 = vshll.u32 %v1734, %v1741
        %v1744 = vshrl.u32 %v1726, %v1742
        %v1745 = vor.u32 %v1743, %v1744
        %v1746 = vsub.s32 4294967266, %v1741
        %v1747 = vadd.s32 %v1746, 127
        %v1748 = vshll.u32 %v1747, 23
        %v1749 = vor.u32 4788187, %v1748
        %v1750 = vand.u32 2147483647, %v1749
        %v1752 = vcvt.s32.f32 %v1745
        %v1753 = vmul.f32 %v1752, %v1750
        %v1754 = vxor.u32 %v1753, 2147483648
        %v1755 = vsel %vm1672, %v1754, %v1753
        %v1756 = vsub.s32 4, %v1732
        %v1757 = vsel %vm1672, %v1756, %v1732
        %v1758 = vsel %vm1671, %v1152, %v1755
        %v1759 = vsel %vm1671, 0, %v1757
        %v1760 = vcosq.f32.pop %v1758
        %v1761 = vsinq.f32.pop %v1758
        %vm1762 = vweird.f32 %v1152
        %v1763 = vand.u32 %v1759, 3
        %vm1764 = vcmp.lt.s32.totalorder %v1763, 2
        %vm1765 = vcmp.eq.s32.totalorder %v1763, 0
        %v1766 = vxor.u32 %v1761, 2147483648
        %v1767 = vsel %vm1765, %v1760, %v1766
        %vm1768 = vcmp.eq.s32.totalorder %v1763, 2
        %v1769 = vxor.u32 %v1760, 2147483648
        %v1770 = vsel %vm1768, %v1769, %v1761
        %v1771 = vsel %vm1764, %v1767, %v1770
        %v1772 = vsel %vm1762, nan, %v1771
        %v1773 = vand.u32 2147483647, %v1153
        %vm1774 = vcmp.le.f32.partialorder %v1773, 0.7853982
        %vm1775 = vcmp.lt.s32.totalorder %v1153, 0
        %v1776 = vand.u32 %v1153, 2139095040
        %v1777 = vshrl.u32 %v1776, 23
        %v1778 = vsub.s32 %v1777, 127
        %v1779 = vand.u32 2147483647, %v1153
        %v1780 = vand.u32 %v1779, 8388607
        %v1781 = vor.u32 %v1780, 8388608
        %v1782 = vsub.s32 0, %v1781
        %v1783 = vadd.s32 %v1778, 1
        %vm1784 = vcmp.gt.s32.totalorder %v1783, 0
        %v1785 = vsel %vm1784, %v1783, 0
        %v1786 = vshrl.u32 %v1785, 5
        %v1787 = vand.u32 %v1785, 31
        %v1788 = vsub.s32 32, %v1787
        %v1789 = vshrl.u32 683565275, %v1788
        %v1790 = vshll.u32 683565275, %v1787
        %v1791 = vshrl.u32 2475754826, %v1788
        %v1792 = vor.u32 %v1790, %v1791
        %v1793 = vshll.u32 2475754826, %v1787
        %v1794 = vshrl.u32 2131351028, %v1788
        %v1795 = vor.u32 %v1793, %v1794
        %v1796 = vshll.u32 2131351028, %v1787
        %v1797 = vshrl.u32 2102212464, %v1788
        %v1798 = vor.u32 %v1796, %v1797
        %v1799 = vshll.u32 2102212464, %v1787
        %v1800 = vshrl.u32 920167782, %v1788
        %v1801 = vor.u32 %v1799, %v1800
        %v1802 = vshll.u32 920167782, %v1787
        %v1803 = vshrl.u32 1326507024, %v1788
        %v1804 = vor.u32 %v1802, %v1803
        %vm1805 = vcmp.lt.s32.totalorder %v1786, 1
        %vm1806 = vcmp.lt.s32.totalorder %v1786, 2
        %vm1807 = vcmp.lt.s32.totalorder %v1786, 3
        %vm1808 = vcmp.lt.s32.totalorder %v1786, 4
        %v1809 = vsel %vm1805, %v1789, %v1792
        %v1810 = vsel %vm1808, %v1798, 2102212464
        %v1811 = vsel %vm1807, %v1795, %v1810
        %v1812 = vsel %vm1806, %v1809, %v1811
        %v1813 = vsel %vm1805, %v1792, %v1795
        %v1814 = vsel %vm1808, %v1801, 920167782
        %v1815 = vsel %vm1807, %v1798, %v1814
        %v1816 = vsel %vm1806, %v1813, %v1815
        %v1817 = vsel %vm1805, %v1795, %v1798
        %v1818 = vsel %vm1808, %v1804, 1326507024
        %v1819 = vsel %vm1807, %v1801, %v1818
        %v1820 = vsel %vm1806, %v1817, %v1819
        %v1821 = vshll.u32 %v1781, 8
        %v1822 = vmul.u32.u64.compose %v1821, %v1820
        %v1823 = vextract.low.u32 %v1822
        %v1824 = vextract.high.u32 %v1822
        %v1825 = vmul.u32.u64.compose %v1821, %v1816
        %v1826 = vextract.low.u32 %v1825
        %v1827 = vextract.high.u32 %v1825
        %v1828 = vmul.u32 %v1821, %v1812
        %v1829 = vadd.s32 %v1824, %v1826
        %vm1830 = vc.u32 %v1824, %v1826
        %v1831 = vadd.s32 %v1827, 1
        %v1832 = vsel %vm1830, %v1831, %v1827
        %v1833 = vadd.s32 %v1828, %v1832
        %v1834 = vadd.s32 %v1833, 536870912
        %v1835 = vshrl.u32 %v1834, 30
        %v1836 = vshll.u32 %v1835, 30
        %v1837 = vsub.s32 %v1833, %v1836
        %vm1838 = vcmp.lt.s32.totalorder %v1837, 0
        %v1839 = vsub.s32 0, %v1837
        %v1840 = vsel %vm1838, %v1839, %v1837
        %v1841 = vclz %v1840
        %v1842 = vsub.s32 %v1841, 2
        %vm1843 = vcmp.gt.s32.totalorder 0, %v1842
        %v1844 = vsel %vm1843, 0, %v1842
        %v1845 = vsub.s32 32, %v1844
        %v1846 = vshll.u32 %v1837, %v1844
        %v1847 = vshrl.u32 %v1829, %v1845
        %v1848 = vor.u32 %v1846, %v1847
        %v1849 = vsub.s32 4294967266, %v1844
        %v1850 = vadd.s32 %v1849, 127
        %v1851 = vshll.u32 %v1850, 23
        %v1852 = vor.u32 4788187, %v1851
        %v1853 = vand.u32 2147483647, %v1852
        %v1855 = vcvt.s32.f32 %v1848
        %v1856 = vmul.f32 %v1855, %v1853
        %v1857 = vxor.u32 %v1856, 2147483648
        %v1858 = vsel %vm1775, %v1857, %v1856
        %v1859 = vsub.s32 4, %v1835
        %v1860 = vsel %vm1775, %v1859, %v1835
        %v1861 = vsel %vm1774, %v1153, %v1858
        %v1862 = vsel %vm1774, 0, %v1860
        %v1863 = vcosq.f32.pop %v1861
        %v1864 = vsinq.f32.pop %v1861
        %vm1865 = vweird.f32 %v1153
        %v1866 = vand.u32 %v1862, 3
        %vm1867 = vcmp.lt.s32.totalorder %v1866, 2
        %vm1868 = vcmp.eq.s32.totalorder %v1866, 0
        %v1869 = vxor.u32 %v1864, 2147483648
        %v1870 = vsel %vm1868, %v1863, %v1869
        %vm1871 = vcmp.eq.s32.totalorder %v1866, 2
        %v1872 = vxor.u32 %v1863, 2147483648
        %v1873 = vsel %vm1871, %v1872, %v1864
        %v1874 = vsel %vm1867, %v1870, %v1873
        %v1875 = vsel %vm1865, nan, %v1874
        %v1876 = vand.u32 2147483647, %v1154
        %vm1877 = vcmp.le.f32.partialorder %v1876, 0.7853982
        %vm1878 = vcmp.lt.s32.totalorder %v1154, 0
        %v1879 = vand.u32 %v1154, 2139095040
        %v1880 = vshrl.u32 %v1879, 23
        %v1881 = vsub.s32 %v1880, 127
        %v1882 = vand.u32 2147483647, %v1154
        %v1883 = vand.u32 %v1882, 8388607
        %v1884 = vor.u32 %v1883, 8388608
        %v1885 = vsub.s32 0, %v1884
        %v1886 = vadd.s32 %v1881, 1
        %vm1887 = vcmp.gt.s32.totalorder %v1886, 0
        %v1888 = vsel %vm1887, %v1886, 0
        %v1889 = vshrl.u32 %v1888, 5
        %v1890 = vand.u32 %v1888, 31
        %v1891 = vsub.s32 32, %v1890
        %v1892 = vshrl.u32 683565275, %v1891
        %v1893 = vshll.u32 683565275, %v1890
        %v1894 = vshrl.u32 2475754826, %v1891
        %v1895 = vor.u32 %v1893, %v1894
        %v1896 = vshll.u32 2475754826, %v1890
        %v1897 = vshrl.u32 2131351028, %v1891
        %v1898 = vor.u32 %v1896, %v1897
        %v1899 = vshll.u32 2131351028, %v1890
        %v1900 = vshrl.u32 2102212464, %v1891
        %v1901 = vor.u32 %v1899, %v1900
        %v1902 = vshll.u32 2102212464, %v1890
        %v1903 = vshrl.u32 920167782, %v1891
        %v1904 = vor.u32 %v1902, %v1903
        %v1905 = vshll.u32 920167782, %v1890
        %v1906 = vshrl.u32 1326507024, %v1891
        %v1907 = vor.u32 %v1905, %v1906
        %vm1908 = vcmp.lt.s32.totalorder %v1889, 1
        %vm1909 = vcmp.lt.s32.totalorder %v1889, 2
        %vm1910 = vcmp.lt.s32.totalorder %v1889, 3
        %vm1911 = vcmp.lt.s32.totalorder %v1889, 4
        %v1912 = vsel %vm1908, %v1892, %v1895
        %v1913 = vsel %vm1911, %v1901, 2102212464
        %v1914 = vsel %vm1910, %v1898, %v1913
        %v1915 = vsel %vm1909, %v1912, %v1914
        %v1916 = vsel %vm1908, %v1895, %v1898
        %v1917 = vsel %vm1911, %v1904, 920167782
        %v1918 = vsel %vm1910, %v1901, %v1917
        %v1919 = vsel %vm1909, %v1916, %v1918
        %v1920 = vsel %vm1908, %v1898, %v1901
        %v1921 = vsel %vm1911, %v1907, 1326507024
        %v1922 = vsel %vm1910, %v1904, %v1921
        %v1923 = vsel %vm1909, %v1920, %v1922
        %v1924 = vshll.u32 %v1884, 8
        %v1925 = vmul.u32.u64.compose %v1924, %v1923
        %v1926 = vextract.low.u32 %v1925
        %v1927 = vextract.high.u32 %v1925
        %v1928 = vmul.u32.u64.compose %v1924, %v1919
        %v1929 = vextract.low.u32 %v1928
        %v1930 = vextract.high.u32 %v1928
        %v1931 = vmul.u32 %v1924, %v1915
        %v1932 = vadd.s32 %v1927, %v1929
        %vm1933 = vc.u32 %v1927, %v1929
        %v1934 = vadd.s32 %v1930, 1
        %v1935 = vsel %vm1933, %v1934, %v1930
        %v1936 = vadd.s32 %v1931, %v1935
        %v1937 = vadd.s32 %v1936, 536870912
        %v1938 = vshrl.u32 %v1937, 30
        %v1939 = vshll.u32 %v1938, 30
        %v1940 = vsub.s32 %v1936, %v1939
        %vm1941 = vcmp.lt.s32.totalorder %v1940, 0
        %v1942 = vsub.s32 0, %v1940
        %v1943 = vsel %vm1941, %v1942, %v1940
        %v1944 = vclz %v1943
        %v1945 = vsub.s32 %v1944, 2
        %vm1946 = vcmp.gt.s32.totalorder 0, %v1945
        %v1947 = vsel %vm1946, 0, %v1945
        %v1948 = vsub.s32 32, %v1947
        %v1949 = vshll.u32 %v1940, %v1947
        %v1950 = vshrl.u32 %v1932, %v1948
        %v1951 = vor.u32 %v1949, %v1950
        %v1952 = vsub.s32 4294967266, %v1947
        %v1953 = vadd.s32 %v1952, 127
        %v1954 = vshll.u32 %v1953, 23
        %v1955 = vor.u32 4788187, %v1954
        %v1956 = vand.u32 2147483647, %v1955
        %v1958 = vcvt.s32.f32 %v1951
        %v1959 = vmul.f32 %v1958, %v1956
        %v1960 = vxor.u32 %v1959, 2147483648
        %v1961 = vsel %vm1878, %v1960, %v1959
        %v1962 = vsub.s32 4, %v1938
        %v1963 = vsel %vm1878, %v1962, %v1938
        %v1964 = vsel %vm1877, %v1154, %v1961
        %v1965 = vsel %vm1877, 0, %v1963
        %v1966 = vcosq.f32.pop %v1964
        %v1967 = vsinq.f32.pop %v1964
        %vm1968 = vweird.f32 %v1154
        %v1969 = vand.u32 %v1965, 3
        %vm1970 = vcmp.lt.s32.totalorder %v1969, 2
        %vm1971 = vcmp.eq.s32.totalorder %v1969, 0
        %v1972 = vxor.u32 %v1967, 2147483648
        %v1973 = vsel %vm1971, %v1966, %v1972
        %vm1974 = vcmp.eq.s32.totalorder %v1969, 2
        %v1975 = vxor.u32 %v1966, 2147483648
        %v1976 = vsel %vm1974, %v1975, %v1967
        %v1977 = vsel %vm1970, %v1973, %v1976
        %v1978 = vsel %vm1968, nan, %v1977
        %v1979 = vmul.f32 %v292, %v1257
        %v1980 = vmul.f32 %v294, %v1360
        %v1981 = vmul.f32 %v296, %v1463
        %v1982 = vmul.f32 %v298, %v1566
        %v1983 = vmul.f32 %v300, %v1669
        %v1984 = vmul.f32 %v302, %v1772
        %v1985 = vmul.f32 %v304, %v1875
        %v1986 = vmul.f32 %v306, %v1978
        %v1987 = vand.u32 2147483647, %v1147
        %vm1988 = vcmp.le.f32.partialorder %v1987, 0.7853982
        %vm1989 = vcmp.lt.s32.totalorder %v1147, 0
        %v1990 = vand.u32 %v1147, 2139095040
        %v1991 = vshrl.u32 %v1990, 23
        %v1992 = vsub.s32 %v1991, 127
        %v1993 = vand.u32 2147483647, %v1147
        %v1994 = vand.u32 %v1993, 8388607
        %v1995 = vor.u32 %v1994, 8388608
        %v1996 = vsub.s32 0, %v1995
        %v1997 = vadd.s32 %v1992, 1
        %vm1998 = vcmp.gt.s32.totalorder %v1997, 0
        %v1999 = vsel %vm1998, %v1997, 0
        %v2000 = vshrl.u32 %v1999, 5
        %v2001 = vand.u32 %v1999, 31
        %v2002 = vsub.s32 32, %v2001
        %v2003 = vshrl.u32 683565275, %v2002
        %v2004 = vshll.u32 683565275, %v2001
        %v2005 = vshrl.u32 2475754826, %v2002
        %v2006 = vor.u32 %v2004, %v2005
        %v2007 = vshll.u32 2475754826, %v2001
        %v2008 = vshrl.u32 2131351028, %v2002
        %v2009 = vor.u32 %v2007, %v2008
        %v2010 = vshll.u32 2131351028, %v2001
        %v2011 = vshrl.u32 2102212464, %v2002
        %v2012 = vor.u32 %v2010, %v2011
        %v2013 = vshll.u32 2102212464, %v2001
        %v2014 = vshrl.u32 920167782, %v2002
        %v2015 = vor.u32 %v2013, %v2014
        %v2016 = vshll.u32 920167782, %v2001
        %v2017 = vshrl.u32 1326507024, %v2002
        %v2018 = vor.u32 %v2016, %v2017
        %vm2019 = vcmp.lt.s32.totalorder %v2000, 1
        %vm2020 = vcmp.lt.s32.totalorder %v2000, 2
        %vm2021 = vcmp.lt.s32.totalorder %v2000, 3
        %vm2022 = vcmp.lt.s32.totalorder %v2000, 4
        %v2023 = vsel %vm2019, %v2003, %v2006
        %v2024 = vsel %vm2022, %v2012, 2102212464
        %v2025 = vsel %vm2021, %v2009, %v2024
        %v2026 = vsel %vm2020, %v2023, %v2025
        %v2027 = vsel %vm2019, %v2006, %v2009
        %v2028 = vsel %vm2022, %v2015, 920167782
        %v2029 = vsel %vm2021, %v2012, %v2028
        %v2030 = vsel %vm2020, %v2027, %v2029
        %v2031 = vsel %vm2019, %v2009, %v2012
        %v2032 = vsel %vm2022, %v2018, 1326507024
        %v2033 = vsel %vm2021, %v2015, %v2032
        %v2034 = vsel %vm2020, %v2031, %v2033
        %v2035 = vshll.u32 %v1995, 8
        %v2036 = vmul.u32.u64.compose %v2035, %v2034
        %v2037 = vextract.low.u32 %v2036
        %v2038 = vextract.high.u32 %v2036
        %v2039 = vmul.u32.u64.compose %v2035, %v2030
        %v2040 = vextract.low.u32 %v2039
        %v2041 = vextract.high.u32 %v2039
        %v2042 = vmul.u32 %v2035, %v2026
        %v2043 = vadd.s32 %v2038, %v2040
        %vm2044 = vc.u32 %v2038, %v2040
        %v2045 = vadd.s32 %v2041, 1
        %v2046 = vsel %vm2044, %v2045, %v2041
        %v2047 = vadd.s32 %v2042, %v2046
        %v2048 = vadd.s32 %v2047, 536870912
        %v2049 = vshrl.u32 %v2048, 30
        %v2050 = vshll.u32 %v2049, 30
        %v2051 = vsub.s32 %v2047, %v2050
        %vm2052 = vcmp.lt.s32.totalorder %v2051, 0
        %v2053 = vsub.s32 0, %v2051
        %v2054 = vsel %vm2052, %v2053, %v2051
        %v2055 = vclz %v2054
        %v2056 = vsub.s32 %v2055, 2
        %vm2057 = vcmp.gt.s32.totalorder 0, %v2056
        %v2058 = vsel %vm2057, 0, %v2056
        %v2059 = vsub.s32 32, %v2058
        %v2060 = vshll.u32 %v2051, %v2058
        %v2061 = vshrl.u32 %v2043, %v2059
        %v2062 = vor.u32 %v2060, %v2061
        %v2063 = vsub.s32 4294967266, %v2058
        %v2064 = vadd.s32 %v2063, 127
        %v2065 = vshll.u32 %v2064, 23
        %v2066 = vor.u32 4788187, %v2065
        %v2067 = vand.u32 2147483647, %v2066
        %v2069 = vcvt.s32.f32 %v2062
        %v2070 = vmul.f32 %v2069, %v2067
        %v2071 = vxor.u32 %v2070, 2147483648
        %v2072 = vsel %vm1989, %v2071, %v2070
        %v2073 = vsub.s32 4, %v2049
        %v2074 = vsel %vm1989, %v2073, %v2049
        %v2075 = vsel %vm1988, %v1147, %v2072
        %v2076 = vsel %vm1988, 0, %v2074
        %v2077 = vcosq.f32.pop %v2075
        %v2078 = vsinq.f32.pop %v2075
        %vm2079 = vweird.f32 %v1147
        %v2080 = vadd.s32 %v2076, 3
        %v2081 = vand.u32 %v2080, 3
        %vm2082 = vcmp.lt.s32.totalorder %v2081, 2
        %vm2083 = vcmp.eq.s32.totalorder %v2081, 0
        %v2084 = vxor.u32 %v2078, 2147483648
        %v2085 = vsel %vm2083, %v2077, %v2084
        %vm2086 = vcmp.eq.s32.totalorder %v2081, 2
        %v2087 = vxor.u32 %v2077, 2147483648
        %v2088 = vsel %vm2086, %v2087, %v2078
        %v2089 = vsel %vm2082, %v2085, %v2088
        %v2090 = vsel %vm2079, nan, %v2089
        %v2091 = vand.u32 2147483647, %v1148
        %vm2092 = vcmp.le.f32.partialorder %v2091, 0.7853982
        %vm2093 = vcmp.lt.s32.totalorder %v1148, 0
        %v2094 = vand.u32 %v1148, 2139095040
        %v2095 = vshrl.u32 %v2094, 23
        %v2096 = vsub.s32 %v2095, 127
        %v2097 = vand.u32 2147483647, %v1148
        %v2098 = vand.u32 %v2097, 8388607
        %v2099 = vor.u32 %v2098, 8388608
        %v2100 = vsub.s32 0, %v2099
        %v2101 = vadd.s32 %v2096, 1
        %vm2102 = vcmp.gt.s32.totalorder %v2101, 0
        %v2103 = vsel %vm2102, %v2101, 0
        %v2104 = vshrl.u32 %v2103, 5
        %v2105 = vand.u32 %v2103, 31
        %v2106 = vsub.s32 32, %v2105
        %v2107 = vshrl.u32 683565275, %v2106
        %v2108 = vshll.u32 683565275, %v2105
        %v2109 = vshrl.u32 2475754826, %v2106
        %v2110 = vor.u32 %v2108, %v2109
        %v2111 = vshll.u32 2475754826, %v2105
        %v2112 = vshrl.u32 2131351028, %v2106
        %v2113 = vor.u32 %v2111, %v2112
        %v2114 = vshll.u32 2131351028, %v2105
        %v2115 = vshrl.u32 2102212464, %v2106
        %v2116 = vor.u32 %v2114, %v2115
        %v2117 = vshll.u32 2102212464, %v2105
        %v2118 = vshrl.u32 920167782, %v2106
        %v2119 = vor.u32 %v2117, %v2118
        %v2120 = vshll.u32 920167782, %v2105
        %v2121 = vshrl.u32 1326507024, %v2106
        %v2122 = vor.u32 %v2120, %v2121
        %vm2123 = vcmp.lt.s32.totalorder %v2104, 1
        %vm2124 = vcmp.lt.s32.totalorder %v2104, 2
        %vm2125 = vcmp.lt.s32.totalorder %v2104, 3
        %vm2126 = vcmp.lt.s32.totalorder %v2104, 4
        %v2127 = vsel %vm2123, %v2107, %v2110
        %v2128 = vsel %vm2126, %v2116, 2102212464
        %v2129 = vsel %vm2125, %v2113, %v2128
        %v2130 = vsel %vm2124, %v2127, %v2129
        %v2131 = vsel %vm2123, %v2110, %v2113
        %v2132 = vsel %vm2126, %v2119, 920167782
        %v2133 = vsel %vm2125, %v2116, %v2132
        %v2134 = vsel %vm2124, %v2131, %v2133
        %v2135 = vsel %vm2123, %v2113, %v2116
        %v2136 = vsel %vm2126, %v2122, 1326507024
        %v2137 = vsel %vm2125, %v2119, %v2136
        %v2138 = vsel %vm2124, %v2135, %v2137
        %v2139 = vshll.u32 %v2099, 8
        %v2140 = vmul.u32.u64.compose %v2139, %v2138
        %v2141 = vextract.low.u32 %v2140
        %v2142 = vextract.high.u32 %v2140
        %v2143 = vmul.u32.u64.compose %v2139, %v2134
        %v2144 = vextract.low.u32 %v2143
        %v2145 = vextract.high.u32 %v2143
        %v2146 = vmul.u32 %v2139, %v2130
        %v2147 = vadd.s32 %v2142, %v2144
        %vm2148 = vc.u32 %v2142, %v2144
        %v2149 = vadd.s32 %v2145, 1
        %v2150 = vsel %vm2148, %v2149, %v2145
        %v2151 = vadd.s32 %v2146, %v2150
        %v2152 = vadd.s32 %v2151, 536870912
        %v2153 = vshrl.u32 %v2152, 30
        %v2154 = vshll.u32 %v2153, 30
        %v2155 = vsub.s32 %v2151, %v2154
        %vm2156 = vcmp.lt.s32.totalorder %v2155, 0
        %v2157 = vsub.s32 0, %v2155
        %v2158 = vsel %vm2156, %v2157, %v2155
        %v2159 = vclz %v2158
        %v2160 = vsub.s32 %v2159, 2
        %vm2161 = vcmp.gt.s32.totalorder 0, %v2160
        %v2162 = vsel %vm2161, 0, %v2160
        %v2163 = vsub.s32 32, %v2162
        %v2164 = vshll.u32 %v2155, %v2162
        %v2165 = vshrl.u32 %v2147, %v2163
        %v2166 = vor.u32 %v2164, %v2165
        %v2167 = vsub.s32 4294967266, %v2162
        %v2168 = vadd.s32 %v2167, 127
        %v2169 = vshll.u32 %v2168, 23
        %v2170 = vor.u32 4788187, %v2169
        %v2171 = vand.u32 2147483647, %v2170
        %v2173 = vcvt.s32.f32 %v2166
        %v2174 = vmul.f32 %v2173, %v2171
        %v2175 = vxor.u32 %v2174, 2147483648
        %v2176 = vsel %vm2093, %v2175, %v2174
        %v2177 = vsub.s32 4, %v2153
        %v2178 = vsel %vm2093, %v2177, %v2153
        %v2179 = vsel %vm2092, %v1148, %v2176
        %v2180 = vsel %vm2092, 0, %v2178
        %v2181 = vcosq.f32.pop %v2179
        %v2182 = vsinq.f32.pop %v2179
        %vm2183 = vweird.f32 %v1148
        %v2184 = vadd.s32 %v2180, 3
        %v2185 = vand.u32 %v2184, 3
        %vm2186 = vcmp.lt.s32.totalorder %v2185, 2
        %vm2187 = vcmp.eq.s32.totalorder %v2185, 0
        %v2188 = vxor.u32 %v2182, 2147483648
        %v2189 = vsel %vm2187, %v2181, %v2188
        %vm2190 = vcmp.eq.s32.totalorder %v2185, 2
        %v2191 = vxor.u32 %v2181, 2147483648
        %v2192 = vsel %vm2190, %v2191, %v2182
        %v2193 = vsel %vm2186, %v2189, %v2192
        %v2194 = vsel %vm2183, nan, %v2193
        %v2195 = vand.u32 2147483647, %v1149
        %vm2196 = vcmp.le.f32.partialorder %v2195, 0.7853982
        %vm2197 = vcmp.lt.s32.totalorder %v1149, 0
        %v2198 = vand.u32 %v1149, 2139095040
        %v2199 = vshrl.u32 %v2198, 23
        %v2200 = vsub.s32 %v2199, 127
        %v2201 = vand.u32 2147483647, %v1149
        %v2202 = vand.u32 %v2201, 8388607
        %v2203 = vor.u32 %v2202, 8388608
        %v2204 = vsub.s32 0, %v2203
        %v2205 = vadd.s32 %v2200, 1
        %vm2206 = vcmp.gt.s32.totalorder %v2205, 0
        %v2207 = vsel %vm2206, %v2205, 0
        %v2208 = vshrl.u32 %v2207, 5
        %v2209 = vand.u32 %v2207, 31
        %v2210 = vsub.s32 32, %v2209
        %v2211 = vshrl.u32 683565275, %v2210
        %v2212 = vshll.u32 683565275, %v2209
        %v2213 = vshrl.u32 2475754826, %v2210
        %v2214 = vor.u32 %v2212, %v2213
        %v2215 = vshll.u32 2475754826, %v2209
        %v2216 = vshrl.u32 2131351028, %v2210
        %v2217 = vor.u32 %v2215, %v2216
        %v2218 = vshll.u32 2131351028, %v2209
        %v2219 = vshrl.u32 2102212464, %v2210
        %v2220 = vor.u32 %v2218, %v2219
        %v2221 = vshll.u32 2102212464, %v2209
        %v2222 = vshrl.u32 920167782, %v2210
        %v2223 = vor.u32 %v2221, %v2222
        %v2224 = vshll.u32 920167782, %v2209
        %v2225 = vshrl.u32 1326507024, %v2210
        %v2226 = vor.u32 %v2224, %v2225
        %vm2227 = vcmp.lt.s32.totalorder %v2208, 1
        %vm2228 = vcmp.lt.s32.totalorder %v2208, 2
        %vm2229 = vcmp.lt.s32.totalorder %v2208, 3
        %vm2230 = vcmp.lt.s32.totalorder %v2208, 4
        %v2231 = vsel %vm2227, %v2211, %v2214
        %v2232 = vsel %vm2230, %v2220, 2102212464
        %v2233 = vsel %vm2229, %v2217, %v2232
        %v2234 = vsel %vm2228, %v2231, %v2233
        %v2235 = vsel %vm2227, %v2214, %v2217
        %v2236 = vsel %vm2230, %v2223, 920167782
        %v2237 = vsel %vm2229, %v2220, %v2236
        %v2238 = vsel %vm2228, %v2235, %v2237
        %v2239 = vsel %vm2227, %v2217, %v2220
        %v2240 = vsel %vm2230, %v2226, 1326507024
        %v2241 = vsel %vm2229, %v2223, %v2240
        %v2242 = vsel %vm2228, %v2239, %v2241
        %v2243 = vshll.u32 %v2203, 8
        %v2244 = vmul.u32.u64.compose %v2243, %v2242
        %v2245 = vextract.low.u32 %v2244
        %v2246 = vextract.high.u32 %v2244
        %v2247 = vmul.u32.u64.compose %v2243, %v2238
        %v2248 = vextract.low.u32 %v2247
        %v2249 = vextract.high.u32 %v2247
        %v2250 = vmul.u32 %v2243, %v2234
        %v2251 = vadd.s32 %v2246, %v2248
        %vm2252 = vc.u32 %v2246, %v2248
        %v2253 = vadd.s32 %v2249, 1
        %v2254 = vsel %vm2252, %v2253, %v2249
        %v2255 = vadd.s32 %v2250, %v2254
        %v2256 = vadd.s32 %v2255, 536870912
        %v2257 = vshrl.u32 %v2256, 30
        %v2258 = vshll.u32 %v2257, 30
        %v2259 = vsub.s32 %v2255, %v2258
        %vm2260 = vcmp.lt.s32.totalorder %v2259, 0
        %v2261 = vsub.s32 0, %v2259
        %v2262 = vsel %vm2260, %v2261, %v2259
        %v2263 = vclz %v2262
        %v2264 = vsub.s32 %v2263, 2
        %vm2265 = vcmp.gt.s32.totalorder 0, %v2264
        %v2266 = vsel %vm2265, 0, %v2264
        %v2267 = vsub.s32 32, %v2266
        %v2268 = vshll.u32 %v2259, %v2266
        %v2269 = vshrl.u32 %v2251, %v2267
        %v2270 = vor.u32 %v2268, %v2269
        %v2271 = vsub.s32 4294967266, %v2266
        %v2272 = vadd.s32 %v2271, 127
        %v2273 = vshll.u32 %v2272, 23
        %v2274 = vor.u32 4788187, %v2273
        %v2275 = vand.u32 2147483647, %v2274
        %v2277 = vcvt.s32.f32 %v2270
        %v2278 = vmul.f32 %v2277, %v2275
        %v2279 = vxor.u32 %v2278, 2147483648
        %v2280 = vsel %vm2197, %v2279, %v2278
        %v2281 = vsub.s32 4, %v2257
        %v2282 = vsel %vm2197, %v2281, %v2257
        %v2283 = vsel %vm2196, %v1149, %v2280
        %v2284 = vsel %vm2196, 0, %v2282
        %v2285 = vcosq.f32.pop %v2283
        %v2286 = vsinq.f32.pop %v2283
        %vm2287 = vweird.f32 %v1149
        %v2288 = vadd.s32 %v2284, 3
        %v2289 = vand.u32 %v2288, 3
        %vm2290 = vcmp.lt.s32.totalorder %v2289, 2
        %vm2291 = vcmp.eq.s32.totalorder %v2289, 0
        %v2292 = vxor.u32 %v2286, 2147483648
        %v2293 = vsel %vm2291, %v2285, %v2292
        %vm2294 = vcmp.eq.s32.totalorder %v2289, 2
        %v2295 = vxor.u32 %v2285, 2147483648
        %v2296 = vsel %vm2294, %v2295, %v2286
        %v2297 = vsel %vm2290, %v2293, %v2296
        %v2298 = vsel %vm2287, nan, %v2297
        %v2299 = vand.u32 2147483647, %v1150
        %vm2300 = vcmp.le.f32.partialorder %v2299, 0.7853982
        %vm2301 = vcmp.lt.s32.totalorder %v1150, 0
        %v2302 = vand.u32 %v1150, 2139095040
        %v2303 = vshrl.u32 %v2302, 23
        %v2304 = vsub.s32 %v2303, 127
        %v2305 = vand.u32 2147483647, %v1150
        %v2306 = vand.u32 %v2305, 8388607
        %v2307 = vor.u32 %v2306, 8388608
        %v2308 = vsub.s32 0, %v2307
        %v2309 = vadd.s32 %v2304, 1
        %vm2310 = vcmp.gt.s32.totalorder %v2309, 0
        %v2311 = vsel %vm2310, %v2309, 0
        %v2312 = vshrl.u32 %v2311, 5
        %v2313 = vand.u32 %v2311, 31
        %v2314 = vsub.s32 32, %v2313
        %v2315 = vshrl.u32 683565275, %v2314
        %v2316 = vshll.u32 683565275, %v2313
        %v2317 = vshrl.u32 2475754826, %v2314
        %v2318 = vor.u32 %v2316, %v2317
        %v2319 = vshll.u32 2475754826, %v2313
        %v2320 = vshrl.u32 2131351028, %v2314
        %v2321 = vor.u32 %v2319, %v2320
        %v2322 = vshll.u32 2131351028, %v2313
        %v2323 = vshrl.u32 2102212464, %v2314
        %v2324 = vor.u32 %v2322, %v2323
        %v2325 = vshll.u32 2102212464, %v2313
        %v2326 = vshrl.u32 920167782, %v2314
        %v2327 = vor.u32 %v2325, %v2326
        %v2328 = vshll.u32 920167782, %v2313
        %v2329 = vshrl.u32 1326507024, %v2314
        %v2330 = vor.u32 %v2328, %v2329
        %vm2331 = vcmp.lt.s32.totalorder %v2312, 1
        %vm2332 = vcmp.lt.s32.totalorder %v2312, 2
        %vm2333 = vcmp.lt.s32.totalorder %v2312, 3
        %vm2334 = vcmp.lt.s32.totalorder %v2312, 4
        %v2335 = vsel %vm2331, %v2315, %v2318
        %v2336 = vsel %vm2334, %v2324, 2102212464
        %v2337 = vsel %vm2333, %v2321, %v2336
        %v2338 = vsel %vm2332, %v2335, %v2337
        %v2339 = vsel %vm2331, %v2318, %v2321
        %v2340 = vsel %vm2334, %v2327, 920167782
        %v2341 = vsel %vm2333, %v2324, %v2340
        %v2342 = vsel %vm2332, %v2339, %v2341
        %v2343 = vsel %vm2331, %v2321, %v2324
        %v2344 = vsel %vm2334, %v2330, 1326507024
        %v2345 = vsel %vm2333, %v2327, %v2344
        %v2346 = vsel %vm2332, %v2343, %v2345
        %v2347 = vshll.u32 %v2307, 8
        %v2348 = vmul.u32.u64.compose %v2347, %v2346
        %v2349 = vextract.low.u32 %v2348
        %v2350 = vextract.high.u32 %v2348
        %v2351 = vmul.u32.u64.compose %v2347, %v2342
        %v2352 = vextract.low.u32 %v2351
        %v2353 = vextract.high.u32 %v2351
        %v2354 = vmul.u32 %v2347, %v2338
        %v2355 = vadd.s32 %v2350, %v2352
        %vm2356 = vc.u32 %v2350, %v2352
        %v2357 = vadd.s32 %v2353, 1
        %v2358 = vsel %vm2356, %v2357, %v2353
        %v2359 = vadd.s32 %v2354, %v2358
        %v2360 = vadd.s32 %v2359, 536870912
        %v2361 = vshrl.u32 %v2360, 30
        %v2362 = vshll.u32 %v2361, 30
        %v2363 = vsub.s32 %v2359, %v2362
        %vm2364 = vcmp.lt.s32.totalorder %v2363, 0
        %v2365 = vsub.s32 0, %v2363
        %v2366 = vsel %vm2364, %v2365, %v2363
        %v2367 = vclz %v2366
        %v2368 = vsub.s32 %v2367, 2
        %vm2369 = vcmp.gt.s32.totalorder 0, %v2368
        %v2370 = vsel %vm2369, 0, %v2368
        %v2371 = vsub.s32 32, %v2370
        %v2372 = vshll.u32 %v2363, %v2370
        %v2373 = vshrl.u32 %v2355, %v2371
        %v2374 = vor.u32 %v2372, %v2373
        %v2375 = vsub.s32 4294967266, %v2370
        %v2376 = vadd.s32 %v2375, 127
        %v2377 = vshll.u32 %v2376, 23
        %v2378 = vor.u32 4788187, %v2377
        %v2379 = vand.u32 2147483647, %v2378
        %v2381 = vcvt.s32.f32 %v2374
        %v2382 = vmul.f32 %v2381, %v2379
        %v2383 = vxor.u32 %v2382, 2147483648
        %v2384 = vsel %vm2301, %v2383, %v2382
        %v2385 = vsub.s32 4, %v2361
        %v2386 = vsel %vm2301, %v2385, %v2361
        %v2387 = vsel %vm2300, %v1150, %v2384
        %v2388 = vsel %vm2300, 0, %v2386
        %v2389 = vcosq.f32.pop %v2387
        %v2390 = vsinq.f32.pop %v2387
        %vm2391 = vweird.f32 %v1150
        %v2392 = vadd.s32 %v2388, 3
        %v2393 = vand.u32 %v2392, 3
        %vm2394 = vcmp.lt.s32.totalorder %v2393, 2
        %vm2395 = vcmp.eq.s32.totalorder %v2393, 0
        %v2396 = vxor.u32 %v2390, 2147483648
        %v2397 = vsel %vm2395, %v2389, %v2396
        %vm2398 = vcmp.eq.s32.totalorder %v2393, 2
        %v2399 = vxor.u32 %v2389, 2147483648
        %v2400 = vsel %vm2398, %v2399, %v2390
        %v2401 = vsel %vm2394, %v2397, %v2400
        %v2402 = vsel %vm2391, nan, %v2401
        %v2403 = vand.u32 2147483647, %v1151
        %vm2404 = vcmp.le.f32.partialorder %v2403, 0.7853982
        %vm2405 = vcmp.lt.s32.totalorder %v1151, 0
        %v2406 = vand.u32 %v1151, 2139095040
        %v2407 = vshrl.u32 %v2406, 23
        %v2408 = vsub.s32 %v2407, 127
        %v2409 = vand.u32 2147483647, %v1151
        %v2410 = vand.u32 %v2409, 8388607
        %v2411 = vor.u32 %v2410, 8388608
        %v2412 = vsub.s32 0, %v2411
        %v2413 = vadd.s32 %v2408, 1
        %vm2414 = vcmp.gt.s32.totalorder %v2413, 0
        %v2415 = vsel %vm2414, %v2413, 0
        %v2416 = vshrl.u32 %v2415, 5
        %v2417 = vand.u32 %v2415, 31
        %v2418 = vsub.s32 32, %v2417
        %v2419 = vshrl.u32 683565275, %v2418
        %v2420 = vshll.u32 683565275, %v2417
        %v2421 = vshrl.u32 2475754826, %v2418
        %v2422 = vor.u32 %v2420, %v2421
        %v2423 = vshll.u32 2475754826, %v2417
        %v2424 = vshrl.u32 2131351028, %v2418
        %v2425 = vor.u32 %v2423, %v2424
        %v2426 = vshll.u32 2131351028, %v2417
        %v2427 = vshrl.u32 2102212464, %v2418
        %v2428 = vor.u32 %v2426, %v2427
        %v2429 = vshll.u32 2102212464, %v2417
        %v2430 = vshrl.u32 920167782, %v2418
        %v2431 = vor.u32 %v2429, %v2430
        %v2432 = vshll.u32 920167782, %v2417
        %v2433 = vshrl.u32 1326507024, %v2418
        %v2434 = vor.u32 %v2432, %v2433
        %vm2435 = vcmp.lt.s32.totalorder %v2416, 1
        %vm2436 = vcmp.lt.s32.totalorder %v2416, 2
        %vm2437 = vcmp.lt.s32.totalorder %v2416, 3
        %vm2438 = vcmp.lt.s32.totalorder %v2416, 4
        %v2439 = vsel %vm2435, %v2419, %v2422
        %v2440 = vsel %vm2438, %v2428, 2102212464
        %v2441 = vsel %vm2437, %v2425, %v2440
        %v2442 = vsel %vm2436, %v2439, %v2441
        %v2443 = vsel %vm2435, %v2422, %v2425
        %v2444 = vsel %vm2438, %v2431, 920167782
        %v2445 = vsel %vm2437, %v2428, %v2444
        %v2446 = vsel %vm2436, %v2443, %v2445
        %v2447 = vsel %vm2435, %v2425, %v2428
        %v2448 = vsel %vm2438, %v2434, 1326507024
        %v2449 = vsel %vm2437, %v2431, %v2448
        %v2450 = vsel %vm2436, %v2447, %v2449
        %v2451 = vshll.u32 %v2411, 8
        %v2452 = vmul.u32.u64.compose %v2451, %v2450
        %v2453 = vextract.low.u32 %v2452
        %v2454 = vextract.high.u32 %v2452
        %v2455 = vmul.u32.u64.compose %v2451, %v2446
        %v2456 = vextract.low.u32 %v2455
        %v2457 = vextract.high.u32 %v2455
        %v2458 = vmul.u32 %v2451, %v2442
        %v2459 = vadd.s32 %v2454, %v2456
        %vm2460 = vc.u32 %v2454, %v2456
        %v2461 = vadd.s32 %v2457, 1
        %v2462 = vsel %vm2460, %v2461, %v2457
        %v2463 = vadd.s32 %v2458, %v2462
        %v2464 = vadd.s32 %v2463, 536870912
        %v2465 = vshrl.u32 %v2464, 30
        %v2466 = vshll.u32 %v2465, 30
        %v2467 = vsub.s32 %v2463, %v2466
        %vm2468 = vcmp.lt.s32.totalorder %v2467, 0
        %v2469 = vsub.s32 0, %v2467
        %v2470 = vsel %vm2468, %v2469, %v2467
        %v2471 = vclz %v2470
        %v2472 = vsub.s32 %v2471, 2
        %vm2473 = vcmp.gt.s32.totalorder 0, %v2472
        %v2474 = vsel %vm2473, 0, %v2472
        %v2475 = vsub.s32 32, %v2474
        %v2476 = vshll.u32 %v2467, %v2474
        %v2477 = vshrl.u32 %v2459, %v2475
        %v2478 = vor.u32 %v2476, %v2477
        %v2479 = vsub.s32 4294967266, %v2474
        %v2480 = vadd.s32 %v2479, 127
        %v2481 = vshll.u32 %v2480, 23
        %v2482 = vor.u32 4788187, %v2481
        %v2483 = vand.u32 2147483647, %v2482
        %v2485 = vcvt.s32.f32 %v2478
        %v2486 = vmul.f32 %v2485, %v2483
        %v2487 = vxor.u32 %v2486, 2147483648
        %v2488 = vsel %vm2405, %v2487, %v2486
        %v2489 = vsub.s32 4, %v2465
        %v2490 = vsel %vm2405, %v2489, %v2465
        %v2491 = vsel %vm2404, %v1151, %v2488
        %v2492 = vsel %vm2404, 0, %v2490
        %v2493 = vcosq.f32.pop %v2491
        %v2494 = vsinq.f32.pop %v2491
        %vm2495 = vweird.f32 %v1151
        %v2496 = vadd.s32 %v2492, 3
        %v2497 = vand.u32 %v2496, 3
        %vm2498 = vcmp.lt.s32.totalorder %v2497, 2
        %vm2499 = vcmp.eq.s32.totalorder %v2497, 0
        %v2500 = vxor.u32 %v2494, 2147483648
        %v2501 = vsel %vm2499, %v2493, %v2500
        %vm2502 = vcmp.eq.s32.totalorder %v2497, 2
        %v2503 = vxor.u32 %v2493, 2147483648
        %v2504 = vsel %vm2502, %v2503, %v2494
        %v2505 = vsel %vm2498, %v2501, %v2504
        %v2506 = vsel %vm2495, nan, %v2505
        %v2507 = vand.u32 2147483647, %v1152
        %vm2508 = vcmp.le.f32.partialorder %v2507, 0.7853982
        %vm2509 = vcmp.lt.s32.totalorder %v1152, 0
        %v2510 = vand.u32 %v1152, 2139095040
        %v2511 = vshrl.u32 %v2510, 23
        %v2512 = vsub.s32 %v2511, 127
        %v2513 = vand.u32 2147483647, %v1152
        %v2514 = vand.u32 %v2513, 8388607
        %v2515 = vor.u32 %v2514, 8388608
        %v2516 = vsub.s32 0, %v2515
        %v2517 = vadd.s32 %v2512, 1
        %vm2518 = vcmp.gt.s32.totalorder %v2517, 0
        %v2519 = vsel %vm2518, %v2517, 0
        %v2520 = vshrl.u32 %v2519, 5
        %v2521 = vand.u32 %v2519, 31
        %v2522 = vsub.s32 32, %v2521
        %v2523 = vshrl.u32 683565275, %v2522
        %v2524 = vshll.u32 683565275, %v2521
        %v2525 = vshrl.u32 2475754826, %v2522
        %v2526 = vor.u32 %v2524, %v2525
        %v2527 = vshll.u32 2475754826, %v2521
        %v2528 = vshrl.u32 2131351028, %v2522
        %v2529 = vor.u32 %v2527, %v2528
        %v2530 = vshll.u32 2131351028, %v2521
        %v2531 = vshrl.u32 2102212464, %v2522
        %v2532 = vor.u32 %v2530, %v2531
        %v2533 = vshll.u32 2102212464, %v2521
        %v2534 = vshrl.u32 920167782, %v2522
        %v2535 = vor.u32 %v2533, %v2534
        %v2536 = vshll.u32 920167782, %v2521
        %v2537 = vshrl.u32 1326507024, %v2522
        %v2538 = vor.u32 %v2536, %v2537
        %vm2539 = vcmp.lt.s32.totalorder %v2520, 1
        %vm2540 = vcmp.lt.s32.totalorder %v2520, 2
        %vm2541 = vcmp.lt.s32.totalorder %v2520, 3
        %vm2542 = vcmp.lt.s32.totalorder %v2520, 4
        %v2543 = vsel %vm2539, %v2523, %v2526
        %v2544 = vsel %vm2542, %v2532, 2102212464
        %v2545 = vsel %vm2541, %v2529, %v2544
        %v2546 = vsel %vm2540, %v2543, %v2545
        %v2547 = vsel %vm2539, %v2526, %v2529
        %v2548 = vsel %vm2542, %v2535, 920167782
        %v2549 = vsel %vm2541, %v2532, %v2548
        %v2550 = vsel %vm2540, %v2547, %v2549
        %v2551 = vsel %vm2539, %v2529, %v2532
        %v2552 = vsel %vm2542, %v2538, 1326507024
        %v2553 = vsel %vm2541, %v2535, %v2552
        %v2554 = vsel %vm2540, %v2551, %v2553
        %v2555 = vshll.u32 %v2515, 8
        %v2556 = vmul.u32.u64.compose %v2555, %v2554
        %v2557 = vextract.low.u32 %v2556
        %v2558 = vextract.high.u32 %v2556
        %v2559 = vmul.u32.u64.compose %v2555, %v2550
        %v2560 = vextract.low.u32 %v2559
        %v2561 = vextract.high.u32 %v2559
        %v2562 = vmul.u32 %v2555, %v2546
        %v2563 = vadd.s32 %v2558, %v2560
        %vm2564 = vc.u32 %v2558, %v2560
        %v2565 = vadd.s32 %v2561, 1
        %v2566 = vsel %vm2564, %v2565, %v2561
        %v2567 = vadd.s32 %v2562, %v2566
        %v2568 = vadd.s32 %v2567, 536870912
        %v2569 = vshrl.u32 %v2568, 30
        %v2570 = vshll.u32 %v2569, 30
        %v2571 = vsub.s32 %v2567, %v2570
        %vm2572 = vcmp.lt.s32.totalorder %v2571, 0
        %v2573 = vsub.s32 0, %v2571
        %v2574 = vsel %vm2572, %v2573, %v2571
        %v2575 = vclz %v2574
        %v2576 = vsub.s32 %v2575, 2
        %vm2577 = vcmp.gt.s32.totalorder 0, %v2576
        %v2578 = vsel %vm2577, 0, %v2576
        %v2579 = vsub.s32 32, %v2578
        %v2580 = vshll.u32 %v2571, %v2578
        %v2581 = vshrl.u32 %v2563, %v2579
        %v2582 = vor.u32 %v2580, %v2581
        %v2583 = vsub.s32 4294967266, %v2578
        %v2584 = vadd.s32 %v2583, 127
        %v2585 = vshll.u32 %v2584, 23
        %v2586 = vor.u32 4788187, %v2585
        %v2587 = vand.u32 2147483647, %v2586
        %v2589 = vcvt.s32.f32 %v2582
        %v2590 = vmul.f32 %v2589, %v2587
        %v2591 = vxor.u32 %v2590, 2147483648
        %v2592 = vsel %vm2509, %v2591, %v2590
        %v2593 = vsub.s32 4, %v2569
        %v2594 = vsel %vm2509, %v2593, %v2569
        %v2595 = vsel %vm2508, %v1152, %v2592
        %v2596 = vsel %vm2508, 0, %v2594
        %v2597 = vcosq.f32.pop %v2595
        %v2598 = vsinq.f32.pop %v2595
        %vm2599 = vweird.f32 %v1152
        %v2600 = vadd.s32 %v2596, 3
        %v2601 = vand.u32 %v2600, 3
        %vm2602 = vcmp.lt.s32.totalorder %v2601, 2
        %vm2603 = vcmp.eq.s32.totalorder %v2601, 0
        %v2604 = vxor.u32 %v2598, 2147483648
        %v2605 = vsel %vm2603, %v2597, %v2604
        %vm2606 = vcmp.eq.s32.totalorder %v2601, 2
        %v2607 = vxor.u32 %v2597, 2147483648
        %v2608 = vsel %vm2606, %v2607, %v2598
        %v2609 = vsel %vm2602, %v2605, %v2608
        %v2610 = vsel %vm2599, nan, %v2609
        %v2611 = vand.u32 2147483647, %v1153
        %vm2612 = vcmp.le.f32.partialorder %v2611, 0.7853982
        %vm2613 = vcmp.lt.s32.totalorder %v1153, 0
        %v2614 = vand.u32 %v1153, 2139095040
        %v2615 = vshrl.u32 %v2614, 23
        %v2616 = vsub.s32 %v2615, 127
        %v2617 = vand.u32 2147483647, %v1153
        %v2618 = vand.u32 %v2617, 8388607
        %v2619 = vor.u32 %v2618, 8388608
        %v2620 = vsub.s32 0, %v2619
        %v2621 = vadd.s32 %v2616, 1
        %vm2622 = vcmp.gt.s32.totalorder %v2621, 0
        %v2623 = vsel %vm2622, %v2621, 0
        %v2624 = vshrl.u32 %v2623, 5
        %v2625 = vand.u32 %v2623, 31
        %v2626 = vsub.s32 32, %v2625
        %v2627 = vshrl.u32 683565275, %v2626
        %v2628 = vshll.u32 683565275, %v2625
        %v2629 = vshrl.u32 2475754826, %v2626
        %v2630 = vor.u32 %v2628, %v2629
        %v2631 = vshll.u32 2475754826, %v2625
        %v2632 = vshrl.u32 2131351028, %v2626
        %v2633 = vor.u32 %v2631, %v2632
        %v2634 = vshll.u32 2131351028, %v2625
        %v2635 = vshrl.u32 2102212464, %v2626
        %v2636 = vor.u32 %v2634, %v2635
        %v2637 = vshll.u32 2102212464, %v2625
        %v2638 = vshrl.u32 920167782, %v2626
        %v2639 = vor.u32 %v2637, %v2638
        %v2640 = vshll.u32 920167782, %v2625
        %v2641 = vshrl.u32 1326507024, %v2626
        %v2642 = vor.u32 %v2640, %v2641
        %vm2643 = vcmp.lt.s32.totalorder %v2624, 1
        %vm2644 = vcmp.lt.s32.totalorder %v2624, 2
        %vm2645 = vcmp.lt.s32.totalorder %v2624, 3
        %vm2646 = vcmp.lt.s32.totalorder %v2624, 4
        %v2647 = vsel %vm2643, %v2627, %v2630
        %v2648 = vsel %vm2646, %v2636, 2102212464
        %v2649 = vsel %vm2645, %v2633, %v2648
        %v2650 = vsel %vm2644, %v2647, %v2649
        %v2651 = vsel %vm2643, %v2630, %v2633
        %v2652 = vsel %vm2646, %v2639, 920167782
        %v2653 = vsel %vm2645, %v2636, %v2652
        %v2654 = vsel %vm2644, %v2651, %v2653
        %v2655 = vsel %vm2643, %v2633, %v2636
        %v2656 = vsel %vm2646, %v2642, 1326507024
        %v2657 = vsel %vm2645, %v2639, %v2656
        %v2658 = vsel %vm2644, %v2655, %v2657
        %v2659 = vshll.u32 %v2619, 8
        %v2660 = vmul.u32.u64.compose %v2659, %v2658
        %v2661 = vextract.low.u32 %v2660
        %v2662 = vextract.high.u32 %v2660
        %v2663 = vmul.u32.u64.compose %v2659, %v2654
        %v2664 = vextract.low.u32 %v2663
        %v2665 = vextract.high.u32 %v2663
        %v2666 = vmul.u32 %v2659, %v2650
        %v2667 = vadd.s32 %v2662, %v2664
        %vm2668 = vc.u32 %v2662, %v2664
        %v2669 = vadd.s32 %v2665, 1
        %v2670 = vsel %vm2668, %v2669, %v2665
        %v2671 = vadd.s32 %v2666, %v2670
        %v2672 = vadd.s32 %v2671, 536870912
        %v2673 = vshrl.u32 %v2672, 30
        %v2674 = vshll.u32 %v2673, 30
        %v2675 = vsub.s32 %v2671, %v2674
        %vm2676 = vcmp.lt.s32.totalorder %v2675, 0
        %v2677 = vsub.s32 0, %v2675
        %v2678 = vsel %vm2676, %v2677, %v2675
        %v2679 = vclz %v2678
        %v2680 = vsub.s32 %v2679, 2
        %vm2681 = vcmp.gt.s32.totalorder 0, %v2680
        %v2682 = vsel %vm2681, 0, %v2680
        %v2683 = vsub.s32 32, %v2682
        %v2684 = vshll.u32 %v2675, %v2682
        %v2685 = vshrl.u32 %v2667, %v2683
        %v2686 = vor.u32 %v2684, %v2685
        %v2687 = vsub.s32 4294967266, %v2682
        %v2688 = vadd.s32 %v2687, 127
        %v2689 = vshll.u32 %v2688, 23
        %v2690 = vor.u32 4788187, %v2689
        %v2691 = vand.u32 2147483647, %v2690
        %v2693 = vcvt.s32.f32 %v2686
        %v2694 = vmul.f32 %v2693, %v2691
        %v2695 = vxor.u32 %v2694, 2147483648
        %v2696 = vsel %vm2613, %v2695, %v2694
        %v2697 = vsub.s32 4, %v2673
        %v2698 = vsel %vm2613, %v2697, %v2673
        %v2699 = vsel %vm2612, %v1153, %v2696
        %v2700 = vsel %vm2612, 0, %v2698
        %v2701 = vcosq.f32.pop %v2699
        %v2702 = vsinq.f32.pop %v2699
        %vm2703 = vweird.f32 %v1153
        %v2704 = vadd.s32 %v2700, 3
        %v2705 = vand.u32 %v2704, 3
        %vm2706 = vcmp.lt.s32.totalorder %v2705, 2
        %vm2707 = vcmp.eq.s32.totalorder %v2705, 0
        %v2708 = vxor.u32 %v2702, 2147483648
        %v2709 = vsel %vm2707, %v2701, %v2708
        %vm2710 = vcmp.eq.s32.totalorder %v2705, 2
        %v2711 = vxor.u32 %v2701, 2147483648
        %v2712 = vsel %vm2710, %v2711, %v2702
        %v2713 = vsel %vm2706, %v2709, %v2712
        %v2714 = vsel %vm2703, nan, %v2713
        %v2715 = vand.u32 2147483647, %v1154
        %vm2716 = vcmp.le.f32.partialorder %v2715, 0.7853982
        %vm2717 = vcmp.lt.s32.totalorder %v1154, 0
        %v2718 = vand.u32 %v1154, 2139095040
        %v2719 = vshrl.u32 %v2718, 23
        %v2720 = vsub.s32 %v2719, 127
        %v2721 = vand.u32 2147483647, %v1154
        %v2722 = vand.u32 %v2721, 8388607
        %v2723 = vor.u32 %v2722, 8388608
        %v2724 = vsub.s32 0, %v2723
        %v2725 = vadd.s32 %v2720, 1
        %vm2726 = vcmp.gt.s32.totalorder %v2725, 0
        %v2727 = vsel %vm2726, %v2725, 0
        %v2728 = vshrl.u32 %v2727, 5
        %v2729 = vand.u32 %v2727, 31
        %v2730 = vsub.s32 32, %v2729
        %v2731 = vshrl.u32 683565275, %v2730
        %v2732 = vshll.u32 683565275, %v2729
        %v2733 = vshrl.u32 2475754826, %v2730
        %v2734 = vor.u32 %v2732, %v2733
        %v2735 = vshll.u32 2475754826, %v2729
        %v2736 = vshrl.u32 2131351028, %v2730
        %v2737 = vor.u32 %v2735, %v2736
        %v2738 = vshll.u32 2131351028, %v2729
        %v2739 = vshrl.u32 2102212464, %v2730
        %v2740 = vor.u32 %v2738, %v2739
        %v2741 = vshll.u32 2102212464, %v2729
        %v2742 = vshrl.u32 920167782, %v2730
        %v2743 = vor.u32 %v2741, %v2742
        %v2744 = vshll.u32 920167782, %v2729
        %v2745 = vshrl.u32 1326507024, %v2730
        %v2746 = vor.u32 %v2744, %v2745
        %vm2747 = vcmp.lt.s32.totalorder %v2728, 1
        %vm2748 = vcmp.lt.s32.totalorder %v2728, 2
        %vm2749 = vcmp.lt.s32.totalorder %v2728, 3
        %vm2750 = vcmp.lt.s32.totalorder %v2728, 4
        %v2751 = vsel %vm2747, %v2731, %v2734
        %v2752 = vsel %vm2750, %v2740, 2102212464
        %v2753 = vsel %vm2749, %v2737, %v2752
        %v2754 = vsel %vm2748, %v2751, %v2753
        %v2755 = vsel %vm2747, %v2734, %v2737
        %v2756 = vsel %vm2750, %v2743, 920167782
        %v2757 = vsel %vm2749, %v2740, %v2756
        %v2758 = vsel %vm2748, %v2755, %v2757
        %v2759 = vsel %vm2747, %v2737, %v2740
        %v2760 = vsel %vm2750, %v2746, 1326507024
        %v2761 = vsel %vm2749, %v2743, %v2760
        %v2762 = vsel %vm2748, %v2759, %v2761
        %v2763 = vshll.u32 %v2723, 8
        %v2764 = vmul.u32.u64.compose %v2763, %v2762
        %v2765 = vextract.low.u32 %v2764
        %v2766 = vextract.high.u32 %v2764
        %v2767 = vmul.u32.u64.compose %v2763, %v2758
        %v2768 = vextract.low.u32 %v2767
        %v2769 = vextract.high.u32 %v2767
        %v2770 = vmul.u32 %v2763, %v2754
        %v2771 = vadd.s32 %v2766, %v2768
        %vm2772 = vc.u32 %v2766, %v2768
        %v2773 = vadd.s32 %v2769, 1
        %v2774 = vsel %vm2772, %v2773, %v2769
        %v2775 = vadd.s32 %v2770, %v2774
        %v2776 = vadd.s32 %v2775, 536870912
        %v2777 = vshrl.u32 %v2776, 30
        %v2778 = vshll.u32 %v2777, 30
        %v2779 = vsub.s32 %v2775, %v2778
        %vm2780 = vcmp.lt.s32.totalorder %v2779, 0
        %v2781 = vsub.s32 0, %v2779
        %v2782 = vsel %vm2780, %v2781, %v2779
        %v2783 = vclz %v2782
        %v2784 = vsub.s32 %v2783, 2
        %vm2785 = vcmp.gt.s32.totalorder 0, %v2784
        %v2786 = vsel %vm2785, 0, %v2784
        %v2787 = vsub.s32 32, %v2786
        %v2788 = vshll.u32 %v2779, %v2786
        %v2789 = vshrl.u32 %v2771, %v2787
        %v2790 = vor.u32 %v2788, %v2789
        %v2791 = vsub.s32 4294967266, %v2786
        %v2792 = vadd.s32 %v2791, 127
        %v2793 = vshll.u32 %v2792, 23
        %v2794 = vor.u32 4788187, %v2793
        %v2795 = vand.u32 2147483647, %v2794
        %v2797 = vcvt.s32.f32 %v2790
        %v2798 = vmul.f32 %v2797, %v2795
        %v2799 = vxor.u32 %v2798, 2147483648
        %v2800 = vsel %vm2717, %v2799, %v2798
        %v2801 = vsub.s32 4, %v2777
        %v2802 = vsel %vm2717, %v2801, %v2777
        %v2803 = vsel %vm2716, %v1154, %v2800
        %v2804 = vsel %vm2716, 0, %v2802
        %v2805 = vcosq.f32.pop %v2803
        %v2806 = vsinq.f32.pop %v2803
        %vm2807 = vweird.f32 %v1154
        %v2808 = vadd.s32 %v2804, 3
        %v2809 = vand.u32 %v2808, 3
        %vm2810 = vcmp.lt.s32.totalorder %v2809, 2
        %vm2811 = vcmp.eq.s32.totalorder %v2809, 0
        %v2812 = vxor.u32 %v2806, 2147483648
        %v2813 = vsel %vm2811, %v2805, %v2812
        %vm2814 = vcmp.eq.s32.totalorder %v2809, 2
        %v2815 = vxor.u32 %v2805, 2147483648
        %v2816 = vsel %vm2814, %v2815, %v2806
        %v2817 = vsel %vm2810, %v2813, %v2816
        %v2818 = vsel %vm2807, nan, %v2817
        %v2819 = vmul.f32 %v292, %v2090
        %v2820 = vmul.f32 %v294, %v2194
        %v2821 = vmul.f32 %v296, %v2298
        %v2822 = vmul.f32 %v298, %v2402
        %v2823 = vmul.f32 %v300, %v2506
        %v2824 = vmul.f32 %v302, %v2610
        %v2825 = vmul.f32 %v304, %v2714
        %v2826 = vmul.f32 %v306, %v2818
        %v2827 = vld [vmem:[%s0] sm:$0xff]
        %v2828 = vld [vmem:[%s0 + $0x8] sm:$0xff]
        %v2829 = vld [vmem:[%s1] sm:$0xff]
        %v2830 = vld [vmem:[%s1 + $0x8] sm:$0xff]
        %vm2831 = vcmask 130048
        %v2833 = vsel %vm2831, %v2829, 0
        %v2836 = vsel %vm2831, %v2830, 0
        %2838 = vmatprep.subr.mxu0 %v2820
        %2839 = vmatpush1.msra.mxu0 %v2819
        %2840 = vmatprep.subr.mxu0 %v2824
        %2841 = vmatpush1.msra.mxu0 %v2823
        %2842 = vmatprep.subr.mxu0 0.0
        %2843 = vmatpush1.msra.mxu0 0.0
        %2844 = vmatprep.subr.mxu0 0.0
        %2845 = vmatpush1.msra.mxu0 0.0
        %2846 = vmatprep.subr.mxu0 0.0
        %2847 = vmatpush1.msra.mxu0 0.0
        %2848 = vmatprep.subr.mxu0 0.0
        %2849 = vmatpush1.msra.mxu0 0.0
        %2850 = vmatprep.subr.mxu0 0.0
        %2851 = vmatpush1.msra.mxu0 0.0
        %2852 = vmatprep.subr.mxu0 0.0
        %2853 = vmatpush1.msra.mxu0 0.0
        %2854 = vmatprep.subr.mxu0 0.0
        %2855 = vmatpush1.msra.mxu0 0.0
        %2856 = vmatprep.subr.mxu0 0.0
        %2857 = vmatpush1.msra.mxu0 0.0
        %2858 = vmatprep.subr.mxu0 0.0
        %2859 = vmatpush1.msra.mxu0 0.0
        %2860 = vmatprep.subr.mxu0 0.0
        %2861 = vmatpush1.msra.mxu0 0.0
        %2862 = vmatprep.subr.mxu0 0.0
        %2863 = vmatpush1.msra.mxu0 0.0
        %2864 = vmatprep.subr.mxu0 0.0
        %2865 = vmatpush1.msra.mxu0 0.0
        %2866 = vmatprep.subr.mxu0 0.0
        %2867 = vmatpush1.msra.mxu0 0.0
        %2868 = vmatprep.subr.mxu0 0.0
        %2869 = vmatpush1.msra.mxu0 0.0
        %2870 = vmatprep.subr.mxu0 0.0
        %2871 = vmatpush1.msra.mxu0 0.0
        %2872 = vmatprep.subr.mxu0 0.0
        %2873 = vmatpush1.msra.mxu0 0.0
        %2874 = vmatprep.subr.mxu0 0.0
        %2875 = vmatpush1.msra.mxu0 0.0
        %2876 = vmatprep.subr.mxu0 0.0
        %2877 = vmatpush1.msra.mxu0 0.0
        %2878 = vmatprep.subr.mxu0 0.0
        %2879 = vmatpush1.msra.mxu0 0.0
        %2880 = vmatprep.subr.mxu0 0.0
        %2881 = vmatpush1.msra.mxu0 0.0
        %2882 = vmatprep.subr.mxu0 0.0
        %2883 = vmatpush1.msra.mxu0 0.0
        %2884 = vmatprep.subr.mxu0 0.0
        %2885 = vmatpush1.msra.mxu0 0.0
        %2886 = vmatprep.subr.mxu0 0.0
        %2887 = vmatpush1.msra.mxu0 0.0
        %2888 = vmatprep.subr.mxu0 0.0
        %2889 = vmatpush1.msra.mxu0 0.0
        %2890 = vmatprep.subr.mxu0 0.0
        %2891 = vmatpush1.msra.mxu0 0.0
        %2892 = vmatprep.subr.mxu0 0.0
        %2893 = vmatpush1.msra.mxu0 0.0
        %2894 = vmatprep.subr.mxu0 0.0
        %2895 = vmatpush1.msra.mxu0 0.0
        %2896 = vmatprep.subr.mxu0 0.0
        %2897 = vmatpush1.msra.mxu0 0.0
        %2898 = vmatprep.subr.mxu0 0.0
        %2899 = vmatpush1.msra.mxu0 0.0
        %2900 = vmatprep.subr.mxu0 0.0
        %2901 = vmatpush1.msra.mxu0 0.0
        %2902 = vmatprep.mubr.f32.mxu0 0.0
        %2903 = vmatmul.mubr.f32.gmra.mrb[0].mxu0 %v2833
        %v2904 = vpop.f32.mrb[0].mxu0
        %v2905 = vadd.f32 0.0, %v2904
        %v2906 = vpop.f32.mrb[0].mxu0
        %v2907 = vadd.f32 0.0, %v2906
        %2908 = vmatprep.mubr.f32.mxu0 0.0
        %2909 = vmatmul.mubr.f32.gmra.mrb[0].mxu0 %v2836
        %v2910 = vpop.f32.mrb[0].mxu0
        %v2911 = vadd.f32 0.0, %v2910
        %v2912 = vpop.f32.mrb[0].mxu0
        %v2913 = vadd.f32 0.0, %v2912
        %2914 = vdwg.mxu0
        %2915 = vmatprep.subr.mxu0 %v2822
        %2916 = vmatpush1.msra.mxu0 %v2821
        %2917 = vmatprep.subr.mxu0 %v2826
        %2918 = vmatpush1.msra.mxu0 %v2825
        %2919 = vmatprep.subr.mxu0 0.0
        %2920 = vmatpush1.msra.mxu0 0.0
        %2921 = vmatprep.subr.mxu0 0.0
        %2922 = vmatpush1.msra.mxu0 0.0
        %2923 = vmatprep.subr.mxu0 0.0
        %2924 = vmatpush1.msra.mxu0 0.0
        %2925 = vmatprep.subr.mxu0 0.0
        %2926 = vmatpush1.msra.mxu0 0.0
        %2927 = vmatprep.subr.mxu0 0.0
        %2928 = vmatpush1.msra.mxu0 0.0
        %2929 = vmatprep.subr.mxu0 0.0
        %2930 = vmatpush1.msra.mxu0 0.0
        %2931 = vmatprep.subr.mxu0 0.0
        %2932 = vmatpush1.msra.mxu0 0.0
        %2933 = vmatprep.subr.mxu0 0.0
        %2934 = vmatpush1.msra.mxu0 0.0
        %2935 = vmatprep.subr.mxu0 0.0
        %2936 = vmatpush1.msra.mxu0 0.0
        %2937 = vmatprep.subr.mxu0 0.0
        %2938 = vmatpush1.msra.mxu0 0.0
        %2939 = vmatprep.subr.mxu0 0.0
        %2940 = vmatpush1.msra.mxu0 0.0
        %2941 = vmatprep.subr.mxu0 0.0
        %2942 = vmatpush1.msra.mxu0 0.0
        %2943 = vmatprep.subr.mxu0 0.0
        %2944 = vmatpush1.msra.mxu0 0.0
        %2945 = vmatprep.subr.mxu0 0.0
        %2946 = vmatpush1.msra.mxu0 0.0
        %2947 = vmatprep.subr.mxu0 0.0
        %2948 = vmatpush1.msra.mxu0 0.0
        %2949 = vmatprep.subr.mxu0 0.0
        %2950 = vmatpush1.msra.mxu0 0.0
        %2951 = vmatprep.subr.mxu0 0.0
        %2952 = vmatpush1.msra.mxu0 0.0
        %2953 = vmatprep.subr.mxu0 0.0
        %2954 = vmatpush1.msra.mxu0 0.0
        %2955 = vmatprep.subr.mxu0 0.0
        %2956 = vmatpush1.msra.mxu0 0.0
        %2957 = vmatprep.subr.mxu0 0.0
        %2958 = vmatpush1.msra.mxu0 0.0
        %2959 = vmatprep.subr.mxu0 0.0
        %2960 = vmatpush1.msra.mxu0 0.0
        %2961 = vmatprep.subr.mxu0 0.0
        %2962 = vmatpush1.msra.mxu0 0.0
        %2963 = vmatprep.subr.mxu0 0.0
        %2964 = vmatpush1.msra.mxu0 0.0
        %2965 = vmatprep.subr.mxu0 0.0
        %2966 = vmatpush1.msra.mxu0 0.0
        %2967 = vmatprep.subr.mxu0 0.0
        %2968 = vmatpush1.msra.mxu0 0.0
        %2969 = vmatprep.subr.mxu0 0.0
        %2970 = vmatpush1.msra.mxu0 0.0
        %2971 = vmatprep.subr.mxu0 0.0
        %2972 = vmatpush1.msra.mxu0 0.0
        %2973 = vmatprep.subr.mxu0 0.0
        %2974 = vmatpush1.msra.mxu0 0.0
        %2975 = vmatprep.subr.mxu0 0.0
        %2976 = vmatpush1.msra.mxu0 0.0
        %2977 = vmatprep.subr.mxu0 0.0
        %2978 = vmatpush1.msra.mxu0 0.0
        %2979 = vmatprep.mubr.f32.mxu0 0.0
        %2980 = vmatmul.mubr.f32.gmra.mrb[0].mxu0 %v2833
        %v2981 = vpop.f32.mrb[0].mxu0
        %v2982 = vadd.f32 0.0, %v2981
        %v2983 = vpop.f32.mrb[0].mxu0
        %v2984 = vadd.f32 0.0, %v2983
        %2985 = vmatprep.mubr.f32.mxu0 0.0
        %2986 = vmatmul.mubr.f32.gmra.mrb[0].mxu0 %v2836
        %v2987 = vpop.f32.mrb[0].mxu0
        %v2988 = vadd.f32 0.0, %v2987
        %v2989 = vpop.f32.mrb[0].mxu0
        %v2990 = vadd.f32 0.0, %v2989
        %2991 = vdwg.mxu0
        %v2993 = vsel %vm2831, %v2827, 0
        %v2996 = vsel %vm2831, %v2828, 0
        %2998 = vmatprep.subr.mxu0 %v1980
        %2999 = vmatpush1.msra.mxu0 %v1979
        %3000 = vmatprep.subr.mxu0 %v1984
        %3001 = vmatpush1.msra.mxu0 %v1983
        %3002 = vmatprep.subr.mxu0 0.0
        %3003 = vmatpush1.msra.mxu0 0.0
        %3004 = vmatprep.subr.mxu0 0.0
        %3005 = vmatpush1.msra.mxu0 0.0
        %3006 = vmatprep.subr.mxu0 0.0
        %3007 = vmatpush1.msra.mxu0 0.0
        %3008 = vmatprep.subr.mxu0 0.0
        %3009 = vmatpush1.msra.mxu0 0.0
        %3010 = vmatprep.subr.mxu0 0.0
        %3011 = vmatpush1.msra.mxu0 0.0
        %3012 = vmatprep.subr.mxu0 0.0
        %3013 = vmatpush1.msra.mxu0 0.0
        %3014 = vmatprep.subr.mxu0 0.0
        %3015 = vmatpush1.msra.mxu0 0.0
        %3016 = vmatprep.subr.mxu0 0.0
        %3017 = vmatpush1.msra.mxu0 0.0
        %3018 = vmatprep.subr.mxu0 0.0
        %3019 = vmatpush1.msra.mxu0 0.0
        %3020 = vmatprep.subr.mxu0 0.0
        %3021 = vmatpush1.msra.mxu0 0.0
        %3022 = vmatprep.subr.mxu0 0.0
        %3023 = vmatpush1.msra.mxu0 0.0
        %3024 = vmatprep.subr.mxu0 0.0
        %3025 = vmatpush1.msra.mxu0 0.0
        %3026 = vmatprep.subr.mxu0 0.0
        %3027 = vmatpush1.msra.mxu0 0.0
        %3028 = vmatprep.subr.mxu0 0.0
        %3029 = vmatpush1.msra.mxu0 0.0
        %3030 = vmatprep.subr.mxu0 0.0
        %3031 = vmatpush1.msra.mxu0 0.0
        %3032 = vmatprep.subr.mxu0 0.0
        %3033 = vmatpush1.msra.mxu0 0.0
        %3034 = vmatprep.subr.mxu0 0.0
        %3035 = vmatpush1.msra.mxu0 0.0
        %3036 = vmatprep.subr.mxu0 0.0
        %3037 = vmatpush1.msra.mxu0 0.0
        %3038 = vmatprep.subr.mxu0 0.0
        %3039 = vmatpush1.msra.mxu0 0.0
        %3040 = vmatprep.subr.mxu0 0.0
        %3041 = vmatpush1.msra.mxu0 0.0
        %3042 = vmatprep.subr.mxu0 0.0
        %3043 = vmatpush1.msra.mxu0 0.0
        %3044 = vmatprep.subr.mxu0 0.0
        %3045 = vmatpush1.msra.mxu0 0.0
        %3046 = vmatprep.subr.mxu0 0.0
        %3047 = vmatpush1.msra.mxu0 0.0
        %3048 = vmatprep.subr.mxu0 0.0
        %3049 = vmatpush1.msra.mxu0 0.0
        %3050 = vmatprep.subr.mxu0 0.0
        %3051 = vmatpush1.msra.mxu0 0.0
        %3052 = vmatprep.subr.mxu0 0.0
        %3053 = vmatpush1.msra.mxu0 0.0
        %3054 = vmatprep.subr.mxu0 0.0
        %3055 = vmatpush1.msra.mxu0 0.0
        %3056 = vmatprep.subr.mxu0 0.0
        %3057 = vmatpush1.msra.mxu0 0.0
        %3058 = vmatprep.subr.mxu0 0.0
        %3059 = vmatpush1.msra.mxu0 0.0
        %3060 = vmatprep.subr.mxu0 0.0
        %3061 = vmatpush1.msra.mxu0 0.0
        %3062 = vmatprep.mubr.f32.mxu0 0.0
        %3063 = vmatmul.mubr.f32.gmra.mrb[0].mxu0 %v2993
        %v3064 = vpop.f32.mrb[0].mxu0
        %v3065 = vadd.f32 %v2905, %v3064
        %v3066 = vpop.f32.mrb[0].mxu0
        %v3067 = vadd.f32 %v2907, %v3066
        %3068 = vmatprep.mubr.f32.mxu0 0.0
        %3069 = vmatmul.mubr.f32.gmra.mrb[0].mxu0 %v2996
        %v3070 = vpop.f32.mrb[0].mxu0
        %v3071 = vadd.f32 %v2911, %v3070
        %v3072 = vpop.f32.mrb[0].mxu0
        %v3073 = vadd.f32 %v2913, %v3072
        %3074 = vdwg.mxu0
        %3075 = vmatprep.subr.mxu0 %v1982
        %3076 = vmatpush1.msra.mxu0 %v1981
        %3077 = vmatprep.subr.mxu0 %v1986
        %3078 = vmatpush1.msra.mxu0 %v1985
        %3079 = vmatprep.subr.mxu0 0.0
        %3080 = vmatpush1.msra.mxu0 0.0
        %3081 = vmatprep.subr.mxu0 0.0
        %3082 = vmatpush1.msra.mxu0 0.0
        %3083 = vmatprep.subr.mxu0 0.0
        %3084 = vmatpush1.msra.mxu0 0.0
        %3085 = vmatprep.subr.mxu0 0.0
        %3086 = vmatpush1.msra.mxu0 0.0
        %3087 = vmatprep.subr.mxu0 0.0
        %3088 = vmatpush1.msra.mxu0 0.0
        %3089 = vmatprep.subr.mxu0 0.0
        %3090 = vmatpush1.msra.mxu0 0.0
        %3091 = vmatprep.subr.mxu0 0.0
        %3092 = vmatpush1.msra.mxu0 0.0
        %3093 = vmatprep.subr.mxu0 0.0
        %3094 = vmatpush1.msra.mxu0 0.0
        %3095 = vmatprep.subr.mxu0 0.0
        %3096 = vmatpush1.msra.mxu0 0.0
        %3097 = vmatprep.subr.mxu0 0.0
        %3098 = vmatpush1.msra.mxu0 0.0
        %3099 = vmatprep.subr.mxu0 0.0
        %3100 = vmatpush1.msra.mxu0 0.0
        %3101 = vmatprep.subr.mxu0 0.0
        %3102 = vmatpush1.msra.mxu0 0.0
        %3103 = vmatprep.subr.mxu0 0.0
        %3104 = vmatpush1.msra.mxu0 0.0
        %3105 = vmatprep.subr.mxu0 0.0
        %3106 = vmatpush1.msra.mxu0 0.0
        %3107 = vmatprep.subr.mxu0 0.0
        %3108 = vmatpush1.msra.mxu0 0.0
        %3109 = vmatprep.subr.mxu0 0.0
        %3110 = vmatpush1.msra.mxu0 0.0
        %3111 = vmatprep.subr.mxu0 0.0
        %3112 = vmatpush1.msra.mxu0 0.0
        %3113 = vmatprep.subr.mxu0 0.0
        %3114 = vmatpush1.msra.mxu0 0.0
        %3115 = vmatprep.subr.mxu0 0.0
        %3116 = vmatpush1.msra.mxu0 0.0
        %3117 = vmatprep.subr.mxu0 0.0
        %3118 = vmatpush1.msra.mxu0 0.0
        %3119 = vmatprep.subr.mxu0 0.0
        %3120 = vmatpush1.msra.mxu0 0.0
        %3121 = vmatprep.subr.mxu0 0.0
        %3122 = vmatpush1.msra.mxu0 0.0
        %3123 = vmatprep.subr.mxu0 0.0
        %3124 = vmatpush1.msra.mxu0 0.0
        %3125 = vmatprep.subr.mxu0 0.0
        %3126 = vmatpush1.msra.mxu0 0.0
        %3127 = vmatprep.subr.mxu0 0.0
        %3128 = vmatpush1.msra.mxu0 0.0
        %3129 = vmatprep.subr.mxu0 0.0
        %3130 = vmatpush1.msra.mxu0 0.0
        %3131 = vmatprep.subr.mxu0 0.0
        %3132 = vmatpush1.msra.mxu0 0.0
        %3133 = vmatprep.subr.mxu0 0.0
        %3134 = vmatpush1.msra.mxu0 0.0
        %3135 = vmatprep.subr.mxu0 0.0
        %3136 = vmatpush1.msra.mxu0 0.0
        %3137 = vmatprep.subr.mxu0 0.0
        %3138 = vmatpush1.msra.mxu0 0.0
        %3139 = vmatprep.mubr.f32.mxu0 0.0
        %3140 = vmatmul.mubr.f32.gmra.mrb[0].mxu0 %v2993
        %v3141 = vpop.f32.mrb[0].mxu0
        %v3142 = vadd.f32 %v2982, %v3141
        %v3143 = vpop.f32.mrb[0].mxu0
        %v3144 = vadd.f32 %v2984, %v3143
        %3145 = vmatprep.mubr.f32.mxu0 0.0
        %3146 = vmatmul.mubr.f32.gmra.mrb[0].mxu0 %v2996
        %v3147 = vpop.f32.mrb[0].mxu0
        %v3148 = vadd.f32 %v2988, %v3147
        %v3149 = vpop.f32.mrb[0].mxu0
        %v3150 = vadd.f32 %v2990, %v3149
        %3151 = vdwg.mxu0
        %3152 = vst [vmem:[%s279] sm:$0xff] %v3065
        %3153 = vst [vmem:[%s279 + $0x8] sm:$0xff] %v3067
        %3154 = vst [vmem:[%s279 + $0x10] sm:$0xff] %v3142
        %3155 = vst [vmem:[%s279 + $0x18] sm:$0xff] %v3144
        %3156 = vst [vmem:[%s279 + $0x20] sm:$0xff] %v3071
        %3157 = vst [vmem:[%s279 + $0x28] sm:$0xff] %v3073
        %3158 = vst [vmem:[%s279 + $0x30] sm:$0xff] %v3148
        %3159 = vst [vmem:[%s279 + $0x38] sm:$0xff] %v3150
        %s3160 = sand.u32 %s117, 1
        %s3161 = sand.u32 %s117, 1
        %s3162 = smul.addr %s3161, 64
        %s3163 = scalar_lea.vmem [#allocation4], %s3162
        // Predicated region
        $region83: #{forward.57} parent=73 // pred_check
          %p3164 = pneg %p127
        $region84: #{forward.57} parent=73 // pred_check_branch
          %3166 = sbr.rel (%p3164) target = $region86
        $region85: #{forward.57} parent=73 // pred_region
          %s3167 = smul.u32 4, %s15
          %s3168 = smul.addr %s3167, 8
          %s3169 = scalar_lea.vmem %s4, %s3168
          // Predicated region
          $region87: #{forward.57} parent=85 // pred_check
            _
          $region88: #{forward.57} parent=85 // pred_check_branch
            %3171 = sbr.rel (0) target = $region90
          $region89: #{forward.57} parent=85 // pred_region
            // Predicated region
            $region91: #{forward.57} parent=89 // pred_check
              _
            $region92: #{forward.57} parent=89 // pred_check_branch
              %3173 = sbr.rel (0) target = $region94
            $region93: #{forward.57} parent=89 // pred_region
              loop: start=0, step=1, limit=1
              $region95: #{forward.57} parent=93 // loop_pre_header
                _
              $region96: #{forward.57} parent=93 // loop_header
                %s3175 = sphi 0, %s3179
                %p3176 = scmp.ge.s32.totalorder %s3175, 1
                %s3180 = sphi %s3163, %s3163
                %s3181 = sphi %s3169, %s3169
              $region97: #{forward.57} parent=93 // loop_header_branch
                %3178 = sbr.rel (%p3176) target = $region101
              $region98: #{forward.57} parent=93 // loop_body
                %v3182 = vld [vmem:[%s3180] sm:$0xff]
                %3183 = vst [vmem:[%s3181] sm:$0xff] %v3182
                %v3184 = vld [vmem:[%s3180 + $0x8] sm:$0xff]
                %3185 = vst [vmem:[%s3181 + $0x8] sm:$0xff] %v3184
                %v3186 = vld [vmem:[%s3180 + $0x10] sm:$0xff]
                %3187 = vst [vmem:[%s3181 + $0x10] sm:$0xff] %v3186
                %v3188 = vld [vmem:[%s3180 + $0x18] sm:$0xff]
                %3189 = vst [vmem:[%s3181 + $0x18] sm:$0xff] %v3188
                %v3190 = vld [vmem:[%s3180 + $0x20] sm:$0xff]
                %3191 = vst [vmem:[%s3181 + $0x60] sm:$0xff] %v3190
                %v3192 = vld [vmem:[%s3180 + $0x28] sm:$0xff]
                %3193 = vst [vmem:[%s3181 + $0x68] sm:$0xff] %v3192
                %v3194 = vld [vmem:[%s3180 + $0x30] sm:$0xff]
                %3195 = vst [vmem:[%s3181 + $0x70] sm:$0xff] %v3194
                %v3196 = vld [vmem:[%s3180 + $0x38] sm:$0xff]
                %3197 = vst [vmem:[%s3181 + $0x78] sm:$0xff] %v3196
              $region99: #{forward.57} parent=93 // loop_footer
                %s3179 = sadd.s32 1, %s3175
              $region100: #{forward.57} parent=93 // loop_footer_branch
                %3174 = sbr.rel target = $region96
              $region101: #{forward.57} parent=93 // loop_exit
                _
            $region94: #{forward.57} parent=89 // pred_fallthru
              _
            // Predicated region
            $region102: #{forward.57} parent=89 // pred_check
              _
            $region103: #{forward.57} parent=89 // pred_check_branch
              %3199 = sbr.rel target = $region105
            $region104: #{forward.57} parent=89 // pred_region
              _
            $region105: #{forward.57} parent=89 // pred_fallthru
              _
          $region90: #{forward.57} parent=85 // pred_fallthru
            _
          %3200 = vnop
        $region86: #{forward.57} parent=73 // pred_fallthru
          _
      $region74: #{forward.57} parent=5 // pred_fallthru
        _
      %p3201 = scmp.le.s32.totalorder 2, %s10
      // Predicated region
      $region106: #{forward.57} parent=5 // pred_check
        %p3202 = pneg %p3201
      $region107: #{forward.57} parent=5 // pred_check_branch
        %3204 = sbr.rel (%p3202) target = $region109
      $region108: #{forward.57} parent=5 // pred_region
        %s3205 = ssub.s32 %s10, 2
        // Predicated region
        $region110: #{forward.57} parent=108 // pred_check
          %p3206 = pneg %p133
        $region111: #{forward.57} parent=108 // pred_check_branch
          %3208 = sbr.rel (%p3206) target = $region113
        $region112: #{forward.57} parent=108 // pred_region
          %s3209 = sand.u32 %s118, 1
          %s3210 = sand.u32 %s118, 1
          %s3211 = smul.addr %s3210, 64
          %s3212 = scalar_lea.vmem [#allocation4], %s3211
        $region113: #{forward.57} parent=108 // pred_fallthru
          _
      $region109: #{forward.57} parent=5 // pred_fallthru
        _
    $region6: #{forward.57} parent=1 // loop_footer
      %s14 = sadd.s32 1, %s10
    $region7: #{forward.57} parent=1 // loop_footer_branch
      %9 = sbr.rel target = $region3
    $region8: #{forward.57} parent=1 // loop_exit
      _

</llo_original>
